<compile_context>
chip_gen: v7x
topology: tpu7x:2x2x1
jax: 0.10.0
libtpu: 0.0.40
codegen_flags: <defaults>
</compile_context>

<pallas_src>
from functools import partial

import jax
import jax.numpy as jnp
from jax import lax
from jax.experimental import pallas as pl
from jax.experimental.pallas import tpu as pltpu


def _double_conv_kernel(x_ref, w1_ref, sh1_ref, w2_ref, sh2_ref, o_ref,
                        xpad_ref, midpad_ref, col1_ref, col2_ref,
                        *, H, W, H1, W1, H2, W2, Cin, Cout, k, dil, pad):
    """Fused (dilated conv2d + folded-BN + ReLU) x 2 for one batch element.

    x_ref:      (1, H,  W,  Cin)      real (unpadded) NHWC input tile, bf16
    w1_ref:     (k*k*Cin, Cout)       stage-1 im2col weights (BN scale folded), bf16
    sh1_ref:    (1, Cout)             stage-1 per-channel shift (bias+BN), f32
    w2_ref:     (k*k*Cout, Cout)      stage-2 im2col weights, bf16
    sh2_ref:    (1, Cout)             stage-2 per-channel shift, f32
    o_ref:      (1, H2, W2, Cout)     real output tile, f32
    xpad_ref:   (H+2p,  W+2p,  Cin)   VMEM scratch: zero-padded stage-1 input (bf16)
    midpad_ref: (H1+2p, W1+2p, Cout)  VMEM scratch: zero-padded stage-1 output (bf16)
    col1_ref:   (H1, W1, k*k*Cin)     VMEM scratch: stage-1 im2col matrix (bf16)
    col2_ref:   (H2, W2, k*k*Cout)    VMEM scratch: stage-2 im2col matrix (bf16)
    """
    f32 = jnp.float32

    # ---------------- stage 1: zero-pad input in VMEM (halo strips only) ----------
    # The interior is fully overwritten every grid step, so only the 2*pad halo
    # strips need zeroing (NOT gated on program_id: with a "parallel" batch axis
    # each TensorCore owns its own scratch instance).
    if pad > 0:
        Hp, Wp = H + 2 * pad, W + 2 * pad
        z_row = jnp.zeros((pad, Wp, Cin), xpad_ref.dtype)
        z_col = jnp.zeros((Hp, pad, Cin), xpad_ref.dtype)
        xpad_ref[:pad, :, :] = z_row
        xpad_ref[H + pad:, :, :] = z_row
        xpad_ref[:, :pad, :] = z_col
        xpad_ref[:, W + pad:, :] = z_col
    xpad_ref[pad:pad + H, pad:pad + W, :] = x_ref[0]

    # im2col gather of the k*k dilated taps -> a single deep-K MXU matmul.
    for kh in range(k):
        for kw in range(k):
            t = kh * k + kw
            col1_ref[:, :, t * Cin:(t + 1) * Cin] = \
                xpad_ref[kh * dil:kh * dil + H1, kw * dil:kw * dil + W1, :]
    y1 = jnp.dot(col1_ref[...], w1_ref[...], preferred_element_type=f32)
    y1 = jnp.maximum(y1 + sh1_ref[...].reshape(1, 1, Cout), 0.0)          # f32 VPU math

    # ---------------- stage 2: intermediate stays on-chip (no HBM round trip) -----
    if pad > 0:
        Hq, Wq = H1 + 2 * pad, W1 + 2 * pad
        z_row = jnp.zeros((pad, Wq, Cout), midpad_ref.dtype)
        z_col = jnp.zeros((Hq, pad, Cout), midpad_ref.dtype)
        midpad_ref[:pad, :, :] = z_row
        midpad_ref[H1 + pad:, :, :] = z_row
        midpad_ref[:, :pad, :] = z_col
        midpad_ref[:, W1 + pad:, :] = z_col
    midpad_ref[pad:pad + H1, pad:pad + W1, :] = y1.astype(midpad_ref.dtype)

    for kh in range(k):
        for kw in range(k):
            t = kh * k + kw
            col2_ref[:, :, t * Cout:(t + 1) * Cout] = \
                midpad_ref[kh * dil:kh * dil + H2, kw * dil:kw * dil + W2, :]
    y2 = jnp.dot(col2_ref[...], w2_ref[...], preferred_element_type=f32)
    y2 = jnp.maximum(y2 + sh2_ref[...].reshape(1, 1, Cout), 0.0)
    o_ref[0] = y2.astype(o_ref.dtype)


def _fold_bn(gamma, beta, mean, var, conv_bias, eps):
    scale = gamma / jnp.sqrt(var + eps)
    shift = beta + scale * (conv_bias - mean)
    return scale.astype(jnp.float32), shift.astype(jnp.float32)


def _prep_stage(w_oihw, bias, gamma, beta, mean, var, k, eps):
    """Fold BN scale into the conv weights and lay them out as an im2col matrix."""
    scale, shift = _fold_bn(gamma, beta, mean, var, bias, eps)
    w = jnp.transpose(w_oihw, (2, 3, 1, 0)).astype(jnp.float32)   # (kh, kw, Cin, Cout)
    w = w * scale[None, None, None, :]                            # fold BN scale
    cin, cout = w.shape[2], w.shape[3]
    w = w.reshape(k * k * cin, cout).astype(jnp.bfloat16)         # matches col layout
    return w, shift.reshape(1, cout)                              # shift stays f32


@partial(jax.jit, static_argnames=("k", "pad", "dil", "eps", "single_buffer_weights"))
def _double_conv_impl(x_nchw, params, *, k, pad, dil, eps, single_buffer_weights):
    N, Cin, H, W = x_nchw.shape
    Cout = params["w1"].shape[0]

    H1 = H + 2 * pad - dil * (k - 1)
    W1 = W + 2 * pad - dil * (k - 1)
    H2 = H1 + 2 * pad - dil * (k - 1)
    W2 = W1 + 2 * pad - dil * (k - 1)

    # NCHW -> NHWC + bf16 cast (one fused XLA pass under jit); NO channel padding.
    x = jnp.transpose(x_nchw, (0, 2, 3, 1)).astype(jnp.bfloat16)

    w1, sh1 = _prep_stage(params["w1"], params["b1"], params["g1"], params["be1"],
                          params["m1"], params["v1"], k, eps)
    w2, sh2 = _prep_stage(params["w2"], params["b2"], params["g2"], params["be2"],
                          params["m2"], params["v2"], k, eps)

    kernel = partial(_double_conv_kernel, H=H, W=W, H1=H1, W1=W1, H2=H2, W2=W2,
                     Cin=Cin, Cout=Cout, k=k, dil=dil, pad=pad)

    def const_spec(shape):
        # Grid-invariant operand: constant index_map; request single buffering
        # (saves a redundant VMEM copy of each weight block).
        index_map = lambda n: (0,) * len(shape)
        if single_buffer_weights:
            return pl.BlockSpec(shape, index_map, pipeline_mode=pl.Buffered(1))
        return pl.BlockSpec(shape, index_map)

    out = pl.pallas_call(
        kernel,
        out_shape=jax.ShapeDtypeStruct((N, H2, W2, Cout), jnp.float32),
        grid=(N,),
        in_specs=[
            pl.BlockSpec((1, H, W, Cin), lambda n: (n, 0, 0, 0)),
            const_spec((k * k * Cin, Cout)),
            const_spec((1, Cout)),
            const_spec((k * k * Cout, Cout)),
            const_spec((1, Cout)),
        ],
        out_specs=pl.BlockSpec((1, H2, W2, Cout), lambda n: (n, 0, 0, 0)),
        scratch_shapes=[
            pltpu.VMEM((H + 2 * pad, W + 2 * pad, Cin), jnp.bfloat16),
            pltpu.VMEM((H1 + 2 * pad, W1 + 2 * pad, Cout), jnp.bfloat16),
            pltpu.VMEM((H1, W1, k * k * Cin), jnp.bfloat16),
            pltpu.VMEM((H2, W2, k * k * Cout), jnp.bfloat16),
        ],
        compiler_params=pltpu.CompilerParams(
            dimension_semantics=("parallel",)),   # batch axis split across TCs (v7x)
    )(x, w1, sh1, w2, sh2)

    # NHWC -> NCHW to match the PyTorch module interface.
    return jnp.transpose(out, (0, 3, 1, 2)).astype(x_nchw.dtype)


def double_conv_block(x_nchw, params, *, k, pad, dil, eps=1e-5):
    """Forward pass of DoubleConvBlock. Input/output are NCHW like PyTorch."""
    try:
        out = _double_conv_impl(x_nchw, params, k=k, pad=pad, dil=dil, eps=eps,
                                single_buffer_weights=True)
        return jax.block_until_ready(out)
    except Exception:
        # Toolchains without pipeline_mode=pl.Buffered support in pallas_call:
        # fall back to default double-buffered weight operands.
        out = _double_conv_impl(x_nchw, params, k=k, pad=pad, dil=dil, eps=eps,
                                single_buffer_weights=False)
        return jax.block_until_ready(out)


def _reference(x_nchw, params, *, k, pad, dil):
    """Plain-JAX f32 reference (lax conv) for the correctness check."""
    def stage(x, w, b, g, be, m, v, eps=1e-5):
        y = lax.conv_general_dilated(
            x, w, window_strides=(1, 1), padding=[(pad, pad), (pad, pad)],
            rhs_dilation=(dil, dil),
            dimension_numbers=("NCHW", "OIHW", "NCHW"))
        y = y + b[None, :, None, None]
        y = (y - m[None, :, None, None]) / jnp.sqrt(v[None, :, None, None] + eps)
        y = y * g[None, :, None, None] + be[None, :, None, None]
        return jnp.maximum(y, 0.0)

    x = stage(x_nchw, params["w1"], params["b1"], params["g1"], params["be1"],
              params["m1"], params["v1"])
    x = stage(x, params["w2"], params["b2"], params["g2"], params["be2"],
              params["m2"], params["v2"])
    return x


if __name__ == "__main__":
    # Module hyperparameters (small, dilation exercised).
    in_ch, out_ch, k_size, pad, dil = 4, 8, 3, 2, 2
    N, H, W = 2, 16, 16

    key = jax.random.PRNGKey(0)
    keys = jax.random.split(key, 9)

    params = {
        # conv1: (out_ch, in_ch, k, k) + bias
        "w1": 0.1 * jax.random.normal(keys[0], (out_ch, in_ch, k_size, k_size), jnp.float32),
        "b1": 0.05 * jax.random.normal(keys[1], (out_ch,), jnp.float32),
        # bn1 (eval-mode running stats)
        "g1": 1.0 + 0.1 * jax.random.normal(keys[2], (out_ch,), jnp.float32),
        "be1": 0.1 * jax.random.normal(keys[3], (out_ch,), jnp.float32),
        "m1": 0.05 * jax.random.normal(keys[4], (out_ch,), jnp.float32),
        "v1": 1.0 + 0.1 * jax.random.uniform(keys[5], (out_ch,), jnp.float32),
        # conv2: (out_ch, out_ch, k, k) + bias
        "w2": 0.1 * jax.random.normal(keys[6], (out_ch, out_ch, k_size, k_size), jnp.float32),
        "b2": 0.05 * jax.random.normal(keys[7], (out_ch,), jnp.float32),
        # bn2
        "g2": jnp.ones((out_ch,), jnp.float32),
        "be2": jnp.zeros((out_ch,), jnp.float32),
        "m2": jnp.zeros((out_ch,), jnp.float32),
        "v2": jnp.ones((out_ch,), jnp.float32),
    }

    x = jax.random.normal(keys[8], (N, in_ch, H, W), jnp.float32)

    out = double_conv_block(x, params, k=k_size, pad=pad, dil=dil)
    out = jax.block_until_ready(out)

    ref = jax.block_until_ready(_reference(x, params, k=k_size, pad=pad, dil=dil))
    assert out.shape == ref.shape, (out.shape, ref.shape)
    # bf16 operands with f32 accumulation -> loosened tolerance vs the f32 reference.
    err = float(jnp.max(jnp.abs(out - ref)))
    assert err < 5e-2, err

    print("KERNEL_OK")
</pallas_src>

<mosaic_0001>
module attributes {stable_mosaic.version = 11 : i64} {
  func.func @_double_conv_kernel(%arg0: i32, %arg1: memref<1x16x16x4xbf16, #tpu.memory_space<vmem>>, %arg2: memref<36x8xbf16, #tpu.memory_space<vmem>>, %arg3: memref<1x8xf32, #tpu.memory_space<vmem>>, %arg4: memref<72x8xbf16, #tpu.memory_space<vmem>>, %arg5: memref<1x8xf32, #tpu.memory_space<vmem>>, %arg6: memref<1x16x16x8xf32, #tpu.memory_space<vmem>>, %arg7: memref<20x20x4xbf16, #tpu.memory_space<vmem>>, %arg8: memref<20x20x8xbf16, #tpu.memory_space<vmem>>, %arg9: memref<16x16x36xbf16, #tpu.memory_space<vmem>>, %arg10: memref<16x16x72xbf16, #tpu.memory_space<vmem>>) attributes {dimension_semantics = [#tpu.dimension_semantics<parallel>], iteration_bounds = array<i64: 2>, scalar_prefetch = 0 : i64, scratch_operands = 4 : i64, tpu.core_type = #tpu.core_type<tc>, window_params = [{transform_indices = @transform_0, window_bounds = array<i64: 1, 16, 16, 4>}, {pipeline_mode = #tpu.pipeline_mode<synchronous>, transform_indices = @transform_1, window_bounds = array<i64: 36, 8>}, {pipeline_mode = #tpu.pipeline_mode<synchronous>, transform_indices = @transform_2, window_bounds = array<i64: 1, 8>}, {pipeline_mode = #tpu.pipeline_mode<synchronous>, transform_indices = @transform_3, window_bounds = array<i64: 72, 8>}, {pipeline_mode = #tpu.pipeline_mode<synchronous>, transform_indices = @transform_4, window_bounds = array<i64: 1, 8>}, {transform_indices = @transform_5, window_bounds = array<i64: 1, 16, 16, 8>}]} {
    %cst = arith.constant 0.000000e+00 : bf16
    %0 = vector.broadcast %cst : bf16 to vector<2x20x4xbf16>
    %cst_0 = arith.constant 0.000000e+00 : bf16
    %1 = vector.broadcast %cst_0 : bf16 to vector<20x2x4xbf16>
    %c0 = arith.constant 0 : index
    %c0_1 = arith.constant 0 : index
    %c0_2 = arith.constant 0 : index
    %2 = vector.load %arg7[%c0, %c0_1, %c0_2] : memref<20x20x4xbf16, #tpu.memory_space<vmem>>, vector<2x20x4xbf16>
    tpu.vector_store %arg7[%c0, %c0_1, %c0_2], %0 {strides = array<i32>} : memref<20x20x4xbf16, #tpu.memory_space<vmem>>, vector<2x20x4xbf16>,
    %c18 = arith.constant 18 : index
    %c0_3 = arith.constant 0 : index
    %c0_4 = arith.constant 0 : index
    %3 = vector.load %arg7[%c18, %c0_3, %c0_4] : memref<20x20x4xbf16, #tpu.memory_space<vmem>>, vector<2x20x4xbf16>
    tpu.vector_store %arg7[%c18, %c0_3, %c0_4], %0 {strides = array<i32>} : memref<20x20x4xbf16, #tpu.memory_space<vmem>>, vector<2x20x4xbf16>,
    %c0_5 = arith.constant 0 : index
    %c0_6 = arith.constant 0 : index
    %c0_7 = arith.constant 0 : index
    %4 = vector.load %arg7[%c0_5, %c0_6, %c0_7] : memref<20x20x4xbf16, #tpu.memory_space<vmem>>, vector<20x2x4xbf16>
    tpu.vector_store %arg7[%c0_5, %c0_6, %c0_7], %1 {strides = array<i32>} : memref<20x20x4xbf16, #tpu.memory_space<vmem>>, vector<20x2x4xbf16>,
    %c0_8 = arith.constant 0 : index
    %c18_9 = arith.constant 18 : index
    %c0_10 = arith.constant 0 : index
    %5 = vector.load %arg7[%c0_8, %c18_9, %c0_10] : memref<20x20x4xbf16, #tpu.memory_space<vmem>>, vector<20x2x4xbf16>
    tpu.vector_store %arg7[%c0_8, %c18_9, %c0_10], %1 {strides = array<i32>} : memref<20x20x4xbf16, #tpu.memory_space<vmem>>, vector<20x2x4xbf16>,
    %c0_11 = arith.constant 0 : index
    %c0_12 = arith.constant 0 : index
    %c0_13 = arith.constant 0 : index
    %c0_14 = arith.constant 0 : index
    %6 = vector.load %arg1[%c0_11, %c0_12, %c0_13, %c0_14] : memref<1x16x16x4xbf16, #tpu.memory_space<vmem>>, vector<1x16x16x4xbf16>
    %7 = vector.shape_cast %6 : vector<1x16x16x4xbf16> to vector<16x16x4xbf16>
    %c2 = arith.constant 2 : index
    %c2_15 = arith.constant 2 : index
    %c0_16 = arith.constant 0 : index
    %8 = vector.load %arg7[%c2, %c2_15, %c0_16] : memref<20x20x4xbf16, #tpu.memory_space<vmem>>, vector<16x16x4xbf16>
    tpu.vector_store %arg7[%c2, %c2_15, %c0_16], %7 {strides = array<i32>} : memref<20x20x4xbf16, #tpu.memory_space<vmem>>, vector<16x16x4xbf16>,
    %c0_17 = arith.constant 0 : index
    %c0_18 = arith.constant 0 : index
    %c0_19 = arith.constant 0 : index
    %9 = vector.load %arg7[%c0_17, %c0_18, %c0_19] : memref<20x20x4xbf16, #tpu.memory_space<vmem>>, vector<16x16x4xbf16>
    %c0_20 = arith.constant 0 : index
    %c0_21 = arith.constant 0 : index
    %c0_22 = arith.constant 0 : index
    %10 = vector.load %arg9[%c0_20, %c0_21, %c0_22] : memref<16x16x36xbf16, #tpu.memory_space<vmem>>, vector<16x16x4xbf16>
    tpu.vector_store %arg9[%c0_20, %c0_21, %c0_22], %9 {strides = array<i32>} : memref<16x16x36xbf16, #tpu.memory_space<vmem>>, vector<16x16x4xbf16>,
    %c0_23 = arith.constant 0 : index
    %c2_24 = arith.constant 2 : index
    %c0_25 = arith.constant 0 : index
    %11 = vector.load %arg7[%c0_23, %c2_24, %c0_25] : memref<20x20x4xbf16, #tpu.memory_space<vmem>>, vector<16x16x4xbf16>
    %c0_26 = arith.constant 0 : index
    %c0_27 = arith.constant 0 : index
    %c4 = arith.constant 4 : index
    %12 = vector.load %arg9[%c0_26, %c0_27, %c4] : memref<16x16x36xbf16, #tpu.memory_space<vmem>>, vector<16x16x4xbf16>
    tpu.vector_store %arg9[%c0_26, %c0_27, %c4], %11 {strides = array<i32>} : memref<16x16x36xbf16, #tpu.memory_space<vmem>>, vector<16x16x4xbf16>,
    %c0_28 = arith.constant 0 : index
    %c4_29 = arith.constant 4 : index
    %c0_30 = arith.constant 0 : index
    %13 = vector.load %arg7[%c0_28, %c4_29, %c0_30] : memref<20x20x4xbf16, #tpu.memory_space<vmem>>, vector<16x16x4xbf16>
    %c0_31 = arith.constant 0 : index
    %c0_32 = arith.constant 0 : index
    %c8 = arith.constant 8 : index
    %14 = vector.load %arg9[%c0_31, %c0_32, %c8] : memref<16x16x36xbf16, #tpu.memory_space<vmem>>, vector<16x16x4xbf16>
    tpu.vector_store %arg9[%c0_31, %c0_32, %c8], %13 {strides = array<i32>} : memref<16x16x36xbf16, #tpu.memory_space<vmem>>, vector<16x16x4xbf16>,
    %c2_33 = arith.constant 2 : index
    %c0_34 = arith.constant 0 : index
    %c0_35 = arith.constant 0 : index
    %15 = vector.load %arg7[%c2_33, %c0_34, %c0_35] : memref<20x20x4xbf16, #tpu.memory_space<vmem>>, vector<16x16x4xbf16>
    %c0_36 = arith.constant 0 : index
    %c0_37 = arith.constant 0 : index
    %c12 = arith.constant 12 : index
    %16 = vector.load %arg9[%c0_36, %c0_37, %c12] : memref<16x16x36xbf16, #tpu.memory_space<vmem>>, vector<16x16x4xbf16>
    tpu.vector_store %arg9[%c0_36, %c0_37, %c12], %15 {strides = array<i32>} : memref<16x16x36xbf16, #tpu.memory_space<vmem>>, vector<16x16x4xbf16>,
    %c2_38 = arith.constant 2 : index
    %c2_39 = arith.constant 2 : index
    %c0_40 = arith.constant 0 : index
    %17 = vector.load %arg7[%c2_38, %c2_39, %c0_40] : memref<20x20x4xbf16, #tpu.memory_space<vmem>>, vector<16x16x4xbf16>
    %c0_41 = arith.constant 0 : index
    %c0_42 = arith.constant 0 : index
    %c16 = arith.constant 16 : index
    %18 = vector.load %arg9[%c0_41, %c0_42, %c16] : memref<16x16x36xbf16, #tpu.memory_space<vmem>>, vector<16x16x4xbf16>
    tpu.vector_store %arg9[%c0_41, %c0_42, %c16], %17 {strides = array<i32>} : memref<16x16x36xbf16, #tpu.memory_space<vmem>>, vector<16x16x4xbf16>,
    %c2_43 = arith.constant 2 : index
    %c4_44 = arith.constant 4 : index
    %c0_45 = arith.constant 0 : index
    %19 = vector.load %arg7[%c2_43, %c4_44, %c0_45] : memref<20x20x4xbf16, #tpu.memory_space<vmem>>, vector<16x16x4xbf16>
    %c0_46 = arith.constant 0 : index
    %c0_47 = arith.constant 0 : index
    %c20 = arith.constant 20 : index
    %20 = vector.load %arg9[%c0_46, %c0_47, %c20] : memref<16x16x36xbf16, #tpu.memory_space<vmem>>, vector<16x16x4xbf16>
    tpu.vector_store %arg9[%c0_46, %c0_47, %c20], %19 {strides = array<i32>} : memref<16x16x36xbf16, #tpu.memory_space<vmem>>, vector<16x16x4xbf16>,
    %c4_48 = arith.constant 4 : index
    %c0_49 = arith.constant 0 : index
    %c0_50 = arith.constant 0 : index
    %21 = vector.load %arg7[%c4_48, %c0_49, %c0_50] : memref<20x20x4xbf16, #tpu.memory_space<vmem>>, vector<16x16x4xbf16>
    %c0_51 = arith.constant 0 : index
    %c0_52 = arith.constant 0 : index
    %c24 = arith.constant 24 : index
    %22 = vector.load %arg9[%c0_51, %c0_52, %c24] : memref<16x16x36xbf16, #tpu.memory_space<vmem>>, vector<16x16x4xbf16>
    tpu.vector_store %arg9[%c0_51, %c0_52, %c24], %21 {strides = array<i32>} : memref<16x16x36xbf16, #tpu.memory_space<vmem>>, vector<16x16x4xbf16>,
    %c4_53 = arith.constant 4 : index
    %c2_54 = arith.constant 2 : index
    %c0_55 = arith.constant 0 : index
    %23 = vector.load %arg7[%c4_53, %c2_54, %c0_55] : memref<20x20x4xbf16, #tpu.memory_space<vmem>>, vector<16x16x4xbf16>
    %c0_56 = arith.constant 0 : index
    %c0_57 = arith.constant 0 : index
    %c28 = arith.constant 28 : index
    %24 = vector.load %arg9[%c0_56, %c0_57, %c28] : memref<16x16x36xbf16, #tpu.memory_space<vmem>>, vector<16x16x4xbf16>
    tpu.vector_store %arg9[%c0_56, %c0_57, %c28], %23 {strides = array<i32>} : memref<16x16x36xbf16, #tpu.memory_space<vmem>>, vector<16x16x4xbf16>,
    %c4_58 = arith.constant 4 : index
    %c4_59 = arith.constant 4 : index
    %c0_60 = arith.constant 0 : index
    %25 = vector.load %arg7[%c4_58, %c4_59, %c0_60] : memref<20x20x4xbf16, #tpu.memory_space<vmem>>, vector<16x16x4xbf16>
    %c0_61 = arith.constant 0 : index
    %c0_62 = arith.constant 0 : index
    %c32 = arith.constant 32 : index
    %26 = vector.load %arg9[%c0_61, %c0_62, %c32] : memref<16x16x36xbf16, #tpu.memory_space<vmem>>, vector<16x16x4xbf16>
    tpu.vector_store %arg9[%c0_61, %c0_62, %c32], %25 {strides = array<i32>} : memref<16x16x36xbf16, #tpu.memory_space<vmem>>, vector<16x16x4xbf16>,
    %c0_63 = arith.constant 0 : index
    %c0_64 = arith.constant 0 : index
    %c0_65 = arith.constant 0 : index
    %27 = vector.load %arg9[%c0_63, %c0_64, %c0_65] : memref<16x16x36xbf16, #tpu.memory_space<vmem>>, vector<16x16x36xbf16>
    %c0_66 = arith.constant 0 : index
    %c0_67 = arith.constant 0 : index
    %28 = vector.load %arg2[%c0_66, %c0_67] : memref<36x8xbf16, #tpu.memory_space<vmem>>, vector<36x8xbf16>
    %cst_68 = arith.constant dense<0.000000e+00> : vector<16x16x8xf32>
    %29 = tpu.matmul %27, %28, %cst_68 {dimension_numbers = #tpu.dot_dimension_numbers<[2], [0], [0, 1], [1], [0, 0, 0, 1, 1, 1], [], []>} : vector<16x16x36xbf16>, vector<36x8xbf16>, vector<16x16x8xf32> -> vector<16x16x8xf32>
    %c0_69 = arith.constant 0 : index
    %c0_70 = arith.constant 0 : index
    %30 = vector.load %arg3[%c0_69, %c0_70] : memref<1x8xf32, #tpu.memory_space<vmem>>, vector<1x8xf32>
    %31 = vector.shape_cast %30 : vector<1x8xf32> to vector<1x1x8xf32>
    %32 = vector.broadcast %31 : vector<1x1x8xf32> to vector<16x16x8xf32>
    %33 = arith.addf %29, %32 : vector<16x16x8xf32>
    %cst_71 = arith.constant 0.000000e+00 : f32
    %34 = vector.broadcast %cst_71 : f32 to vector<16x16x8xf32>
    %35 = arith.maximumf %33, %34 : vector<16x16x8xf32>
    %cst_72 = arith.constant 0.000000e+00 : bf16
    %36 = vector.broadcast %cst_72 : bf16 to vector<2x20x8xbf16>
    %cst_73 = arith.constant 0.000000e+00 : bf16
    %37 = vector.broadcast %cst_73 : bf16 to vector<20x2x8xbf16>
    %c0_74 = arith.constant 0 : index
    %c0_75 = arith.constant 0 : index
    %c0_76 = arith.constant 0 : index
    %38 = vector.load %arg8[%c0_74, %c0_75, %c0_76] : memref<20x20x8xbf16, #tpu.memory_space<vmem>>, vector<2x20x8xbf16>
    tpu.vector_store %arg8[%c0_74, %c0_75, %c0_76], %36 {strides = array<i32>} : memref<20x20x8xbf16, #tpu.memory_space<vmem>>, vector<2x20x8xbf16>,
    %c18_77 = arith.constant 18 : index
    %c0_78 = arith.constant 0 : index
    %c0_79 = arith.constant 0 : index
    %39 = vector.load %arg8[%c18_77, %c0_78, %c0_79] : memref<20x20x8xbf16, #tpu.memory_space<vmem>>, vector<2x20x8xbf16>
    tpu.vector_store %arg8[%c18_77, %c0_78, %c0_79], %36 {strides = array<i32>} : memref<20x20x8xbf16, #tpu.memory_space<vmem>>, vector<2x20x8xbf16>,
    %c0_80 = arith.constant 0 : index
    %c0_81 = arith.constant 0 : index
    %c0_82 = arith.constant 0 : index
    %40 = vector.load %arg8[%c0_80, %c0_81, %c0_82] : memref<20x20x8xbf16, #tpu.memory_space<vmem>>, vector<20x2x8xbf16>
    tpu.vector_store %arg8[%c0_80, %c0_81, %c0_82], %37 {strides = array<i32>} : memref<20x20x8xbf16, #tpu.memory_space<vmem>>, vector<20x2x8xbf16>,
    %c0_83 = arith.constant 0 : index
    %c18_84 = arith.constant 18 : index
    %c0_85 = arith.constant 0 : index
    %41 = vector.load %arg8[%c0_83, %c18_84, %c0_85] : memref<20x20x8xbf16, #tpu.memory_space<vmem>>, vector<20x2x8xbf16>
    tpu.vector_store %arg8[%c0_83, %c18_84, %c0_85], %37 {strides = array<i32>} : memref<20x20x8xbf16, #tpu.memory_space<vmem>>, vector<20x2x8xbf16>,
    %42 = arith.truncf %35 : vector<16x16x8xf32> to vector<16x16x8xbf16>
    %c2_86 = arith.constant 2 : index
    %c2_87 = arith.constant 2 : index
    %c0_88 = arith.constant 0 : index
    %43 = vector.load %arg8[%c2_86, %c2_87, %c0_88] : memref<20x20x8xbf16, #tpu.memory_space<vmem>>, vector<16x16x8xbf16>
    tpu.vector_store %arg8[%c2_86, %c2_87, %c0_88], %42 {strides = array<i32>} : memref<20x20x8xbf16, #tpu.memory_space<vmem>>, vector<16x16x8xbf16>,
    %c0_89 = arith.constant 0 : index
    %c0_90 = arith.constant 0 : index
    %c0_91 = arith.constant 0 : index
    %44 = vector.load %arg8[%c0_89, %c0_90, %c0_91] : memref<20x20x8xbf16, #tpu.memory_space<vmem>>, vector<16x16x8xbf16>
    %c0_92 = arith.constant 0 : index
    %c0_93 = arith.constant 0 : index
    %c0_94 = arith.constant 0 : index
    %45 = vector.load %arg10[%c0_92, %c0_93, %c0_94] : memref<16x16x72xbf16, #tpu.memory_space<vmem>>, vector<16x16x8xbf16>
    tpu.vector_store %arg10[%c0_92, %c0_93, %c0_94], %44 {strides = array<i32>} : memref<16x16x72xbf16, #tpu.memory_space<vmem>>, vector<16x16x8xbf16>,
    %c0_95 = arith.constant 0 : index
    %c2_96 = arith.constant 2 : index
    %c0_97 = arith.constant 0 : index
    %46 = vector.load %arg8[%c0_95, %c2_96, %c0_97] : memref<20x20x8xbf16, #tpu.memory_space<vmem>>, vector<16x16x8xbf16>
    %c0_98 = arith.constant 0 : index
    %c0_99 = arith.constant 0 : index
    %c8_100 = arith.constant 8 : index
    %47 = vector.load %arg10[%c0_98, %c0_99, %c8_100] : memref<16x16x72xbf16, #tpu.memory_space<vmem>>, vector<16x16x8xbf16>
    tpu.vector_store %arg10[%c0_98, %c0_99, %c8_100], %46 {strides = array<i32>} : memref<16x16x72xbf16, #tpu.memory_space<vmem>>, vector<16x16x8xbf16>,
    %c0_101 = arith.constant 0 : index
    %c4_102 = arith.constant 4 : index
    %c0_103 = arith.constant 0 : index
    %48 = vector.load %arg8[%c0_101, %c4_102, %c0_103] : memref<20x20x8xbf16, #tpu.memory_space<vmem>>, vector<16x16x8xbf16>
    %c0_104 = arith.constant 0 : index
    %c0_105 = arith.constant 0 : index
    %c16_106 = arith.constant 16 : index
    %49 = vector.load %arg10[%c0_104, %c0_105, %c16_106] : memref<16x16x72xbf16, #tpu.memory_space<vmem>>, vector<16x16x8xbf16>
    tpu.vector_store %arg10[%c0_104, %c0_105, %c16_106], %48 {strides = array<i32>} : memref<16x16x72xbf16, #tpu.memory_space<vmem>>, vector<16x16x8xbf16>,
    %c2_107 = arith.constant 2 : index
    %c0_108 = arith.constant 0 : index
    %c0_109 = arith.constant 0 : index
    %50 = vector.load %arg8[%c2_107, %c0_108, %c0_109] : memref<20x20x8xbf16, #tpu.memory_space<vmem>>, vector<16x16x8xbf16>
    %c0_110 = arith.constant 0 : index
    %c0_111 = arith.constant 0 : index
    %c24_112 = arith.constant 24 : index
    %51 = vector.load %arg10[%c0_110, %c0_111, %c24_112] : memref<16x16x72xbf16, #tpu.memory_space<vmem>>, vector<16x16x8xbf16>
    tpu.vector_store %arg10[%c0_110, %c0_111, %c24_112], %50 {strides = array<i32>} : memref<16x16x72xbf16, #tpu.memory_space<vmem>>, vector<16x16x8xbf16>,
    %c2_113 = arith.constant 2 : index
    %c2_114 = arith.constant 2 : index
    %c0_115 = arith.constant 0 : index
    %52 = vector.load %arg8[%c2_113, %c2_114, %c0_115] : memref<20x20x8xbf16, #tpu.memory_space<vmem>>, vector<16x16x8xbf16>
    %c0_116 = arith.constant 0 : index
    %c0_117 = arith.constant 0 : index
    %c32_118 = arith.constant 32 : index
    %53 = vector.load %arg10[%c0_116, %c0_117, %c32_118] : memref<16x16x72xbf16, #tpu.memory_space<vmem>>, vector<16x16x8xbf16>
    tpu.vector_store %arg10[%c0_116, %c0_117, %c32_118], %52 {strides = array<i32>} : memref<16x16x72xbf16, #tpu.memory_space<vmem>>, vector<16x16x8xbf16>,
    %c2_119 = arith.constant 2 : index
    %c4_120 = arith.constant 4 : index
    %c0_121 = arith.constant 0 : index
    %54 = vector.load %arg8[%c2_119, %c4_120, %c0_121] : memref<20x20x8xbf16, #tpu.memory_space<vmem>>, vector<16x16x8xbf16>
    %c0_122 = arith.constant 0 : index
    %c0_123 = arith.constant 0 : index
    %c40 = arith.constant 40 : index
    %55 = vector.load %arg10[%c0_122, %c0_123, %c40] : memref<16x16x72xbf16, #tpu.memory_space<vmem>>, vector<16x16x8xbf16>
    tpu.vector_store %arg10[%c0_122, %c0_123, %c40], %54 {strides = array<i32>} : memref<16x16x72xbf16, #tpu.memory_space<vmem>>, vector<16x16x8xbf16>,
    %c4_124 = arith.constant 4 : index
    %c0_125 = arith.constant 0 : index
    %c0_126 = arith.constant 0 : index
    %56 = vector.load %arg8[%c4_124, %c0_125, %c0_126] : memref<20x20x8xbf16, #tpu.memory_space<vmem>>, vector<16x16x8xbf16>
    %c0_127 = arith.constant 0 : index
    %c0_128 = arith.constant 0 : index
    %c48 = arith.constant 48 : index
    %57 = vector.load %arg10[%c0_127, %c0_128, %c48] : memref<16x16x72xbf16, #tpu.memory_space<vmem>>, vector<16x16x8xbf16>
    tpu.vector_store %arg10[%c0_127, %c0_128, %c48], %56 {strides = array<i32>} : memref<16x16x72xbf16, #tpu.memory_space<vmem>>, vector<16x16x8xbf16>,
    %c4_129 = arith.constant 4 : index
    %c2_130 = arith.constant 2 : index
    %c0_131 = arith.constant 0 : index
    %58 = vector.load %arg8[%c4_129, %c2_130, %c0_131] : memref<20x20x8xbf16, #tpu.memory_space<vmem>>, vector<16x16x8xbf16>
    %c0_132 = arith.constant 0 : index
    %c0_133 = arith.constant 0 : index
    %c56 = arith.constant 56 : index
    %59 = vector.load %arg10[%c0_132, %c0_133, %c56] : memref<16x16x72xbf16, #tpu.memory_space<vmem>>, vector<16x16x8xbf16>
    tpu.vector_store %arg10[%c0_132, %c0_133, %c56], %58 {strides = array<i32>} : memref<16x16x72xbf16, #tpu.memory_space<vmem>>, vector<16x16x8xbf16>,
    %c4_134 = arith.constant 4 : index
    %c4_135 = arith.constant 4 : index
    %c0_136 = arith.constant 0 : index
    %60 = vector.load %arg8[%c4_134, %c4_135, %c0_136] : memref<20x20x8xbf16, #tpu.memory_space<vmem>>, vector<16x16x8xbf16>
    %c0_137 = arith.constant 0 : index
    %c0_138 = arith.constant 0 : index
    %c64 = arith.constant 64 : index
    %61 = vector.load %arg10[%c0_137, %c0_138, %c64] : memref<16x16x72xbf16, #tpu.memory_space<vmem>>, vector<16x16x8xbf16>
    tpu.vector_store %arg10[%c0_137, %c0_138, %c64], %60 {strides = array<i32>} : memref<16x16x72xbf16, #tpu.memory_space<vmem>>, vector<16x16x8xbf16>,
    %c0_139 = arith.constant 0 : index
    %c0_140 = arith.constant 0 : index
    %c0_141 = arith.constant 0 : index
    %62 = vector.load %arg10[%c0_139, %c0_140, %c0_141] : memref<16x16x72xbf16, #tpu.memory_space<vmem>>, vector<16x16x72xbf16>
    %c0_142 = arith.constant 0 : index
    %c0_143 = arith.constant 0 : index
    %63 = vector.load %arg4[%c0_142, %c0_143] : memref<72x8xbf16, #tpu.memory_space<vmem>>, vector<72x8xbf16>
    %cst_144 = arith.constant dense<0.000000e+00> : vector<16x16x8xf32>
    %64 = tpu.matmul %62, %63, %cst_144 {dimension_numbers = #tpu.dot_dimension_numbers<[2], [0], [0, 1], [1], [0, 0, 0, 1, 1, 1], [], []>} : vector<16x16x72xbf16>, vector<72x8xbf16>, vector<16x16x8xf32> -> vector<16x16x8xf32>
    %c0_145 = arith.constant 0 : index
    %c0_146 = arith.constant 0 : index
    %65 = vector.load %arg5[%c0_145, %c0_146] : memref<1x8xf32, #tpu.memory_space<vmem>>, vector<1x8xf32>
    %66 = vector.shape_cast %65 : vector<1x8xf32> to vector<1x1x8xf32>
    %67 = vector.broadcast %66 : vector<1x1x8xf32> to vector<16x16x8xf32>
    %68 = arith.addf %64, %67 : vector<16x16x8xf32>
    %cst_147 = arith.constant 0.000000e+00 : f32
    %69 = vector.broadcast %cst_147 : f32 to vector<16x16x8xf32>
    %70 = arith.maximumf %68, %69 : vector<16x16x8xf32>
    %c0_148 = arith.constant 0 : index
    %c0_149 = arith.constant 0 : index
    %c0_150 = arith.constant 0 : index
    %c0_151 = arith.constant 0 : index
    %71 = vector.load %arg6[%c0_148, %c0_149, %c0_150, %c0_151] : memref<1x16x16x8xf32, #tpu.memory_space<vmem>>, vector<1x16x16x8xf32>
    %72 = vector.shape_cast %71 : vector<1x16x16x8xf32> to vector<16x16x8xf32>
    %73 = vector.shape_cast %70 : vector<16x16x8xf32> to vector<1x16x16x8xf32>
    tpu.vector_store %arg6[%c0_148, %c0_149, %c0_150, %c0_151], %73 {strides = array<i32>} : memref<1x16x16x8xf32, #tpu.memory_space<vmem>>, vector<1x16x16x8xf32>,
    return
  }
  func.func @transform_0(%arg0: i32) -> (i32, i32, i32, i32) {
    %c0_i32 = arith.constant 0 : i32
    %c0_i32_0 = arith.constant 0 : i32
    %c0_i32_1 = arith.constant 0 : i32
    %c0_i32_2 = arith.constant 0 : i32
    return %arg0, %c0_i32, %c0_i32_0, %c0_i32_1 : i32, i32, i32, i32
  }
  func.func @transform_1(%arg0: i32) -> (i32, i32) {
    %c0_i32 = arith.constant 0 : i32
    %c0_i32_0 = arith.constant 0 : i32
    %c0_i32_1 = arith.constant 0 : i32
    return %c0_i32, %c0_i32_0 : i32, i32
  }
  func.func @transform_2(%arg0: i32) -> (i32, i32) {
    %c0_i32 = arith.constant 0 : i32
    %c0_i32_0 = arith.constant 0 : i32
    %c0_i32_1 = arith.constant 0 : i32
    return %c0_i32, %c0_i32_0 : i32, i32
  }
  func.func @transform_3(%arg0: i32) -> (i32, i32) {
    %c0_i32 = arith.constant 0 : i32
    %c0_i32_0 = arith.constant 0 : i32
    %c0_i32_1 = arith.constant 0 : i32
    return %c0_i32, %c0_i32_0 : i32, i32
  }
  func.func @transform_4(%arg0: i32) -> (i32, i32) {
    %c0_i32 = arith.constant 0 : i32
    %c0_i32_0 = arith.constant 0 : i32
    %c0_i32_1 = arith.constant 0 : i32
    return %c0_i32, %c0_i32_0 : i32, i32
  }
  func.func @transform_5(%arg0: i32) -> (i32, i32, i32, i32) {
    %c0_i32 = arith.constant 0 : i32
    %c0_i32_0 = arith.constant 0 : i32
    %c0_i32_1 = arith.constant 0 : i32
    %c0_i32_2 = arith.constant 0 : i32
    return %arg0, %c0_i32, %c0_i32_0, %c0_i32_1 : i32, i32, i32, i32
  }
}

module attributes {stable_mosaic.version = 11 : i64} {
  func.func @_double_conv_kernel(%arg0: i32, %arg1: memref<1x16x16x4xbf16, #tpu.memory_space<vmem>>, %arg2: memref<36x8xbf16, #tpu.memory_space<vmem>>, %arg3: memref<1x8xf32, #tpu.memory_space<vmem>>, %arg4: memref<72x8xbf16, #tpu.memory_space<vmem>>, %arg5: memref<1x8xf32, #tpu.memory_space<vmem>>, %arg6: memref<1x16x16x8xf32, #tpu.memory_space<vmem>>, %arg7: memref<20x20x4xbf16, #tpu.memory_space<vmem>>, %arg8: memref<20x20x8xbf16, #tpu.memory_space<vmem>>, %arg9: memref<16x16x36xbf16, #tpu.memory_space<vmem>>, %arg10: memref<16x16x72xbf16, #tpu.memory_space<vmem>>) attributes {dimension_semantics = [#tpu.dimension_semantics<parallel>], iteration_bounds = array<i64: 2>, scalar_prefetch = 0 : i64, scratch_operands = 4 : i64, tpu.core_type = #tpu.core_type<tc>, window_params = [{transform_indices = @transform_0, window_bounds = array<i64: 1, 16, 16, 4>}, {pipeline_mode = #tpu.pipeline_mode<synchronous>, transform_indices = @transform_1, window_bounds = array<i64: 36, 8>}, {pipeline_mode = #tpu.pipeline_mode<synchronous>, transform_indices = @transform_2, window_bounds = array<i64: 1, 8>}, {pipeline_mode = #tpu.pipeline_mode<synchronous>, transform_indices = @transform_3, window_bounds = array<i64: 72, 8>}, {pipeline_mode = #tpu.pipeline_mode<synchronous>, transform_indices = @transform_4, window_bounds = array<i64: 1, 8>}, {transform_indices = @transform_5, window_bounds = array<i64: 1, 16, 16, 8>}]} {
    %cst = arith.constant 0.000000e+00 : bf16
    %0 = vector.broadcast %cst : bf16 to vector<2x20x4xbf16>
    %cst_0 = arith.constant 0.000000e+00 : bf16
    %1 = vector.broadcast %cst_0 : bf16 to vector<20x2x4xbf16>
    %c0 = arith.constant 0 : index
    %c0_1 = arith.constant 0 : index
    %c0_2 = arith.constant 0 : index
    %2 = vector.load %arg7[%c0, %c0_1, %c0_2] : memref<20x20x4xbf16, #tpu.memory_space<vmem>>, vector<2x20x4xbf16>
    tpu.vector_store %arg7[%c0, %c0_1, %c0_2], %0 {strides = array<i32>} : memref<20x20x4xbf16, #tpu.memory_space<vmem>>, vector<2x20x4xbf16>,
    %c18 = arith.constant 18 : index
    %c0_3 = arith.constant 0 : index
    %c0_4 = arith.constant 0 : index
    %3 = vector.load %arg7[%c18, %c0_3, %c0_4] : memref<20x20x4xbf16, #tpu.memory_space<vmem>>, vector<2x20x4xbf16>
    tpu.vector_store %arg7[%c18, %c0_3, %c0_4], %0 {strides = array<i32>} : memref<20x20x4xbf16, #tpu.memory_space<vmem>>, vector<2x20x4xbf16>,
    %c0_5 = arith.constant 0 : index
    %c0_6 = arith.constant 0 : index
    %c0_7 = arith.constant 0 : index
    %4 = vector.load %arg7[%c0_5, %c0_6, %c0_7] : memref<20x20x4xbf16, #tpu.memory_space<vmem>>, vector<20x2x4xbf16>
    tpu.vector_store %arg7[%c0_5, %c0_6, %c0_7], %1 {strides = array<i32>} : memref<20x20x4xbf16, #tpu.memory_space<vmem>>, vector<20x2x4xbf16>,
    %c0_8 = arith.constant 0 : index
    %c18_9 = arith.constant 18 : index
    %c0_10 = arith.constant 0 : index
    %5 = vector.load %arg7[%c0_8, %c18_9, %c0_10] : memref<20x20x4xbf16, #tpu.memory_space<vmem>>, vector<20x2x4xbf16>
    tpu.vector_store %arg7[%c0_8, %c18_9, %c0_10], %1 {strides = array<i32>} : memref<20x20x4xbf16, #tpu.memory_space<vmem>>, vector<20x2x4xbf16>,
    %c0_11 = arith.constant 0 : index
    %c0_12 = arith.constant 0 : index
    %c0_13 = arith.constant 0 : index
    %c0_14 = arith.constant 0 : index
    %6 = vector.load %arg1[%c0_11, %c0_12, %c0_13, %c0_14] : memref<1x16x16x4xbf16, #tpu.memory_space<vmem>>, vector<1x16x16x4xbf16>
    %7 = vector.shape_cast %6 : vector<1x16x16x4xbf16> to vector<16x16x4xbf16>
    %c2 = arith.constant 2 : index
    %c2_15 = arith.constant 2 : index
    %c0_16 = arith.constant 0 : index
    %8 = vector.load %arg7[%c2, %c2_15, %c0_16] : memref<20x20x4xbf16, #tpu.memory_space<vmem>>, vector<16x16x4xbf16>
    tpu.vector_store %arg7[%c2, %c2_15, %c0_16], %7 {strides = array<i32>} : memref<20x20x4xbf16, #tpu.memory_space<vmem>>, vector<16x16x4xbf16>,
    %c0_17 = arith.constant 0 : index
    %c0_18 = arith.constant 0 : index
    %c0_19 = arith.constant 0 : index
    %9 = vector.load %arg7[%c0_17, %c0_18, %c0_19] : memref<20x20x4xbf16, #tpu.memory_space<vmem>>, vector<16x16x4xbf16>
    %c0_20 = arith.constant 0 : index
    %c0_21 = arith.constant 0 : index
    %c0_22 = arith.constant 0 : index
    %10 = vector.load %arg9[%c0_20, %c0_21, %c0_22] : memref<16x16x36xbf16, #tpu.memory_space<vmem>>, vector<16x16x4xbf16>
    tpu.vector_store %arg9[%c0_20, %c0_21, %c0_22], %9 {strides = array<i32>} : memref<16x16x36xbf16, #tpu.memory_space<vmem>>, vector<16x16x4xbf16>,
    %c0_23 = arith.constant 0 : index
    %c2_24 = arith.constant 2 : index
    %c0_25 = arith.constant 0 : index
    %11 = vector.load %arg7[%c0_23, %c2_24, %c0_25] : memref<20x20x4xbf16, #tpu.memory_space<vmem>>, vector<16x16x4xbf16>
    %c0_26 = arith.constant 0 : index
    %c0_27 = arith.constant 0 : index
    %c4 = arith.constant 4 : index
    %12 = vector.load %arg9[%c0_26, %c0_27, %c4] : memref<16x16x36xbf16, #tpu.memory_space<vmem>>, vector<16x16x4xbf16>
    tpu.vector_store %arg9[%c0_26, %c0_27, %c4], %11 {strides = array<i32>} : memref<16x16x36xbf16, #tpu.memory_space<vmem>>, vector<16x16x4xbf16>,
    %c0_28 = arith.constant 0 : index
    %c4_29 = arith.constant 4 : index
    %c0_30 = arith.constant 0 : index
    %13 = vector.load %arg7[%c0_28, %c4_29, %c0_30] : memref<20x20x4xbf16, #tpu.memory_space<vmem>>, vector<16x16x4xbf16>
    %c0_31 = arith.constant 0 : index
    %c0_32 = arith.constant 0 : index
    %c8 = arith.constant 8 : index
    %14 = vector.load %arg9[%c0_31, %c0_32, %c8] : memref<16x16x36xbf16, #tpu.memory_space<vmem>>, vector<16x16x4xbf16>
    tpu.vector_store %arg9[%c0_31, %c0_32, %c8], %13 {strides = array<i32>} : memref<16x16x36xbf16, #tpu.memory_space<vmem>>, vector<16x16x4xbf16>,
    %c2_33 = arith.constant 2 : index
    %c0_34 = arith.constant 0 : index
    %c0_35 = arith.constant 0 : index
    %15 = vector.load %arg7[%c2_33, %c0_34, %c0_35] : memref<20x20x4xbf16, #tpu.memory_space<vmem>>, vector<16x16x4xbf16>
    %c0_36 = arith.constant 0 : index
    %c0_37 = arith.constant 0 : index
    %c12 = arith.constant 12 : index
    %16 = vector.load %arg9[%c0_36, %c0_37, %c12] : memref<16x16x36xbf16, #tpu.memory_space<vmem>>, vector<16x16x4xbf16>
    tpu.vector_store %arg9[%c0_36, %c0_37, %c12], %15 {strides = array<i32>} : memref<16x16x36xbf16, #tpu.memory_space<vmem>>, vector<16x16x4xbf16>,
    %c2_38 = arith.constant 2 : index
    %c2_39 = arith.constant 2 : index
    %c0_40 = arith.constant 0 : index
    %17 = vector.load %arg7[%c2_38, %c2_39, %c0_40] : memref<20x20x4xbf16, #tpu.memory_space<vmem>>, vector<16x16x4xbf16>
    %c0_41 = arith.constant 0 : index
    %c0_42 = arith.constant 0 : index
    %c16 = arith.constant 16 : index
    %18 = vector.load %arg9[%c0_41, %c0_42, %c16] : memref<16x16x36xbf16, #tpu.memory_space<vmem>>, vector<16x16x4xbf16>
    tpu.vector_store %arg9[%c0_41, %c0_42, %c16], %17 {strides = array<i32>} : memref<16x16x36xbf16, #tpu.memory_space<vmem>>, vector<16x16x4xbf16>,
    %c2_43 = arith.constant 2 : index
    %c4_44 = arith.constant 4 : index
    %c0_45 = arith.constant 0 : index
    %19 = vector.load %arg7[%c2_43, %c4_44, %c0_45] : memref<20x20x4xbf16, #tpu.memory_space<vmem>>, vector<16x16x4xbf16>
    %c0_46 = arith.constant 0 : index
    %c0_47 = arith.constant 0 : index
    %c20 = arith.constant 20 : index
    %20 = vector.load %arg9[%c0_46, %c0_47, %c20] : memref<16x16x36xbf16, #tpu.memory_space<vmem>>, vector<16x16x4xbf16>
    tpu.vector_store %arg9[%c0_46, %c0_47, %c20], %19 {strides = array<i32>} : memref<16x16x36xbf16, #tpu.memory_space<vmem>>, vector<16x16x4xbf16>,
    %c4_48 = arith.constant 4 : index
    %c0_49 = arith.constant 0 : index
    %c0_50 = arith.constant 0 : index
    %21 = vector.load %arg7[%c4_48, %c0_49, %c0_50] : memref<20x20x4xbf16, #tpu.memory_space<vmem>>, vector<16x16x4xbf16>
    %c0_51 = arith.constant 0 : index
    %c0_52 = arith.constant 0 : index
    %c24 = arith.constant 24 : index
    %22 = vector.load %arg9[%c0_51, %c0_52, %c24] : memref<16x16x36xbf16, #tpu.memory_space<vmem>>, vector<16x16x4xbf16>
    tpu.vector_store %arg9[%c0_51, %c0_52, %c24], %21 {strides = array<i32>} : memref<16x16x36xbf16, #tpu.memory_space<vmem>>, vector<16x16x4xbf16>,
    %c4_53 = arith.constant 4 : index
    %c2_54 = arith.constant 2 : index
    %c0_55 = arith.constant 0 : index
    %23 = vector.load %arg7[%c4_53, %c2_54, %c0_55] : memref<20x20x4xbf16, #tpu.memory_space<vmem>>, vector<16x16x4xbf16>
    %c0_56 = arith.constant 0 : index
    %c0_57 = arith.constant 0 : index
    %c28 = arith.constant 28 : index
    %24 = vector.load %arg9[%c0_56, %c0_57, %c28] : memref<16x16x36xbf16, #tpu.memory_space<vmem>>, vector<16x16x4xbf16>
    tpu.vector_store %arg9[%c0_56, %c0_57, %c28], %23 {strides = array<i32>} : memref<16x16x36xbf16, #tpu.memory_space<vmem>>, vector<16x16x4xbf16>,
    %c4_58 = arith.constant 4 : index
    %c4_59 = arith.constant 4 : index
    %c0_60 = arith.constant 0 : index
    %25 = vector.load %arg7[%c4_58, %c4_59, %c0_60] : memref<20x20x4xbf16, #tpu.memory_space<vmem>>, vector<16x16x4xbf16>
    %c0_61 = arith.constant 0 : index
    %c0_62 = arith.constant 0 : index
    %c32 = arith.constant 32 : index
    %26 = vector.load %arg9[%c0_61, %c0_62, %c32] : memref<16x16x36xbf16, #tpu.memory_space<vmem>>, vector<16x16x4xbf16>
    tpu.vector_store %arg9[%c0_61, %c0_62, %c32], %25 {strides = array<i32>} : memref<16x16x36xbf16, #tpu.memory_space<vmem>>, vector<16x16x4xbf16>,
    %c0_63 = arith.constant 0 : index
    %c0_64 = arith.constant 0 : index
    %c0_65 = arith.constant 0 : index
    %27 = vector.load %arg9[%c0_63, %c0_64, %c0_65] : memref<16x16x36xbf16, #tpu.memory_space<vmem>>, vector<16x16x36xbf16>
    %c0_66 = arith.constant 0 : index
    %c0_67 = arith.constant 0 : index
    %28 = vector.load %arg2[%c0_66, %c0_67] : memref<36x8xbf16, #tpu.memory_space<vmem>>, vector<36x8xbf16>
    %cst_68 = arith.constant dense<0.000000e+00> : vector<16x16x8xf32>
    %29 = tpu.matmul %27, %28, %cst_68 {dimension_numbers = #tpu.dot_dimension_numbers<[2], [0], [0, 1], [1], [0, 0, 0, 1, 1, 1], [], []>} : vector<16x16x36xbf16>, vector<36x8xbf16>, vector<16x16x8xf32> -> vector<16x16x8xf32>
    %c0_69 = arith.constant 0 : index
    %c0_70 = arith.constant 0 : index
    %30 = vector.load %arg3[%c0_69, %c0_70] : memref<1x8xf32, #tpu.memory_space<vmem>>, vector<1x8xf32>
    %31 = vector.shape_cast %30 : vector<1x8xf32> to vector<1x1x8xf32>
    %32 = vector.broadcast %31 : vector<1x1x8xf32> to vector<16x16x8xf32>
    %33 = arith.addf %29, %32 : vector<16x16x8xf32>
    %cst_71 = arith.constant 0.000000e+00 : f32
    %34 = vector.broadcast %cst_71 : f32 to vector<16x16x8xf32>
    %35 = arith.maximumf %33, %34 : vector<16x16x8xf32>
    %cst_72 = arith.constant 0.000000e+00 : bf16
    %36 = vector.broadcast %cst_72 : bf16 to vector<2x20x8xbf16>
    %cst_73 = arith.constant 0.000000e+00 : bf16
    %37 = vector.broadcast %cst_73 : bf16 to vector<20x2x8xbf16>
    %c0_74 = arith.constant 0 : index
    %c0_75 = arith.constant 0 : index
    %c0_76 = arith.constant 0 : index
    %38 = vector.load %arg8[%c0_74, %c0_75, %c0_76] : memref<20x20x8xbf16, #tpu.memory_space<vmem>>, vector<2x20x8xbf16>
    tpu.vector_store %arg8[%c0_74, %c0_75, %c0_76], %36 {strides = array<i32>} : memref<20x20x8xbf16, #tpu.memory_space<vmem>>, vector<2x20x8xbf16>,
    %c18_77 = arith.constant 18 : index
    %c0_78 = arith.constant 0 : index
    %c0_79 = arith.constant 0 : index
    %39 = vector.load %arg8[%c18_77, %c0_78, %c0_79] : memref<20x20x8xbf16, #tpu.memory_space<vmem>>, vector<2x20x8xbf16>
    tpu.vector_store %arg8[%c18_77, %c0_78, %c0_79], %36 {strides = array<i32>} : memref<20x20x8xbf16, #tpu.memory_space<vmem>>, vector<2x20x8xbf16>,
    %c0_80 = arith.constant 0 : index
    %c0_81 = arith.constant 0 : index
    %c0_82 = arith.constant 0 : index
    %40 = vector.load %arg8[%c0_80, %c0_81, %c0_82] : memref<20x20x8xbf16, #tpu.memory_space<vmem>>, vector<20x2x8xbf16>
    tpu.vector_store %arg8[%c0_80, %c0_81, %c0_82], %37 {strides = array<i32>} : memref<20x20x8xbf16, #tpu.memory_space<vmem>>, vector<20x2x8xbf16>,
    %c0_83 = arith.constant 0 : index
    %c18_84 = arith.constant 18 : index
    %c0_85 = arith.constant 0 : index
    %41 = vector.load %arg8[%c0_83, %c18_84, %c0_85] : memref<20x20x8xbf16, #tpu.memory_space<vmem>>, vector<20x2x8xbf16>
    tpu.vector_store %arg8[%c0_83, %c18_84, %c0_85], %37 {strides = array<i32>} : memref<20x20x8xbf16, #tpu.memory_space<vmem>>, vector<20x2x8xbf16>,
    %42 = arith.truncf %35 : vector<16x16x8xf32> to vector<16x16x8xbf16>
    %c2_86 = arith.constant 2 : index
    %c2_87 = arith.constant 2 : index
    %c0_88 = arith.constant 0 : index
    %43 = vector.load %arg8[%c2_86, %c2_87, %c0_88] : memref<20x20x8xbf16, #tpu.memory_space<vmem>>, vector<16x16x8xbf16>
    tpu.vector_store %arg8[%c2_86, %c2_87, %c0_88], %42 {strides = array<i32>} : memref<20x20x8xbf16, #tpu.memory_space<vmem>>, vector<16x16x8xbf16>,
    %c0_89 = arith.constant 0 : index
    %c0_90 = arith.constant 0 : index
    %c0_91 = arith.constant 0 : index
    %44 = vector.load %arg8[%c0_89, %c0_90, %c0_91] : memref<20x20x8xbf16, #tpu.memory_space<vmem>>, vector<16x16x8xbf16>
    %c0_92 = arith.constant 0 : index
    %c0_93 = arith.constant 0 : index
    %c0_94 = arith.constant 0 : index
    %45 = vector.load %arg10[%c0_92, %c0_93, %c0_94] : memref<16x16x72xbf16, #tpu.memory_space<vmem>>, vector<16x16x8xbf16>
    tpu.vector_store %arg10[%c0_92, %c0_93, %c0_94], %44 {strides = array<i32>} : memref<16x16x72xbf16, #tpu.memory_space<vmem>>, vector<16x16x8xbf16>,
    %c0_95 = arith.constant 0 : index
    %c2_96 = arith.constant 2 : index
    %c0_97 = arith.constant 0 : index
    %46 = vector.load %arg8[%c0_95, %c2_96, %c0_97] : memref<20x20x8xbf16, #tpu.memory_space<vmem>>, vector<16x16x8xbf16>
    %c0_98 = arith.constant 0 : index
    %c0_99 = arith.constant 0 : index
    %c8_100 = arith.constant 8 : index
    %47 = vector.load %arg10[%c0_98, %c0_99, %c8_100] : memref<16x16x72xbf16, #tpu.memory_space<vmem>>, vector<16x16x8xbf16>
    tpu.vector_store %arg10[%c0_98, %c0_99, %c8_100], %46 {strides = array<i32>} : memref<16x16x72xbf16, #tpu.memory_space<vmem>>, vector<16x16x8xbf16>,
    %c0_101 = arith.constant 0 : index
    %c4_102 = arith.constant 4 : index
    %c0_103 = arith.constant 0 : index
    %48 = vector.load %arg8[%c0_101, %c4_102, %c0_103] : memref<20x20x8xbf16, #tpu.memory_space<vmem>>, vector<16x16x8xbf16>
    %c0_104 = arith.constant 0 : index
    %c0_105 = arith.constant 0 : index
    %c16_106 = arith.constant 16 : index
    %49 = vector.load %arg10[%c0_104, %c0_105, %c16_106] : memref<16x16x72xbf16, #tpu.memory_space<vmem>>, vector<16x16x8xbf16>
    tpu.vector_store %arg10[%c0_104, %c0_105, %c16_106], %48 {strides = array<i32>} : memref<16x16x72xbf16, #tpu.memory_space<vmem>>, vector<16x16x8xbf16>,
    %c2_107 = arith.constant 2 : index
    %c0_108 = arith.constant 0 : index
    %c0_109 = arith.constant 0 : index
    %50 = vector.load %arg8[%c2_107, %c0_108, %c0_109] : memref<20x20x8xbf16, #tpu.memory_space<vmem>>, vector<16x16x8xbf16>
    %c0_110 = arith.constant 0 : index
    %c0_111 = arith.constant 0 : index
    %c24_112 = arith.constant 24 : index
    %51 = vector.load %arg10[%c0_110, %c0_111, %c24_112] : memref<16x16x72xbf16, #tpu.memory_space<vmem>>, vector<16x16x8xbf16>
    tpu.vector_store %arg10[%c0_110, %c0_111, %c24_112], %50 {strides = array<i32>} : memref<16x16x72xbf16, #tpu.memory_space<vmem>>, vector<16x16x8xbf16>,
    %c2_113 = arith.constant 2 : index
    %c2_114 = arith.constant 2 : index
    %c0_115 = arith.constant 0 : index
    %52 = vector.load %arg8[%c2_113, %c2_114, %c0_115] : memref<20x20x8xbf16, #tpu.memory_space<vmem>>, vector<16x16x8xbf16>
    %c0_116 = arith.constant 0 : index
    %c0_117 = arith.constant 0 : index
    %c32_118 = arith.constant 32 : index
    %53 = vector.load %arg10[%c0_116, %c0_117, %c32_118] : memref<16x16x72xbf16, #tpu.memory_space<vmem>>, vector<16x16x8xbf16>
    tpu.vector_store %arg10[%c0_116, %c0_117, %c32_118], %52 {strides = array<i32>} : memref<16x16x72xbf16, #tpu.memory_space<vmem>>, vector<16x16x8xbf16>,
    %c2_119 = arith.constant 2 : index
    %c4_120 = arith.constant 4 : index
    %c0_121 = arith.constant 0 : index
    %54 = vector.load %arg8[%c2_119, %c4_120, %c0_121] : memref<20x20x8xbf16, #tpu.memory_space<vmem>>, vector<16x16x8xbf16>
    %c0_122 = arith.constant 0 : index
    %c0_123 = arith.constant 0 : index
    %c40 = arith.constant 40 : index
    %55 = vector.load %arg10[%c0_122, %c0_123, %c40] : memref<16x16x72xbf16, #tpu.memory_space<vmem>>, vector<16x16x8xbf16>
    tpu.vector_store %arg10[%c0_122, %c0_123, %c40], %54 {strides = array<i32>} : memref<16x16x72xbf16, #tpu.memory_space<vmem>>, vector<16x16x8xbf16>,
    %c4_124 = arith.constant 4 : index
    %c0_125 = arith.constant 0 : index
    %c0_126 = arith.constant 0 : index
    %56 = vector.load %arg8[%c4_124, %c0_125, %c0_126] : memref<20x20x8xbf16, #tpu.memory_space<vmem>>, vector<16x16x8xbf16>
    %c0_127 = arith.constant 0 : index
    %c0_128 = arith.constant 0 : index
    %c48 = arith.constant 48 : index
    %57 = vector.load %arg10[%c0_127, %c0_128, %c48] : memref<16x16x72xbf16, #tpu.memory_space<vmem>>, vector<16x16x8xbf16>
    tpu.vector_store %arg10[%c0_127, %c0_128, %c48], %56 {strides = array<i32>} : memref<16x16x72xbf16, #tpu.memory_space<vmem>>, vector<16x16x8xbf16>,
    %c4_129 = arith.constant 4 : index
    %c2_130 = arith.constant 2 : index
    %c0_131 = arith.constant 0 : index
    %58 = vector.load %arg8[%c4_129, %c2_130, %c0_131] : memref<20x20x8xbf16, #tpu.memory_space<vmem>>, vector<16x16x8xbf16>
    %c0_132 = arith.constant 0 : index
    %c0_133 = arith.constant 0 : index
    %c56 = arith.constant 56 : index
    %59 = vector.load %arg10[%c0_132, %c0_133, %c56] : memref<16x16x72xbf16, #tpu.memory_space<vmem>>, vector<16x16x8xbf16>
    tpu.vector_store %arg10[%c0_132, %c0_133, %c56], %58 {strides = array<i32>} : memref<16x16x72xbf16, #tpu.memory_space<vmem>>, vector<16x16x8xbf16>,
    %c4_134 = arith.constant 4 : index
    %c4_135 = arith.constant 4 : index
    %c0_136 = arith.constant 0 : index
    %60 = vector.load %arg8[%c4_134, %c4_135, %c0_136] : memref<20x20x8xbf16, #tpu.memory_space<vmem>>, vector<16x16x8xbf16>
    %c0_137 = arith.constant 0 : index
    %c0_138 = arith.constant 0 : index
    %c64 = arith.constant 64 : index
    %61 = vector.load %arg10[%c0_137, %c0_138, %c64] : memref<16x16x72xbf16, #tpu.memory_space<vmem>>, vector<16x16x8xbf16>
    tpu.vector_store %arg10[%c0_137, %c0_138, %c64], %60 {strides = array<i32>} : memref<16x16x72xbf16, #tpu.memory_space<vmem>>, vector<16x16x8xbf16>,
    %c0_139 = arith.constant 0 : index
    %c0_140 = arith.constant 0 : index
    %c0_141 = arith.constant 0 : index
    %62 = vector.load %arg10[%c0_139, %c0_140, %c0_141] : memref<16x16x72xbf16, #tpu.memory_space<vmem>>, vector<16x16x72xbf16>
    %c0_142 = arith.constant 0 : index
    %c0_143 = arith.constant 0 : index
    %63 = vector.load %arg4[%c0_142, %c0_143] : memref<72x8xbf16, #tpu.memory_space<vmem>>, vector<72x8xbf16>
    %cst_144 = arith.constant dense<0.000000e+00> : vector<16x16x8xf32>
    %64 = tpu.matmul %62, %63, %cst_144 {dimension_numbers = #tpu.dot_dimension_numbers<[2], [0], [0, 1], [1], [0, 0, 0, 1, 1, 1], [], []>} : vector<16x16x72xbf16>, vector<72x8xbf16>, vector<16x16x8xf32> -> vector<16x16x8xf32>
    %c0_145 = arith.constant 0 : index
    %c0_146 = arith.constant 0 : index
    %65 = vector.load %arg5[%c0_145, %c0_146] : memref<1x8xf32, #tpu.memory_space<vmem>>, vector<1x8xf32>
    %66 = vector.shape_cast %65 : vector<1x8xf32> to vector<1x1x8xf32>
    %67 = vector.broadcast %66 : vector<1x1x8xf32> to vector<16x16x8xf32>
    %68 = arith.addf %64, %67 : vector<16x16x8xf32>
    %cst_147 = arith.constant 0.000000e+00 : f32
    %69 = vector.broadcast %cst_147 : f32 to vector<16x16x8xf32>
    %70 = arith.maximumf %68, %69 : vector<16x16x8xf32>
    %c0_148 = arith.constant 0 : index
    %c0_149 = arith.constant 0 : index
    %c0_150 = arith.constant 0 : index
    %c0_151 = arith.constant 0 : index
    %71 = vector.load %arg6[%c0_148, %c0_149, %c0_150, %c0_151] : memref<1x16x16x8xf32, #tpu.memory_space<vmem>>, vector<1x16x16x8xf32>
    %72 = vector.shape_cast %71 : vector<1x16x16x8xf32> to vector<16x16x8xf32>
    %73 = vector.shape_cast %70 : vector<16x16x8xf32> to vector<1x16x16x8xf32>
    tpu.vector_store %arg6[%c0_148, %c0_149, %c0_150, %c0_151], %73 {strides = array<i32>} : memref<1x16x16x8xf32, #tpu.memory_space<vmem>>, vector<1x16x16x8xf32>,
    return
  }
  func.func @transform_0(%arg0: i32) -> (i32, i32, i32, i32) {
    %c0_i32 = arith.constant 0 : i32
    %c0_i32_0 = arith.constant 0 : i32
    %c0_i32_1 = arith.constant 0 : i32
    %c0_i32_2 = arith.constant 0 : i32
    return %arg0, %c0_i32, %c0_i32_0, %c0_i32_1 : i32, i32, i32, i32
  }
  func.func @transform_1(%arg0: i32) -> (i32, i32) {
    %c0_i32 = arith.constant 0 : i32
    %c0_i32_0 = arith.constant 0 : i32
    %c0_i32_1 = arith.constant 0 : i32
    return %c0_i32, %c0_i32_0 : i32, i32
  }
  func.func @transform_2(%arg0: i32) -> (i32, i32) {
    %c0_i32 = arith.constant 0 : i32
    %c0_i32_0 = arith.constant 0 : i32
    %c0_i32_1 = arith.constant 0 : i32
    return %c0_i32, %c0_i32_0 : i32, i32
  }
  func.func @transform_3(%arg0: i32) -> (i32, i32) {
    %c0_i32 = arith.constant 0 : i32
    %c0_i32_0 = arith.constant 0 : i32
    %c0_i32_1 = arith.constant 0 : i32
    return %c0_i32, %c0_i32_0 : i32, i32
  }
  func.func @transform_4(%arg0: i32) -> (i32, i32) {
    %c0_i32 = arith.constant 0 : i32
    %c0_i32_0 = arith.constant 0 : i32
    %c0_i32_1 = arith.constant 0 : i32
    return %c0_i32, %c0_i32_0 : i32, i32
  }
  func.func @transform_5(%arg0: i32) -> (i32, i32, i32, i32) {
    %c0_i32 = arith.constant 0 : i32
    %c0_i32_0 = arith.constant 0 : i32
    %c0_i32_1 = arith.constant 0 : i32
    %c0_i32_2 = arith.constant 0 : i32
    return %arg0, %c0_i32, %c0_i32_0, %c0_i32_1 : i32, i32, i32, i32
  }
}

</mosaic_0001>

<llo_original>
// kernel: _double_conv_impl.1
$region0: #{_double_conv_impl.1}
  #allocation0 [shape = 'u32[]', space=smem, size = 0x4, offset = 0x4, fixed_abs, tag = 'smem constant byte address 0x4 - core index']
  #allocation1 [shape = 'u32[144,128]{1,0:T(1,128)}', space=vmem, size = 0x12000, scoped, tag = 'internal scratch']
  #allocation2 [shape = 'bf16[20,20,4]{2,1,0:T(8,128)(2,1)}', space=vmem, size = 0x1e000, scoped, tag = 'scratch operand']
  #allocation3 [shape = 'bf16[20,20,8]{2,1,0:T(8,128)(2,1)}', space=vmem, size = 0x1e000, scoped, tag = 'scratch operand']
  #allocation4 [shape = 'bf16[16,16,36]{2,1,0:T(16,128)(2,1)}', space=vmem, size = 0x10000, scoped, tag = 'scratch operand']
  #allocation5 [shape = 'bf16[16,16,72]{2,1,0:T(16,128)(2,1)}', space=vmem, size = 0x10000, scoped, tag = 'scratch operand']
  %s0 = inlined_call_operand.vmem [shape: bf16[2,16,16,4], index: 0, kind: input, shape index: {}]
  %s1 = inlined_call_operand.vmem [shape: bf16[36,8], index: 1, kind: input, shape index: {}]
  %s2 = inlined_call_operand.vmem [shape: f32[1,8], index: 2, kind: input, shape index: {}]
  %s3 = inlined_call_operand.vmem [shape: bf16[72,8], index: 3, kind: input, shape index: {}]
  %s4 = inlined_call_operand.vmem [shape: f32[1,8], index: 4, kind: input, shape index: {}]
  %s5 = inlined_call_operand.vmem [shape: f32[2,16,16,8], index: 5, kind: output, shape index: {}]
  %s6 = sld [smem:[#allocation0]]
  $region53: #{_double_conv_impl.1} parent=0
    _
  %s8 = ssub.s32 1, %s6
  %s9 = scalar_select 0, %s8, %s6
  loop: start=0, step=1, limit=4
  $region2: #{_double_conv_impl.1} parent=0 // loop_pre_header
    _
  $region3: #{_double_conv_impl.1} parent=0 // loop_header
    %s11 = sphi 0, %s15
    %p12 = scmp.ge.s32.totalorder %s11, 4
    %s21 = sphi 0, %s23
    %s24 = sphi 0, %s21
    %s25 = sphi 0, %s24
    %s41 = sphi 0, %s25
    %s45 = sphi 0, %s45
    %s47 = sphi 0, %s45
    %s48 = sphi 0, %s47
    %s62 = sphi 0, %s48
    %s66 = sphi 0, %s66
    %s68 = sphi 0, %s66
    %s69 = sphi 0, %s68
    %s83 = sphi 0, %s69
    %s87 = sphi 0, %s87
    %s89 = sphi 0, %s87
    %s90 = sphi 0, %s89
    %s104 = sphi 0, %s90
    %s108 = sphi 0, %s108
    %s110 = sphi 0, %s108
    %s111 = sphi 0, %s110
    %s125 = sphi 0, %s111
    %s131 = sphi 0, %s133
    %s134 = sphi 0, %s131
    %s135 = sphi 0, %s134
    %s151 = sphi 0, %s135
  $region4: #{_double_conv_impl.1} parent=0 // loop_header_branch
    %14 = sbr.rel (%p12) target = $region8
  $region5: #{_double_conv_impl.1} parent=0 // loop_body
    %s16 = ssub.s32 %s11, 1
    %s17 = ssub.s32 %s11, 2
    %s18 = sadd.s32 %s11, 1
    %s19 = ssub.s32 %s11, %s18
    %p20 = scmp.eq.s32.totalorder %s19, 0
    %s22 = sadd.s32 %s21, 1
    %s23 = scalar_select %p20, %s21, %s22
    %p26 = pneg %p20
    %p27 = scmp.eq.s32.totalorder %s11, 1
    %p28 = por %p26, %p27
    %p29 = scmp.ne.s32.totalorder %s21, %s24
    %p30 = scmp.eq.s32.totalorder %s11, 0
    %p31 = por %p29, %p30
    %p32 = scmp.ne.s32.totalorder %s21, %s24
    %p33 = scmp.eq.s32.totalorder %s16, 1
    %p34 = por %p32, %p33
    %p35 = scmp.ne.s32.totalorder %s24, %s25
    %p36 = scmp.eq.s32.totalorder %s16, 0
    %p37 = por %p35, %p36
    %p38 = scmp.ne.s32.totalorder %s24, %s25
    %p39 = scmp.eq.s32.totalorder %s17, 1
    %p40 = por %p38, %p39
    %p42 = scmp.ne.s32.totalorder %s25, %s41
    %p43 = scmp.eq.s32.totalorder %s17, 0
    %p44 = por %p42, %p43
    %s46 = sadd.s32 %s45, 1
    %p49 = scmp.eq.s32.totalorder %s11, 1
    %p50 = scmp.ne.s32.totalorder %s45, %s47
    %p51 = scmp.eq.s32.totalorder %s11, 0
    %p52 = por %p50, %p51
    %p53 = scmp.ne.s32.totalorder %s45, %s47
    %p54 = scmp.eq.s32.totalorder %s16, 1
    %p55 = por %p53, %p54
    %p56 = scmp.ne.s32.totalorder %s47, %s48
    %p57 = scmp.eq.s32.totalorder %s16, 0
    %p58 = por %p56, %p57
    %p59 = scmp.ne.s32.totalorder %s47, %s48
    %p60 = scmp.eq.s32.totalorder %s17, 1
    %p61 = por %p59, %p60
    %p63 = scmp.ne.s32.totalorder %s48, %s62
    %p64 = scmp.eq.s32.totalorder %s17, 0
    %p65 = por %p63, %p64
    %s67 = sadd.s32 %s66, 1
    %p70 = scmp.eq.s32.totalorder %s11, 1
    %p71 = scmp.ne.s32.totalorder %s66, %s68
    %p72 = scmp.eq.s32.totalorder %s11, 0
    %p73 = por %p71, %p72
    %p74 = scmp.ne.s32.totalorder %s66, %s68
    %p75 = scmp.eq.s32.totalorder %s16, 1
    %p76 = por %p74, %p75
    %p77 = scmp.ne.s32.totalorder %s68, %s69
    %p78 = scmp.eq.s32.totalorder %s16, 0
    %p79 = por %p77, %p78
    %p80 = scmp.ne.s32.totalorder %s68, %s69
    %p81 = scmp.eq.s32.totalorder %s17, 1
    %p82 = por %p80, %p81
    %p84 = scmp.ne.s32.totalorder %s69, %s83
    %p85 = scmp.eq.s32.totalorder %s17, 0
    %p86 = por %p84, %p85
    %s88 = sadd.s32 %s87, 1
    %p91 = scmp.eq.s32.totalorder %s11, 1
    %p92 = scmp.ne.s32.totalorder %s87, %s89
    %p93 = scmp.eq.s32.totalorder %s11, 0
    %p94 = por %p92, %p93
    %p95 = scmp.ne.s32.totalorder %s87, %s89
    %p96 = scmp.eq.s32.totalorder %s16, 1
    %p97 = por %p95, %p96
    %p98 = scmp.ne.s32.totalorder %s89, %s90
    %p99 = scmp.eq.s32.totalorder %s16, 0
    %p100 = por %p98, %p99
    %p101 = scmp.ne.s32.totalorder %s89, %s90
    %p102 = scmp.eq.s32.totalorder %s17, 1
    %p103 = por %p101, %p102
    %p105 = scmp.ne.s32.totalorder %s90, %s104
    %p106 = scmp.eq.s32.totalorder %s17, 0
    %p107 = por %p105, %p106
    %s109 = sadd.s32 %s108, 1
    %p112 = scmp.eq.s32.totalorder %s11, 1
    %p113 = scmp.ne.s32.totalorder %s108, %s110
    %p114 = scmp.eq.s32.totalorder %s11, 0
    %p115 = por %p113, %p114
    %p116 = scmp.ne.s32.totalorder %s108, %s110
    %p117 = scmp.eq.s32.totalorder %s16, 1
    %p118 = por %p116, %p117
    %p119 = scmp.ne.s32.totalorder %s110, %s111
    %p120 = scmp.eq.s32.totalorder %s16, 0
    %p121 = por %p119, %p120
    %p122 = scmp.ne.s32.totalorder %s110, %s111
    %p123 = scmp.eq.s32.totalorder %s17, 1
    %p124 = por %p122, %p123
    %p126 = scmp.ne.s32.totalorder %s111, %s125
    %p127 = scmp.eq.s32.totalorder %s17, 0
    %p128 = por %p126, %p127
    %s129 = ssub.s32 %s11, %s18
    %p130 = scmp.eq.s32.totalorder %s129, 0
    %s132 = sadd.s32 %s131, 1
    %s133 = scalar_select %p130, %s131, %s132
    %p136 = pneg %p130
    %p137 = scmp.eq.s32.totalorder %s11, 1
    %p138 = por %p136, %p137
    %p139 = scmp.ne.s32.totalorder %s131, %s134
    %p140 = scmp.eq.s32.totalorder %s11, 0
    %p141 = por %p139, %p140
    %p142 = scmp.ne.s32.totalorder %s131, %s134
    %p143 = scmp.eq.s32.totalorder %s16, 1
    %p144 = por %p142, %p143
    %p145 = scmp.ne.s32.totalorder %s134, %s135
    %p146 = scmp.eq.s32.totalorder %s16, 0
    %p147 = por %p145, %p146
    %p148 = scmp.ne.s32.totalorder %s134, %s135
    %p149 = scmp.eq.s32.totalorder %s17, 1
    %p150 = por %p148, %p149
    %p152 = scmp.ne.s32.totalorder %s135, %s151
    %p153 = scmp.eq.s32.totalorder %s17, 0
    %p154 = por %p152, %p153
    %p155 = scmp.le.s32.totalorder 1, %s11
    %p156 = scmp.lt.s32.totalorder %s11, 3
    %p157 = pnand %p155, %p156
    %p158 = pneg %p157
    // Predicated region
    $region9: #{_double_conv_impl.1} parent=5 // pred_check
      _
    $region10: #{_double_conv_impl.1} parent=5 // pred_check_branch
      %160 = sbr.rel (%p157) target = $region12
    $region11: #{_double_conv_impl.1} parent=5 // pred_region
      %s161 = ssub.s32 %s11, 1
      // Predicated region
      $region13: #{_double_conv_impl.1} parent=11 // pred_check
        %p162 = pneg %p58
      $region14: #{_double_conv_impl.1} parent=11 // pred_check_branch
        %164 = sbr.rel (%p162) target = $region16
      $region15: #{_double_conv_impl.1} parent=11 // pred_region
        _
      $region16: #{_double_conv_impl.1} parent=11 // pred_fallthru
        _
      // Predicated region
      $region17: #{_double_conv_impl.1} parent=11 // pred_check
        %p165 = pneg %p79
      $region18: #{_double_conv_impl.1} parent=11 // pred_check_branch
        %167 = sbr.rel (%p165) target = $region20
      $region19: #{_double_conv_impl.1} parent=11 // pred_region
        _
      $region20: #{_double_conv_impl.1} parent=11 // pred_fallthru
        _
      // Predicated region
      $region21: #{_double_conv_impl.1} parent=11 // pred_check
        %p168 = pneg %p100
      $region22: #{_double_conv_impl.1} parent=11 // pred_check_branch
        %170 = sbr.rel (%p168) target = $region24
      $region23: #{_double_conv_impl.1} parent=11 // pred_region
        _
      $region24: #{_double_conv_impl.1} parent=11 // pred_fallthru
        _
      // Predicated region
      $region25: #{_double_conv_impl.1} parent=11 // pred_check
        %p171 = pneg %p121
      $region26: #{_double_conv_impl.1} parent=11 // pred_check_branch
        %173 = sbr.rel (%p171) target = $region28
      $region27: #{_double_conv_impl.1} parent=11 // pred_region
        _
      $region28: #{_double_conv_impl.1} parent=11 // pred_fallthru
        _
    $region12: #{_double_conv_impl.1} parent=5 // pred_fallthru
      _
    %p174 = scmp.lt.s32.totalorder %s11, 2
    // Predicated region
    $region29: #{_double_conv_impl.1} parent=5 // pred_check
      %p175 = pneg %p174
    $region30: #{_double_conv_impl.1} parent=5 // pred_check_branch
      %177 = sbr.rel (%p175) target = $region32
    $region31: #{_double_conv_impl.1} parent=5 // pred_region
      // Predicated region
      $region33: #{_double_conv_impl.1} parent=31 // pred_check
        %p178 = pneg %p31
      $region34: #{_double_conv_impl.1} parent=31 // pred_check_branch
        %180 = sbr.rel (%p178) target = $region36
      $region35: #{_double_conv_impl.1} parent=31 // pred_region
        %p181 = scmp.lt.s32.totalorder %s11, 1
        %s182 = scalar_select %p181, %s11, 1
        %s183 = smul.addr %s182, 32
        %s184 = smul.addr %s183, 4
        %s185 = scalar_lea.vmem %s0, %s184
      $region36: #{_double_conv_impl.1} parent=31 // pred_fallthru
        _
    $region32: #{_double_conv_impl.1} parent=5 // pred_fallthru
      _
    %p186 = scmp.le.s32.totalorder 1, %s11
    %p187 = scmp.lt.s32.totalorder %s11, 3
    %p188 = pnand %p186, %p187
    %p189 = pneg %p188
    // Predicated region
    $region37: #{_double_conv_impl.1} parent=5 // pred_check
      _
    $region38: #{_double_conv_impl.1} parent=5 // pred_check_branch
      %191 = sbr.rel (%p188) target = $region40
    $region39: #{_double_conv_impl.1} parent=5 // pred_region
      %s192 = ssub.s32 %s11, 1
      %p193 = scmp.lt.s32.totalorder %s16, 1
      %s194 = scalar_select %p193, %s16, 1
      %s195 = smul.addr %s194, 32
      %s196 = smul.addr %s195, 4
      %s197 = scalar_lea.vmem %s0, %s196
      %p198 = pneg %p37
      %p199 = pneg %p34
      %p200 = pneg %p58
      %p201 = pneg %p55
      %p202 = pneg %p79
      %p203 = pneg %p76
      %p204 = pneg %p100
      %p205 = pneg %p97
      %p206 = pneg %p121
      %p207 = pneg %p118
      %p208 = pneg %p147
      %p209 = pneg %p144
      %p210 = scmp.lt.s32.totalorder %s16, 1
      %s211 = scalar_select %p210, %s16, 1
      %s212 = smul.addr %s211, 32
      %s213 = smul.addr %s212, 8
      %s214 = scalar_lea.vmem %s5, %s213
      %p215 = scmp.lt.s32.totalorder %s16, 1
      %s216 = scalar_select %p215, %s16, 1
      %s217 = smul.addr %s216, 32
      %s218 = smul.addr %s217, 4
      %s219 = scalar_lea.vmem %s0, %s218
      %p220 = scmp.lt.s32.totalorder %s16, 1
      %s221 = scalar_select %p220, %s16, 1
      %s222 = smul.addr %s221, 32
      %s223 = smul.addr %s222, 8
      %s224 = scalar_lea.vmem %s5, %s223
      %vm226 = vcmask 27648
      %227 = vst.msk [vmem:[#allocation2] sm:$0xf] %vm226, 0
      %228 = vst.msk [vmem:[#allocation2 + $0x4] sm:$0xf] %vm226, 0
      %vm229 = vcmask 25600
      %230 = vst.msk [vmem:[#allocation2 + $0x8] sm:$0x3] %vm229, 0
      %231 = vst.msk [vmem:[#allocation2 + $0xc] sm:$0xf] %vm226, 0
      %232 = vst.msk [vmem:[#allocation2 + $0x10] sm:$0xf] %vm226, 0
      %233 = vst.msk [vmem:[#allocation2 + $0x14] sm:$0x3] %vm229, 0
      %s234 = scalar_lea.vmem [#allocation2], 216
      %235 = vst.msk [vmem:[%s234] sm:$0xf] %vm226, 0
      %236 = vst.msk [vmem:[%s234 + $0x4] sm:$0xf] %vm226, 0
      %237 = vst.msk [vmem:[%s234 + $0x8] sm:$0x3] %vm229, 0
      %238 = vst.msk [vmem:[%s234 + $0xc] sm:$0xf] %vm226, 0
      %239 = vst.msk [vmem:[%s234 + $0x10] sm:$0xf] %vm226, 0
      %240 = vst.msk [vmem:[%s234 + $0x14] sm:$0x3] %vm229, 0
      %vm241 = vcmask 24576
      %242 = vst.msk [vmem:[#allocation2] sm:$0x1] %vm241, 0
      %243 = vst.msk [vmem:[#allocation2 + $0xc] sm:$0x1] %vm241, 0
      %244 = vst.msk [vmem:[#allocation2 + $0x18] sm:$0x1] %vm241, 0
      %245 = vst.msk [vmem:[#allocation2 + $0x24] sm:$0x1] %vm241, 0
      %246 = vst.msk [vmem:[#allocation2 + $0x30] sm:$0x1] %vm241, 0
      %247 = vst.msk [vmem:[#allocation2 + $0x3c] sm:$0x1] %vm241, 0
      %248 = vst.msk [vmem:[#allocation2 + $0x48] sm:$0x1] %vm241, 0
      %249 = vst.msk [vmem:[#allocation2 + $0x54] sm:$0x1] %vm241, 0
      %250 = vst.msk [vmem:[#allocation2 + $0x60] sm:$0x1] %vm241, 0
      %251 = vst.msk [vmem:[#allocation2 + $0x6c] sm:$0x1] %vm241, 0
      %252 = vst.msk [vmem:[#allocation2 + $0x78] sm:$0x1] %vm241, 0
      %253 = vst.msk [vmem:[#allocation2 + $0x84] sm:$0x1] %vm241, 0
      %254 = vst.msk [vmem:[#allocation2 + $0x90] sm:$0x1] %vm241, 0
      %255 = vst.msk [vmem:[#allocation2 + $0x9c] sm:$0x1] %vm241, 0
      %256 = vst.msk [vmem:[#allocation2 + $0xa8] sm:$0x1] %vm241, 0
      %257 = vst.msk [vmem:[#allocation2 + $0xb4] sm:$0x1] %vm241, 0
      %258 = vst.msk [vmem:[#allocation2 + $0xc0] sm:$0x1] %vm241, 0
      %259 = vst.msk [vmem:[#allocation2 + $0xcc] sm:$0x1] %vm241, 0
      %260 = vst.msk [vmem:[#allocation2 + $0xd8] sm:$0x1] %vm241, 0
      %261 = vst.msk [vmem:[#allocation2 + $0xe4] sm:$0x1] %vm241, 0
      %vm262 = vcmask 25601
      %263 = vst.msk [vmem:[#allocation2 + $0x8] sm:$0x2] %vm262, 0
      %264 = vst.msk [vmem:[#allocation2 + $0x14] sm:$0x2] %vm262, 0
      %265 = vst.msk [vmem:[#allocation2 + $0x20] sm:$0x2] %vm262, 0
      %266 = vst.msk [vmem:[#allocation2 + $0x2c] sm:$0x2] %vm262, 0
      %267 = vst.msk [vmem:[#allocation2 + $0x38] sm:$0x2] %vm262, 0
      %268 = vst.msk [vmem:[#allocation2 + $0x44] sm:$0x2] %vm262, 0
      %269 = vst.msk [vmem:[#allocation2 + $0x50] sm:$0x2] %vm262, 0
      %270 = vst.msk [vmem:[#allocation2 + $0x5c] sm:$0x2] %vm262, 0
      %271 = vst.msk [vmem:[#allocation2 + $0x68] sm:$0x2] %vm262, 0
      %272 = vst.msk [vmem:[#allocation2 + $0x74] sm:$0x2] %vm262, 0
      %273 = vst.msk [vmem:[#allocation2 + $0x80] sm:$0x2] %vm262, 0
      %274 = vst.msk [vmem:[#allocation2 + $0x8c] sm:$0x2] %vm262, 0
      %275 = vst.msk [vmem:[#allocation2 + $0x98] sm:$0x2] %vm262, 0
      %276 = vst.msk [vmem:[#allocation2 + $0xa4] sm:$0x2] %vm262, 0
      %277 = vst.msk [vmem:[#allocation2 + $0xb0] sm:$0x2] %vm262, 0
      %278 = vst.msk [vmem:[#allocation2 + $0xbc] sm:$0x2] %vm262, 0
      %279 = vst.msk [vmem:[#allocation2 + $0xc8] sm:$0x2] %vm262, 0
      %280 = vst.msk [vmem:[#allocation2 + $0xd4] sm:$0x2] %vm262, 0
      %281 = vst.msk [vmem:[#allocation2 + $0xe0] sm:$0x2] %vm262, 0
      %282 = vst.msk [vmem:[#allocation2 + $0xec] sm:$0x2] %vm262, 0
      %v283 = vld [vmem:[%s219] sm:$0xf]
      %v284 = vld [vmem:[%s219 + $0x4] sm:$0xf]
      %v285 = vld [vmem:[%s219 + $0x8] sm:$0xf]
      %v286 = vld [vmem:[%s219 + $0xc] sm:$0xf]
      %v287 = vld [vmem:[%s219 + $0x10] sm:$0xf]
      %v288 = vld [vmem:[%s219 + $0x14] sm:$0xf]
      %v289 = vld [vmem:[%s219 + $0x18] sm:$0xf]
      %v290 = vld [vmem:[%s219 + $0x1c] sm:$0xf]
      %v291 = vld [vmem:[%s219 + $0x20] sm:$0xf]
      %v292 = vld [vmem:[%s219 + $0x24] sm:$0xf]
      %v293 = vld [vmem:[%s219 + $0x28] sm:$0xf]
      %v294 = vld [vmem:[%s219 + $0x2c] sm:$0xf]
      %v295 = vld [vmem:[%s219 + $0x30] sm:$0xf]
      %v296 = vld [vmem:[%s219 + $0x34] sm:$0xf]
      %v297 = vld [vmem:[%s219 + $0x38] sm:$0xf]
      %v298 = vld [vmem:[%s219 + $0x3c] sm:$0xf]
      %v299 = vld [vmem:[%s219 + $0x40] sm:$0xf]
      %v300 = vld [vmem:[%s219 + $0x44] sm:$0xf]
      %v301 = vld [vmem:[%s219 + $0x48] sm:$0xf]
      %v302 = vld [vmem:[%s219 + $0x4c] sm:$0xf]
      %v303 = vld [vmem:[%s219 + $0x50] sm:$0xf]
      %v304 = vld [vmem:[%s219 + $0x54] sm:$0xf]
      %v305 = vld [vmem:[%s219 + $0x58] sm:$0xf]
      %v306 = vld [vmem:[%s219 + $0x5c] sm:$0xf]
      %v307 = vld [vmem:[%s219 + $0x60] sm:$0xf]
      %v308 = vld [vmem:[%s219 + $0x64] sm:$0xf]
      %v309 = vld [vmem:[%s219 + $0x68] sm:$0xf]
      %v310 = vld [vmem:[%s219 + $0x6c] sm:$0xf]
      %v311 = vld [vmem:[%s219 + $0x70] sm:$0xf]
      %v312 = vld [vmem:[%s219 + $0x74] sm:$0xf]
      %v313 = vld [vmem:[%s219 + $0x78] sm:$0xf]
      %v314 = vld [vmem:[%s219 + $0x7c] sm:$0xf]
      %vm347 = vcmask 1040384
      %vm348 = vcmask 1044484
      %vm349 = vmor %vm347, %vm348
      %v350 = vrot.slane %v283, 7
      %v351 = vrot.slane %v350, 4
      %v352 = vrot.slane %v284, 7
      %v353 = vsel %vm349, %v351, %v352
      %v354 = vrot.slane %v352, 4
      %v355 = vrot.slane %v285, 7
      %v356 = vrot.slane %v355, 4
      %v357 = vrot.slane %v286, 7
      %v358 = vsel %vm349, %v356, %v357
      %v359 = vrot.slane %v357, 4
      %v360 = vrot.slane %v287, 7
      %v361 = vrot.slane %v360, 4
      %v362 = vrot.slane %v288, 7
      %v363 = vsel %vm349, %v361, %v362
      %v364 = vrot.slane %v362, 4
      %v365 = vrot.slane %v289, 7
      %v366 = vrot.slane %v365, 4
      %v367 = vrot.slane %v290, 7
      %v368 = vsel %vm349, %v366, %v367
      %v369 = vrot.slane %v367, 4
      %v370 = vrot.slane %v291, 7
      %v371 = vrot.slane %v370, 4
      %v372 = vrot.slane %v292, 7
      %v373 = vsel %vm349, %v371, %v372
      %v374 = vrot.slane %v372, 4
      %v375 = vrot.slane %v293, 7
      %v376 = vrot.slane %v375, 4
      %v377 = vrot.slane %v294, 7
      %v378 = vsel %vm349, %v376, %v377
      %v379 = vrot.slane %v377, 4
      %v380 = vrot.slane %v295, 7
      %v381 = vrot.slane %v380, 4
      %v382 = vrot.slane %v296, 7
      %v383 = vsel %vm349, %v381, %v382
      %v384 = vrot.slane %v382, 4
      %v385 = vrot.slane %v297, 7
      %v386 = vrot.slane %v385, 4
      %v387 = vrot.slane %v298, 7
      %v388 = vsel %vm349, %v386, %v387
      %v389 = vrot.slane %v387, 4
      %v390 = vrot.slane %v299, 7
      %v391 = vrot.slane %v390, 4
      %v392 = vrot.slane %v300, 7
      %v393 = vsel %vm349, %v391, %v392
      %v394 = vrot.slane %v392, 4
      %v395 = vrot.slane %v301, 7
      %v396 = vrot.slane %v395, 4
      %v397 = vrot.slane %v302, 7
      %v398 = vsel %vm349, %v396, %v397
      %v399 = vrot.slane %v397, 4
      %v400 = vrot.slane %v303, 7
      %v401 = vrot.slane %v400, 4
      %v402 = vrot.slane %v304, 7
      %v403 = vsel %vm349, %v401, %v402
      %v404 = vrot.slane %v402, 4
      %v405 = vrot.slane %v305, 7
      %v406 = vrot.slane %v405, 4
      %v407 = vrot.slane %v306, 7
      %v408 = vsel %vm349, %v406, %v407
      %v409 = vrot.slane %v407, 4
      %v410 = vrot.slane %v307, 7
      %v411 = vrot.slane %v410, 4
      %v412 = vrot.slane %v308, 7
      %v413 = vsel %vm349, %v411, %v412
      %v414 = vrot.slane %v412, 4
      %v415 = vrot.slane %v309, 7
      %v416 = vrot.slane %v415, 4
      %v417 = vrot.slane %v310, 7
      %v418 = vsel %vm349, %v416, %v417
      %v419 = vrot.slane %v417, 4
      %v420 = vrot.slane %v311, 7
      %v421 = vrot.slane %v420, 4
      %v422 = vrot.slane %v312, 7
      %v423 = vsel %vm349, %v421, %v422
      %v424 = vrot.slane %v422, 4
      %v425 = vrot.slane %v313, 7
      %v426 = vrot.slane %v425, 4
      %v427 = vrot.slane %v314, 7
      %v428 = vsel %vm349, %v426, %v427
      %v429 = vrot.slane %v427, 4
      %s478 = scalar_lea.vmem [#allocation2], 24
      %vm479 = vcmask 27649
      %480 = vst.msk [vmem:[%s478] sm:$0xe] %vm479, %v350
      %481 = vst.msk [vmem:[%s478 + $0x4] sm:$0xf] %vm226, %v353
      %482 = vst.msk [vmem:[%s478 + $0x8] sm:$0x1] %vm241, %v354
      %483 = vst.msk [vmem:[%s478 + $0xc] sm:$0xe] %vm479, %v355
      %484 = vst.msk [vmem:[%s478 + $0x10] sm:$0xf] %vm226, %v358
      %485 = vst.msk [vmem:[%s478 + $0x14] sm:$0x1] %vm241, %v359
      %486 = vst.msk [vmem:[%s478 + $0x18] sm:$0xe] %vm479, %v360
      %487 = vst.msk [vmem:[%s478 + $0x1c] sm:$0xf] %vm226, %v363
      %488 = vst.msk [vmem:[%s478 + $0x20] sm:$0x1] %vm241, %v364
      %489 = vst.msk [vmem:[%s478 + $0x24] sm:$0xe] %vm479, %v365
      %490 = vst.msk [vmem:[%s478 + $0x28] sm:$0xf] %vm226, %v368
      %491 = vst.msk [vmem:[%s478 + $0x2c] sm:$0x1] %vm241, %v369
      %492 = vst.msk [vmem:[%s478 + $0x30] sm:$0xe] %vm479, %v370
      %493 = vst.msk [vmem:[%s478 + $0x34] sm:$0xf] %vm226, %v373
      %494 = vst.msk [vmem:[%s478 + $0x38] sm:$0x1] %vm241, %v374
      %495 = vst.msk [vmem:[%s478 + $0x3c] sm:$0xe] %vm479, %v375
      %496 = vst.msk [vmem:[%s478 + $0x40] sm:$0xf] %vm226, %v378
      %497 = vst.msk [vmem:[%s478 + $0x44] sm:$0x1] %vm241, %v379
      %498 = vst.msk [vmem:[%s478 + $0x48] sm:$0xe] %vm479, %v380
      %499 = vst.msk [vmem:[%s478 + $0x4c] sm:$0xf] %vm226, %v383
      %500 = vst.msk [vmem:[%s478 + $0x50] sm:$0x1] %vm241, %v384
      %501 = vst.msk [vmem:[%s478 + $0x54] sm:$0xe] %vm479, %v385
      %502 = vst.msk [vmem:[%s478 + $0x58] sm:$0xf] %vm226, %v388
      %503 = vst.msk [vmem:[%s478 + $0x5c] sm:$0x1] %vm241, %v389
      %504 = vst.msk [vmem:[%s478 + $0x60] sm:$0xe] %vm479, %v390
      %505 = vst.msk [vmem:[%s478 + $0x64] sm:$0xf] %vm226, %v393
      %506 = vst.msk [vmem:[%s478 + $0x68] sm:$0x1] %vm241, %v394
      %507 = vst.msk [vmem:[%s478 + $0x6c] sm:$0xe] %vm479, %v395
      %508 = vst.msk [vmem:[%s478 + $0x70] sm:$0xf] %vm226, %v398
      %509 = vst.msk [vmem:[%s478 + $0x74] sm:$0x1] %vm241, %v399
      %510 = vst.msk [vmem:[%s478 + $0x78] sm:$0xe] %vm479, %v400
      %511 = vst.msk [vmem:[%s478 + $0x7c] sm:$0xf] %vm226, %v403
      %512 = vst.msk [vmem:[%s478 + $0x80] sm:$0x1] %vm241, %v404
      %513 = vst.msk [vmem:[%s478 + $0x84] sm:$0xe] %vm479, %v405
      %514 = vst.msk [vmem:[%s478 + $0x88] sm:$0xf] %vm226, %v408
      %515 = vst.msk [vmem:[%s478 + $0x8c] sm:$0x1] %vm241, %v409
      %516 = vst.msk [vmem:[%s478 + $0x90] sm:$0xe] %vm479, %v410
      %517 = vst.msk [vmem:[%s478 + $0x94] sm:$0xf] %vm226, %v413
      %518 = vst.msk [vmem:[%s478 + $0x98] sm:$0x1] %vm241, %v414
      %519 = vst.msk [vmem:[%s478 + $0x9c] sm:$0xe] %vm479, %v415
      %520 = vst.msk [vmem:[%s478 + $0xa0] sm:$0xf] %vm226, %v418
      %521 = vst.msk [vmem:[%s478 + $0xa4] sm:$0x1] %vm241, %v419
      %522 = vst.msk [vmem:[%s478 + $0xa8] sm:$0xe] %vm479, %v420
      %523 = vst.msk [vmem:[%s478 + $0xac] sm:$0xf] %vm226, %v423
      %524 = vst.msk [vmem:[%s478 + $0xb0] sm:$0x1] %vm241, %v424
      %525 = vst.msk [vmem:[%s478 + $0xb4] sm:$0xe] %vm479, %v425
      %526 = vst.msk [vmem:[%s478 + $0xb8] sm:$0xf] %vm226, %v428
      %527 = vst.msk [vmem:[%s478 + $0xbc] sm:$0x1] %vm241, %v429
      %v528 = vld [vmem:[#allocation2] sm:$0xf]
      %v529 = vld [vmem:[#allocation2 + $0x4] sm:$0xf]
      %v530 = vld [vmem:[#allocation2 + $0xc] sm:$0xf]
      %v531 = vld [vmem:[#allocation2 + $0x10] sm:$0xf]
      %v532 = vld [vmem:[#allocation2 + $0x18] sm:$0xf]
      %v533 = vld [vmem:[#allocation2 + $0x1c] sm:$0xf]
      %v534 = vld [vmem:[#allocation2 + $0x24] sm:$0xf]
      %v535 = vld [vmem:[#allocation2 + $0x28] sm:$0xf]
      %v536 = vld [vmem:[#allocation2 + $0x30] sm:$0xf]
      %v537 = vld [vmem:[#allocation2 + $0x34] sm:$0xf]
      %v538 = vld [vmem:[#allocation2 + $0x3c] sm:$0xf]
      %v539 = vld [vmem:[#allocation2 + $0x40] sm:$0xf]
      %v540 = vld [vmem:[#allocation2 + $0x48] sm:$0xf]
      %v541 = vld [vmem:[#allocation2 + $0x4c] sm:$0xf]
      %v542 = vld [vmem:[#allocation2 + $0x54] sm:$0xf]
      %v543 = vld [vmem:[#allocation2 + $0x58] sm:$0xf]
      %v544 = vld [vmem:[#allocation2 + $0x60] sm:$0xf]
      %v545 = vld [vmem:[#allocation2 + $0x64] sm:$0xf]
      %v546 = vld [vmem:[#allocation2 + $0x6c] sm:$0xf]
      %v547 = vld [vmem:[#allocation2 + $0x70] sm:$0xf]
      %v548 = vld [vmem:[#allocation2 + $0x78] sm:$0xf]
      %v549 = vld [vmem:[#allocation2 + $0x7c] sm:$0xf]
      %v550 = vld [vmem:[#allocation2 + $0x84] sm:$0xf]
      %v551 = vld [vmem:[#allocation2 + $0x88] sm:$0xf]
      %v552 = vld [vmem:[#allocation2 + $0x90] sm:$0xf]
      %v553 = vld [vmem:[#allocation2 + $0x94] sm:$0xf]
      %v554 = vld [vmem:[#allocation2 + $0x9c] sm:$0xf]
      %v555 = vld [vmem:[#allocation2 + $0xa0] sm:$0xf]
      %v556 = vld [vmem:[#allocation2 + $0xa8] sm:$0xf]
      %v557 = vld [vmem:[#allocation2 + $0xac] sm:$0xf]
      %v558 = vld [vmem:[#allocation2 + $0xb4] sm:$0xf]
      %v559 = vld [vmem:[#allocation2 + $0xb8] sm:$0xf]
      %v592 = vunpack.c.l.b16 %v528
      %v593 = vunpack.c.l.b16 %v529
      %v594 = vunpack.c.l.b16 %v530
      %v595 = vunpack.c.l.b16 %v531
      %v596 = vunpack.c.l.b16 %v532
      %v597 = vunpack.c.l.b16 %v533
      %v598 = vunpack.c.l.b16 %v534
      %v599 = vunpack.c.l.b16 %v535
      %v600 = vunpack.c.l.b16 %v536
      %v601 = vunpack.c.l.b16 %v537
      %v602 = vunpack.c.l.b16 %v538
      %v603 = vunpack.c.l.b16 %v539
      %v604 = vunpack.c.l.b16 %v540
      %v605 = vunpack.c.l.b16 %v541
      %v606 = vunpack.c.l.b16 %v542
      %v607 = vunpack.c.l.b16 %v543
      %v608 = vunpack.c.l.b16 %v544
      %v609 = vunpack.c.l.b16 %v545
      %v610 = vunpack.c.l.b16 %v546
      %v611 = vunpack.c.l.b16 %v547
      %v612 = vunpack.c.l.b16 %v548
      %v613 = vunpack.c.l.b16 %v549
      %v614 = vunpack.c.l.b16 %v550
      %v615 = vunpack.c.l.b16 %v551
      %v616 = vunpack.c.l.b16 %v552
      %v617 = vunpack.c.l.b16 %v553
      %v618 = vunpack.c.l.b16 %v554
      %v619 = vunpack.c.l.b16 %v555
      %v620 = vunpack.c.l.b16 %v556
      %v621 = vunpack.c.l.b16 %v557
      %v622 = vunpack.c.l.b16 %v558
      %v623 = vunpack.c.l.b16 %v559
      %v624 = vpack.c.b16 %v593, %v592
      %v625 = vpack.c.b16 %v595, %v594
      %v626 = vpack.c.b16 %v597, %v596
      %v627 = vpack.c.b16 %v599, %v598
      %v628 = vpack.c.b16 %v601, %v600
      %v629 = vpack.c.b16 %v603, %v602
      %v630 = vpack.c.b16 %v605, %v604
      %v631 = vpack.c.b16 %v607, %v606
      %v632 = vpack.c.b16 %v609, %v608
      %v633 = vpack.c.b16 %v611, %v610
      %v634 = vpack.c.b16 %v613, %v612
      %v635 = vpack.c.b16 %v615, %v614
      %v636 = vpack.c.b16 %v617, %v616
      %v637 = vpack.c.b16 %v619, %v618
      %v638 = vpack.c.b16 %v621, %v620
      %v639 = vpack.c.b16 %v623, %v622
      %vm656 = vcmask 31744
      %657 = vst.msk [vmem:[#allocation4] sm:$0xff] %vm656, %v624
      %658 = vst.msk [vmem:[#allocation4 + $0x8] sm:$0xff] %vm656, %v625
      %659 = vst.msk [vmem:[#allocation4 + $0x10] sm:$0xff] %vm656, %v626
      %660 = vst.msk [vmem:[#allocation4 + $0x18] sm:$0xff] %vm656, %v627
      %661 = vst.msk [vmem:[#allocation4 + $0x20] sm:$0xff] %vm656, %v628
      %662 = vst.msk [vmem:[#allocation4 + $0x28] sm:$0xff] %vm656, %v629
      %663 = vst.msk [vmem:[#allocation4 + $0x30] sm:$0xff] %vm656, %v630
      %664 = vst.msk [vmem:[#allocation4 + $0x38] sm:$0xff] %vm656, %v631
      %665 = vst.msk [vmem:[#allocation4 + $0x40] sm:$0xff] %vm656, %v632
      %666 = vst.msk [vmem:[#allocation4 + $0x48] sm:$0xff] %vm656, %v633
      %667 = vst.msk [vmem:[#allocation4 + $0x50] sm:$0xff] %vm656, %v634
      %668 = vst.msk [vmem:[#allocation4 + $0x58] sm:$0xff] %vm656, %v635
      %669 = vst.msk [vmem:[#allocation4 + $0x60] sm:$0xff] %vm656, %v636
      %670 = vst.msk [vmem:[#allocation4 + $0x68] sm:$0xff] %vm656, %v637
      %671 = vst.msk [vmem:[#allocation4 + $0x70] sm:$0xff] %vm656, %v638
      %672 = vst.msk [vmem:[#allocation4 + $0x78] sm:$0xff] %vm656, %v639
      %v673 = vld [vmem:[#allocation2] sm:$0xe]
      %v674 = vld [vmem:[#allocation2 + $0x4] sm:$0xf]
      %v675 = vld [vmem:[#allocation2 + $0x8] sm:$0x1]
      %v676 = vld [vmem:[#allocation2 + $0xc] sm:$0xe]
      %v677 = vld [vmem:[#allocation2 + $0x10] sm:$0xf]
      %v678 = vld [vmem:[#allocation2 + $0x14] sm:$0x1]
      %v679 = vld [vmem:[#allocation2 + $0x18] sm:$0xe]
      %v680 = vld [vmem:[#allocation2 + $0x1c] sm:$0xf]
      %v681 = vld [vmem:[#allocation2 + $0x20] sm:$0x1]
      %v682 = vld [vmem:[#allocation2 + $0x24] sm:$0xe]
      %v683 = vld [vmem:[#allocation2 + $0x28] sm:$0xf]
      %v684 = vld [vmem:[#allocation2 + $0x2c] sm:$0x1]
      %v685 = vld [vmem:[#allocation2 + $0x30] sm:$0xe]
      %v686 = vld [vmem:[#allocation2 + $0x34] sm:$0xf]
      %v687 = vld [vmem:[#allocation2 + $0x38] sm:$0x1]
      %v688 = vld [vmem:[#allocation2 + $0x3c] sm:$0xe]
      %v689 = vld [vmem:[#allocation2 + $0x40] sm:$0xf]
      %v690 = vld [vmem:[#allocation2 + $0x44] sm:$0x1]
      %v691 = vld [vmem:[#allocation2 + $0x48] sm:$0xe]
      %v692 = vld [vmem:[#allocation2 + $0x4c] sm:$0xf]
      %v693 = vld [vmem:[#allocation2 + $0x50] sm:$0x1]
      %v694 = vld [vmem:[#allocation2 + $0x54] sm:$0xe]
      %v695 = vld [vmem:[#allocation2 + $0x58] sm:$0xf]
      %v696 = vld [vmem:[#allocation2 + $0x5c] sm:$0x1]
      %v697 = vld [vmem:[#allocation2 + $0x60] sm:$0xe]
      %v698 = vld [vmem:[#allocation2 + $0x64] sm:$0xf]
      %v699 = vld [vmem:[#allocation2 + $0x68] sm:$0x1]
      %v700 = vld [vmem:[#allocation2 + $0x6c] sm:$0xe]
      %v701 = vld [vmem:[#allocation2 + $0x70] sm:$0xf]
      %v702 = vld [vmem:[#allocation2 + $0x74] sm:$0x1]
      %v703 = vld [vmem:[#allocation2 + $0x78] sm:$0xe]
      %v704 = vld [vmem:[#allocation2 + $0x7c] sm:$0xf]
      %v705 = vld [vmem:[#allocation2 + $0x80] sm:$0x1]
      %v706 = vld [vmem:[#allocation2 + $0x84] sm:$0xe]
      %v707 = vld [vmem:[#allocation2 + $0x88] sm:$0xf]
      %v708 = vld [vmem:[#allocation2 + $0x8c] sm:$0x1]
      %v709 = vld [vmem:[#allocation2 + $0x90] sm:$0xe]
      %v710 = vld [vmem:[#allocation2 + $0x94] sm:$0xf]
      %v711 = vld [vmem:[#allocation2 + $0x98] sm:$0x1]
      %v712 = vld [vmem:[#allocation2 + $0x9c] sm:$0xe]
      %v713 = vld [vmem:[#allocation2 + $0xa0] sm:$0xf]
      %v714 = vld [vmem:[#allocation2 + $0xa4] sm:$0x1]
      %v715 = vld [vmem:[#allocation2 + $0xa8] sm:$0xe]
      %v716 = vld [vmem:[#allocation2 + $0xac] sm:$0xf]
      %v717 = vld [vmem:[#allocation2 + $0xb0] sm:$0x1]
      %v718 = vld [vmem:[#allocation2 + $0xb4] sm:$0xe]
      %v719 = vld [vmem:[#allocation2 + $0xb8] sm:$0xf]
      %v720 = vld [vmem:[#allocation2 + $0xbc] sm:$0x1]
      %v769 = vunpack.c.l.b16 %v673
      %v770 = vunpack.c.l.b16 %v674
      %v771 = vunpack.c.l.b16 %v675
      %v772 = vunpack.c.l.b16 %v676
      %v773 = vunpack.c.l.b16 %v677
      %v774 = vunpack.c.l.b16 %v678
      %v775 = vunpack.c.l.b16 %v679
      %v776 = vunpack.c.l.b16 %v680
      %v777 = vunpack.c.l.b16 %v681
      %v778 = vunpack.c.l.b16 %v682
      %v779 = vunpack.c.l.b16 %v683
      %v780 = vunpack.c.l.b16 %v684
      %v781 = vunpack.c.l.b16 %v685
      %v782 = vunpack.c.l.b16 %v686
      %v783 = vunpack.c.l.b16 %v687
      %v784 = vunpack.c.l.b16 %v688
      %v785 = vunpack.c.l.b16 %v689
      %v786 = vunpack.c.l.b16 %v690
      %v787 = vunpack.c.l.b16 %v691
      %v788 = vunpack.c.l.b16 %v692
      %v789 = vunpack.c.l.b16 %v693
      %v790 = vunpack.c.l.b16 %v694
      %v791 = vunpack.c.l.b16 %v695
      %v792 = vunpack.c.l.b16 %v696
      %v793 = vunpack.c.l.b16 %v697
      %v794 = vunpack.c.l.b16 %v698
      %v795 = vunpack.c.l.b16 %v699
      %v796 = vunpack.c.l.b16 %v700
      %v797 = vunpack.c.l.b16 %v701
      %v798 = vunpack.c.l.b16 %v702
      %v799 = vunpack.c.l.b16 %v703
      %v800 = vunpack.c.l.b16 %v704
      %v801 = vunpack.c.l.b16 %v705
      %v802 = vunpack.c.l.b16 %v706
      %v803 = vunpack.c.l.b16 %v707
      %v804 = vunpack.c.l.b16 %v708
      %v805 = vunpack.c.l.b16 %v709
      %v806 = vunpack.c.l.b16 %v710
      %v807 = vunpack.c.l.b16 %v711
      %v808 = vunpack.c.l.b16 %v712
      %v809 = vunpack.c.l.b16 %v713
      %v810 = vunpack.c.l.b16 %v714
      %v811 = vunpack.c.l.b16 %v715
      %v812 = vunpack.c.l.b16 %v716
      %v813 = vunpack.c.l.b16 %v717
      %v814 = vunpack.c.l.b16 %v718
      %v815 = vunpack.c.l.b16 %v719
      %v816 = vunpack.c.l.b16 %v720
      %v817 = vpack.c.b16 %v770, %v769
      %v818 = vpack.c.b16 %v771, %v771
      %v819 = vpack.c.b16 %v773, %v772
      %v820 = vpack.c.b16 %v774, %v774
      %v821 = vpack.c.b16 %v776, %v775
      %v822 = vpack.c.b16 %v777, %v777
      %v823 = vpack.c.b16 %v779, %v778
      %v824 = vpack.c.b16 %v780, %v780
      %v825 = vpack.c.b16 %v782, %v781
      %v826 = vpack.c.b16 %v783, %v783
      %v827 = vpack.c.b16 %v785, %v784
      %v828 = vpack.c.b16 %v786, %v786
      %v829 = vpack.c.b16 %v788, %v787
      %v830 = vpack.c.b16 %v789, %v789
      %v831 = vpack.c.b16 %v791, %v790
      %v832 = vpack.c.b16 %v792, %v792
      %v833 = vpack.c.b16 %v794, %v793
      %v834 = vpack.c.b16 %v795, %v795
      %v835 = vpack.c.b16 %v797, %v796
      %v836 = vpack.c.b16 %v798, %v798
      %v837 = vpack.c.b16 %v800, %v799
      %v838 = vpack.c.b16 %v801, %v801
      %v839 = vpack.c.b16 %v803, %v802
      %v840 = vpack.c.b16 %v804, %v804
      %v841 = vpack.c.b16 %v806, %v805
      %v842 = vpack.c.b16 %v807, %v807
      %v843 = vpack.c.b16 %v809, %v808
      %v844 = vpack.c.b16 %v810, %v810
      %v845 = vpack.c.b16 %v812, %v811
      %v846 = vpack.c.b16 %v813, %v813
      %v847 = vpack.c.b16 %v815, %v814
      %v848 = vpack.c.b16 %v816, %v816
      %vm849 = vcmask 1046528
      %v850 = vrot.slane %v817, 1
      %v851 = vrot.slane %v818, 1
      %v852 = vsel %vm849, %v850, %v851
      %v853 = vrot.slane %v819, 1
      %v854 = vrot.slane %v820, 1
      %v855 = vsel %vm849, %v853, %v854
      %v856 = vrot.slane %v821, 1
      %v857 = vrot.slane %v822, 1
      %v858 = vsel %vm849, %v856, %v857
      %v859 = vrot.slane %v823, 1
      %v860 = vrot.slane %v824, 1
      %v861 = vsel %vm849, %v859, %v860
      %v862 = vrot.slane %v825, 1
      %v863 = vrot.slane %v826, 1
      %v864 = vsel %vm849, %v862, %v863
      %v865 = vrot.slane %v827, 1
      %v866 = vrot.slane %v828, 1
      %v867 = vsel %vm849, %v865, %v866
      %v868 = vrot.slane %v829, 1
      %v869 = vrot.slane %v830, 1
      %v870 = vsel %vm849, %v868, %v869
      %v871 = vrot.slane %v831, 1
      %v872 = vrot.slane %v832, 1
      %v873 = vsel %vm849, %v871, %v872
      %v874 = vrot.slane %v833, 1
      %v875 = vrot.slane %v834, 1
      %v876 = vsel %vm849, %v874, %v875
      %v877 = vrot.slane %v835, 1
      %v878 = vrot.slane %v836, 1
      %v879 = vsel %vm849, %v877, %v878
      %v880 = vrot.slane %v837, 1
      %v881 = vrot.slane %v838, 1
      %v882 = vsel %vm849, %v880, %v881
      %v883 = vrot.slane %v839, 1
      %v884 = vrot.slane %v840, 1
      %v885 = vsel %vm849, %v883, %v884
      %v886 = vrot.slane %v841, 1
      %v887 = vrot.slane %v842, 1
      %v888 = vsel %vm849, %v886, %v887
      %v889 = vrot.slane %v843, 1
      %v890 = vrot.slane %v844, 1
      %v891 = vsel %vm849, %v889, %v890
      %v892 = vrot.slane %v845, 1
      %v893 = vrot.slane %v846, 1
      %v894 = vsel %vm849, %v892, %v893
      %v895 = vrot.slane %v847, 1
      %v896 = vrot.slane %v848, 1
      %v897 = vsel %vm849, %v895, %v896
      %898 = vrot.lane.b32.xlu0 %v852, 4
      %v899 = vpop.permute.xlu0 %898
      %900 = vrot.lane.b32.xlu0 %v855, 4
      %v901 = vpop.permute.xlu0 %900
      %902 = vrot.lane.b32.xlu0 %v858, 4
      %v903 = vpop.permute.xlu0 %902
      %904 = vrot.lane.b32.xlu0 %v861, 4
      %v905 = vpop.permute.xlu0 %904
      %906 = vrot.lane.b32.xlu0 %v864, 4
      %v907 = vpop.permute.xlu0 %906
      %908 = vrot.lane.b32.xlu0 %v867, 4
      %v909 = vpop.permute.xlu0 %908
      %910 = vrot.lane.b32.xlu0 %v870, 4
      %v911 = vpop.permute.xlu0 %910
      %912 = vrot.lane.b32.xlu0 %v873, 4
      %v913 = vpop.permute.xlu0 %912
      %914 = vrot.lane.b32.xlu0 %v876, 4
      %v915 = vpop.permute.xlu0 %914
      %916 = vrot.lane.b32.xlu0 %v879, 4
      %v917 = vpop.permute.xlu0 %916
      %918 = vrot.lane.b32.xlu0 %v882, 4
      %v919 = vpop.permute.xlu0 %918
      %920 = vrot.lane.b32.xlu0 %v885, 4
      %v921 = vpop.permute.xlu0 %920
      %922 = vrot.lane.b32.xlu0 %v888, 4
      %v923 = vpop.permute.xlu0 %922
      %924 = vrot.lane.b32.xlu0 %v891, 4
      %v925 = vpop.permute.xlu0 %924
      %926 = vrot.lane.b32.xlu0 %v894, 4
      %v927 = vpop.permute.xlu0 %926
      %928 = vrot.lane.b32.xlu0 %v897, 4
      %v929 = vpop.permute.xlu0 %928
      %vm946 = vcmask 64544
      %947 = vst.msk [vmem:[#allocation4] sm:$0xff] %vm946, %v899
      %948 = vst.msk [vmem:[#allocation4 + $0x8] sm:$0xff] %vm946, %v901
      %949 = vst.msk [vmem:[#allocation4 + $0x10] sm:$0xff] %vm946, %v903
      %950 = vst.msk [vmem:[#allocation4 + $0x18] sm:$0xff] %vm946, %v905
      %951 = vst.msk [vmem:[#allocation4 + $0x20] sm:$0xff] %vm946, %v907
      %952 = vst.msk [vmem:[#allocation4 + $0x28] sm:$0xff] %vm946, %v909
      %953 = vst.msk [vmem:[#allocation4 + $0x30] sm:$0xff] %vm946, %v911
      %954 = vst.msk [vmem:[#allocation4 + $0x38] sm:$0xff] %vm946, %v913
      %955 = vst.msk [vmem:[#allocation4 + $0x40] sm:$0xff] %vm946, %v915
      %956 = vst.msk [vmem:[#allocation4 + $0x48] sm:$0xff] %vm946, %v917
      %957 = vst.msk [vmem:[#allocation4 + $0x50] sm:$0xff] %vm946, %v919
      %958 = vst.msk [vmem:[#allocation4 + $0x58] sm:$0xff] %vm946, %v921
      %959 = vst.msk [vmem:[#allocation4 + $0x60] sm:$0xff] %vm946, %v923
      %960 = vst.msk [vmem:[#allocation4 + $0x68] sm:$0xff] %vm946, %v925
      %961 = vst.msk [vmem:[#allocation4 + $0x70] sm:$0xff] %vm946, %v927
      %962 = vst.msk [vmem:[#allocation4 + $0x78] sm:$0xff] %vm946, %v929
      %v963 = vld [vmem:[#allocation2] sm:$0xc]
      %v964 = vld [vmem:[#allocation2 + $0x4] sm:$0xf]
      %v965 = vld [vmem:[#allocation2 + $0x8] sm:$0x3]
      %v966 = vld [vmem:[#allocation2 + $0xc] sm:$0xc]
      %v967 = vld [vmem:[#allocation2 + $0x10] sm:$0xf]
      %v968 = vld [vmem:[#allocation2 + $0x14] sm:$0x3]
      %v969 = vld [vmem:[#allocation2 + $0x18] sm:$0xc]
      %v970 = vld [vmem:[#allocation2 + $0x1c] sm:$0xf]
      %v971 = vld [vmem:[#allocation2 + $0x20] sm:$0x3]
      %v972 = vld [vmem:[#allocation2 + $0x24] sm:$0xc]
      %v973 = vld [vmem:[#allocation2 + $0x28] sm:$0xf]
      %v974 = vld [vmem:[#allocation2 + $0x2c] sm:$0x3]
      %v975 = vld [vmem:[#allocation2 + $0x30] sm:$0xc]
      %v976 = vld [vmem:[#allocation2 + $0x34] sm:$0xf]
      %v977 = vld [vmem:[#allocation2 + $0x38] sm:$0x3]
      %v978 = vld [vmem:[#allocation2 + $0x3c] sm:$0xc]
      %v979 = vld [vmem:[#allocation2 + $0x40] sm:$0xf]
      %v980 = vld [vmem:[#allocation2 + $0x44] sm:$0x3]
      %v981 = vld [vmem:[#allocation2 + $0x48] sm:$0xc]
      %v982 = vld [vmem:[#allocation2 + $0x4c] sm:$0xf]
      %v983 = vld [vmem:[#allocation2 + $0x50] sm:$0x3]
      %v984 = vld [vmem:[#allocation2 + $0x54] sm:$0xc]
      %v985 = vld [vmem:[#allocation2 + $0x58] sm:$0xf]
      %v986 = vld [vmem:[#allocation2 + $0x5c] sm:$0x3]
      %v987 = vld [vmem:[#allocation2 + $0x60] sm:$0xc]
      %v988 = vld [vmem:[#allocation2 + $0x64] sm:$0xf]
      %v989 = vld [vmem:[#allocation2 + $0x68] sm:$0x3]
      %v990 = vld [vmem:[#allocation2 + $0x6c] sm:$0xc]
      %v991 = vld [vmem:[#allocation2 + $0x70] sm:$0xf]
      %v992 = vld [vmem:[#allocation2 + $0x74] sm:$0x3]
      %v993 = vld [vmem:[#allocation2 + $0x78] sm:$0xc]
      %v994 = vld [vmem:[#allocation2 + $0x7c] sm:$0xf]
      %v995 = vld [vmem:[#allocation2 + $0x80] sm:$0x3]
      %v996 = vld [vmem:[#allocation2 + $0x84] sm:$0xc]
      %v997 = vld [vmem:[#allocation2 + $0x88] sm:$0xf]
      %v998 = vld [vmem:[#allocation2 + $0x8c] sm:$0x3]
      %v999 = vld [vmem:[#allocation2 + $0x90] sm:$0xc]
      %v1000 = vld [vmem:[#allocation2 + $0x94] sm:$0xf]
      %v1001 = vld [vmem:[#allocation2 + $0x98] sm:$0x3]
      %v1002 = vld [vmem:[#allocation2 + $0x9c] sm:$0xc]
      %v1003 = vld [vmem:[#allocation2 + $0xa0] sm:$0xf]
      %v1004 = vld [vmem:[#allocation2 + $0xa4] sm:$0x3]
      %v1005 = vld [vmem:[#allocation2 + $0xa8] sm:$0xc]
      %v1006 = vld [vmem:[#allocation2 + $0xac] sm:$0xf]
      %v1007 = vld [vmem:[#allocation2 + $0xb0] sm:$0x3]
      %v1008 = vld [vmem:[#allocation2 + $0xb4] sm:$0xc]
      %v1009 = vld [vmem:[#allocation2 + $0xb8] sm:$0xf]
      %v1010 = vld [vmem:[#allocation2 + $0xbc] sm:$0x3]
      %v1059 = vunpack.c.l.b16 %v963
      %v1060 = vunpack.c.l.b16 %v964
      %v1061 = vunpack.c.l.b16 %v965
      %v1062 = vunpack.c.l.b16 %v966
      %v1063 = vunpack.c.l.b16 %v967
      %v1064 = vunpack.c.l.b16 %v968
      %v1065 = vunpack.c.l.b16 %v969
      %v1066 = vunpack.c.l.b16 %v970
      %v1067 = vunpack.c.l.b16 %v971
      %v1068 = vunpack.c.l.b16 %v972
      %v1069 = vunpack.c.l.b16 %v973
      %v1070 = vunpack.c.l.b16 %v974
      %v1071 = vunpack.c.l.b16 %v975
      %v1072 = vunpack.c.l.b16 %v976
      %v1073 = vunpack.c.l.b16 %v977
      %v1074 = vunpack.c.l.b16 %v978
      %v1075 = vunpack.c.l.b16 %v979
      %v1076 = vunpack.c.l.b16 %v980
      %v1077 = vunpack.c.l.b16 %v981
      %v1078 = vunpack.c.l.b16 %v982
      %v1079 = vunpack.c.l.b16 %v983
      %v1080 = vunpack.c.l.b16 %v984
      %v1081 = vunpack.c.l.b16 %v985
      %v1082 = vunpack.c.l.b16 %v986
      %v1083 = vunpack.c.l.b16 %v987
      %v1084 = vunpack.c.l.b16 %v988
      %v1085 = vunpack.c.l.b16 %v989
      %v1086 = vunpack.c.l.b16 %v990
      %v1087 = vunpack.c.l.b16 %v991
      %v1088 = vunpack.c.l.b16 %v992
      %v1089 = vunpack.c.l.b16 %v993
      %v1090 = vunpack.c.l.b16 %v994
      %v1091 = vunpack.c.l.b16 %v995
      %v1092 = vunpack.c.l.b16 %v996
      %v1093 = vunpack.c.l.b16 %v997
      %v1094 = vunpack.c.l.b16 %v998
      %v1095 = vunpack.c.l.b16 %v999
      %v1096 = vunpack.c.l.b16 %v1000
      %v1097 = vunpack.c.l.b16 %v1001
      %v1098 = vunpack.c.l.b16 %v1002
      %v1099 = vunpack.c.l.b16 %v1003
      %v1100 = vunpack.c.l.b16 %v1004
      %v1101 = vunpack.c.l.b16 %v1005
      %v1102 = vunpack.c.l.b16 %v1006
      %v1103 = vunpack.c.l.b16 %v1007
      %v1104 = vunpack.c.l.b16 %v1008
      %v1105 = vunpack.c.l.b16 %v1009
      %v1106 = vunpack.c.l.b16 %v1010
      %v1107 = vpack.c.b16 %v1060, %v1059
      %v1108 = vpack.c.b16 %v1061, %v1061
      %v1109 = vpack.c.b16 %v1063, %v1062
      %v1110 = vpack.c.b16 %v1064, %v1064
      %v1111 = vpack.c.b16 %v1066, %v1065
      %v1112 = vpack.c.b16 %v1067, %v1067
      %v1113 = vpack.c.b16 %v1069, %v1068
      %v1114 = vpack.c.b16 %v1070, %v1070
      %v1115 = vpack.c.b16 %v1072, %v1071
      %v1116 = vpack.c.b16 %v1073, %v1073
      %v1117 = vpack.c.b16 %v1075, %v1074
      %v1118 = vpack.c.b16 %v1076, %v1076
      %v1119 = vpack.c.b16 %v1078, %v1077
      %v1120 = vpack.c.b16 %v1079, %v1079
      %v1121 = vpack.c.b16 %v1081, %v1080
      %v1122 = vpack.c.b16 %v1082, %v1082
      %v1123 = vpack.c.b16 %v1084, %v1083
      %v1124 = vpack.c.b16 %v1085, %v1085
      %v1125 = vpack.c.b16 %v1087, %v1086
      %v1126 = vpack.c.b16 %v1088, %v1088
      %v1127 = vpack.c.b16 %v1090, %v1089
      %v1128 = vpack.c.b16 %v1091, %v1091
      %v1129 = vpack.c.b16 %v1093, %v1092
      %v1130 = vpack.c.b16 %v1094, %v1094
      %v1131 = vpack.c.b16 %v1096, %v1095
      %v1132 = vpack.c.b16 %v1097, %v1097
      %v1133 = vpack.c.b16 %v1099, %v1098
      %v1134 = vpack.c.b16 %v1100, %v1100
      %v1135 = vpack.c.b16 %v1102, %v1101
      %v1136 = vpack.c.b16 %v1103, %v1103
      %v1137 = vpack.c.b16 %v1105, %v1104
      %v1138 = vpack.c.b16 %v1106, %v1106
      %vm1139 = vcmask 1045504
      %v1140 = vrot.slane %v1107, 2
      %v1141 = vrot.slane %v1108, 2
      %v1142 = vsel %vm1139, %v1140, %v1141
      %v1143 = vrot.slane %v1109, 2
      %v1144 = vrot.slane %v1110, 2
      %v1145 = vsel %vm1139, %v1143, %v1144
      %v1146 = vrot.slane %v1111, 2
      %v1147 = vrot.slane %v1112, 2
      %v1148 = vsel %vm1139, %v1146, %v1147
      %v1149 = vrot.slane %v1113, 2
      %v1150 = vrot.slane %v1114, 2
      %v1151 = vsel %vm1139, %v1149, %v1150
      %v1152 = vrot.slane %v1115, 2
      %v1153 = vrot.slane %v1116, 2
      %v1154 = vsel %vm1139, %v1152, %v1153
      %v1155 = vrot.slane %v1117, 2
      %v1156 = vrot.slane %v1118, 2
      %v1157 = vsel %vm1139, %v1155, %v1156
      %v1158 = vrot.slane %v1119, 2
      %v1159 = vrot.slane %v1120, 2
      %v1160 = vsel %vm1139, %v1158, %v1159
      %v1161 = vrot.slane %v1121, 2
      %v1162 = vrot.slane %v1122, 2
      %v1163 = vsel %vm1139, %v1161, %v1162
      %v1164 = vrot.slane %v1123, 2
      %v1165 = vrot.slane %v1124, 2
      %v1166 = vsel %vm1139, %v1164, %v1165
      %v1167 = vrot.slane %v1125, 2
      %v1168 = vrot.slane %v1126, 2
      %v1169 = vsel %vm1139, %v1167, %v1168
      %v1170 = vrot.slane %v1127, 2
      %v1171 = vrot.slane %v1128, 2
      %v1172 = vsel %vm1139, %v1170, %v1171
      %v1173 = vrot.slane %v1129, 2
      %v1174 = vrot.slane %v1130, 2
      %v1175 = vsel %vm1139, %v1173, %v1174
      %v1176 = vrot.slane %v1131, 2
      %v1177 = vrot.slane %v1132, 2
      %v1178 = vsel %vm1139, %v1176, %v1177
      %v1179 = vrot.slane %v1133, 2
      %v1180 = vrot.slane %v1134, 2
      %v1181 = vsel %vm1139, %v1179, %v1180
      %v1182 = vrot.slane %v1135, 2
      %v1183 = vrot.slane %v1136, 2
      %v1184 = vsel %vm1139, %v1182, %v1183
      %v1185 = vrot.slane %v1137, 2
      %v1186 = vrot.slane %v1138, 2
      %v1187 = vsel %vm1139, %v1185, %v1186
      %1188 = vrot.lane.b32.xlu0 %v1142, 8
      %v1189 = vpop.permute.xlu0 %1188
      %1190 = vrot.lane.b32.xlu0 %v1145, 8
      %v1191 = vpop.permute.xlu0 %1190
      %1192 = vrot.lane.b32.xlu0 %v1148, 8
      %v1193 = vpop.permute.xlu0 %1192
      %1194 = vrot.lane.b32.xlu0 %v1151, 8
      %v1195 = vpop.permute.xlu0 %1194
      %1196 = vrot.lane.b32.xlu0 %v1154, 8
      %v1197 = vpop.permute.xlu0 %1196
      %1198 = vrot.lane.b32.xlu0 %v1157, 8
      %v1199 = vpop.permute.xlu0 %1198
      %1200 = vrot.lane.b32.xlu0 %v1160, 8
      %v1201 = vpop.permute.xlu0 %1200
      %1202 = vrot.lane.b32.xlu0 %v1163, 8
      %v1203 = vpop.permute.xlu0 %1202
      %1204 = vrot.lane.b32.xlu0 %v1166, 8
      %v1205 = vpop.permute.xlu0 %1204
      %1206 = vrot.lane.b32.xlu0 %v1169, 8
      %v1207 = vpop.permute.xlu0 %1206
      %1208 = vrot.lane.b32.xlu0 %v1172, 8
      %v1209 = vpop.permute.xlu0 %1208
      %1210 = vrot.lane.b32.xlu0 %v1175, 8
      %v1211 = vpop.permute.xlu0 %1210
      %1212 = vrot.lane.b32.xlu0 %v1178, 8
      %v1213 = vpop.permute.xlu0 %1212
      %1214 = vrot.lane.b32.xlu0 %v1181, 8
      %v1215 = vpop.permute.xlu0 %1214
      %1216 = vrot.lane.b32.xlu0 %v1184, 8
      %v1217 = vpop.permute.xlu0 %1216
      %1218 = vrot.lane.b32.xlu0 %v1187, 8
      %v1219 = vpop.permute.xlu0 %1218
      %vm1236 = vcmask 97344
      %1237 = vst.msk [vmem:[#allocation4] sm:$0xff] %vm1236, %v1189
      %1238 = vst.msk [vmem:[#allocation4 + $0x8] sm:$0xff] %vm1236, %v1191
      %1239 = vst.msk [vmem:[#allocation4 + $0x10] sm:$0xff] %vm1236, %v1193
      %1240 = vst.msk [vmem:[#allocation4 + $0x18] sm:$0xff] %vm1236, %v1195
      %1241 = vst.msk [vmem:[#allocation4 + $0x20] sm:$0xff] %vm1236, %v1197
      %1242 = vst.msk [vmem:[#allocation4 + $0x28] sm:$0xff] %vm1236, %v1199
      %1243 = vst.msk [vmem:[#allocation4 + $0x30] sm:$0xff] %vm1236, %v1201
      %1244 = vst.msk [vmem:[#allocation4 + $0x38] sm:$0xff] %vm1236, %v1203
      %1245 = vst.msk [vmem:[#allocation4 + $0x40] sm:$0xff] %vm1236, %v1205
      %1246 = vst.msk [vmem:[#allocation4 + $0x48] sm:$0xff] %vm1236, %v1207
      %1247 = vst.msk [vmem:[#allocation4 + $0x50] sm:$0xff] %vm1236, %v1209
      %1248 = vst.msk [vmem:[#allocation4 + $0x58] sm:$0xff] %vm1236, %v1211
      %1249 = vst.msk [vmem:[#allocation4 + $0x60] sm:$0xff] %vm1236, %v1213
      %1250 = vst.msk [vmem:[#allocation4 + $0x68] sm:$0xff] %vm1236, %v1215
      %1251 = vst.msk [vmem:[#allocation4 + $0x70] sm:$0xff] %vm1236, %v1217
      %1252 = vst.msk [vmem:[#allocation4 + $0x78] sm:$0xff] %vm1236, %v1219
      %v1253 = vld [vmem:[%s478] sm:$0xf]
      %v1254 = vld [vmem:[%s478 + $0x4] sm:$0xf]
      %v1255 = vld [vmem:[%s478 + $0xc] sm:$0xf]
      %v1256 = vld [vmem:[%s478 + $0x10] sm:$0xf]
      %v1257 = vld [vmem:[%s478 + $0x18] sm:$0xf]
      %v1258 = vld [vmem:[%s478 + $0x1c] sm:$0xf]
      %v1259 = vld [vmem:[%s478 + $0x24] sm:$0xf]
      %v1260 = vld [vmem:[%s478 + $0x28] sm:$0xf]
      %v1261 = vld [vmem:[%s478 + $0x30] sm:$0xf]
      %v1262 = vld [vmem:[%s478 + $0x34] sm:$0xf]
      %v1263 = vld [vmem:[%s478 + $0x3c] sm:$0xf]
      %v1264 = vld [vmem:[%s478 + $0x40] sm:$0xf]
      %v1265 = vld [vmem:[%s478 + $0x48] sm:$0xf]
      %v1266 = vld [vmem:[%s478 + $0x4c] sm:$0xf]
      %v1267 = vld [vmem:[%s478 + $0x54] sm:$0xf]
      %v1268 = vld [vmem:[%s478 + $0x58] sm:$0xf]
      %v1269 = vld [vmem:[%s478 + $0x60] sm:$0xf]
      %v1270 = vld [vmem:[%s478 + $0x64] sm:$0xf]
      %v1271 = vld [vmem:[%s478 + $0x6c] sm:$0xf]
      %v1272 = vld [vmem:[%s478 + $0x70] sm:$0xf]
      %v1273 = vld [vmem:[%s478 + $0x78] sm:$0xf]
      %v1274 = vld [vmem:[%s478 + $0x7c] sm:$0xf]
      %v1275 = vld [vmem:[%s478 + $0x84] sm:$0xf]
      %v1276 = vld [vmem:[%s478 + $0x88] sm:$0xf]
      %v1277 = vld [vmem:[%s478 + $0x90] sm:$0xf]
      %v1278 = vld [vmem:[%s478 + $0x94] sm:$0xf]
      %v1279 = vld [vmem:[%s478 + $0x9c] sm:$0xf]
      %v1280 = vld [vmem:[%s478 + $0xa0] sm:$0xf]
      %v1281 = vld [vmem:[%s478 + $0xa8] sm:$0xf]
      %v1282 = vld [vmem:[%s478 + $0xac] sm:$0xf]
      %v1283 = vld [vmem:[%s478 + $0xb4] sm:$0xf]
      %v1284 = vld [vmem:[%s478 + $0xb8] sm:$0xf]
      %v1317 = vunpack.c.l.b16 %v1253
      %v1318 = vunpack.c.l.b16 %v1254
      %v1319 = vunpack.c.l.b16 %v1255
      %v1320 = vunpack.c.l.b16 %v1256
      %v1321 = vunpack.c.l.b16 %v1257
      %v1322 = vunpack.c.l.b16 %v1258
      %v1323 = vunpack.c.l.b16 %v1259
      %v1324 = vunpack.c.l.b16 %v1260
      %v1325 = vunpack.c.l.b16 %v1261
      %v1326 = vunpack.c.l.b16 %v1262
      %v1327 = vunpack.c.l.b16 %v1263
      %v1328 = vunpack.c.l.b16 %v1264
      %v1329 = vunpack.c.l.b16 %v1265
      %v1330 = vunpack.c.l.b16 %v1266
      %v1331 = vunpack.c.l.b16 %v1267
      %v1332 = vunpack.c.l.b16 %v1268
      %v1333 = vunpack.c.l.b16 %v1269
      %v1334 = vunpack.c.l.b16 %v1270
      %v1335 = vunpack.c.l.b16 %v1271
      %v1336 = vunpack.c.l.b16 %v1272
      %v1337 = vunpack.c.l.b16 %v1273
      %v1338 = vunpack.c.l.b16 %v1274
      %v1339 = vunpack.c.l.b16 %v1275
      %v1340 = vunpack.c.l.b16 %v1276
      %v1341 = vunpack.c.l.b16 %v1277
      %v1342 = vunpack.c.l.b16 %v1278
      %v1343 = vunpack.c.l.b16 %v1279
      %v1344 = vunpack.c.l.b16 %v1280
      %v1345 = vunpack.c.l.b16 %v1281
      %v1346 = vunpack.c.l.b16 %v1282
      %v1347 = vunpack.c.l.b16 %v1283
      %v1348 = vunpack.c.l.b16 %v1284
      %v1349 = vpack.c.b16 %v1318, %v1317
      %v1350 = vpack.c.b16 %v1320, %v1319
      %v1351 = vpack.c.b16 %v1322, %v1321
      %v1352 = vpack.c.b16 %v1324, %v1323
      %v1353 = vpack.c.b16 %v1326, %v1325
      %v1354 = vpack.c.b16 %v1328, %v1327
      %v1355 = vpack.c.b16 %v1330, %v1329
      %v1356 = vpack.c.b16 %v1332, %v1331
      %v1357 = vpack.c.b16 %v1334, %v1333
      %v1358 = vpack.c.b16 %v1336, %v1335
      %v1359 = vpack.c.b16 %v1338, %v1337
      %v1360 = vpack.c.b16 %v1340, %v1339
      %v1361 = vpack.c.b16 %v1342, %v1341
      %v1362 = vpack.c.b16 %v1344, %v1343
      %v1363 = vpack.c.b16 %v1346, %v1345
      %v1364 = vpack.c.b16 %v1348, %v1347
      %1365 = vrot.lane.b32.xlu0 %v1349, 12
      %v1366 = vpop.permute.xlu0 %1365
      %1367 = vrot.lane.b32.xlu0 %v1350, 12
      %v1368 = vpop.permute.xlu0 %1367
      %1369 = vrot.lane.b32.xlu0 %v1351, 12
      %v1370 = vpop.permute.xlu0 %1369
      %1371 = vrot.lane.b32.xlu0 %v1352, 12
      %v1372 = vpop.permute.xlu0 %1371
      %1373 = vrot.lane.b32.xlu0 %v1353, 12
      %v1374 = vpop.permute.xlu0 %1373
      %1375 = vrot.lane.b32.xlu0 %v1354, 12
      %v1376 = vpop.permute.xlu0 %1375
      %1377 = vrot.lane.b32.xlu0 %v1355, 12
      %v1378 = vpop.permute.xlu0 %1377
      %1379 = vrot.lane.b32.xlu0 %v1356, 12
      %v1380 = vpop.permute.xlu0 %1379
      %1381 = vrot.lane.b32.xlu0 %v1357, 12
      %v1382 = vpop.permute.xlu0 %1381
      %1383 = vrot.lane.b32.xlu0 %v1358, 12
      %v1384 = vpop.permute.xlu0 %1383
      %1385 = vrot.lane.b32.xlu0 %v1359, 12
      %v1386 = vpop.permute.xlu0 %1385
      %1387 = vrot.lane.b32.xlu0 %v1360, 12
      %v1388 = vpop.permute.xlu0 %1387
      %1389 = vrot.lane.b32.xlu0 %v1361, 12
      %v1390 = vpop.permute.xlu0 %1389
      %1391 = vrot.lane.b32.xlu0 %v1362, 12
      %v1392 = vpop.permute.xlu0 %1391
      %1393 = vrot.lane.b32.xlu0 %v1363, 12
      %v1394 = vpop.permute.xlu0 %1393
      %1395 = vrot.lane.b32.xlu0 %v1364, 12
      %v1396 = vpop.permute.xlu0 %1395
      %vm1413 = vcmask 130144
      %1414 = vst.msk [vmem:[#allocation4] sm:$0xff] %vm1413, %v1366
      %1415 = vst.msk [vmem:[#allocation4 + $0x8] sm:$0xff] %vm1413, %v1368
      %1416 = vst.msk [vmem:[#allocation4 + $0x10] sm:$0xff] %vm1413, %v1370
      %1417 = vst.msk [vmem:[#allocation4 + $0x18] sm:$0xff] %vm1413, %v1372
      %1418 = vst.msk [vmem:[#allocation4 + $0x20] sm:$0xff] %vm1413, %v1374
      %1419 = vst.msk [vmem:[#allocation4 + $0x28] sm:$0xff] %vm1413, %v1376
      %1420 = vst.msk [vmem:[#allocation4 + $0x30] sm:$0xff] %vm1413, %v1378
      %1421 = vst.msk [vmem:[#allocation4 + $0x38] sm:$0xff] %vm1413, %v1380
      %1422 = vst.msk [vmem:[#allocation4 + $0x40] sm:$0xff] %vm1413, %v1382
      %1423 = vst.msk [vmem:[#allocation4 + $0x48] sm:$0xff] %vm1413, %v1384
      %1424 = vst.msk [vmem:[#allocation4 + $0x50] sm:$0xff] %vm1413, %v1386
      %1425 = vst.msk [vmem:[#allocation4 + $0x58] sm:$0xff] %vm1413, %v1388
      %1426 = vst.msk [vmem:[#allocation4 + $0x60] sm:$0xff] %vm1413, %v1390
      %1427 = vst.msk [vmem:[#allocation4 + $0x68] sm:$0xff] %vm1413, %v1392
      %1428 = vst.msk [vmem:[#allocation4 + $0x70] sm:$0xff] %vm1413, %v1394
      %1429 = vst.msk [vmem:[#allocation4 + $0x78] sm:$0xff] %vm1413, %v1396
      %v1430 = vld [vmem:[%s478] sm:$0xe]
      %v1431 = vld [vmem:[%s478 + $0x4] sm:$0xf]
      %v1432 = vld [vmem:[%s478 + $0x8] sm:$0x1]
      %v1433 = vld [vmem:[%s478 + $0xc] sm:$0xe]
      %v1434 = vld [vmem:[%s478 + $0x10] sm:$0xf]
      %v1435 = vld [vmem:[%s478 + $0x14] sm:$0x1]
      %v1436 = vld [vmem:[%s478 + $0x18] sm:$0xe]
      %v1437 = vld [vmem:[%s478 + $0x1c] sm:$0xf]
      %v1438 = vld [vmem:[%s478 + $0x20] sm:$0x1]
      %v1439 = vld [vmem:[%s478 + $0x24] sm:$0xe]
      %v1440 = vld [vmem:[%s478 + $0x28] sm:$0xf]
      %v1441 = vld [vmem:[%s478 + $0x2c] sm:$0x1]
      %v1442 = vld [vmem:[%s478 + $0x30] sm:$0xe]
      %v1443 = vld [vmem:[%s478 + $0x34] sm:$0xf]
      %v1444 = vld [vmem:[%s478 + $0x38] sm:$0x1]
      %v1445 = vld [vmem:[%s478 + $0x3c] sm:$0xe]
      %v1446 = vld [vmem:[%s478 + $0x40] sm:$0xf]
      %v1447 = vld [vmem:[%s478 + $0x44] sm:$0x1]
      %v1448 = vld [vmem:[%s478 + $0x48] sm:$0xe]
      %v1449 = vld [vmem:[%s478 + $0x4c] sm:$0xf]
      %v1450 = vld [vmem:[%s478 + $0x50] sm:$0x1]
      %v1451 = vld [vmem:[%s478 + $0x54] sm:$0xe]
      %v1452 = vld [vmem:[%s478 + $0x58] sm:$0xf]
      %v1453 = vld [vmem:[%s478 + $0x5c] sm:$0x1]
      %v1454 = vld [vmem:[%s478 + $0x60] sm:$0xe]
      %v1455 = vld [vmem:[%s478 + $0x64] sm:$0xf]
      %v1456 = vld [vmem:[%s478 + $0x68] sm:$0x1]
      %v1457 = vld [vmem:[%s478 + $0x6c] sm:$0xe]
      %v1458 = vld [vmem:[%s478 + $0x70] sm:$0xf]
      %v1459 = vld [vmem:[%s478 + $0x74] sm:$0x1]
      %v1460 = vld [vmem:[%s478 + $0x78] sm:$0xe]
      %v1461 = vld [vmem:[%s478 + $0x7c] sm:$0xf]
      %v1462 = vld [vmem:[%s478 + $0x80] sm:$0x1]
      %v1463 = vld [vmem:[%s478 + $0x84] sm:$0xe]
      %v1464 = vld [vmem:[%s478 + $0x88] sm:$0xf]
      %v1465 = vld [vmem:[%s478 + $0x8c] sm:$0x1]
      %v1466 = vld [vmem:[%s478 + $0x90] sm:$0xe]
      %v1467 = vld [vmem:[%s478 + $0x94] sm:$0xf]
      %v1468 = vld [vmem:[%s478 + $0x98] sm:$0x1]
      %v1469 = vld [vmem:[%s478 + $0x9c] sm:$0xe]
      %v1470 = vld [vmem:[%s478 + $0xa0] sm:$0xf]
      %v1471 = vld [vmem:[%s478 + $0xa4] sm:$0x1]
      %v1472 = vld [vmem:[%s478 + $0xa8] sm:$0xe]
      %v1473 = vld [vmem:[%s478 + $0xac] sm:$0xf]
      %v1474 = vld [vmem:[%s478 + $0xb0] sm:$0x1]
      %v1475 = vld [vmem:[%s478 + $0xb4] sm:$0xe]
      %v1476 = vld [vmem:[%s478 + $0xb8] sm:$0xf]
      %v1477 = vld [vmem:[%s478 + $0xbc] sm:$0x1]
      %v1526 = vunpack.c.l.b16 %v1430
      %v1527 = vunpack.c.l.b16 %v1431
      %v1528 = vunpack.c.l.b16 %v1432
      %v1529 = vunpack.c.l.b16 %v1433
      %v1530 = vunpack.c.l.b16 %v1434
      %v1531 = vunpack.c.l.b16 %v1435
      %v1532 = vunpack.c.l.b16 %v1436
      %v1533 = vunpack.c.l.b16 %v1437
      %v1534 = vunpack.c.l.b16 %v1438
      %v1535 = vunpack.c.l.b16 %v1439
      %v1536 = vunpack.c.l.b16 %v1440
      %v1537 = vunpack.c.l.b16 %v1441
      %v1538 = vunpack.c.l.b16 %v1442
      %v1539 = vunpack.c.l.b16 %v1443
      %v1540 = vunpack.c.l.b16 %v1444
      %v1541 = vunpack.c.l.b16 %v1445
      %v1542 = vunpack.c.l.b16 %v1446
      %v1543 = vunpack.c.l.b16 %v1447
      %v1544 = vunpack.c.l.b16 %v1448
      %v1545 = vunpack.c.l.b16 %v1449
      %v1546 = vunpack.c.l.b16 %v1450
      %v1547 = vunpack.c.l.b16 %v1451
      %v1548 = vunpack.c.l.b16 %v1452
      %v1549 = vunpack.c.l.b16 %v1453
      %v1550 = vunpack.c.l.b16 %v1454
      %v1551 = vunpack.c.l.b16 %v1455
      %v1552 = vunpack.c.l.b16 %v1456
      %v1553 = vunpack.c.l.b16 %v1457
      %v1554 = vunpack.c.l.b16 %v1458
      %v1555 = vunpack.c.l.b16 %v1459
      %v1556 = vunpack.c.l.b16 %v1460
      %v1557 = vunpack.c.l.b16 %v1461
      %v1558 = vunpack.c.l.b16 %v1462
      %v1559 = vunpack.c.l.b16 %v1463
      %v1560 = vunpack.c.l.b16 %v1464
      %v1561 = vunpack.c.l.b16 %v1465
      %v1562 = vunpack.c.l.b16 %v1466
      %v1563 = vunpack.c.l.b16 %v1467
      %v1564 = vunpack.c.l.b16 %v1468
      %v1565 = vunpack.c.l.b16 %v1469
      %v1566 = vunpack.c.l.b16 %v1470
      %v1567 = vunpack.c.l.b16 %v1471
      %v1568 = vunpack.c.l.b16 %v1472
      %v1569 = vunpack.c.l.b16 %v1473
      %v1570 = vunpack.c.l.b16 %v1474
      %v1571 = vunpack.c.l.b16 %v1475
      %v1572 = vunpack.c.l.b16 %v1476
      %v1573 = vunpack.c.l.b16 %v1477
      %v1574 = vpack.c.b16 %v1527, %v1526
      %v1575 = vpack.c.b16 %v1528, %v1528
      %v1576 = vpack.c.b16 %v1530, %v1529
      %v1577 = vpack.c.b16 %v1531, %v1531
      %v1578 = vpack.c.b16 %v1533, %v1532
      %v1579 = vpack.c.b16 %v1534, %v1534
      %v1580 = vpack.c.b16 %v1536, %v1535
      %v1581 = vpack.c.b16 %v1537, %v1537
      %v1582 = vpack.c.b16 %v1539, %v1538
      %v1583 = vpack.c.b16 %v1540, %v1540
      %v1584 = vpack.c.b16 %v1542, %v1541
      %v1585 = vpack.c.b16 %v1543, %v1543
      %v1586 = vpack.c.b16 %v1545, %v1544
      %v1587 = vpack.c.b16 %v1546, %v1546
      %v1588 = vpack.c.b16 %v1548, %v1547
      %v1589 = vpack.c.b16 %v1549, %v1549
      %v1590 = vpack.c.b16 %v1551, %v1550
      %v1591 = vpack.c.b16 %v1552, %v1552
      %v1592 = vpack.c.b16 %v1554, %v1553
      %v1593 = vpack.c.b16 %v1555, %v1555
      %v1594 = vpack.c.b16 %v1557, %v1556
      %v1595 = vpack.c.b16 %v1558, %v1558
      %v1596 = vpack.c.b16 %v1560, %v1559
      %v1597 = vpack.c.b16 %v1561, %v1561
      %v1598 = vpack.c.b16 %v1563, %v1562
      %v1599 = vpack.c.b16 %v1564, %v1564
      %v1600 = vpack.c.b16 %v1566, %v1565
      %v1601 = vpack.c.b16 %v1567, %v1567
      %v1602 = vpack.c.b16 %v1569, %v1568
      %v1603 = vpack.c.b16 %v1570, %v1570
      %v1604 = vpack.c.b16 %v1572, %v1571
      %v1605 = vpack.c.b16 %v1573, %v1573
      %v1606 = vrot.slane %v1574, 1
      %v1607 = vrot.slane %v1575, 1
      %v1608 = vsel %vm849, %v1606, %v1607
      %v1609 = vrot.slane %v1576, 1
      %v1610 = vrot.slane %v1577, 1
      %v1611 = vsel %vm849, %v1609, %v1610
      %v1612 = vrot.slane %v1578, 1
      %v1613 = vrot.slane %v1579, 1
      %v1614 = vsel %vm849, %v1612, %v1613
      %v1615 = vrot.slane %v1580, 1
      %v1616 = vrot.slane %v1581, 1
      %v1617 = vsel %vm849, %v1615, %v1616
      %v1618 = vrot.slane %v1582, 1
      %v1619 = vrot.slane %v1583, 1
      %v1620 = vsel %vm849, %v1618, %v1619
      %v1621 = vrot.slane %v1584, 1
      %v1622 = vrot.slane %v1585, 1
      %v1623 = vsel %vm849, %v1621, %v1622
      %v1624 = vrot.slane %v1586, 1
      %v1625 = vrot.slane %v1587, 1
      %v1626 = vsel %vm849, %v1624, %v1625
      %v1627 = vrot.slane %v1588, 1
      %v1628 = vrot.slane %v1589, 1
      %v1629 = vsel %vm849, %v1627, %v1628
      %v1630 = vrot.slane %v1590, 1
      %v1631 = vrot.slane %v1591, 1
      %v1632 = vsel %vm849, %v1630, %v1631
      %v1633 = vrot.slane %v1592, 1
      %v1634 = vrot.slane %v1593, 1
      %v1635 = vsel %vm849, %v1633, %v1634
      %v1636 = vrot.slane %v1594, 1
      %v1637 = vrot.slane %v1595, 1
      %v1638 = vsel %vm849, %v1636, %v1637
      %v1639 = vrot.slane %v1596, 1
      %v1640 = vrot.slane %v1597, 1
      %v1641 = vsel %vm849, %v1639, %v1640
      %v1642 = vrot.slane %v1598, 1
      %v1643 = vrot.slane %v1599, 1
      %v1644 = vsel %vm849, %v1642, %v1643
      %v1645 = vrot.slane %v1600, 1
      %v1646 = vrot.slane %v1601, 1
      %v1647 = vsel %vm849, %v1645, %v1646
      %v1648 = vrot.slane %v1602, 1
      %v1649 = vrot.slane %v1603, 1
      %v1650 = vsel %vm849, %v1648, %v1649
      %v1651 = vrot.slane %v1604, 1
      %v1652 = vrot.slane %v1605, 1
      %v1653 = vsel %vm849, %v1651, %v1652
      %1654 = vrot.lane.b32.xlu0 %v1608, 16
      %v1655 = vpop.permute.xlu0 %1654
      %1656 = vrot.lane.b32.xlu0 %v1611, 16
      %v1657 = vpop.permute.xlu0 %1656
      %1658 = vrot.lane.b32.xlu0 %v1614, 16
      %v1659 = vpop.permute.xlu0 %1658
      %1660 = vrot.lane.b32.xlu0 %v1617, 16
      %v1661 = vpop.permute.xlu0 %1660
      %1662 = vrot.lane.b32.xlu0 %v1620, 16
      %v1663 = vpop.permute.xlu0 %1662
      %1664 = vrot.lane.b32.xlu0 %v1623, 16
      %v1665 = vpop.permute.xlu0 %1664
      %1666 = vrot.lane.b32.xlu0 %v1626, 16
      %v1667 = vpop.permute.xlu0 %1666
      %1668 = vrot.lane.b32.xlu0 %v1629, 16
      %v1669 = vpop.permute.xlu0 %1668
      %1670 = vrot.lane.b32.xlu0 %v1632, 16
      %v1671 = vpop.permute.xlu0 %1670
      %1672 = vrot.lane.b32.xlu0 %v1635, 16
      %v1673 = vpop.permute.xlu0 %1672
      %1674 = vrot.lane.b32.xlu0 %v1638, 16
      %v1675 = vpop.permute.xlu0 %1674
      %1676 = vrot.lane.b32.xlu0 %v1641, 16
      %v1677 = vpop.permute.xlu0 %1676
      %1678 = vrot.lane.b32.xlu0 %v1644, 16
      %v1679 = vpop.permute.xlu0 %1678
      %1680 = vrot.lane.b32.xlu0 %v1647, 16
      %v1681 = vpop.permute.xlu0 %1680
      %1682 = vrot.lane.b32.xlu0 %v1650, 16
      %v1683 = vpop.permute.xlu0 %1682
      %1684 = vrot.lane.b32.xlu0 %v1653, 16
      %v1685 = vpop.permute.xlu0 %1684
      %vm1702 = vcmask 162944
      %1703 = vst.msk [vmem:[#allocation4] sm:$0xff] %vm1702, %v1655
      %1704 = vst.msk [vmem:[#allocation4 + $0x8] sm:$0xff] %vm1702, %v1657
      %1705 = vst.msk [vmem:[#allocation4 + $0x10] sm:$0xff] %vm1702, %v1659
      %1706 = vst.msk [vmem:[#allocation4 + $0x18] sm:$0xff] %vm1702, %v1661
      %1707 = vst.msk [vmem:[#allocation4 + $0x20] sm:$0xff] %vm1702, %v1663
      %1708 = vst.msk [vmem:[#allocation4 + $0x28] sm:$0xff] %vm1702, %v1665
      %1709 = vst.msk [vmem:[#allocation4 + $0x30] sm:$0xff] %vm1702, %v1667
      %1710 = vst.msk [vmem:[#allocation4 + $0x38] sm:$0xff] %vm1702, %v1669
      %1711 = vst.msk [vmem:[#allocation4 + $0x40] sm:$0xff] %vm1702, %v1671
      %1712 = vst.msk [vmem:[#allocation4 + $0x48] sm:$0xff] %vm1702, %v1673
      %1713 = vst.msk [vmem:[#allocation4 + $0x50] sm:$0xff] %vm1702, %v1675
      %1714 = vst.msk [vmem:[#allocation4 + $0x58] sm:$0xff] %vm1702, %v1677
      %1715 = vst.msk [vmem:[#allocation4 + $0x60] sm:$0xff] %vm1702, %v1679
      %1716 = vst.msk [vmem:[#allocation4 + $0x68] sm:$0xff] %vm1702, %v1681
      %1717 = vst.msk [vmem:[#allocation4 + $0x70] sm:$0xff] %vm1702, %v1683
      %1718 = vst.msk [vmem:[#allocation4 + $0x78] sm:$0xff] %vm1702, %v1685
      %v1719 = vld [vmem:[%s478] sm:$0xc]
      %v1720 = vld [vmem:[%s478 + $0x4] sm:$0xf]
      %v1721 = vld [vmem:[%s478 + $0x8] sm:$0x3]
      %v1722 = vld [vmem:[%s478 + $0xc] sm:$0xc]
      %v1723 = vld [vmem:[%s478 + $0x10] sm:$0xf]
      %v1724 = vld [vmem:[%s478 + $0x14] sm:$0x3]
      %v1725 = vld [vmem:[%s478 + $0x18] sm:$0xc]
      %v1726 = vld [vmem:[%s478 + $0x1c] sm:$0xf]
      %v1727 = vld [vmem:[%s478 + $0x20] sm:$0x3]
      %v1728 = vld [vmem:[%s478 + $0x24] sm:$0xc]
      %v1729 = vld [vmem:[%s478 + $0x28] sm:$0xf]
      %v1730 = vld [vmem:[%s478 + $0x2c] sm:$0x3]
      %v1731 = vld [vmem:[%s478 + $0x30] sm:$0xc]
      %v1732 = vld [vmem:[%s478 + $0x34] sm:$0xf]
      %v1733 = vld [vmem:[%s478 + $0x38] sm:$0x3]
      %v1734 = vld [vmem:[%s478 + $0x3c] sm:$0xc]
      %v1735 = vld [vmem:[%s478 + $0x40] sm:$0xf]
      %v1736 = vld [vmem:[%s478 + $0x44] sm:$0x3]
      %v1737 = vld [vmem:[%s478 + $0x48] sm:$0xc]
      %v1738 = vld [vmem:[%s478 + $0x4c] sm:$0xf]
      %v1739 = vld [vmem:[%s478 + $0x50] sm:$0x3]
      %v1740 = vld [vmem:[%s478 + $0x54] sm:$0xc]
      %v1741 = vld [vmem:[%s478 + $0x58] sm:$0xf]
      %v1742 = vld [vmem:[%s478 + $0x5c] sm:$0x3]
      %v1743 = vld [vmem:[%s478 + $0x60] sm:$0xc]
      %v1744 = vld [vmem:[%s478 + $0x64] sm:$0xf]
      %v1745 = vld [vmem:[%s478 + $0x68] sm:$0x3]
      %v1746 = vld [vmem:[%s478 + $0x6c] sm:$0xc]
      %v1747 = vld [vmem:[%s478 + $0x70] sm:$0xf]
      %v1748 = vld [vmem:[%s478 + $0x74] sm:$0x3]
      %v1749 = vld [vmem:[%s478 + $0x78] sm:$0xc]
      %v1750 = vld [vmem:[%s478 + $0x7c] sm:$0xf]
      %v1751 = vld [vmem:[%s478 + $0x80] sm:$0x3]
      %v1752 = vld [vmem:[%s478 + $0x84] sm:$0xc]
      %v1753 = vld [vmem:[%s478 + $0x88] sm:$0xf]
      %v1754 = vld [vmem:[%s478 + $0x8c] sm:$0x3]
      %v1755 = vld [vmem:[%s478 + $0x90] sm:$0xc]
      %v1756 = vld [vmem:[%s478 + $0x94] sm:$0xf]
      %v1757 = vld [vmem:[%s478 + $0x98] sm:$0x3]
      %v1758 = vld [vmem:[%s478 + $0x9c] sm:$0xc]
      %v1759 = vld [vmem:[%s478 + $0xa0] sm:$0xf]
      %v1760 = vld [vmem:[%s478 + $0xa4] sm:$0x3]
      %v1761 = vld [vmem:[%s478 + $0xa8] sm:$0xc]
      %v1762 = vld [vmem:[%s478 + $0xac] sm:$0xf]
      %v1763 = vld [vmem:[%s478 + $0xb0] sm:$0x3]
      %v1764 = vld [vmem:[%s478 + $0xb4] sm:$0xc]
      %v1765 = vld [vmem:[%s478 + $0xb8] sm:$0xf]
      %v1766 = vld [vmem:[%s478 + $0xbc] sm:$0x3]
      %v1815 = vunpack.c.l.b16 %v1719
      %v1816 = vunpack.c.l.b16 %v1720
      %v1817 = vunpack.c.l.b16 %v1721
      %v1818 = vunpack.c.l.b16 %v1722
      %v1819 = vunpack.c.l.b16 %v1723
      %v1820 = vunpack.c.l.b16 %v1724
      %v1821 = vunpack.c.l.b16 %v1725
      %v1822 = vunpack.c.l.b16 %v1726
      %v1823 = vunpack.c.l.b16 %v1727
      %v1824 = vunpack.c.l.b16 %v1728
      %v1825 = vunpack.c.l.b16 %v1729
      %v1826 = vunpack.c.l.b16 %v1730
      %v1827 = vunpack.c.l.b16 %v1731
      %v1828 = vunpack.c.l.b16 %v1732
      %v1829 = vunpack.c.l.b16 %v1733
      %v1830 = vunpack.c.l.b16 %v1734
      %v1831 = vunpack.c.l.b16 %v1735
      %v1832 = vunpack.c.l.b16 %v1736
      %v1833 = vunpack.c.l.b16 %v1737
      %v1834 = vunpack.c.l.b16 %v1738
      %v1835 = vunpack.c.l.b16 %v1739
      %v1836 = vunpack.c.l.b16 %v1740
      %v1837 = vunpack.c.l.b16 %v1741
      %v1838 = vunpack.c.l.b16 %v1742
      %v1839 = vunpack.c.l.b16 %v1743
      %v1840 = vunpack.c.l.b16 %v1744
      %v1841 = vunpack.c.l.b16 %v1745
      %v1842 = vunpack.c.l.b16 %v1746
      %v1843 = vunpack.c.l.b16 %v1747
      %v1844 = vunpack.c.l.b16 %v1748
      %v1845 = vunpack.c.l.b16 %v1749
      %v1846 = vunpack.c.l.b16 %v1750
      %v1847 = vunpack.c.l.b16 %v1751
      %v1848 = vunpack.c.l.b16 %v1752
      %v1849 = vunpack.c.l.b16 %v1753
      %v1850 = vunpack.c.l.b16 %v1754
      %v1851 = vunpack.c.l.b16 %v1755
      %v1852 = vunpack.c.l.b16 %v1756
      %v1853 = vunpack.c.l.b16 %v1757
      %v1854 = vunpack.c.l.b16 %v1758
      %v1855 = vunpack.c.l.b16 %v1759
      %v1856 = vunpack.c.l.b16 %v1760
      %v1857 = vunpack.c.l.b16 %v1761
      %v1858 = vunpack.c.l.b16 %v1762
      %v1859 = vunpack.c.l.b16 %v1763
      %v1860 = vunpack.c.l.b16 %v1764
      %v1861 = vunpack.c.l.b16 %v1765
      %v1862 = vunpack.c.l.b16 %v1766
      %v1863 = vpack.c.b16 %v1816, %v1815
      %v1864 = vpack.c.b16 %v1817, %v1817
      %v1865 = vpack.c.b16 %v1819, %v1818
      %v1866 = vpack.c.b16 %v1820, %v1820
      %v1867 = vpack.c.b16 %v1822, %v1821
      %v1868 = vpack.c.b16 %v1823, %v1823
      %v1869 = vpack.c.b16 %v1825, %v1824
      %v1870 = vpack.c.b16 %v1826, %v1826
      %v1871 = vpack.c.b16 %v1828, %v1827
      %v1872 = vpack.c.b16 %v1829, %v1829
      %v1873 = vpack.c.b16 %v1831, %v1830
      %v1874 = vpack.c.b16 %v1832, %v1832
      %v1875 = vpack.c.b16 %v1834, %v1833
      %v1876 = vpack.c.b16 %v1835, %v1835
      %v1877 = vpack.c.b16 %v1837, %v1836
      %v1878 = vpack.c.b16 %v1838, %v1838
      %v1879 = vpack.c.b16 %v1840, %v1839
      %v1880 = vpack.c.b16 %v1841, %v1841
      %v1881 = vpack.c.b16 %v1843, %v1842
      %v1882 = vpack.c.b16 %v1844, %v1844
      %v1883 = vpack.c.b16 %v1846, %v1845
      %v1884 = vpack.c.b16 %v1847, %v1847
      %v1885 = vpack.c.b16 %v1849, %v1848
      %v1886 = vpack.c.b16 %v1850, %v1850
      %v1887 = vpack.c.b16 %v1852, %v1851
      %v1888 = vpack.c.b16 %v1853, %v1853
      %v1889 = vpack.c.b16 %v1855, %v1854
      %v1890 = vpack.c.b16 %v1856, %v1856
      %v1891 = vpack.c.b16 %v1858, %v1857
      %v1892 = vpack.c.b16 %v1859, %v1859
      %v1893 = vpack.c.b16 %v1861, %v1860
      %v1894 = vpack.c.b16 %v1862, %v1862
      %v1895 = vrot.slane %v1863, 2
      %v1896 = vrot.slane %v1864, 2
      %v1897 = vsel %vm1139, %v1895, %v1896
      %v1898 = vrot.slane %v1865, 2
      %v1899 = vrot.slane %v1866, 2
      %v1900 = vsel %vm1139, %v1898, %v1899
      %v1901 = vrot.slane %v1867, 2
      %v1902 = vrot.slane %v1868, 2
      %v1903 = vsel %vm1139, %v1901, %v1902
      %v1904 = vrot.slane %v1869, 2
      %v1905 = vrot.slane %v1870, 2
      %v1906 = vsel %vm1139, %v1904, %v1905
      %v1907 = vrot.slane %v1871, 2
      %v1908 = vrot.slane %v1872, 2
      %v1909 = vsel %vm1139, %v1907, %v1908
      %v1910 = vrot.slane %v1873, 2
      %v1911 = vrot.slane %v1874, 2
      %v1912 = vsel %vm1139, %v1910, %v1911
      %v1913 = vrot.slane %v1875, 2
      %v1914 = vrot.slane %v1876, 2
      %v1915 = vsel %vm1139, %v1913, %v1914
      %v1916 = vrot.slane %v1877, 2
      %v1917 = vrot.slane %v1878, 2
      %v1918 = vsel %vm1139, %v1916, %v1917
      %v1919 = vrot.slane %v1879, 2
      %v1920 = vrot.slane %v1880, 2
      %v1921 = vsel %vm1139, %v1919, %v1920
      %v1922 = vrot.slane %v1881, 2
      %v1923 = vrot.slane %v1882, 2
      %v1924 = vsel %vm1139, %v1922, %v1923
      %v1925 = vrot.slane %v1883, 2
      %v1926 = vrot.slane %v1884, 2
      %v1927 = vsel %vm1139, %v1925, %v1926
      %v1928 = vrot.slane %v1885, 2
      %v1929 = vrot.slane %v1886, 2
      %v1930 = vsel %vm1139, %v1928, %v1929
      %v1931 = vrot.slane %v1887, 2
      %v1932 = vrot.slane %v1888, 2
      %v1933 = vsel %vm1139, %v1931, %v1932
      %v1934 = vrot.slane %v1889, 2
      %v1935 = vrot.slane %v1890, 2
      %v1936 = vsel %vm1139, %v1934, %v1935
      %v1937 = vrot.slane %v1891, 2
      %v1938 = vrot.slane %v1892, 2
      %v1939 = vsel %vm1139, %v1937, %v1938
      %v1940 = vrot.slane %v1893, 2
      %v1941 = vrot.slane %v1894, 2
      %v1942 = vsel %vm1139, %v1940, %v1941
      %1943 = vrot.lane.b32.xlu0 %v1897, 20
      %v1944 = vpop.permute.xlu0 %1943
      %1945 = vrot.lane.b32.xlu0 %v1900, 20
      %v1946 = vpop.permute.xlu0 %1945
      %1947 = vrot.lane.b32.xlu0 %v1903, 20
      %v1948 = vpop.permute.xlu0 %1947
      %1949 = vrot.lane.b32.xlu0 %v1906, 20
      %v1950 = vpop.permute.xlu0 %1949
      %1951 = vrot.lane.b32.xlu0 %v1909, 20
      %v1952 = vpop.permute.xlu0 %1951
      %1953 = vrot.lane.b32.xlu0 %v1912, 20
      %v1954 = vpop.permute.xlu0 %1953
      %1955 = vrot.lane.b32.xlu0 %v1915, 20
      %v1956 = vpop.permute.xlu0 %1955
      %1957 = vrot.lane.b32.xlu0 %v1918, 20
      %v1958 = vpop.permute.xlu0 %1957
      %1959 = vrot.lane.b32.xlu0 %v1921, 20
      %v1960 = vpop.permute.xlu0 %1959
      %1961 = vrot.lane.b32.xlu0 %v1924, 20
      %v1962 = vpop.permute.xlu0 %1961
      %1963 = vrot.lane.b32.xlu0 %v1927, 20
      %v1964 = vpop.permute.xlu0 %1963
      %1965 = vrot.lane.b32.xlu0 %v1930, 20
      %v1966 = vpop.permute.xlu0 %1965
      %1967 = vrot.lane.b32.xlu0 %v1933, 20
      %v1968 = vpop.permute.xlu0 %1967
      %1969 = vrot.lane.b32.xlu0 %v1936, 20
      %v1970 = vpop.permute.xlu0 %1969
      %1971 = vrot.lane.b32.xlu0 %v1939, 20
      %v1972 = vpop.permute.xlu0 %1971
      %1973 = vrot.lane.b32.xlu0 %v1942, 20
      %v1974 = vpop.permute.xlu0 %1973
      %vm1991 = vcmask 195744
      %1992 = vst.msk [vmem:[#allocation4] sm:$0xff] %vm1991, %v1944
      %1993 = vst.msk [vmem:[#allocation4 + $0x8] sm:$0xff] %vm1991, %v1946
      %1994 = vst.msk [vmem:[#allocation4 + $0x10] sm:$0xff] %vm1991, %v1948
      %1995 = vst.msk [vmem:[#allocation4 + $0x18] sm:$0xff] %vm1991, %v1950
      %1996 = vst.msk [vmem:[#allocation4 + $0x20] sm:$0xff] %vm1991, %v1952
      %1997 = vst.msk [vmem:[#allocation4 + $0x28] sm:$0xff] %vm1991, %v1954
      %1998 = vst.msk [vmem:[#allocation4 + $0x30] sm:$0xff] %vm1991, %v1956
      %1999 = vst.msk [vmem:[#allocation4 + $0x38] sm:$0xff] %vm1991, %v1958
      %2000 = vst.msk [vmem:[#allocation4 + $0x40] sm:$0xff] %vm1991, %v1960
      %2001 = vst.msk [vmem:[#allocation4 + $0x48] sm:$0xff] %vm1991, %v1962
      %2002 = vst.msk [vmem:[#allocation4 + $0x50] sm:$0xff] %vm1991, %v1964
      %2003 = vst.msk [vmem:[#allocation4 + $0x58] sm:$0xff] %vm1991, %v1966
      %2004 = vst.msk [vmem:[#allocation4 + $0x60] sm:$0xff] %vm1991, %v1968
      %2005 = vst.msk [vmem:[#allocation4 + $0x68] sm:$0xff] %vm1991, %v1970
      %2006 = vst.msk [vmem:[#allocation4 + $0x70] sm:$0xff] %vm1991, %v1972
      %2007 = vst.msk [vmem:[#allocation4 + $0x78] sm:$0xff] %vm1991, %v1974
      %s2008 = scalar_lea.vmem [#allocation2], 48
      %v2009 = vld [vmem:[%s2008] sm:$0xf]
      %v2010 = vld [vmem:[%s2008 + $0x4] sm:$0xf]
      %v2011 = vld [vmem:[%s2008 + $0xc] sm:$0xf]
      %v2012 = vld [vmem:[%s2008 + $0x10] sm:$0xf]
      %v2013 = vld [vmem:[%s2008 + $0x18] sm:$0xf]
      %v2014 = vld [vmem:[%s2008 + $0x1c] sm:$0xf]
      %v2015 = vld [vmem:[%s2008 + $0x24] sm:$0xf]
      %v2016 = vld [vmem:[%s2008 + $0x28] sm:$0xf]
      %v2017 = vld [vmem:[%s2008 + $0x30] sm:$0xf]
      %v2018 = vld [vmem:[%s2008 + $0x34] sm:$0xf]
      %v2019 = vld [vmem:[%s2008 + $0x3c] sm:$0xf]
      %v2020 = vld [vmem:[%s2008 + $0x40] sm:$0xf]
      %v2021 = vld [vmem:[%s2008 + $0x48] sm:$0xf]
      %v2022 = vld [vmem:[%s2008 + $0x4c] sm:$0xf]
      %v2023 = vld [vmem:[%s2008 + $0x54] sm:$0xf]
      %v2024 = vld [vmem:[%s2008 + $0x58] sm:$0xf]
      %v2025 = vld [vmem:[%s2008 + $0x60] sm:$0xf]
      %v2026 = vld [vmem:[%s2008 + $0x64] sm:$0xf]
      %v2027 = vld [vmem:[%s2008 + $0x6c] sm:$0xf]
      %v2028 = vld [vmem:[%s2008 + $0x70] sm:$0xf]
      %v2029 = vld [vmem:[%s2008 + $0x78] sm:$0xf]
      %v2030 = vld [vmem:[%s2008 + $0x7c] sm:$0xf]
      %v2031 = vld [vmem:[%s2008 + $0x84] sm:$0xf]
      %v2032 = vld [vmem:[%s2008 + $0x88] sm:$0xf]
      %v2033 = vld [vmem:[%s2008 + $0x90] sm:$0xf]
      %v2034 = vld [vmem:[%s2008 + $0x94] sm:$0xf]
      %v2035 = vld [vmem:[%s2008 + $0x9c] sm:$0xf]
      %v2036 = vld [vmem:[%s2008 + $0xa0] sm:$0xf]
      %v2037 = vld [vmem:[%s2008 + $0xa8] sm:$0xf]
      %v2038 = vld [vmem:[%s2008 + $0xac] sm:$0xf]
      %v2039 = vld [vmem:[%s2008 + $0xb4] sm:$0xf]
      %v2040 = vld [vmem:[%s2008 + $0xb8] sm:$0xf]
      %v2073 = vunpack.c.l.b16 %v2009
      %v2074 = vunpack.c.l.b16 %v2010
      %v2075 = vunpack.c.l.b16 %v2011
      %v2076 = vunpack.c.l.b16 %v2012
      %v2077 = vunpack.c.l.b16 %v2013
      %v2078 = vunpack.c.l.b16 %v2014
      %v2079 = vunpack.c.l.b16 %v2015
      %v2080 = vunpack.c.l.b16 %v2016
      %v2081 = vunpack.c.l.b16 %v2017
      %v2082 = vunpack.c.l.b16 %v2018
      %v2083 = vunpack.c.l.b16 %v2019
      %v2084 = vunpack.c.l.b16 %v2020
      %v2085 = vunpack.c.l.b16 %v2021
      %v2086 = vunpack.c.l.b16 %v2022
      %v2087 = vunpack.c.l.b16 %v2023
      %v2088 = vunpack.c.l.b16 %v2024
      %v2089 = vunpack.c.l.b16 %v2025
      %v2090 = vunpack.c.l.b16 %v2026
      %v2091 = vunpack.c.l.b16 %v2027
      %v2092 = vunpack.c.l.b16 %v2028
      %v2093 = vunpack.c.l.b16 %v2029
      %v2094 = vunpack.c.l.b16 %v2030
      %v2095 = vunpack.c.l.b16 %v2031
      %v2096 = vunpack.c.l.b16 %v2032
      %v2097 = vunpack.c.l.b16 %v2033
      %v2098 = vunpack.c.l.b16 %v2034
      %v2099 = vunpack.c.l.b16 %v2035
      %v2100 = vunpack.c.l.b16 %v2036
      %v2101 = vunpack.c.l.b16 %v2037
      %v2102 = vunpack.c.l.b16 %v2038
      %v2103 = vunpack.c.l.b16 %v2039
      %v2104 = vunpack.c.l.b16 %v2040
      %v2105 = vpack.c.b16 %v2074, %v2073
      %v2106 = vpack.c.b16 %v2076, %v2075
      %v2107 = vpack.c.b16 %v2078, %v2077
      %v2108 = vpack.c.b16 %v2080, %v2079
      %v2109 = vpack.c.b16 %v2082, %v2081
      %v2110 = vpack.c.b16 %v2084, %v2083
      %v2111 = vpack.c.b16 %v2086, %v2085
      %v2112 = vpack.c.b16 %v2088, %v2087
      %v2113 = vpack.c.b16 %v2090, %v2089
      %v2114 = vpack.c.b16 %v2092, %v2091
      %v2115 = vpack.c.b16 %v2094, %v2093
      %v2116 = vpack.c.b16 %v2096, %v2095
      %v2117 = vpack.c.b16 %v2098, %v2097
      %v2118 = vpack.c.b16 %v2100, %v2099
      %v2119 = vpack.c.b16 %v2102, %v2101
      %v2120 = vpack.c.b16 %v2104, %v2103
      %2121 = vrot.lane.b32.xlu0 %v2105, 24
      %v2122 = vpop.permute.xlu0 %2121
      %2123 = vrot.lane.b32.xlu0 %v2106, 24
      %v2124 = vpop.permute.xlu0 %2123
      %2125 = vrot.lane.b32.xlu0 %v2107, 24
      %v2126 = vpop.permute.xlu0 %2125
      %2127 = vrot.lane.b32.xlu0 %v2108, 24
      %v2128 = vpop.permute.xlu0 %2127
      %2129 = vrot.lane.b32.xlu0 %v2109, 24
      %v2130 = vpop.permute.xlu0 %2129
      %2131 = vrot.lane.b32.xlu0 %v2110, 24
      %v2132 = vpop.permute.xlu0 %2131
      %2133 = vrot.lane.b32.xlu0 %v2111, 24
      %v2134 = vpop.permute.xlu0 %2133
      %2135 = vrot.lane.b32.xlu0 %v2112, 24
      %v2136 = vpop.permute.xlu0 %2135
      %2137 = vrot.lane.b32.xlu0 %v2113, 24
      %v2138 = vpop.permute.xlu0 %2137
      %2139 = vrot.lane.b32.xlu0 %v2114, 24
      %v2140 = vpop.permute.xlu0 %2139
      %2141 = vrot.lane.b32.xlu0 %v2115, 24
      %v2142 = vpop.permute.xlu0 %2141
      %2143 = vrot.lane.b32.xlu0 %v2116, 24
      %v2144 = vpop.permute.xlu0 %2143
      %2145 = vrot.lane.b32.xlu0 %v2117, 24
      %v2146 = vpop.permute.xlu0 %2145
      %2147 = vrot.lane.b32.xlu0 %v2118, 24
      %v2148 = vpop.permute.xlu0 %2147
      %2149 = vrot.lane.b32.xlu0 %v2119, 24
      %v2150 = vpop.permute.xlu0 %2149
      %2151 = vrot.lane.b32.xlu0 %v2120, 24
      %v2152 = vpop.permute.xlu0 %2151
      %vm2169 = vcmask 228544
      %2170 = vst.msk [vmem:[#allocation4] sm:$0xff] %vm2169, %v2122
      %2171 = vst.msk [vmem:[#allocation4 + $0x8] sm:$0xff] %vm2169, %v2124
      %2172 = vst.msk [vmem:[#allocation4 + $0x10] sm:$0xff] %vm2169, %v2126
      %2173 = vst.msk [vmem:[#allocation4 + $0x18] sm:$0xff] %vm2169, %v2128
      %2174 = vst.msk [vmem:[#allocation4 + $0x20] sm:$0xff] %vm2169, %v2130
      %2175 = vst.msk [vmem:[#allocation4 + $0x28] sm:$0xff] %vm2169, %v2132
      %2176 = vst.msk [vmem:[#allocation4 + $0x30] sm:$0xff] %vm2169, %v2134
      %2177 = vst.msk [vmem:[#allocation4 + $0x38] sm:$0xff] %vm2169, %v2136
      %2178 = vst.msk [vmem:[#allocation4 + $0x40] sm:$0xff] %vm2169, %v2138
      %2179 = vst.msk [vmem:[#allocation4 + $0x48] sm:$0xff] %vm2169, %v2140
      %2180 = vst.msk [vmem:[#allocation4 + $0x50] sm:$0xff] %vm2169, %v2142
      %2181 = vst.msk [vmem:[#allocation4 + $0x58] sm:$0xff] %vm2169, %v2144
      %2182 = vst.msk [vmem:[#allocation4 + $0x60] sm:$0xff] %vm2169, %v2146
      %2183 = vst.msk [vmem:[#allocation4 + $0x68] sm:$0xff] %vm2169, %v2148
      %2184 = vst.msk [vmem:[#allocation4 + $0x70] sm:$0xff] %vm2169, %v2150
      %2185 = vst.msk [vmem:[#allocation4 + $0x78] sm:$0xff] %vm2169, %v2152
      %v2186 = vld [vmem:[%s2008] sm:$0xe]
      %v2187 = vld [vmem:[%s2008 + $0x4] sm:$0xf]
      %v2188 = vld [vmem:[%s2008 + $0x8] sm:$0x1]
      %v2189 = vld [vmem:[%s2008 + $0xc] sm:$0xe]
      %v2190 = vld [vmem:[%s2008 + $0x10] sm:$0xf]
      %v2191 = vld [vmem:[%s2008 + $0x14] sm:$0x1]
      %v2192 = vld [vmem:[%s2008 + $0x18] sm:$0xe]
      %v2193 = vld [vmem:[%s2008 + $0x1c] sm:$0xf]
      %v2194 = vld [vmem:[%s2008 + $0x20] sm:$0x1]
      %v2195 = vld [vmem:[%s2008 + $0x24] sm:$0xe]
      %v2196 = vld [vmem:[%s2008 + $0x28] sm:$0xf]
      %v2197 = vld [vmem:[%s2008 + $0x2c] sm:$0x1]
      %v2198 = vld [vmem:[%s2008 + $0x30] sm:$0xe]
      %v2199 = vld [vmem:[%s2008 + $0x34] sm:$0xf]
      %v2200 = vld [vmem:[%s2008 + $0x38] sm:$0x1]
      %v2201 = vld [vmem:[%s2008 + $0x3c] sm:$0xe]
      %v2202 = vld [vmem:[%s2008 + $0x40] sm:$0xf]
      %v2203 = vld [vmem:[%s2008 + $0x44] sm:$0x1]
      %v2204 = vld [vmem:[%s2008 + $0x48] sm:$0xe]
      %v2205 = vld [vmem:[%s2008 + $0x4c] sm:$0xf]
      %v2206 = vld [vmem:[%s2008 + $0x50] sm:$0x1]
      %v2207 = vld [vmem:[%s2008 + $0x54] sm:$0xe]
      %v2208 = vld [vmem:[%s2008 + $0x58] sm:$0xf]
      %v2209 = vld [vmem:[%s2008 + $0x5c] sm:$0x1]
      %v2210 = vld [vmem:[%s2008 + $0x60] sm:$0xe]
      %v2211 = vld [vmem:[%s2008 + $0x64] sm:$0xf]
      %v2212 = vld [vmem:[%s2008 + $0x68] sm:$0x1]
      %v2213 = vld [vmem:[%s2008 + $0x6c] sm:$0xe]
      %v2214 = vld [vmem:[%s2008 + $0x70] sm:$0xf]
      %v2215 = vld [vmem:[%s2008 + $0x74] sm:$0x1]
      %v2216 = vld [vmem:[%s2008 + $0x78] sm:$0xe]
      %v2217 = vld [vmem:[%s2008 + $0x7c] sm:$0xf]
      %v2218 = vld [vmem:[%s2008 + $0x80] sm:$0x1]
      %v2219 = vld [vmem:[%s2008 + $0x84] sm:$0xe]
      %v2220 = vld [vmem:[%s2008 + $0x88] sm:$0xf]
      %v2221 = vld [vmem:[%s2008 + $0x8c] sm:$0x1]
      %v2222 = vld [vmem:[%s2008 + $0x90] sm:$0xe]
      %v2223 = vld [vmem:[%s2008 + $0x94] sm:$0xf]
      %v2224 = vld [vmem:[%s2008 + $0x98] sm:$0x1]
      %v2225 = vld [vmem:[%s2008 + $0x9c] sm:$0xe]
      %v2226 = vld [vmem:[%s2008 + $0xa0] sm:$0xf]
      %v2227 = vld [vmem:[%s2008 + $0xa4] sm:$0x1]
      %v2228 = vld [vmem:[%s2008 + $0xa8] sm:$0xe]
      %v2229 = vld [vmem:[%s2008 + $0xac] sm:$0xf]
      %v2230 = vld [vmem:[%s2008 + $0xb0] sm:$0x1]
      %v2231 = vld [vmem:[%s2008 + $0xb4] sm:$0xe]
      %v2232 = vld [vmem:[%s2008 + $0xb8] sm:$0xf]
      %v2233 = vld [vmem:[%s2008 + $0xbc] sm:$0x1]
      %v2282 = vunpack.c.l.b16 %v2186
      %v2283 = vunpack.c.l.b16 %v2187
      %v2284 = vunpack.c.l.b16 %v2188
      %v2285 = vunpack.c.l.b16 %v2189
      %v2286 = vunpack.c.l.b16 %v2190
      %v2287 = vunpack.c.l.b16 %v2191
      %v2288 = vunpack.c.l.b16 %v2192
      %v2289 = vunpack.c.l.b16 %v2193
      %v2290 = vunpack.c.l.b16 %v2194
      %v2291 = vunpack.c.l.b16 %v2195
      %v2292 = vunpack.c.l.b16 %v2196
      %v2293 = vunpack.c.l.b16 %v2197
      %v2294 = vunpack.c.l.b16 %v2198
      %v2295 = vunpack.c.l.b16 %v2199
      %v2296 = vunpack.c.l.b16 %v2200
      %v2297 = vunpack.c.l.b16 %v2201
      %v2298 = vunpack.c.l.b16 %v2202
      %v2299 = vunpack.c.l.b16 %v2203
      %v2300 = vunpack.c.l.b16 %v2204
      %v2301 = vunpack.c.l.b16 %v2205
      %v2302 = vunpack.c.l.b16 %v2206
      %v2303 = vunpack.c.l.b16 %v2207
      %v2304 = vunpack.c.l.b16 %v2208
      %v2305 = vunpack.c.l.b16 %v2209
      %v2306 = vunpack.c.l.b16 %v2210
      %v2307 = vunpack.c.l.b16 %v2211
      %v2308 = vunpack.c.l.b16 %v2212
      %v2309 = vunpack.c.l.b16 %v2213
      %v2310 = vunpack.c.l.b16 %v2214
      %v2311 = vunpack.c.l.b16 %v2215
      %v2312 = vunpack.c.l.b16 %v2216
      %v2313 = vunpack.c.l.b16 %v2217
      %v2314 = vunpack.c.l.b16 %v2218
      %v2315 = vunpack.c.l.b16 %v2219
      %v2316 = vunpack.c.l.b16 %v2220
      %v2317 = vunpack.c.l.b16 %v2221
      %v2318 = vunpack.c.l.b16 %v2222
      %v2319 = vunpack.c.l.b16 %v2223
      %v2320 = vunpack.c.l.b16 %v2224
      %v2321 = vunpack.c.l.b16 %v2225
      %v2322 = vunpack.c.l.b16 %v2226
      %v2323 = vunpack.c.l.b16 %v2227
      %v2324 = vunpack.c.l.b16 %v2228
      %v2325 = vunpack.c.l.b16 %v2229
      %v2326 = vunpack.c.l.b16 %v2230
      %v2327 = vunpack.c.l.b16 %v2231
      %v2328 = vunpack.c.l.b16 %v2232
      %v2329 = vunpack.c.l.b16 %v2233
      %v2330 = vpack.c.b16 %v2283, %v2282
      %v2331 = vpack.c.b16 %v2284, %v2284
      %v2332 = vpack.c.b16 %v2286, %v2285
      %v2333 = vpack.c.b16 %v2287, %v2287
      %v2334 = vpack.c.b16 %v2289, %v2288
      %v2335 = vpack.c.b16 %v2290, %v2290
      %v2336 = vpack.c.b16 %v2292, %v2291
      %v2337 = vpack.c.b16 %v2293, %v2293
      %v2338 = vpack.c.b16 %v2295, %v2294
      %v2339 = vpack.c.b16 %v2296, %v2296
      %v2340 = vpack.c.b16 %v2298, %v2297
      %v2341 = vpack.c.b16 %v2299, %v2299
      %v2342 = vpack.c.b16 %v2301, %v2300
      %v2343 = vpack.c.b16 %v2302, %v2302
      %v2344 = vpack.c.b16 %v2304, %v2303
      %v2345 = vpack.c.b16 %v2305, %v2305
      %v2346 = vpack.c.b16 %v2307, %v2306
      %v2347 = vpack.c.b16 %v2308, %v2308
      %v2348 = vpack.c.b16 %v2310, %v2309
      %v2349 = vpack.c.b16 %v2311, %v2311
      %v2350 = vpack.c.b16 %v2313, %v2312
      %v2351 = vpack.c.b16 %v2314, %v2314
      %v2352 = vpack.c.b16 %v2316, %v2315
      %v2353 = vpack.c.b16 %v2317, %v2317
      %v2354 = vpack.c.b16 %v2319, %v2318
      %v2355 = vpack.c.b16 %v2320, %v2320
      %v2356 = vpack.c.b16 %v2322, %v2321
      %v2357 = vpack.c.b16 %v2323, %v2323
      %v2358 = vpack.c.b16 %v2325, %v2324
      %v2359 = vpack.c.b16 %v2326, %v2326
      %v2360 = vpack.c.b16 %v2328, %v2327
      %v2361 = vpack.c.b16 %v2329, %v2329
      %v2362 = vrot.slane %v2330, 1
      %v2363 = vrot.slane %v2331, 1
      %v2364 = vsel %vm849, %v2362, %v2363
      %v2365 = vrot.slane %v2332, 1
      %v2366 = vrot.slane %v2333, 1
      %v2367 = vsel %vm849, %v2365, %v2366
      %v2368 = vrot.slane %v2334, 1
      %v2369 = vrot.slane %v2335, 1
      %v2370 = vsel %vm849, %v2368, %v2369
      %v2371 = vrot.slane %v2336, 1
      %v2372 = vrot.slane %v2337, 1
      %v2373 = vsel %vm849, %v2371, %v2372
      %v2374 = vrot.slane %v2338, 1
      %v2375 = vrot.slane %v2339, 1
      %v2376 = vsel %vm849, %v2374, %v2375
      %v2377 = vrot.slane %v2340, 1
      %v2378 = vrot.slane %v2341, 1
      %v2379 = vsel %vm849, %v2377, %v2378
      %v2380 = vrot.slane %v2342, 1
      %v2381 = vrot.slane %v2343, 1
      %v2382 = vsel %vm849, %v2380, %v2381
      %v2383 = vrot.slane %v2344, 1
      %v2384 = vrot.slane %v2345, 1
      %v2385 = vsel %vm849, %v2383, %v2384
      %v2386 = vrot.slane %v2346, 1
      %v2387 = vrot.slane %v2347, 1
      %v2388 = vsel %vm849, %v2386, %v2387
      %v2389 = vrot.slane %v2348, 1
      %v2390 = vrot.slane %v2349, 1
      %v2391 = vsel %vm849, %v2389, %v2390
      %v2392 = vrot.slane %v2350, 1
      %v2393 = vrot.slane %v2351, 1
      %v2394 = vsel %vm849, %v2392, %v2393
      %v2395 = vrot.slane %v2352, 1
      %v2396 = vrot.slane %v2353, 1
      %v2397 = vsel %vm849, %v2395, %v2396
      %v2398 = vrot.slane %v2354, 1
      %v2399 = vrot.slane %v2355, 1
      %v2400 = vsel %vm849, %v2398, %v2399
      %v2401 = vrot.slane %v2356, 1
      %v2402 = vrot.slane %v2357, 1
      %v2403 = vsel %vm849, %v2401, %v2402
      %v2404 = vrot.slane %v2358, 1
      %v2405 = vrot.slane %v2359, 1
      %v2406 = vsel %vm849, %v2404, %v2405
      %v2407 = vrot.slane %v2360, 1
      %v2408 = vrot.slane %v2361, 1
      %v2409 = vsel %vm849, %v2407, %v2408
      %2410 = vrot.lane.b32.xlu0 %v2364, 28
      %v2411 = vpop.permute.xlu0 %2410
      %2412 = vrot.lane.b32.xlu0 %v2367, 28
      %v2413 = vpop.permute.xlu0 %2412
      %2414 = vrot.lane.b32.xlu0 %v2370, 28
      %v2415 = vpop.permute.xlu0 %2414
      %2416 = vrot.lane.b32.xlu0 %v2373, 28
      %v2417 = vpop.permute.xlu0 %2416
      %2418 = vrot.lane.b32.xlu0 %v2376, 28
      %v2419 = vpop.permute.xlu0 %2418
      %2420 = vrot.lane.b32.xlu0 %v2379, 28
      %v2421 = vpop.permute.xlu0 %2420
      %2422 = vrot.lane.b32.xlu0 %v2382, 28
      %v2423 = vpop.permute.xlu0 %2422
      %2424 = vrot.lane.b32.xlu0 %v2385, 28
      %v2425 = vpop.permute.xlu0 %2424
      %2426 = vrot.lane.b32.xlu0 %v2388, 28
      %v2427 = vpop.permute.xlu0 %2426
      %2428 = vrot.lane.b32.xlu0 %v2391, 28
      %v2429 = vpop.permute.xlu0 %2428
      %2430 = vrot.lane.b32.xlu0 %v2394, 28
      %v2431 = vpop.permute.xlu0 %2430
      %2432 = vrot.lane.b32.xlu0 %v2397, 28
      %v2433 = vpop.permute.xlu0 %2432
      %2434 = vrot.lane.b32.xlu0 %v2400, 28
      %v2435 = vpop.permute.xlu0 %2434
      %2436 = vrot.lane.b32.xlu0 %v2403, 28
      %v2437 = vpop.permute.xlu0 %2436
      %2438 = vrot.lane.b32.xlu0 %v2406, 28
      %v2439 = vpop.permute.xlu0 %2438
      %2440 = vrot.lane.b32.xlu0 %v2409, 28
      %v2441 = vpop.permute.xlu0 %2440
      %vm2458 = vcmask 261344
      %2459 = vst.msk [vmem:[#allocation4] sm:$0xff] %vm2458, %v2411
      %2460 = vst.msk [vmem:[#allocation4 + $0x8] sm:$0xff] %vm2458, %v2413
      %2461 = vst.msk [vmem:[#allocation4 + $0x10] sm:$0xff] %vm2458, %v2415
      %2462 = vst.msk [vmem:[#allocation4 + $0x18] sm:$0xff] %vm2458, %v2417
      %2463 = vst.msk [vmem:[#allocation4 + $0x20] sm:$0xff] %vm2458, %v2419
      %2464 = vst.msk [vmem:[#allocation4 + $0x28] sm:$0xff] %vm2458, %v2421
      %2465 = vst.msk [vmem:[#allocation4 + $0x30] sm:$0xff] %vm2458, %v2423
      %2466 = vst.msk [vmem:[#allocation4 + $0x38] sm:$0xff] %vm2458, %v2425
      %2467 = vst.msk [vmem:[#allocation4 + $0x40] sm:$0xff] %vm2458, %v2427
      %2468 = vst.msk [vmem:[#allocation4 + $0x48] sm:$0xff] %vm2458, %v2429
      %2469 = vst.msk [vmem:[#allocation4 + $0x50] sm:$0xff] %vm2458, %v2431
      %2470 = vst.msk [vmem:[#allocation4 + $0x58] sm:$0xff] %vm2458, %v2433
      %2471 = vst.msk [vmem:[#allocation4 + $0x60] sm:$0xff] %vm2458, %v2435
      %2472 = vst.msk [vmem:[#allocation4 + $0x68] sm:$0xff] %vm2458, %v2437
      %2473 = vst.msk [vmem:[#allocation4 + $0x70] sm:$0xff] %vm2458, %v2439
      %2474 = vst.msk [vmem:[#allocation4 + $0x78] sm:$0xff] %vm2458, %v2441
      %v2475 = vld [vmem:[%s2008] sm:$0xc]
      %v2476 = vld [vmem:[%s2008 + $0x4] sm:$0xf]
      %v2477 = vld [vmem:[%s2008 + $0x8] sm:$0x3]
      %v2478 = vld [vmem:[%s2008 + $0xc] sm:$0xc]
      %v2479 = vld [vmem:[%s2008 + $0x10] sm:$0xf]
      %v2480 = vld [vmem:[%s2008 + $0x14] sm:$0x3]
      %v2481 = vld [vmem:[%s2008 + $0x18] sm:$0xc]
      %v2482 = vld [vmem:[%s2008 + $0x1c] sm:$0xf]
      %v2483 = vld [vmem:[%s2008 + $0x20] sm:$0x3]
      %v2484 = vld [vmem:[%s2008 + $0x24] sm:$0xc]
      %v2485 = vld [vmem:[%s2008 + $0x28] sm:$0xf]
      %v2486 = vld [vmem:[%s2008 + $0x2c] sm:$0x3]
      %v2487 = vld [vmem:[%s2008 + $0x30] sm:$0xc]
      %v2488 = vld [vmem:[%s2008 + $0x34] sm:$0xf]
      %v2489 = vld [vmem:[%s2008 + $0x38] sm:$0x3]
      %v2490 = vld [vmem:[%s2008 + $0x3c] sm:$0xc]
      %v2491 = vld [vmem:[%s2008 + $0x40] sm:$0xf]
      %v2492 = vld [vmem:[%s2008 + $0x44] sm:$0x3]
      %v2493 = vld [vmem:[%s2008 + $0x48] sm:$0xc]
      %v2494 = vld [vmem:[%s2008 + $0x4c] sm:$0xf]
      %v2495 = vld [vmem:[%s2008 + $0x50] sm:$0x3]
      %v2496 = vld [vmem:[%s2008 + $0x54] sm:$0xc]
      %v2497 = vld [vmem:[%s2008 + $0x58] sm:$0xf]
      %v2498 = vld [vmem:[%s2008 + $0x5c] sm:$0x3]
      %v2499 = vld [vmem:[%s2008 + $0x60] sm:$0xc]
      %v2500 = vld [vmem:[%s2008 + $0x64] sm:$0xf]
      %v2501 = vld [vmem:[%s2008 + $0x68] sm:$0x3]
      %v2502 = vld [vmem:[%s2008 + $0x6c] sm:$0xc]
      %v2503 = vld [vmem:[%s2008 + $0x70] sm:$0xf]
      %v2504 = vld [vmem:[%s2008 + $0x74] sm:$0x3]
      %v2505 = vld [vmem:[%s2008 + $0x78] sm:$0xc]
      %v2506 = vld [vmem:[%s2008 + $0x7c] sm:$0xf]
      %v2507 = vld [vmem:[%s2008 + $0x80] sm:$0x3]
      %v2508 = vld [vmem:[%s2008 + $0x84] sm:$0xc]
      %v2509 = vld [vmem:[%s2008 + $0x88] sm:$0xf]
      %v2510 = vld [vmem:[%s2008 + $0x8c] sm:$0x3]
      %v2511 = vld [vmem:[%s2008 + $0x90] sm:$0xc]
      %v2512 = vld [vmem:[%s2008 + $0x94] sm:$0xf]
      %v2513 = vld [vmem:[%s2008 + $0x98] sm:$0x3]
      %v2514 = vld [vmem:[%s2008 + $0x9c] sm:$0xc]
      %v2515 = vld [vmem:[%s2008 + $0xa0] sm:$0xf]
      %v2516 = vld [vmem:[%s2008 + $0xa4] sm:$0x3]
      %v2517 = vld [vmem:[%s2008 + $0xa8] sm:$0xc]
      %v2518 = vld [vmem:[%s2008 + $0xac] sm:$0xf]
      %v2519 = vld [vmem:[%s2008 + $0xb0] sm:$0x3]
      %v2520 = vld [vmem:[%s2008 + $0xb4] sm:$0xc]
      %v2521 = vld [vmem:[%s2008 + $0xb8] sm:$0xf]
      %v2522 = vld [vmem:[%s2008 + $0xbc] sm:$0x3]
      %v2571 = vunpack.c.l.b16 %v2475
      %v2572 = vunpack.c.l.b16 %v2476
      %v2573 = vunpack.c.l.b16 %v2477
      %v2574 = vunpack.c.l.b16 %v2478
      %v2575 = vunpack.c.l.b16 %v2479
      %v2576 = vunpack.c.l.b16 %v2480
      %v2577 = vunpack.c.l.b16 %v2481
      %v2578 = vunpack.c.l.b16 %v2482
      %v2579 = vunpack.c.l.b16 %v2483
      %v2580 = vunpack.c.l.b16 %v2484
      %v2581 = vunpack.c.l.b16 %v2485
      %v2582 = vunpack.c.l.b16 %v2486
      %v2583 = vunpack.c.l.b16 %v2487
      %v2584 = vunpack.c.l.b16 %v2488
      %v2585 = vunpack.c.l.b16 %v2489
      %v2586 = vunpack.c.l.b16 %v2490
      %v2587 = vunpack.c.l.b16 %v2491
      %v2588 = vunpack.c.l.b16 %v2492
      %v2589 = vunpack.c.l.b16 %v2493
      %v2590 = vunpack.c.l.b16 %v2494
      %v2591 = vunpack.c.l.b16 %v2495
      %v2592 = vunpack.c.l.b16 %v2496
      %v2593 = vunpack.c.l.b16 %v2497
      %v2594 = vunpack.c.l.b16 %v2498
      %v2595 = vunpack.c.l.b16 %v2499
      %v2596 = vunpack.c.l.b16 %v2500
      %v2597 = vunpack.c.l.b16 %v2501
      %v2598 = vunpack.c.l.b16 %v2502
      %v2599 = vunpack.c.l.b16 %v2503
      %v2600 = vunpack.c.l.b16 %v2504
      %v2601 = vunpack.c.l.b16 %v2505
      %v2602 = vunpack.c.l.b16 %v2506
      %v2603 = vunpack.c.l.b16 %v2507
      %v2604 = vunpack.c.l.b16 %v2508
      %v2605 = vunpack.c.l.b16 %v2509
      %v2606 = vunpack.c.l.b16 %v2510
      %v2607 = vunpack.c.l.b16 %v2511
      %v2608 = vunpack.c.l.b16 %v2512
      %v2609 = vunpack.c.l.b16 %v2513
      %v2610 = vunpack.c.l.b16 %v2514
      %v2611 = vunpack.c.l.b16 %v2515
      %v2612 = vunpack.c.l.b16 %v2516
      %v2613 = vunpack.c.l.b16 %v2517
      %v2614 = vunpack.c.l.b16 %v2518
      %v2615 = vunpack.c.l.b16 %v2519
      %v2616 = vunpack.c.l.b16 %v2520
      %v2617 = vunpack.c.l.b16 %v2521
      %v2618 = vunpack.c.l.b16 %v2522
      %v2619 = vpack.c.b16 %v2572, %v2571
      %v2620 = vpack.c.b16 %v2573, %v2573
      %v2621 = vpack.c.b16 %v2575, %v2574
      %v2622 = vpack.c.b16 %v2576, %v2576
      %v2623 = vpack.c.b16 %v2578, %v2577
      %v2624 = vpack.c.b16 %v2579, %v2579
      %v2625 = vpack.c.b16 %v2581, %v2580
      %v2626 = vpack.c.b16 %v2582, %v2582
      %v2627 = vpack.c.b16 %v2584, %v2583
      %v2628 = vpack.c.b16 %v2585, %v2585
      %v2629 = vpack.c.b16 %v2587, %v2586
      %v2630 = vpack.c.b16 %v2588, %v2588
      %v2631 = vpack.c.b16 %v2590, %v2589
      %v2632 = vpack.c.b16 %v2591, %v2591
      %v2633 = vpack.c.b16 %v2593, %v2592
      %v2634 = vpack.c.b16 %v2594, %v2594
      %v2635 = vpack.c.b16 %v2596, %v2595
      %v2636 = vpack.c.b16 %v2597, %v2597
      %v2637 = vpack.c.b16 %v2599, %v2598
      %v2638 = vpack.c.b16 %v2600, %v2600
      %v2639 = vpack.c.b16 %v2602, %v2601
      %v2640 = vpack.c.b16 %v2603, %v2603
      %v2641 = vpack.c.b16 %v2605, %v2604
      %v2642 = vpack.c.b16 %v2606, %v2606
      %v2643 = vpack.c.b16 %v2608, %v2607
      %v2644 = vpack.c.b16 %v2609, %v2609
      %v2645 = vpack.c.b16 %v2611, %v2610
      %v2646 = vpack.c.b16 %v2612, %v2612
      %v2647 = vpack.c.b16 %v2614, %v2613
      %v2648 = vpack.c.b16 %v2615, %v2615
      %v2649 = vpack.c.b16 %v2617, %v2616
      %v2650 = vpack.c.b16 %v2618, %v2618
      %v2651 = vrot.slane %v2619, 2
      %v2652 = vrot.slane %v2620, 2
      %v2653 = vsel %vm1139, %v2651, %v2652
      %v2654 = vrot.slane %v2621, 2
      %v2655 = vrot.slane %v2622, 2
      %v2656 = vsel %vm1139, %v2654, %v2655
      %v2657 = vrot.slane %v2623, 2
      %v2658 = vrot.slane %v2624, 2
      %v2659 = vsel %vm1139, %v2657, %v2658
      %v2660 = vrot.slane %v2625, 2
      %v2661 = vrot.slane %v2626, 2
      %v2662 = vsel %vm1139, %v2660, %v2661
      %v2663 = vrot.slane %v2627, 2
      %v2664 = vrot.slane %v2628, 2
      %v2665 = vsel %vm1139, %v2663, %v2664
      %v2666 = vrot.slane %v2629, 2
      %v2667 = vrot.slane %v2630, 2
      %v2668 = vsel %vm1139, %v2666, %v2667
      %v2669 = vrot.slane %v2631, 2
      %v2670 = vrot.slane %v2632, 2
      %v2671 = vsel %vm1139, %v2669, %v2670
      %v2672 = vrot.slane %v2633, 2
      %v2673 = vrot.slane %v2634, 2
      %v2674 = vsel %vm1139, %v2672, %v2673
      %v2675 = vrot.slane %v2635, 2
      %v2676 = vrot.slane %v2636, 2
      %v2677 = vsel %vm1139, %v2675, %v2676
      %v2678 = vrot.slane %v2637, 2
      %v2679 = vrot.slane %v2638, 2
      %v2680 = vsel %vm1139, %v2678, %v2679
      %v2681 = vrot.slane %v2639, 2
      %v2682 = vrot.slane %v2640, 2
      %v2683 = vsel %vm1139, %v2681, %v2682
      %v2684 = vrot.slane %v2641, 2
      %v2685 = vrot.slane %v2642, 2
      %v2686 = vsel %vm1139, %v2684, %v2685
      %v2687 = vrot.slane %v2643, 2
      %v2688 = vrot.slane %v2644, 2
      %v2689 = vsel %vm1139, %v2687, %v2688
      %v2690 = vrot.slane %v2645, 2
      %v2691 = vrot.slane %v2646, 2
      %v2692 = vsel %vm1139, %v2690, %v2691
      %v2693 = vrot.slane %v2647, 2
      %v2694 = vrot.slane %v2648, 2
      %v2695 = vsel %vm1139, %v2693, %v2694
      %v2696 = vrot.slane %v2649, 2
      %v2697 = vrot.slane %v2650, 2
      %v2698 = vsel %vm1139, %v2696, %v2697
      %2699 = vrot.lane.b32.xlu0 %v2653, 32
      %v2700 = vpop.permute.xlu0 %2699
      %2701 = vrot.lane.b32.xlu0 %v2656, 32
      %v2702 = vpop.permute.xlu0 %2701
      %2703 = vrot.lane.b32.xlu0 %v2659, 32
      %v2704 = vpop.permute.xlu0 %2703
      %2705 = vrot.lane.b32.xlu0 %v2662, 32
      %v2706 = vpop.permute.xlu0 %2705
      %2707 = vrot.lane.b32.xlu0 %v2665, 32
      %v2708 = vpop.permute.xlu0 %2707
      %2709 = vrot.lane.b32.xlu0 %v2668, 32
      %v2710 = vpop.permute.xlu0 %2709
      %2711 = vrot.lane.b32.xlu0 %v2671, 32
      %v2712 = vpop.permute.xlu0 %2711
      %2713 = vrot.lane.b32.xlu0 %v2674, 32
      %v2714 = vpop.permute.xlu0 %2713
      %2715 = vrot.lane.b32.xlu0 %v2677, 32
      %v2716 = vpop.permute.xlu0 %2715
      %2717 = vrot.lane.b32.xlu0 %v2680, 32
      %v2718 = vpop.permute.xlu0 %2717
      %2719 = vrot.lane.b32.xlu0 %v2683, 32
      %v2720 = vpop.permute.xlu0 %2719
      %2721 = vrot.lane.b32.xlu0 %v2686, 32
      %v2722 = vpop.permute.xlu0 %2721
      %2723 = vrot.lane.b32.xlu0 %v2689, 32
      %v2724 = vpop.permute.xlu0 %2723
      %2725 = vrot.lane.b32.xlu0 %v2692, 32
      %v2726 = vpop.permute.xlu0 %2725
      %2727 = vrot.lane.b32.xlu0 %v2695, 32
      %v2728 = vpop.permute.xlu0 %2727
      %2729 = vrot.lane.b32.xlu0 %v2698, 32
      %v2730 = vpop.permute.xlu0 %2729
      %vm2747 = vcmask 294144
      %2748 = vst.msk [vmem:[#allocation4] sm:$0xff] %vm2747, %v2700
      %2749 = vst.msk [vmem:[#allocation4 + $0x8] sm:$0xff] %vm2747, %v2702
      %2750 = vst.msk [vmem:[#allocation4 + $0x10] sm:$0xff] %vm2747, %v2704
      %2751 = vst.msk [vmem:[#allocation4 + $0x18] sm:$0xff] %vm2747, %v2706
      %2752 = vst.msk [vmem:[#allocation4 + $0x20] sm:$0xff] %vm2747, %v2708
      %2753 = vst.msk [vmem:[#allocation4 + $0x28] sm:$0xff] %vm2747, %v2710
      %2754 = vst.msk [vmem:[#allocation4 + $0x30] sm:$0xff] %vm2747, %v2712
      %2755 = vst.msk [vmem:[#allocation4 + $0x38] sm:$0xff] %vm2747, %v2714
      %2756 = vst.msk [vmem:[#allocation4 + $0x40] sm:$0xff] %vm2747, %v2716
      %2757 = vst.msk [vmem:[#allocation4 + $0x48] sm:$0xff] %vm2747, %v2718
      %2758 = vst.msk [vmem:[#allocation4 + $0x50] sm:$0xff] %vm2747, %v2720
      %2759 = vst.msk [vmem:[#allocation4 + $0x58] sm:$0xff] %vm2747, %v2722
      %2760 = vst.msk [vmem:[#allocation4 + $0x60] sm:$0xff] %vm2747, %v2724
      %2761 = vst.msk [vmem:[#allocation4 + $0x68] sm:$0xff] %vm2747, %v2726
      %2762 = vst.msk [vmem:[#allocation4 + $0x70] sm:$0xff] %vm2747, %v2728
      %2763 = vst.msk [vmem:[#allocation4 + $0x78] sm:$0xff] %vm2747, %v2730
      %v2764 = vld [vmem:[#allocation4] sm:$0xff]
      %v2765 = vld [vmem:[#allocation4 + $0x8] sm:$0xff]
      %v2766 = vld [vmem:[#allocation4 + $0x10] sm:$0xff]
      %v2767 = vld [vmem:[#allocation4 + $0x18] sm:$0xff]
      %v2768 = vld [vmem:[#allocation4 + $0x20] sm:$0xff]
      %v2769 = vld [vmem:[#allocation4 + $0x28] sm:$0xff]
      %v2770 = vld [vmem:[#allocation4 + $0x30] sm:$0xff]
      %v2771 = vld [vmem:[#allocation4 + $0x38] sm:$0xff]
      %v2772 = vld [vmem:[#allocation4 + $0x40] sm:$0xff]
      %v2773 = vld [vmem:[#allocation4 + $0x48] sm:$0xff]
      %v2774 = vld [vmem:[#allocation4 + $0x50] sm:$0xff]
      %v2775 = vld [vmem:[#allocation4 + $0x58] sm:$0xff]
      %v2776 = vld [vmem:[#allocation4 + $0x60] sm:$0xff]
      %v2777 = vld [vmem:[#allocation4 + $0x68] sm:$0xff]
      %v2778 = vld [vmem:[#allocation4 + $0x70] sm:$0xff]
      %v2779 = vld [vmem:[#allocation4 + $0x78] sm:$0xff]
      %v2780 = vld [vmem:[%s1] sm:$0xf]
      %v2781 = vld [vmem:[%s1 + $0x4] sm:$0xf]
      %v2782 = vld [vmem:[%s1 + $0x8] sm:$0xf]
      %v2783 = vld [vmem:[%s1 + $0xc] sm:$0xf]
      %v2784 = vld [vmem:[%s1 + $0x10] sm:$0x3]
      %v2785 = vld [vmem:[%s2] sm:$0x1]
      %v2787 = vlaneseq
      %v2788 = vshrl.u32 %v2787, 7
      %v2789 = vsub.s32 0, %v2788
      %v2790 = vrot.slane %v2785, %v2789
      %v2797 = vunpack.c.l.b16 %v2780
      %v2798 = vunpack.c.l.b16 %v2781
      %v2799 = vunpack.c.l.b16 %v2782
      %v2800 = vunpack.c.l.b16 %v2783
      %v2801 = vunpack.c.l.b16 %v2784
      %v2802 = vpack.c.b16 %v2798, %v2797
      %v2803 = vpack.c.b16 %v2800, %v2799
      %v2804 = vpack.c.b16 %v2801, %v2801
      %vm2807 = vcmask 293888
      %v2809 = vsel %vm2807, %v2764, 0
      %v2812 = vsel %vm2807, %v2765, 0
      %v2815 = vsel %vm2807, %v2766, 0
      %v2818 = vsel %vm2807, %v2767, 0
      %v2821 = vsel %vm2807, %v2768, 0
      %v2824 = vsel %vm2807, %v2769, 0
      %v2827 = vsel %vm2807, %v2770, 0
      %v2830 = vsel %vm2807, %v2771, 0
      %v2833 = vsel %vm2807, %v2772, 0
      %v2836 = vsel %vm2807, %v2773, 0
      %v2839 = vsel %vm2807, %v2774, 0
      %v2842 = vsel %vm2807, %v2775, 0
      %v2845 = vsel %vm2807, %v2776, 0
      %v2848 = vsel %vm2807, %v2777, 0
      %v2851 = vsel %vm2807, %v2778, 0
      %v2854 = vsel %vm2807, %v2779, 0
      %vm2856 = vcmask 1041408
      %v2858 = vsel %vm2856, %v2804, 0
      %2860 = vmatprep.subr.bf16.mxu0 0
      %2861 = vmatpush1.bf16.msra.mxu0 %v2802
      %2862 = vmatprep.subr.bf16.mxu0 0
      %2863 = vmatpush1.bf16.msra.mxu0 %v2803
      %2864 = vmatprep.subr.bf16.mxu0 0
      %2865 = vmatpush1.bf16.msra.mxu0 %v2858
      %2866 = vmatprep.subr.bf16.mxu0 0
      %2867 = vmatpush1.bf16.msra.mxu0 0
      %2868 = vmatprep.subr.bf16.mxu0 0
      %2869 = vmatpush1.bf16.msra.mxu0 0
      %2870 = vmatprep.subr.bf16.mxu0 0
      %2871 = vmatpush1.bf16.msra.mxu0 0
      %2872 = vmatprep.subr.bf16.mxu0 0
      %2873 = vmatpush1.bf16.msra.mxu0 0
      %2874 = vmatprep.subr.bf16.mxu0 0
      %2875 = vmatpush1.bf16.msra.mxu0 0
      %2876 = vmatprep.subr.bf16.mxu0 0
      %2877 = vmatpush1.bf16.msra.mxu0 0
      %2878 = vmatprep.subr.bf16.mxu0 0
      %2879 = vmatpush1.bf16.msra.mxu0 0
      %2880 = vmatprep.subr.bf16.mxu0 0
      %2881 = vmatpush1.bf16.msra.mxu0 0
      %2882 = vmatprep.subr.bf16.mxu0 0
      %2883 = vmatpush1.bf16.msra.mxu0 0
      %2884 = vmatprep.subr.bf16.mxu0 0
      %2885 = vmatpush1.bf16.msra.mxu0 0
      %2886 = vmatprep.subr.bf16.mxu0 0
      %2887 = vmatpush1.bf16.msra.mxu0 0
      %2888 = vmatprep.subr.bf16.mxu0 0
      %2889 = vmatpush1.bf16.msra.mxu0 0
      %2890 = vmatprep.subr.bf16.mxu0 0
      %2891 = vmatpush1.bf16.msra.mxu0 0
      %2892 = vmatprep.mubr.bf16.mxu0 0
      %2893 = vmatmul.mubr.bf16.gmra.mrb[0].mxu0 %v2809
      %v2894 = vpop.f32.mrb[0].mxu0
      %v2895 = vadd.f32 %v2790, %v2894
      %v2896 = vpop.f32.mrb[0].mxu0
      %v2897 = vpop.f32.mrb[0].mxu0
      %v2898 = vadd.f32 %v2790, %v2897
      %v2899 = vpop.f32.mrb[0].mxu0
      %2900 = vmatprep.mubr.bf16.mxu0 0
      %2901 = vmatmul.mubr.bf16.gmra.mrb[0].mxu0 %v2812
      %v2902 = vpop.f32.mrb[0].mxu0
      %v2903 = vadd.f32 %v2790, %v2902
      %v2904 = vpop.f32.mrb[0].mxu0
      %v2905 = vpop.f32.mrb[0].mxu0
      %v2906 = vadd.f32 %v2790, %v2905
      %v2907 = vpop.f32.mrb[0].mxu0
      %2908 = vmatprep.mubr.bf16.mxu0 0
      %2909 = vmatmul.mubr.bf16.gmra.mrb[0].mxu0 %v2815
      %v2910 = vpop.f32.mrb[0].mxu0
      %v2911 = vadd.f32 %v2790, %v2910
      %v2912 = vpop.f32.mrb[0].mxu0
      %v2913 = vpop.f32.mrb[0].mxu0
      %v2914 = vadd.f32 %v2790, %v2913
      %v2915 = vpop.f32.mrb[0].mxu0
      %2916 = vmatprep.mubr.bf16.mxu0 0
      %2917 = vmatmul.mubr.bf16.gmra.mrb[0].mxu0 %v2818
      %v2918 = vpop.f32.mrb[0].mxu0
      %v2919 = vadd.f32 %v2790, %v2918
      %v2920 = vpop.f32.mrb[0].mxu0
      %v2921 = vpop.f32.mrb[0].mxu0
      %v2922 = vadd.f32 %v2790, %v2921
      %v2923 = vpop.f32.mrb[0].mxu0
      %2924 = vmatprep.mubr.bf16.mxu0 0
      %2925 = vmatmul.mubr.bf16.gmra.mrb[0].mxu0 %v2821
      %v2926 = vpop.f32.mrb[0].mxu0
      %v2927 = vadd.f32 %v2790, %v2926
      %v2928 = vpop.f32.mrb[0].mxu0
      %v2929 = vpop.f32.mrb[0].mxu0
      %v2930 = vadd.f32 %v2790, %v2929
      %v2931 = vpop.f32.mrb[0].mxu0
      %2932 = vmatprep.mubr.bf16.mxu0 0
      %2933 = vmatmul.mubr.bf16.gmra.mrb[0].mxu0 %v2824
      %v2934 = vpop.f32.mrb[0].mxu0
      %v2935 = vadd.f32 %v2790, %v2934
      %v2936 = vpop.f32.mrb[0].mxu0
      %v2937 = vpop.f32.mrb[0].mxu0
      %v2938 = vadd.f32 %v2790, %v2937
      %v2939 = vpop.f32.mrb[0].mxu0
      %2940 = vmatprep.mubr.bf16.mxu0 0
      %2941 = vmatmul.mubr.bf16.gmra.mrb[0].mxu0 %v2827
      %v2942 = vpop.f32.mrb[0].mxu0
      %v2943 = vadd.f32 %v2790, %v2942
      %v2944 = vpop.f32.mrb[0].mxu0
      %v2945 = vpop.f32.mrb[0].mxu0
      %v2946 = vadd.f32 %v2790, %v2945
      %v2947 = vpop.f32.mrb[0].mxu0
      %2948 = vmatprep.mubr.bf16.mxu0 0
      %2949 = vmatmul.mubr.bf16.gmra.mrb[0].mxu0 %v2830
      %v2950 = vpop.f32.mrb[0].mxu0
      %v2951 = vadd.f32 %v2790, %v2950
      %v2952 = vpop.f32.mrb[0].mxu0
      %v2953 = vpop.f32.mrb[0].mxu0
      %v2954 = vadd.f32 %v2790, %v2953
      %v2955 = vpop.f32.mrb[0].mxu0
      %2956 = vmatprep.mubr.bf16.mxu0 0
      %2957 = vmatmul.mubr.bf16.gmra.mrb[0].mxu0 %v2833
      %v2958 = vpop.f32.mrb[0].mxu0
      %v2959 = vadd.f32 %v2790, %v2958
      %v2960 = vpop.f32.mrb[0].mxu0
      %v2961 = vpop.f32.mrb[0].mxu0
      %v2962 = vadd.f32 %v2790, %v2961
      %v2963 = vpop.f32.mrb[0].mxu0
      %2964 = vmatprep.mubr.bf16.mxu0 0
      %2965 = vmatmul.mubr.bf16.gmra.mrb[0].mxu0 %v2836
      %v2966 = vpop.f32.mrb[0].mxu0
      %v2967 = vadd.f32 %v2790, %v2966
      %v2968 = vpop.f32.mrb[0].mxu0
      %v2969 = vpop.f32.mrb[0].mxu0
      %v2970 = vadd.f32 %v2790, %v2969
      %v2971 = vpop.f32.mrb[0].mxu0
      %2972 = vmatprep.mubr.bf16.mxu0 0
      %2973 = vmatmul.mubr.bf16.gmra.mrb[0].mxu0 %v2839
      %v2974 = vpop.f32.mrb[0].mxu0
      %v2975 = vadd.f32 %v2790, %v2974
      %v2976 = vpop.f32.mrb[0].mxu0
      %v2977 = vpop.f32.mrb[0].mxu0
      %v2978 = vadd.f32 %v2790, %v2977
      %v2979 = vpop.f32.mrb[0].mxu0
      %2980 = vmatprep.mubr.bf16.mxu0 0
      %2981 = vmatmul.mubr.bf16.gmra.mrb[0].mxu0 %v2842
      %v2982 = vpop.f32.mrb[0].mxu0
      %v2983 = vadd.f32 %v2790, %v2982
      %v2984 = vpop.f32.mrb[0].mxu0
      %v2985 = vpop.f32.mrb[0].mxu0
      %v2986 = vadd.f32 %v2790, %v2985
      %v2987 = vpop.f32.mrb[0].mxu0
      %2988 = vmatprep.mubr.bf16.mxu0 0
      %2989 = vmatmul.mubr.bf16.gmra.mrb[0].mxu0 %v2845
      %v2990 = vpop.f32.mrb[0].mxu0
      %v2991 = vadd.f32 %v2790, %v2990
      %v2992 = vpop.f32.mrb[0].mxu0
      %v2993 = vpop.f32.mrb[0].mxu0
      %v2994 = vadd.f32 %v2790, %v2993
      %v2995 = vpop.f32.mrb[0].mxu0
      %2996 = vmatprep.mubr.bf16.mxu0 0
      %2997 = vmatmul.mubr.bf16.gmra.mrb[0].mxu0 %v2848
      %v2998 = vpop.f32.mrb[0].mxu0
      %v2999 = vadd.f32 %v2790, %v2998
      %v3000 = vpop.f32.mrb[0].mxu0
      %v3001 = vpop.f32.mrb[0].mxu0
      %v3002 = vadd.f32 %v2790, %v3001
      %v3003 = vpop.f32.mrb[0].mxu0
      %3004 = vmatprep.mubr.bf16.mxu0 0
      %3005 = vmatmul.mubr.bf16.gmra.mrb[0].mxu0 %v2851
      %v3006 = vpop.f32.mrb[0].mxu0
      %v3007 = vadd.f32 %v2790, %v3006
      %v3008 = vpop.f32.mrb[0].mxu0
      %v3009 = vpop.f32.mrb[0].mxu0
      %v3010 = vadd.f32 %v2790, %v3009
      %v3011 = vpop.f32.mrb[0].mxu0
      %3012 = vmatprep.mubr.bf16.mxu0 0
      %3013 = vmatmul.mubr.bf16.gmra.mrb[0].mxu0 %v2854
      %v3014 = vpop.f32.mrb[0].mxu0
      %v3015 = vadd.f32 %v2790, %v3014
      %v3016 = vpop.f32.mrb[0].mxu0
      %v3017 = vpop.f32.mrb[0].mxu0
      %v3018 = vadd.f32 %v2790, %v3017
      %v3019 = vpop.f32.mrb[0].mxu0
      %3020 = vdwg.mxu0
      %v3021 = vmax.f32 %v2895, 0.0
      %v3022 = vmax.f32 %v2898, 0.0
      %v3023 = vmax.f32 %v2903, 0.0
      %v3024 = vmax.f32 %v2906, 0.0
      %v3025 = vmax.f32 %v2911, 0.0
      %v3026 = vmax.f32 %v2914, 0.0
      %v3027 = vmax.f32 %v2919, 0.0
      %v3028 = vmax.f32 %v2922, 0.0
      %v3029 = vmax.f32 %v2927, 0.0
      %v3030 = vmax.f32 %v2930, 0.0
      %v3031 = vmax.f32 %v2935, 0.0
      %v3032 = vmax.f32 %v2938, 0.0
      %v3033 = vmax.f32 %v2943, 0.0
      %v3034 = vmax.f32 %v2946, 0.0
      %v3035 = vmax.f32 %v2951, 0.0
      %v3036 = vmax.f32 %v2954, 0.0
      %v3037 = vmax.f32 %v2959, 0.0
      %v3038 = vmax.f32 %v2962, 0.0
      %v3039 = vmax.f32 %v2967, 0.0
      %v3040 = vmax.f32 %v2970, 0.0
      %v3041 = vmax.f32 %v2975, 0.0
      %v3042 = vmax.f32 %v2978, 0.0
      %v3043 = vmax.f32 %v2983, 0.0
      %v3044 = vmax.f32 %v2986, 0.0
      %v3045 = vmax.f32 %v2991, 0.0
      %v3046 = vmax.f32 %v2994, 0.0
      %v3047 = vmax.f32 %v2999, 0.0
      %v3048 = vmax.f32 %v3002, 0.0
      %v3049 = vmax.f32 %v3007, 0.0
      %v3050 = vmax.f32 %v3010, 0.0
      %v3051 = vmax.f32 %v3015, 0.0
      %v3052 = vmax.f32 %v3018, 0.0
      %vm3053 = vcmask 60416
      %3054 = vst.msk [vmem:[#allocation3] sm:$0xf] %vm3053, 0
      %3055 = vst.msk [vmem:[#allocation3 + $0x4] sm:$0xf] %vm3053, 0
      %vm3056 = vcmask 58368
      %3057 = vst.msk [vmem:[#allocation3 + $0x8] sm:$0x3] %vm3056, 0
      %3058 = vst.msk [vmem:[#allocation3 + $0xc] sm:$0xf] %vm3053, 0
      %3059 = vst.msk [vmem:[#allocation3 + $0x10] sm:$0xf] %vm3053, 0
      %3060 = vst.msk [vmem:[#allocation3 + $0x14] sm:$0x3] %vm3056, 0
      %s3061 = scalar_lea.vmem [#allocation3], 216
      %3062 = vst.msk [vmem:[%s3061] sm:$0xf] %vm3053, 0
      %3063 = vst.msk [vmem:[%s3061 + $0x4] sm:$0xf] %vm3053, 0
      %3064 = vst.msk [vmem:[%s3061 + $0x8] sm:$0x3] %vm3056, 0
      %3065 = vst.msk [vmem:[%s3061 + $0xc] sm:$0xf] %vm3053, 0
      %3066 = vst.msk [vmem:[%s3061 + $0x10] sm:$0xf] %vm3053, 0
      %3067 = vst.msk [vmem:[%s3061 + $0x14] sm:$0x3] %vm3056, 0
      %vm3068 = vcmask 57344
      %3069 = vst.msk [vmem:[#allocation3] sm:$0x1] %vm3068, 0
      %3070 = vst.msk [vmem:[#allocation3 + $0xc] sm:$0x1] %vm3068, 0
      %3071 = vst.msk [vmem:[#allocation3 + $0x18] sm:$0x1] %vm3068, 0
      %3072 = vst.msk [vmem:[#allocation3 + $0x24] sm:$0x1] %vm3068, 0
      %3073 = vst.msk [vmem:[#allocation3 + $0x30] sm:$0x1] %vm3068, 0
      %3074 = vst.msk [vmem:[#allocation3 + $0x3c] sm:$0x1] %vm3068, 0
      %3075 = vst.msk [vmem:[#allocation3 + $0x48] sm:$0x1] %vm3068, 0
      %3076 = vst.msk [vmem:[#allocation3 + $0x54] sm:$0x1] %vm3068, 0
      %3077 = vst.msk [vmem:[#allocation3 + $0x60] sm:$0x1] %vm3068, 0
      %3078 = vst.msk [vmem:[#allocation3 + $0x6c] sm:$0x1] %vm3068, 0
      %3079 = vst.msk [vmem:[#allocation3 + $0x78] sm:$0x1] %vm3068, 0
      %3080 = vst.msk [vmem:[#allocation3 + $0x84] sm:$0x1] %vm3068, 0
      %3081 = vst.msk [vmem:[#allocation3 + $0x90] sm:$0x1] %vm3068, 0
      %3082 = vst.msk [vmem:[#allocation3 + $0x9c] sm:$0x1] %vm3068, 0
      %3083 = vst.msk [vmem:[#allocation3 + $0xa8] sm:$0x1] %vm3068, 0
      %3084 = vst.msk [vmem:[#allocation3 + $0xb4] sm:$0x1] %vm3068, 0
      %3085 = vst.msk [vmem:[#allocation3 + $0xc0] sm:$0x1] %vm3068, 0
      %3086 = vst.msk [vmem:[#allocation3 + $0xcc] sm:$0x1] %vm3068, 0
      %3087 = vst.msk [vmem:[#allocation3 + $0xd8] sm:$0x1] %vm3068, 0
      %3088 = vst.msk [vmem:[#allocation3 + $0xe4] sm:$0x1] %vm3068, 0
      %vm3089 = vcmask 58369
      %3090 = vst.msk [vmem:[#allocation3 + $0x8] sm:$0x2] %vm3089, 0
      %3091 = vst.msk [vmem:[#allocation3 + $0x14] sm:$0x2] %vm3089, 0
      %3092 = vst.msk [vmem:[#allocation3 + $0x20] sm:$0x2] %vm3089, 0
      %3093 = vst.msk [vmem:[#allocation3 + $0x2c] sm:$0x2] %vm3089, 0
      %3094 = vst.msk [vmem:[#allocation3 + $0x38] sm:$0x2] %vm3089, 0
      %3095 = vst.msk [vmem:[#allocation3 + $0x44] sm:$0x2] %vm3089, 0
      %3096 = vst.msk [vmem:[#allocation3 + $0x50] sm:$0x2] %vm3089, 0
      %3097 = vst.msk [vmem:[#allocation3 + $0x5c] sm:$0x2] %vm3089, 0
      %3098 = vst.msk [vmem:[#allocation3 + $0x68] sm:$0x2] %vm3089, 0
      %3099 = vst.msk [vmem:[#allocation3 + $0x74] sm:$0x2] %vm3089, 0
      %3100 = vst.msk [vmem:[#allocation3 + $0x80] sm:$0x2] %vm3089, 0
      %3101 = vst.msk [vmem:[#allocation3 + $0x8c] sm:$0x2] %vm3089, 0
      %3102 = vst.msk [vmem:[#allocation3 + $0x98] sm:$0x2] %vm3089, 0
      %3103 = vst.msk [vmem:[#allocation3 + $0xa4] sm:$0x2] %vm3089, 0
      %3104 = vst.msk [vmem:[#allocation3 + $0xb0] sm:$0x2] %vm3089, 0
      %3105 = vst.msk [vmem:[#allocation3 + $0xbc] sm:$0x2] %vm3089, 0
      %3106 = vst.msk [vmem:[#allocation3 + $0xc8] sm:$0x2] %vm3089, 0
      %3107 = vst.msk [vmem:[#allocation3 + $0xd4] sm:$0x2] %vm3089, 0
      %3108 = vst.msk [vmem:[#allocation3 + $0xe0] sm:$0x2] %vm3089, 0
      %3109 = vst.msk [vmem:[#allocation3 + $0xec] sm:$0x2] %vm3089, 0
      %v3110 = vpack.c.bf16 %v3022, %v3021
      %v3111 = vpack.c.bf16 %v3024, %v3023
      %v3112 = vpack.c.bf16 %v3026, %v3025
      %v3113 = vpack.c.bf16 %v3028, %v3027
      %v3114 = vpack.c.bf16 %v3030, %v3029
      %v3115 = vpack.c.bf16 %v3032, %v3031
      %v3116 = vpack.c.bf16 %v3034, %v3033
      %v3117 = vpack.c.bf16 %v3036, %v3035
      %v3118 = vpack.c.bf16 %v3038, %v3037
      %v3119 = vpack.c.bf16 %v3040, %v3039
      %v3120 = vpack.c.bf16 %v3042, %v3041
      %v3121 = vpack.c.bf16 %v3044, %v3043
      %v3122 = vpack.c.bf16 %v3046, %v3045
      %v3123 = vpack.c.bf16 %v3048, %v3047
      %v3124 = vpack.c.bf16 %v3050, %v3049
      %v3125 = vpack.c.bf16 %v3052, %v3051
      %v3142 = vunpack.c.l.b16 %v3110
      %v3143 = vunpack.c.h.b16 %v3110
      %v3144 = vunpack.c.l.b16 %v3111
      %v3145 = vunpack.c.h.b16 %v3111
      %v3146 = vunpack.c.l.b16 %v3112
      %v3147 = vunpack.c.h.b16 %v3112
      %v3148 = vunpack.c.l.b16 %v3113
      %v3149 = vunpack.c.h.b16 %v3113
      %v3150 = vunpack.c.l.b16 %v3114
      %v3151 = vunpack.c.h.b16 %v3114
      %v3152 = vunpack.c.l.b16 %v3115
      %v3153 = vunpack.c.h.b16 %v3115
      %v3154 = vunpack.c.l.b16 %v3116
      %v3155 = vunpack.c.h.b16 %v3116
      %v3156 = vunpack.c.l.b16 %v3117
      %v3157 = vunpack.c.h.b16 %v3117
      %v3158 = vunpack.c.l.b16 %v3118
      %v3159 = vunpack.c.h.b16 %v3118
      %v3160 = vunpack.c.l.b16 %v3119
      %v3161 = vunpack.c.h.b16 %v3119
      %v3162 = vunpack.c.l.b16 %v3120
      %v3163 = vunpack.c.h.b16 %v3120
      %v3164 = vunpack.c.l.b16 %v3121
      %v3165 = vunpack.c.h.b16 %v3121
      %v3166 = vunpack.c.l.b16 %v3122
      %v3167 = vunpack.c.h.b16 %v3122
      %v3168 = vunpack.c.l.b16 %v3123
      %v3169 = vunpack.c.h.b16 %v3123
      %v3170 = vunpack.c.l.b16 %v3124
      %v3171 = vunpack.c.h.b16 %v3124
      %v3172 = vunpack.c.l.b16 %v3125
      %v3173 = vunpack.c.h.b16 %v3125
      %v3174 = vpack.c.b16 %v3142, %v3142
      %v3175 = vpack.c.b16 %v3143, %v3143
      %v3176 = vpack.c.b16 %v3144, %v3144
      %v3177 = vpack.c.b16 %v3145, %v3145
      %v3178 = vpack.c.b16 %v3146, %v3146
      %v3179 = vpack.c.b16 %v3147, %v3147
      %v3180 = vpack.c.b16 %v3148, %v3148
      %v3181 = vpack.c.b16 %v3149, %v3149
      %v3182 = vpack.c.b16 %v3150, %v3150
      %v3183 = vpack.c.b16 %v3151, %v3151
      %v3184 = vpack.c.b16 %v3152, %v3152
      %v3185 = vpack.c.b16 %v3153, %v3153
      %v3186 = vpack.c.b16 %v3154, %v3154
      %v3187 = vpack.c.b16 %v3155, %v3155
      %v3188 = vpack.c.b16 %v3156, %v3156
      %v3189 = vpack.c.b16 %v3157, %v3157
      %v3190 = vpack.c.b16 %v3158, %v3158
      %v3191 = vpack.c.b16 %v3159, %v3159
      %v3192 = vpack.c.b16 %v3160, %v3160
      %v3193 = vpack.c.b16 %v3161, %v3161
      %v3194 = vpack.c.b16 %v3162, %v3162
      %v3195 = vpack.c.b16 %v3163, %v3163
      %v3196 = vpack.c.b16 %v3164, %v3164
      %v3197 = vpack.c.b16 %v3165, %v3165
      %v3198 = vpack.c.b16 %v3166, %v3166
      %v3199 = vpack.c.b16 %v3167, %v3167
      %v3200 = vpack.c.b16 %v3168, %v3168
      %v3201 = vpack.c.b16 %v3169, %v3169
      %v3202 = vpack.c.b16 %v3170, %v3170
      %v3203 = vpack.c.b16 %v3171, %v3171
      %v3204 = vpack.c.b16 %v3172, %v3172
      %v3205 = vpack.c.b16 %v3173, %v3173
      %v3206 = vrot.slane %v3174, 7
      %v3207 = vrot.slane %v3206, 4
      %v3208 = vrot.slane %v3175, 7
      %v3209 = vsel %vm349, %v3207, %v3208
      %v3210 = vrot.slane %v3208, 4
      %v3211 = vrot.slane %v3176, 7
      %v3212 = vrot.slane %v3211, 4
      %v3213 = vrot.slane %v3177, 7
      %v3214 = vsel %vm349, %v3212, %v3213
      %v3215 = vrot.slane %v3213, 4
      %v3216 = vrot.slane %v3178, 7
      %v3217 = vrot.slane %v3216, 4
      %v3218 = vrot.slane %v3179, 7
      %v3219 = vsel %vm349, %v3217, %v3218
      %v3220 = vrot.slane %v3218, 4
      %v3221 = vrot.slane %v3180, 7
      %v3222 = vrot.slane %v3221, 4
      %v3223 = vrot.slane %v3181, 7
      %v3224 = vsel %vm349, %v3222, %v3223
      %v3225 = vrot.slane %v3223, 4
      %v3226 = vrot.slane %v3182, 7
      %v3227 = vrot.slane %v3226, 4
      %v3228 = vrot.slane %v3183, 7
      %v3229 = vsel %vm349, %v3227, %v3228
      %v3230 = vrot.slane %v3228, 4
      %v3231 = vrot.slane %v3184, 7
      %v3232 = vrot.slane %v3231, 4
      %v3233 = vrot.slane %v3185, 7
      %v3234 = vsel %vm349, %v3232, %v3233
      %v3235 = vrot.slane %v3233, 4
      %v3236 = vrot.slane %v3186, 7
      %v3237 = vrot.slane %v3236, 4
      %v3238 = vrot.slane %v3187, 7
      %v3239 = vsel %vm349, %v3237, %v3238
      %v3240 = vrot.slane %v3238, 4
      %v3241 = vrot.slane %v3188, 7
      %v3242 = vrot.slane %v3241, 4
      %v3243 = vrot.slane %v3189, 7
      %v3244 = vsel %vm349, %v3242, %v3243
      %v3245 = vrot.slane %v3243, 4
      %v3246 = vrot.slane %v3190, 7
      %v3247 = vrot.slane %v3246, 4
      %v3248 = vrot.slane %v3191, 7
      %v3249 = vsel %vm349, %v3247, %v3248
      %v3250 = vrot.slane %v3248, 4
      %v3251 = vrot.slane %v3192, 7
      %v3252 = vrot.slane %v3251, 4
      %v3253 = vrot.slane %v3193, 7
      %v3254 = vsel %vm349, %v3252, %v3253
      %v3255 = vrot.slane %v3253, 4
      %v3256 = vrot.slane %v3194, 7
      %v3257 = vrot.slane %v3256, 4
      %v3258 = vrot.slane %v3195, 7
      %v3259 = vsel %vm349, %v3257, %v3258
      %v3260 = vrot.slane %v3258, 4
      %v3261 = vrot.slane %v3196, 7
      %v3262 = vrot.slane %v3261, 4
      %v3263 = vrot.slane %v3197, 7
      %v3264 = vsel %vm349, %v3262, %v3263
      %v3265 = vrot.slane %v3263, 4
      %v3266 = vrot.slane %v3198, 7
      %v3267 = vrot.slane %v3266, 4
      %v3268 = vrot.slane %v3199, 7
      %v3269 = vsel %vm349, %v3267, %v3268
      %v3270 = vrot.slane %v3268, 4
      %v3271 = vrot.slane %v3200, 7
      %v3272 = vrot.slane %v3271, 4
      %v3273 = vrot.slane %v3201, 7
      %v3274 = vsel %vm349, %v3272, %v3273
      %v3275 = vrot.slane %v3273, 4
      %v3276 = vrot.slane %v3202, 7
      %v3277 = vrot.slane %v3276, 4
      %v3278 = vrot.slane %v3203, 7
      %v3279 = vsel %vm349, %v3277, %v3278
      %v3280 = vrot.slane %v3278, 4
      %v3281 = vrot.slane %v3204, 7
      %v3282 = vrot.slane %v3281, 4
      %v3283 = vrot.slane %v3205, 7
      %v3284 = vsel %vm349, %v3282, %v3283
      %v3285 = vrot.slane %v3283, 4
      %s3334 = scalar_lea.vmem [#allocation3], 24
      %vm3335 = vcmask 60417
      %3336 = vst.msk [vmem:[%s3334] sm:$0xe] %vm3335, %v3206
      %3337 = vst.msk [vmem:[%s3334 + $0x4] sm:$0xf] %vm3053, %v3209
      %3338 = vst.msk [vmem:[%s3334 + $0x8] sm:$0x1] %vm3068, %v3210
      %3339 = vst.msk [vmem:[%s3334 + $0xc] sm:$0xe] %vm3335, %v3211
      %3340 = vst.msk [vmem:[%s3334 + $0x10] sm:$0xf] %vm3053, %v3214
      %3341 = vst.msk [vmem:[%s3334 + $0x14] sm:$0x1] %vm3068, %v3215
      %3342 = vst.msk [vmem:[%s3334 + $0x18] sm:$0xe] %vm3335, %v3216
      %3343 = vst.msk [vmem:[%s3334 + $0x1c] sm:$0xf] %vm3053, %v3219
      %3344 = vst.msk [vmem:[%s3334 + $0x20] sm:$0x1] %vm3068, %v3220
      %3345 = vst.msk [vmem:[%s3334 + $0x24] sm:$0xe] %vm3335, %v3221
      %3346 = vst.msk [vmem:[%s3334 + $0x28] sm:$0xf] %vm3053, %v3224
      %3347 = vst.msk [vmem:[%s3334 + $0x2c] sm:$0x1] %vm3068, %v3225
      %3348 = vst.msk [vmem:[%s3334 + $0x30] sm:$0xe] %vm3335, %v3226
      %3349 = vst.msk [vmem:[%s3334 + $0x34] sm:$0xf] %vm3053, %v3229
      %3350 = vst.msk [vmem:[%s3334 + $0x38] sm:$0x1] %vm3068, %v3230
      %3351 = vst.msk [vmem:[%s3334 + $0x3c] sm:$0xe] %vm3335, %v3231
      %3352 = vst.msk [vmem:[%s3334 + $0x40] sm:$0xf] %vm3053, %v3234
      %3353 = vst.msk [vmem:[%s3334 + $0x44] sm:$0x1] %vm3068, %v3235
      %3354 = vst.msk [vmem:[%s3334 + $0x48] sm:$0xe] %vm3335, %v3236
      %3355 = vst.msk [vmem:[%s3334 + $0x4c] sm:$0xf] %vm3053, %v3239
      %3356 = vst.msk [vmem:[%s3334 + $0x50] sm:$0x1] %vm3068, %v3240
      %3357 = vst.msk [vmem:[%s3334 + $0x54] sm:$0xe] %vm3335, %v3241
      %3358 = vst.msk [vmem:[%s3334 + $0x58] sm:$0xf] %vm3053, %v3244
      %3359 = vst.msk [vmem:[%s3334 + $0x5c] sm:$0x1] %vm3068, %v3245
      %3360 = vst.msk [vmem:[%s3334 + $0x60] sm:$0xe] %vm3335, %v3246
      %3361 = vst.msk [vmem:[%s3334 + $0x64] sm:$0xf] %vm3053, %v3249
      %3362 = vst.msk [vmem:[%s3334 + $0x68] sm:$0x1] %vm3068, %v3250
      %3363 = vst.msk [vmem:[%s3334 + $0x6c] sm:$0xe] %vm3335, %v3251
      %3364 = vst.msk [vmem:[%s3334 + $0x70] sm:$0xf] %vm3053, %v3254
      %3365 = vst.msk [vmem:[%s3334 + $0x74] sm:$0x1] %vm3068, %v3255
      %3366 = vst.msk [vmem:[%s3334 + $0x78] sm:$0xe] %vm3335, %v3256
      %3367 = vst.msk [vmem:[%s3334 + $0x7c] sm:$0xf] %vm3053, %v3259
      %3368 = vst.msk [vmem:[%s3334 + $0x80] sm:$0x1] %vm3068, %v3260
      %3369 = vst.msk [vmem:[%s3334 + $0x84] sm:$0xe] %vm3335, %v3261
      %3370 = vst.msk [vmem:[%s3334 + $0x88] sm:$0xf] %vm3053, %v3264
      %3371 = vst.msk [vmem:[%s3334 + $0x8c] sm:$0x1] %vm3068, %v3265
      %3372 = vst.msk [vmem:[%s3334 + $0x90] sm:$0xe] %vm3335, %v3266
      %3373 = vst.msk [vmem:[%s3334 + $0x94] sm:$0xf] %vm3053, %v3269
      %3374 = vst.msk [vmem:[%s3334 + $0x98] sm:$0x1] %vm3068, %v3270
      %3375 = vst.msk [vmem:[%s3334 + $0x9c] sm:$0xe] %vm3335, %v3271
      %3376 = vst.msk [vmem:[%s3334 + $0xa0] sm:$0xf] %vm3053, %v3274
      %3377 = vst.msk [vmem:[%s3334 + $0xa4] sm:$0x1] %vm3068, %v3275
      %3378 = vst.msk [vmem:[%s3334 + $0xa8] sm:$0xe] %vm3335, %v3276
      %3379 = vst.msk [vmem:[%s3334 + $0xac] sm:$0xf] %vm3053, %v3279
      %3380 = vst.msk [vmem:[%s3334 + $0xb0] sm:$0x1] %vm3068, %v3280
      %3381 = vst.msk [vmem:[%s3334 + $0xb4] sm:$0xe] %vm3335, %v3281
      %3382 = vst.msk [vmem:[%s3334 + $0xb8] sm:$0xf] %vm3053, %v3284
      %3383 = vst.msk [vmem:[%s3334 + $0xbc] sm:$0x1] %vm3068, %v3285
      %v3384 = vld [vmem:[#allocation3] sm:$0xf]
      %v3385 = vld [vmem:[#allocation3 + $0x4] sm:$0xf]
      %v3386 = vld [vmem:[#allocation3 + $0xc] sm:$0xf]
      %v3387 = vld [vmem:[#allocation3 + $0x10] sm:$0xf]
      %v3388 = vld [vmem:[#allocation3 + $0x18] sm:$0xf]
      %v3389 = vld [vmem:[#allocation3 + $0x1c] sm:$0xf]
      %v3390 = vld [vmem:[#allocation3 + $0x24] sm:$0xf]
      %v3391 = vld [vmem:[#allocation3 + $0x28] sm:$0xf]
      %v3392 = vld [vmem:[#allocation3 + $0x30] sm:$0xf]
      %v3393 = vld [vmem:[#allocation3 + $0x34] sm:$0xf]
      %v3394 = vld [vmem:[#allocation3 + $0x3c] sm:$0xf]
      %v3395 = vld [vmem:[#allocation3 + $0x40] sm:$0xf]
      %v3396 = vld [vmem:[#allocation3 + $0x48] sm:$0xf]
      %v3397 = vld [vmem:[#allocation3 + $0x4c] sm:$0xf]
      %v3398 = vld [vmem:[#allocation3 + $0x54] sm:$0xf]
      %v3399 = vld [vmem:[#allocation3 + $0x58] sm:$0xf]
      %v3400 = vld [vmem:[#allocation3 + $0x60] sm:$0xf]
      %v3401 = vld [vmem:[#allocation3 + $0x64] sm:$0xf]
      %v3402 = vld [vmem:[#allocation3 + $0x6c] sm:$0xf]
      %v3403 = vld [vmem:[#allocation3 + $0x70] sm:$0xf]
      %v3404 = vld [vmem:[#allocation3 + $0x78] sm:$0xf]
      %v3405 = vld [vmem:[#allocation3 + $0x7c] sm:$0xf]
      %v3406 = vld [vmem:[#allocation3 + $0x84] sm:$0xf]
      %v3407 = vld [vmem:[#allocation3 + $0x88] sm:$0xf]
      %v3408 = vld [vmem:[#allocation3 + $0x90] sm:$0xf]
      %v3409 = vld [vmem:[#allocation3 + $0x94] sm:$0xf]
      %v3410 = vld [vmem:[#allocation3 + $0x9c] sm:$0xf]
      %v3411 = vld [vmem:[#allocation3 + $0xa0] sm:$0xf]
      %v3412 = vld [vmem:[#allocation3 + $0xa8] sm:$0xf]
      %v3413 = vld [vmem:[#allocation3 + $0xac] sm:$0xf]
      %v3414 = vld [vmem:[#allocation3 + $0xb4] sm:$0xf]
      %v3415 = vld [vmem:[#allocation3 + $0xb8] sm:$0xf]
      %v3448 = vunpack.c.l.b16 %v3384
      %v3449 = vunpack.c.l.b16 %v3385
      %v3450 = vunpack.c.l.b16 %v3386
      %v3451 = vunpack.c.l.b16 %v3387
      %v3452 = vunpack.c.l.b16 %v3388
      %v3453 = vunpack.c.l.b16 %v3389
      %v3454 = vunpack.c.l.b16 %v3390
      %v3455 = vunpack.c.l.b16 %v3391
      %v3456 = vunpack.c.l.b16 %v3392
      %v3457 = vunpack.c.l.b16 %v3393
      %v3458 = vunpack.c.l.b16 %v3394
      %v3459 = vunpack.c.l.b16 %v3395
      %v3460 = vunpack.c.l.b16 %v3396
      %v3461 = vunpack.c.l.b16 %v3397
      %v3462 = vunpack.c.l.b16 %v3398
      %v3463 = vunpack.c.l.b16 %v3399
      %v3464 = vunpack.c.l.b16 %v3400
      %v3465 = vunpack.c.l.b16 %v3401
      %v3466 = vunpack.c.l.b16 %v3402
      %v3467 = vunpack.c.l.b16 %v3403
      %v3468 = vunpack.c.l.b16 %v3404
      %v3469 = vunpack.c.l.b16 %v3405
      %v3470 = vunpack.c.l.b16 %v3406
      %v3471 = vunpack.c.l.b16 %v3407
      %v3472 = vunpack.c.l.b16 %v3408
      %v3473 = vunpack.c.l.b16 %v3409
      %v3474 = vunpack.c.l.b16 %v3410
      %v3475 = vunpack.c.l.b16 %v3411
      %v3476 = vunpack.c.l.b16 %v3412
      %v3477 = vunpack.c.l.b16 %v3413
      %v3478 = vunpack.c.l.b16 %v3414
      %v3479 = vunpack.c.l.b16 %v3415
      %v3480 = vpack.c.b16 %v3449, %v3448
      %v3481 = vpack.c.b16 %v3451, %v3450
      %v3482 = vpack.c.b16 %v3453, %v3452
      %v3483 = vpack.c.b16 %v3455, %v3454
      %v3484 = vpack.c.b16 %v3457, %v3456
      %v3485 = vpack.c.b16 %v3459, %v3458
      %v3486 = vpack.c.b16 %v3461, %v3460
      %v3487 = vpack.c.b16 %v3463, %v3462
      %v3488 = vpack.c.b16 %v3465, %v3464
      %v3489 = vpack.c.b16 %v3467, %v3466
      %v3490 = vpack.c.b16 %v3469, %v3468
      %v3491 = vpack.c.b16 %v3471, %v3470
      %v3492 = vpack.c.b16 %v3473, %v3472
      %v3493 = vpack.c.b16 %v3475, %v3474
      %v3494 = vpack.c.b16 %v3477, %v3476
      %v3495 = vpack.c.b16 %v3479, %v3478
      %vm3512 = vcmask 64512
      %3513 = vst.msk [vmem:[#allocation5] sm:$0xff] %vm3512, %v3480
      %3514 = vst.msk [vmem:[#allocation5 + $0x8] sm:$0xff] %vm3512, %v3481
      %3515 = vst.msk [vmem:[#allocation5 + $0x10] sm:$0xff] %vm3512, %v3482
      %3516 = vst.msk [vmem:[#allocation5 + $0x18] sm:$0xff] %vm3512, %v3483
      %3517 = vst.msk [vmem:[#allocation5 + $0x20] sm:$0xff] %vm3512, %v3484
      %3518 = vst.msk [vmem:[#allocation5 + $0x28] sm:$0xff] %vm3512, %v3485
      %3519 = vst.msk [vmem:[#allocation5 + $0x30] sm:$0xff] %vm3512, %v3486
      %3520 = vst.msk [vmem:[#allocation5 + $0x38] sm:$0xff] %vm3512, %v3487
      %3521 = vst.msk [vmem:[#allocation5 + $0x40] sm:$0xff] %vm3512, %v3488
      %3522 = vst.msk [vmem:[#allocation5 + $0x48] sm:$0xff] %vm3512, %v3489
      %3523 = vst.msk [vmem:[#allocation5 + $0x50] sm:$0xff] %vm3512, %v3490
      %3524 = vst.msk [vmem:[#allocation5 + $0x58] sm:$0xff] %vm3512, %v3491
      %3525 = vst.msk [vmem:[#allocation5 + $0x60] sm:$0xff] %vm3512, %v3492
      %3526 = vst.msk [vmem:[#allocation5 + $0x68] sm:$0xff] %vm3512, %v3493
      %3527 = vst.msk [vmem:[#allocation5 + $0x70] sm:$0xff] %vm3512, %v3494
      %3528 = vst.msk [vmem:[#allocation5 + $0x78] sm:$0xff] %vm3512, %v3495
      %v3529 = vld [vmem:[#allocation3] sm:$0xe]
      %v3530 = vld [vmem:[#allocation3 + $0x4] sm:$0xf]
      %v3531 = vld [vmem:[#allocation3 + $0x8] sm:$0x1]
      %v3532 = vld [vmem:[#allocation3 + $0xc] sm:$0xe]
      %v3533 = vld [vmem:[#allocation3 + $0x10] sm:$0xf]
      %v3534 = vld [vmem:[#allocation3 + $0x14] sm:$0x1]
      %v3535 = vld [vmem:[#allocation3 + $0x18] sm:$0xe]
      %v3536 = vld [vmem:[#allocation3 + $0x1c] sm:$0xf]
      %v3537 = vld [vmem:[#allocation3 + $0x20] sm:$0x1]
      %v3538 = vld [vmem:[#allocation3 + $0x24] sm:$0xe]
      %v3539 = vld [vmem:[#allocation3 + $0x28] sm:$0xf]
      %v3540 = vld [vmem:[#allocation3 + $0x2c] sm:$0x1]
      %v3541 = vld [vmem:[#allocation3 + $0x30] sm:$0xe]
      %v3542 = vld [vmem:[#allocation3 + $0x34] sm:$0xf]
      %v3543 = vld [vmem:[#allocation3 + $0x38] sm:$0x1]
      %v3544 = vld [vmem:[#allocation3 + $0x3c] sm:$0xe]
      %v3545 = vld [vmem:[#allocation3 + $0x40] sm:$0xf]
      %v3546 = vld [vmem:[#allocation3 + $0x44] sm:$0x1]
      %v3547 = vld [vmem:[#allocation3 + $0x48] sm:$0xe]
      %v3548 = vld [vmem:[#allocation3 + $0x4c] sm:$0xf]
      %v3549 = vld [vmem:[#allocation3 + $0x50] sm:$0x1]
      %v3550 = vld [vmem:[#allocation3 + $0x54] sm:$0xe]
      %v3551 = vld [vmem:[#allocation3 + $0x58] sm:$0xf]
      %v3552 = vld [vmem:[#allocation3 + $0x5c] sm:$0x1]
      %v3553 = vld [vmem:[#allocation3 + $0x60] sm:$0xe]
      %v3554 = vld [vmem:[#allocation3 + $0x64] sm:$0xf]
      %v3555 = vld [vmem:[#allocation3 + $0x68] sm:$0x1]
      %v3556 = vld [vmem:[#allocation3 + $0x6c] sm:$0xe]
      %v3557 = vld [vmem:[#allocation3 + $0x70] sm:$0xf]
      %v3558 = vld [vmem:[#allocation3 + $0x74] sm:$0x1]
      %v3559 = vld [vmem:[#allocation3 + $0x78] sm:$0xe]
      %v3560 = vld [vmem:[#allocation3 + $0x7c] sm:$0xf]
      %v3561 = vld [vmem:[#allocation3 + $0x80] sm:$0x1]
      %v3562 = vld [vmem:[#allocation3 + $0x84] sm:$0xe]
      %v3563 = vld [vmem:[#allocation3 + $0x88] sm:$0xf]
      %v3564 = vld [vmem:[#allocation3 + $0x8c] sm:$0x1]
      %v3565 = vld [vmem:[#allocation3 + $0x90] sm:$0xe]
      %v3566 = vld [vmem:[#allocation3 + $0x94] sm:$0xf]
      %v3567 = vld [vmem:[#allocation3 + $0x98] sm:$0x1]
      %v3568 = vld [vmem:[#allocation3 + $0x9c] sm:$0xe]
      %v3569 = vld [vmem:[#allocation3 + $0xa0] sm:$0xf]
      %v3570 = vld [vmem:[#allocation3 + $0xa4] sm:$0x1]
      %v3571 = vld [vmem:[#allocation3 + $0xa8] sm:$0xe]
      %v3572 = vld [vmem:[#allocation3 + $0xac] sm:$0xf]
      %v3573 = vld [vmem:[#allocation3 + $0xb0] sm:$0x1]
      %v3574 = vld [vmem:[#allocation3 + $0xb4] sm:$0xe]
      %v3575 = vld [vmem:[#allocation3 + $0xb8] sm:$0xf]
      %v3576 = vld [vmem:[#allocation3 + $0xbc] sm:$0x1]
      %v3625 = vunpack.c.l.b16 %v3529
      %v3626 = vunpack.c.l.b16 %v3530
      %v3627 = vunpack.c.l.b16 %v3531
      %v3628 = vunpack.c.l.b16 %v3532
      %v3629 = vunpack.c.l.b16 %v3533
      %v3630 = vunpack.c.l.b16 %v3534
      %v3631 = vunpack.c.l.b16 %v3535
      %v3632 = vunpack.c.l.b16 %v3536
      %v3633 = vunpack.c.l.b16 %v3537
      %v3634 = vunpack.c.l.b16 %v3538
      %v3635 = vunpack.c.l.b16 %v3539
      %v3636 = vunpack.c.l.b16 %v3540
      %v3637 = vunpack.c.l.b16 %v3541
      %v3638 = vunpack.c.l.b16 %v3542
      %v3639 = vunpack.c.l.b16 %v3543
      %v3640 = vunpack.c.l.b16 %v3544
      %v3641 = vunpack.c.l.b16 %v3545
      %v3642 = vunpack.c.l.b16 %v3546
      %v3643 = vunpack.c.l.b16 %v3547
      %v3644 = vunpack.c.l.b16 %v3548
      %v3645 = vunpack.c.l.b16 %v3549
      %v3646 = vunpack.c.l.b16 %v3550
      %v3647 = vunpack.c.l.b16 %v3551
      %v3648 = vunpack.c.l.b16 %v3552
      %v3649 = vunpack.c.l.b16 %v3553
      %v3650 = vunpack.c.l.b16 %v3554
      %v3651 = vunpack.c.l.b16 %v3555
      %v3652 = vunpack.c.l.b16 %v3556
      %v3653 = vunpack.c.l.b16 %v3557
      %v3654 = vunpack.c.l.b16 %v3558
      %v3655 = vunpack.c.l.b16 %v3559
      %v3656 = vunpack.c.l.b16 %v3560
      %v3657 = vunpack.c.l.b16 %v3561
      %v3658 = vunpack.c.l.b16 %v3562
      %v3659 = vunpack.c.l.b16 %v3563
      %v3660 = vunpack.c.l.b16 %v3564
      %v3661 = vunpack.c.l.b16 %v3565
      %v3662 = vunpack.c.l.b16 %v3566
      %v3663 = vunpack.c.l.b16 %v3567
      %v3664 = vunpack.c.l.b16 %v3568
      %v3665 = vunpack.c.l.b16 %v3569
      %v3666 = vunpack.c.l.b16 %v3570
      %v3667 = vunpack.c.l.b16 %v3571
      %v3668 = vunpack.c.l.b16 %v3572
      %v3669 = vunpack.c.l.b16 %v3573
      %v3670 = vunpack.c.l.b16 %v3574
      %v3671 = vunpack.c.l.b16 %v3575
      %v3672 = vunpack.c.l.b16 %v3576
      %v3673 = vpack.c.b16 %v3626, %v3625
      %v3674 = vpack.c.b16 %v3627, %v3627
      %v3675 = vpack.c.b16 %v3629, %v3628
      %v3676 = vpack.c.b16 %v3630, %v3630
      %v3677 = vpack.c.b16 %v3632, %v3631
      %v3678 = vpack.c.b16 %v3633, %v3633
      %v3679 = vpack.c.b16 %v3635, %v3634
      %v3680 = vpack.c.b16 %v3636, %v3636
      %v3681 = vpack.c.b16 %v3638, %v3637
      %v3682 = vpack.c.b16 %v3639, %v3639
      %v3683 = vpack.c.b16 %v3641, %v3640
      %v3684 = vpack.c.b16 %v3642, %v3642
      %v3685 = vpack.c.b16 %v3644, %v3643
      %v3686 = vpack.c.b16 %v3645, %v3645
      %v3687 = vpack.c.b16 %v3647, %v3646
      %v3688 = vpack.c.b16 %v3648, %v3648
      %v3689 = vpack.c.b16 %v3650, %v3649
      %v3690 = vpack.c.b16 %v3651, %v3651
      %v3691 = vpack.c.b16 %v3653, %v3652
      %v3692 = vpack.c.b16 %v3654, %v3654
      %v3693 = vpack.c.b16 %v3656, %v3655
      %v3694 = vpack.c.b16 %v3657, %v3657
      %v3695 = vpack.c.b16 %v3659, %v3658
      %v3696 = vpack.c.b16 %v3660, %v3660
      %v3697 = vpack.c.b16 %v3662, %v3661
      %v3698 = vpack.c.b16 %v3663, %v3663
      %v3699 = vpack.c.b16 %v3665, %v3664
      %v3700 = vpack.c.b16 %v3666, %v3666
      %v3701 = vpack.c.b16 %v3668, %v3667
      %v3702 = vpack.c.b16 %v3669, %v3669
      %v3703 = vpack.c.b16 %v3671, %v3670
      %v3704 = vpack.c.b16 %v3672, %v3672
      %v3705 = vrot.slane %v3673, 1
      %v3706 = vrot.slane %v3674, 1
      %v3707 = vsel %vm849, %v3705, %v3706
      %v3708 = vrot.slane %v3675, 1
      %v3709 = vrot.slane %v3676, 1
      %v3710 = vsel %vm849, %v3708, %v3709
      %v3711 = vrot.slane %v3677, 1
      %v3712 = vrot.slane %v3678, 1
      %v3713 = vsel %vm849, %v3711, %v3712
      %v3714 = vrot.slane %v3679, 1
      %v3715 = vrot.slane %v3680, 1
      %v3716 = vsel %vm849, %v3714, %v3715
      %v3717 = vrot.slane %v3681, 1
      %v3718 = vrot.slane %v3682, 1
      %v3719 = vsel %vm849, %v3717, %v3718
      %v3720 = vrot.slane %v3683, 1
      %v3721 = vrot.slane %v3684, 1
      %v3722 = vsel %vm849, %v3720, %v3721
      %v3723 = vrot.slane %v3685, 1
      %v3724 = vrot.slane %v3686, 1
      %v3725 = vsel %vm849, %v3723, %v3724
      %v3726 = vrot.slane %v3687, 1
      %v3727 = vrot.slane %v3688, 1
      %v3728 = vsel %vm849, %v3726, %v3727
      %v3729 = vrot.slane %v3689, 1
      %v3730 = vrot.slane %v3690, 1
      %v3731 = vsel %vm849, %v3729, %v3730
      %v3732 = vrot.slane %v3691, 1
      %v3733 = vrot.slane %v3692, 1
      %v3734 = vsel %vm849, %v3732, %v3733
      %v3735 = vrot.slane %v3693, 1
      %v3736 = vrot.slane %v3694, 1
      %v3737 = vsel %vm849, %v3735, %v3736
      %v3738 = vrot.slane %v3695, 1
      %v3739 = vrot.slane %v3696, 1
      %v3740 = vsel %vm849, %v3738, %v3739
      %v3741 = vrot.slane %v3697, 1
      %v3742 = vrot.slane %v3698, 1
      %v3743 = vsel %vm849, %v3741, %v3742
      %v3744 = vrot.slane %v3699, 1
      %v3745 = vrot.slane %v3700, 1
      %v3746 = vsel %vm849, %v3744, %v3745
      %v3747 = vrot.slane %v3701, 1
      %v3748 = vrot.slane %v3702, 1
      %v3749 = vsel %vm849, %v3747, %v3748
      %v3750 = vrot.slane %v3703, 1
      %v3751 = vrot.slane %v3704, 1
      %v3752 = vsel %vm849, %v3750, %v3751
      %3753 = vrot.lane.b32.xlu0 %v3707, 8
      %v3754 = vpop.permute.xlu0 %3753
      %3755 = vrot.lane.b32.xlu0 %v3710, 8
      %v3756 = vpop.permute.xlu0 %3755
      %3757 = vrot.lane.b32.xlu0 %v3713, 8
      %v3758 = vpop.permute.xlu0 %3757
      %3759 = vrot.lane.b32.xlu0 %v3716, 8
      %v3760 = vpop.permute.xlu0 %3759
      %3761 = vrot.lane.b32.xlu0 %v3719, 8
      %v3762 = vpop.permute.xlu0 %3761
      %3763 = vrot.lane.b32.xlu0 %v3722, 8
      %v3764 = vpop.permute.xlu0 %3763
      %3765 = vrot.lane.b32.xlu0 %v3725, 8
      %v3766 = vpop.permute.xlu0 %3765
      %3767 = vrot.lane.b32.xlu0 %v3728, 8
      %v3768 = vpop.permute.xlu0 %3767
      %3769 = vrot.lane.b32.xlu0 %v3731, 8
      %v3770 = vpop.permute.xlu0 %3769
      %3771 = vrot.lane.b32.xlu0 %v3734, 8
      %v3772 = vpop.permute.xlu0 %3771
      %3773 = vrot.lane.b32.xlu0 %v3737, 8
      %v3774 = vpop.permute.xlu0 %3773
      %3775 = vrot.lane.b32.xlu0 %v3740, 8
      %v3776 = vpop.permute.xlu0 %3775
      %3777 = vrot.lane.b32.xlu0 %v3743, 8
      %v3778 = vpop.permute.xlu0 %3777
      %3779 = vrot.lane.b32.xlu0 %v3746, 8
      %v3780 = vpop.permute.xlu0 %3779
      %3781 = vrot.lane.b32.xlu0 %v3749, 8
      %v3782 = vpop.permute.xlu0 %3781
      %3783 = vrot.lane.b32.xlu0 %v3752, 8
      %v3784 = vpop.permute.xlu0 %3783
      %vm3801 = vcmask 130112
      %3802 = vst.msk [vmem:[#allocation5] sm:$0xff] %vm3801, %v3754
      %3803 = vst.msk [vmem:[#allocation5 + $0x8] sm:$0xff] %vm3801, %v3756
      %3804 = vst.msk [vmem:[#allocation5 + $0x10] sm:$0xff] %vm3801, %v3758
      %3805 = vst.msk [vmem:[#allocation5 + $0x18] sm:$0xff] %vm3801, %v3760
      %3806 = vst.msk [vmem:[#allocation5 + $0x20] sm:$0xff] %vm3801, %v3762
      %3807 = vst.msk [vmem:[#allocation5 + $0x28] sm:$0xff] %vm3801, %v3764
      %3808 = vst.msk [vmem:[#allocation5 + $0x30] sm:$0xff] %vm3801, %v3766
      %3809 = vst.msk [vmem:[#allocation5 + $0x38] sm:$0xff] %vm3801, %v3768
      %3810 = vst.msk [vmem:[#allocation5 + $0x40] sm:$0xff] %vm3801, %v3770
      %3811 = vst.msk [vmem:[#allocation5 + $0x48] sm:$0xff] %vm3801, %v3772
      %3812 = vst.msk [vmem:[#allocation5 + $0x50] sm:$0xff] %vm3801, %v3774
      %3813 = vst.msk [vmem:[#allocation5 + $0x58] sm:$0xff] %vm3801, %v3776
      %3814 = vst.msk [vmem:[#allocation5 + $0x60] sm:$0xff] %vm3801, %v3778
      %3815 = vst.msk [vmem:[#allocation5 + $0x68] sm:$0xff] %vm3801, %v3780
      %3816 = vst.msk [vmem:[#allocation5 + $0x70] sm:$0xff] %vm3801, %v3782
      %3817 = vst.msk [vmem:[#allocation5 + $0x78] sm:$0xff] %vm3801, %v3784
      %v3818 = vld [vmem:[#allocation3] sm:$0xc]
      %v3819 = vld [vmem:[#allocation3 + $0x4] sm:$0xf]
      %v3820 = vld [vmem:[#allocation3 + $0x8] sm:$0x3]
      %v3821 = vld [vmem:[#allocation3 + $0xc] sm:$0xc]
      %v3822 = vld [vmem:[#allocation3 + $0x10] sm:$0xf]
      %v3823 = vld [vmem:[#allocation3 + $0x14] sm:$0x3]
      %v3824 = vld [vmem:[#allocation3 + $0x18] sm:$0xc]
      %v3825 = vld [vmem:[#allocation3 + $0x1c] sm:$0xf]
      %v3826 = vld [vmem:[#allocation3 + $0x20] sm:$0x3]
      %v3827 = vld [vmem:[#allocation3 + $0x24] sm:$0xc]
      %v3828 = vld [vmem:[#allocation3 + $0x28] sm:$0xf]
      %v3829 = vld [vmem:[#allocation3 + $0x2c] sm:$0x3]
      %v3830 = vld [vmem:[#allocation3 + $0x30] sm:$0xc]
      %v3831 = vld [vmem:[#allocation3 + $0x34] sm:$0xf]
      %v3832 = vld [vmem:[#allocation3 + $0x38] sm:$0x3]
      %v3833 = vld [vmem:[#allocation3 + $0x3c] sm:$0xc]
      %v3834 = vld [vmem:[#allocation3 + $0x40] sm:$0xf]
      %v3835 = vld [vmem:[#allocation3 + $0x44] sm:$0x3]
      %v3836 = vld [vmem:[#allocation3 + $0x48] sm:$0xc]
      %v3837 = vld [vmem:[#allocation3 + $0x4c] sm:$0xf]
      %v3838 = vld [vmem:[#allocation3 + $0x50] sm:$0x3]
      %v3839 = vld [vmem:[#allocation3 + $0x54] sm:$0xc]
      %v3840 = vld [vmem:[#allocation3 + $0x58] sm:$0xf]
      %v3841 = vld [vmem:[#allocation3 + $0x5c] sm:$0x3]
      %v3842 = vld [vmem:[#allocation3 + $0x60] sm:$0xc]
      %v3843 = vld [vmem:[#allocation3 + $0x64] sm:$0xf]
      %v3844 = vld [vmem:[#allocation3 + $0x68] sm:$0x3]
      %v3845 = vld [vmem:[#allocation3 + $0x6c] sm:$0xc]
      %v3846 = vld [vmem:[#allocation3 + $0x70] sm:$0xf]
      %v3847 = vld [vmem:[#allocation3 + $0x74] sm:$0x3]
      %v3848 = vld [vmem:[#allocation3 + $0x78] sm:$0xc]
      %v3849 = vld [vmem:[#allocation3 + $0x7c] sm:$0xf]
      %v3850 = vld [vmem:[#allocation3 + $0x80] sm:$0x3]
      %v3851 = vld [vmem:[#allocation3 + $0x84] sm:$0xc]
      %v3852 = vld [vmem:[#allocation3 + $0x88] sm:$0xf]
      %v3853 = vld [vmem:[#allocation3 + $0x8c] sm:$0x3]
      %v3854 = vld [vmem:[#allocation3 + $0x90] sm:$0xc]
      %v3855 = vld [vmem:[#allocation3 + $0x94] sm:$0xf]
      %v3856 = vld [vmem:[#allocation3 + $0x98] sm:$0x3]
      %v3857 = vld [vmem:[#allocation3 + $0x9c] sm:$0xc]
      %v3858 = vld [vmem:[#allocation3 + $0xa0] sm:$0xf]
      %v3859 = vld [vmem:[#allocation3 + $0xa4] sm:$0x3]
      %v3860 = vld [vmem:[#allocation3 + $0xa8] sm:$0xc]
      %v3861 = vld [vmem:[#allocation3 + $0xac] sm:$0xf]
      %v3862 = vld [vmem:[#allocation3 + $0xb0] sm:$0x3]
      %v3863 = vld [vmem:[#allocation3 + $0xb4] sm:$0xc]
      %v3864 = vld [vmem:[#allocation3 + $0xb8] sm:$0xf]
      %v3865 = vld [vmem:[#allocation3 + $0xbc] sm:$0x3]
      %v3914 = vunpack.c.l.b16 %v3818
      %v3915 = vunpack.c.l.b16 %v3819
      %v3916 = vunpack.c.l.b16 %v3820
      %v3917 = vunpack.c.l.b16 %v3821
      %v3918 = vunpack.c.l.b16 %v3822
      %v3919 = vunpack.c.l.b16 %v3823
      %v3920 = vunpack.c.l.b16 %v3824
      %v3921 = vunpack.c.l.b16 %v3825
      %v3922 = vunpack.c.l.b16 %v3826
      %v3923 = vunpack.c.l.b16 %v3827
      %v3924 = vunpack.c.l.b16 %v3828
      %v3925 = vunpack.c.l.b16 %v3829
      %v3926 = vunpack.c.l.b16 %v3830
      %v3927 = vunpack.c.l.b16 %v3831
      %v3928 = vunpack.c.l.b16 %v3832
      %v3929 = vunpack.c.l.b16 %v3833
      %v3930 = vunpack.c.l.b16 %v3834
      %v3931 = vunpack.c.l.b16 %v3835
      %v3932 = vunpack.c.l.b16 %v3836
      %v3933 = vunpack.c.l.b16 %v3837
      %v3934 = vunpack.c.l.b16 %v3838
      %v3935 = vunpack.c.l.b16 %v3839
      %v3936 = vunpack.c.l.b16 %v3840
      %v3937 = vunpack.c.l.b16 %v3841
      %v3938 = vunpack.c.l.b16 %v3842
      %v3939 = vunpack.c.l.b16 %v3843
      %v3940 = vunpack.c.l.b16 %v3844
      %v3941 = vunpack.c.l.b16 %v3845
      %v3942 = vunpack.c.l.b16 %v3846
      %v3943 = vunpack.c.l.b16 %v3847
      %v3944 = vunpack.c.l.b16 %v3848
      %v3945 = vunpack.c.l.b16 %v3849
      %v3946 = vunpack.c.l.b16 %v3850
      %v3947 = vunpack.c.l.b16 %v3851
      %v3948 = vunpack.c.l.b16 %v3852
      %v3949 = vunpack.c.l.b16 %v3853
      %v3950 = vunpack.c.l.b16 %v3854
      %v3951 = vunpack.c.l.b16 %v3855
      %v3952 = vunpack.c.l.b16 %v3856
      %v3953 = vunpack.c.l.b16 %v3857
      %v3954 = vunpack.c.l.b16 %v3858
      %v3955 = vunpack.c.l.b16 %v3859
      %v3956 = vunpack.c.l.b16 %v3860
      %v3957 = vunpack.c.l.b16 %v3861
      %v3958 = vunpack.c.l.b16 %v3862
      %v3959 = vunpack.c.l.b16 %v3863
      %v3960 = vunpack.c.l.b16 %v3864
      %v3961 = vunpack.c.l.b16 %v3865
      %v3962 = vpack.c.b16 %v3915, %v3914
      %v3963 = vpack.c.b16 %v3916, %v3916
      %v3964 = vpack.c.b16 %v3918, %v3917
      %v3965 = vpack.c.b16 %v3919, %v3919
      %v3966 = vpack.c.b16 %v3921, %v3920
      %v3967 = vpack.c.b16 %v3922, %v3922
      %v3968 = vpack.c.b16 %v3924, %v3923
      %v3969 = vpack.c.b16 %v3925, %v3925
      %v3970 = vpack.c.b16 %v3927, %v3926
      %v3971 = vpack.c.b16 %v3928, %v3928
      %v3972 = vpack.c.b16 %v3930, %v3929
      %v3973 = vpack.c.b16 %v3931, %v3931
      %v3974 = vpack.c.b16 %v3933, %v3932
      %v3975 = vpack.c.b16 %v3934, %v3934
      %v3976 = vpack.c.b16 %v3936, %v3935
      %v3977 = vpack.c.b16 %v3937, %v3937
      %v3978 = vpack.c.b16 %v3939, %v3938
      %v3979 = vpack.c.b16 %v3940, %v3940
      %v3980 = vpack.c.b16 %v3942, %v3941
      %v3981 = vpack.c.b16 %v3943, %v3943
      %v3982 = vpack.c.b16 %v3945, %v3944
      %v3983 = vpack.c.b16 %v3946, %v3946
      %v3984 = vpack.c.b16 %v3948, %v3947
      %v3985 = vpack.c.b16 %v3949, %v3949
      %v3986 = vpack.c.b16 %v3951, %v3950
      %v3987 = vpack.c.b16 %v3952, %v3952
      %v3988 = vpack.c.b16 %v3954, %v3953
      %v3989 = vpack.c.b16 %v3955, %v3955
      %v3990 = vpack.c.b16 %v3957, %v3956
      %v3991 = vpack.c.b16 %v3958, %v3958
      %v3992 = vpack.c.b16 %v3960, %v3959
      %v3993 = vpack.c.b16 %v3961, %v3961
      %v3994 = vrot.slane %v3962, 2
      %v3995 = vrot.slane %v3963, 2
      %v3996 = vsel %vm1139, %v3994, %v3995
      %v3997 = vrot.slane %v3964, 2
      %v3998 = vrot.slane %v3965, 2
      %v3999 = vsel %vm1139, %v3997, %v3998
      %v4000 = vrot.slane %v3966, 2
      %v4001 = vrot.slane %v3967, 2
      %v4002 = vsel %vm1139, %v4000, %v4001
      %v4003 = vrot.slane %v3968, 2
      %v4004 = vrot.slane %v3969, 2
      %v4005 = vsel %vm1139, %v4003, %v4004
      %v4006 = vrot.slane %v3970, 2
      %v4007 = vrot.slane %v3971, 2
      %v4008 = vsel %vm1139, %v4006, %v4007
      %v4009 = vrot.slane %v3972, 2
      %v4010 = vrot.slane %v3973, 2
      %v4011 = vsel %vm1139, %v4009, %v4010
      %v4012 = vrot.slane %v3974, 2
      %v4013 = vrot.slane %v3975, 2
      %v4014 = vsel %vm1139, %v4012, %v4013
      %v4015 = vrot.slane %v3976, 2
      %v4016 = vrot.slane %v3977, 2
      %v4017 = vsel %vm1139, %v4015, %v4016
      %v4018 = vrot.slane %v3978, 2
      %v4019 = vrot.slane %v3979, 2
      %v4020 = vsel %vm1139, %v4018, %v4019
      %v4021 = vrot.slane %v3980, 2
      %v4022 = vrot.slane %v3981, 2
      %v4023 = vsel %vm1139, %v4021, %v4022
      %v4024 = vrot.slane %v3982, 2
      %v4025 = vrot.slane %v3983, 2
      %v4026 = vsel %vm1139, %v4024, %v4025
      %v4027 = vrot.slane %v3984, 2
      %v4028 = vrot.slane %v3985, 2
      %v4029 = vsel %vm1139, %v4027, %v4028
      %v4030 = vrot.slane %v3986, 2
      %v4031 = vrot.slane %v3987, 2
      %v4032 = vsel %vm1139, %v4030, %v4031
      %v4033 = vrot.slane %v3988, 2
      %v4034 = vrot.slane %v3989, 2
      %v4035 = vsel %vm1139, %v4033, %v4034
      %v4036 = vrot.slane %v3990, 2
      %v4037 = vrot.slane %v3991, 2
      %v4038 = vsel %vm1139, %v4036, %v4037
      %v4039 = vrot.slane %v3992, 2
      %v4040 = vrot.slane %v3993, 2
      %v4041 = vsel %vm1139, %v4039, %v4040
      %4042 = vrot.lane.b32.xlu0 %v3996, 16
      %v4043 = vpop.permute.xlu0 %4042
      %4044 = vrot.lane.b32.xlu0 %v3999, 16
      %v4045 = vpop.permute.xlu0 %4044
      %4046 = vrot.lane.b32.xlu0 %v4002, 16
      %v4047 = vpop.permute.xlu0 %4046
      %4048 = vrot.lane.b32.xlu0 %v4005, 16
      %v4049 = vpop.permute.xlu0 %4048
      %4050 = vrot.lane.b32.xlu0 %v4008, 16
      %v4051 = vpop.permute.xlu0 %4050
      %4052 = vrot.lane.b32.xlu0 %v4011, 16
      %v4053 = vpop.permute.xlu0 %4052
      %4054 = vrot.lane.b32.xlu0 %v4014, 16
      %v4055 = vpop.permute.xlu0 %4054
      %4056 = vrot.lane.b32.xlu0 %v4017, 16
      %v4057 = vpop.permute.xlu0 %4056
      %4058 = vrot.lane.b32.xlu0 %v4020, 16
      %v4059 = vpop.permute.xlu0 %4058
      %4060 = vrot.lane.b32.xlu0 %v4023, 16
      %v4061 = vpop.permute.xlu0 %4060
      %4062 = vrot.lane.b32.xlu0 %v4026, 16
      %v4063 = vpop.permute.xlu0 %4062
      %4064 = vrot.lane.b32.xlu0 %v4029, 16
      %v4065 = vpop.permute.xlu0 %4064
      %4066 = vrot.lane.b32.xlu0 %v4032, 16
      %v4067 = vpop.permute.xlu0 %4066
      %4068 = vrot.lane.b32.xlu0 %v4035, 16
      %v4069 = vpop.permute.xlu0 %4068
      %4070 = vrot.lane.b32.xlu0 %v4038, 16
      %v4071 = vpop.permute.xlu0 %4070
      %4072 = vrot.lane.b32.xlu0 %v4041, 16
      %v4073 = vpop.permute.xlu0 %4072
      %vm4090 = vcmask 195712
      %4091 = vst.msk [vmem:[#allocation5] sm:$0xff] %vm4090, %v4043
      %4092 = vst.msk [vmem:[#allocation5 + $0x8] sm:$0xff] %vm4090, %v4045
      %4093 = vst.msk [vmem:[#allocation5 + $0x10] sm:$0xff] %vm4090, %v4047
      %4094 = vst.msk [vmem:[#allocation5 + $0x18] sm:$0xff] %vm4090, %v4049
      %4095 = vst.msk [vmem:[#allocation5 + $0x20] sm:$0xff] %vm4090, %v4051
      %4096 = vst.msk [vmem:[#allocation5 + $0x28] sm:$0xff] %vm4090, %v4053
      %4097 = vst.msk [vmem:[#allocation5 + $0x30] sm:$0xff] %vm4090, %v4055
      %4098 = vst.msk [vmem:[#allocation5 + $0x38] sm:$0xff] %vm4090, %v4057
      %4099 = vst.msk [vmem:[#allocation5 + $0x40] sm:$0xff] %vm4090, %v4059
      %4100 = vst.msk [vmem:[#allocation5 + $0x48] sm:$0xff] %vm4090, %v4061
      %4101 = vst.msk [vmem:[#allocation5 + $0x50] sm:$0xff] %vm4090, %v4063
      %4102 = vst.msk [vmem:[#allocation5 + $0x58] sm:$0xff] %vm4090, %v4065
      %4103 = vst.msk [vmem:[#allocation5 + $0x60] sm:$0xff] %vm4090, %v4067
      %4104 = vst.msk [vmem:[#allocation5 + $0x68] sm:$0xff] %vm4090, %v4069
      %4105 = vst.msk [vmem:[#allocation5 + $0x70] sm:$0xff] %vm4090, %v4071
      %4106 = vst.msk [vmem:[#allocation5 + $0x78] sm:$0xff] %vm4090, %v4073
      %v4107 = vld [vmem:[%s3334] sm:$0xf]
      %v4108 = vld [vmem:[%s3334 + $0x4] sm:$0xf]
      %v4109 = vld [vmem:[%s3334 + $0xc] sm:$0xf]
      %v4110 = vld [vmem:[%s3334 + $0x10] sm:$0xf]
      %v4111 = vld [vmem:[%s3334 + $0x18] sm:$0xf]
      %v4112 = vld [vmem:[%s3334 + $0x1c] sm:$0xf]
      %v4113 = vld [vmem:[%s3334 + $0x24] sm:$0xf]
      %v4114 = vld [vmem:[%s3334 + $0x28] sm:$0xf]
      %v4115 = vld [vmem:[%s3334 + $0x30] sm:$0xf]
      %v4116 = vld [vmem:[%s3334 + $0x34] sm:$0xf]
      %v4117 = vld [vmem:[%s3334 + $0x3c] sm:$0xf]
      %v4118 = vld [vmem:[%s3334 + $0x40] sm:$0xf]
      %v4119 = vld [vmem:[%s3334 + $0x48] sm:$0xf]
      %v4120 = vld [vmem:[%s3334 + $0x4c] sm:$0xf]
      %v4121 = vld [vmem:[%s3334 + $0x54] sm:$0xf]
      %v4122 = vld [vmem:[%s3334 + $0x58] sm:$0xf]
      %v4123 = vld [vmem:[%s3334 + $0x60] sm:$0xf]
      %v4124 = vld [vmem:[%s3334 + $0x64] sm:$0xf]
      %v4125 = vld [vmem:[%s3334 + $0x6c] sm:$0xf]
      %v4126 = vld [vmem:[%s3334 + $0x70] sm:$0xf]
      %v4127 = vld [vmem:[%s3334 + $0x78] sm:$0xf]
      %v4128 = vld [vmem:[%s3334 + $0x7c] sm:$0xf]
      %v4129 = vld [vmem:[%s3334 + $0x84] sm:$0xf]
      %v4130 = vld [vmem:[%s3334 + $0x88] sm:$0xf]
      %v4131 = vld [vmem:[%s3334 + $0x90] sm:$0xf]
      %v4132 = vld [vmem:[%s3334 + $0x94] sm:$0xf]
      %v4133 = vld [vmem:[%s3334 + $0x9c] sm:$0xf]
      %v4134 = vld [vmem:[%s3334 + $0xa0] sm:$0xf]
      %v4135 = vld [vmem:[%s3334 + $0xa8] sm:$0xf]
      %v4136 = vld [vmem:[%s3334 + $0xac] sm:$0xf]
      %v4137 = vld [vmem:[%s3334 + $0xb4] sm:$0xf]
      %v4138 = vld [vmem:[%s3334 + $0xb8] sm:$0xf]
      %v4171 = vunpack.c.l.b16 %v4107
      %v4172 = vunpack.c.l.b16 %v4108
      %v4173 = vunpack.c.l.b16 %v4109
      %v4174 = vunpack.c.l.b16 %v4110
      %v4175 = vunpack.c.l.b16 %v4111
      %v4176 = vunpack.c.l.b16 %v4112
      %v4177 = vunpack.c.l.b16 %v4113
      %v4178 = vunpack.c.l.b16 %v4114
      %v4179 = vunpack.c.l.b16 %v4115
      %v4180 = vunpack.c.l.b16 %v4116
      %v4181 = vunpack.c.l.b16 %v4117
      %v4182 = vunpack.c.l.b16 %v4118
      %v4183 = vunpack.c.l.b16 %v4119
      %v4184 = vunpack.c.l.b16 %v4120
      %v4185 = vunpack.c.l.b16 %v4121
      %v4186 = vunpack.c.l.b16 %v4122
      %v4187 = vunpack.c.l.b16 %v4123
      %v4188 = vunpack.c.l.b16 %v4124
      %v4189 = vunpack.c.l.b16 %v4125
      %v4190 = vunpack.c.l.b16 %v4126
      %v4191 = vunpack.c.l.b16 %v4127
      %v4192 = vunpack.c.l.b16 %v4128
      %v4193 = vunpack.c.l.b16 %v4129
      %v4194 = vunpack.c.l.b16 %v4130
      %v4195 = vunpack.c.l.b16 %v4131
      %v4196 = vunpack.c.l.b16 %v4132
      %v4197 = vunpack.c.l.b16 %v4133
      %v4198 = vunpack.c.l.b16 %v4134
      %v4199 = vunpack.c.l.b16 %v4135
      %v4200 = vunpack.c.l.b16 %v4136
      %v4201 = vunpack.c.l.b16 %v4137
      %v4202 = vunpack.c.l.b16 %v4138
      %v4203 = vpack.c.b16 %v4172, %v4171
      %v4204 = vpack.c.b16 %v4174, %v4173
      %v4205 = vpack.c.b16 %v4176, %v4175
      %v4206 = vpack.c.b16 %v4178, %v4177
      %v4207 = vpack.c.b16 %v4180, %v4179
      %v4208 = vpack.c.b16 %v4182, %v4181
      %v4209 = vpack.c.b16 %v4184, %v4183
      %v4210 = vpack.c.b16 %v4186, %v4185
      %v4211 = vpack.c.b16 %v4188, %v4187
      %v4212 = vpack.c.b16 %v4190, %v4189
      %v4213 = vpack.c.b16 %v4192, %v4191
      %v4214 = vpack.c.b16 %v4194, %v4193
      %v4215 = vpack.c.b16 %v4196, %v4195
      %v4216 = vpack.c.b16 %v4198, %v4197
      %v4217 = vpack.c.b16 %v4200, %v4199
      %v4218 = vpack.c.b16 %v4202, %v4201
      %4219 = vrot.lane.b32.xlu0 %v4203, 24
      %v4220 = vpop.permute.xlu0 %4219
      %4221 = vrot.lane.b32.xlu0 %v4204, 24
      %v4222 = vpop.permute.xlu0 %4221
      %4223 = vrot.lane.b32.xlu0 %v4205, 24
      %v4224 = vpop.permute.xlu0 %4223
      %4225 = vrot.lane.b32.xlu0 %v4206, 24
      %v4226 = vpop.permute.xlu0 %4225
      %4227 = vrot.lane.b32.xlu0 %v4207, 24
      %v4228 = vpop.permute.xlu0 %4227
      %4229 = vrot.lane.b32.xlu0 %v4208, 24
      %v4230 = vpop.permute.xlu0 %4229
      %4231 = vrot.lane.b32.xlu0 %v4209, 24
      %v4232 = vpop.permute.xlu0 %4231
      %4233 = vrot.lane.b32.xlu0 %v4210, 24
      %v4234 = vpop.permute.xlu0 %4233
      %4235 = vrot.lane.b32.xlu0 %v4211, 24
      %v4236 = vpop.permute.xlu0 %4235
      %4237 = vrot.lane.b32.xlu0 %v4212, 24
      %v4238 = vpop.permute.xlu0 %4237
      %4239 = vrot.lane.b32.xlu0 %v4213, 24
      %v4240 = vpop.permute.xlu0 %4239
      %4241 = vrot.lane.b32.xlu0 %v4214, 24
      %v4242 = vpop.permute.xlu0 %4241
      %4243 = vrot.lane.b32.xlu0 %v4215, 24
      %v4244 = vpop.permute.xlu0 %4243
      %4245 = vrot.lane.b32.xlu0 %v4216, 24
      %v4246 = vpop.permute.xlu0 %4245
      %4247 = vrot.lane.b32.xlu0 %v4217, 24
      %v4248 = vpop.permute.xlu0 %4247
      %4249 = vrot.lane.b32.xlu0 %v4218, 24
      %v4250 = vpop.permute.xlu0 %4249
      %vm4267 = vcmask 261312
      %4268 = vst.msk [vmem:[#allocation5] sm:$0xff] %vm4267, %v4220
      %4269 = vst.msk [vmem:[#allocation5 + $0x8] sm:$0xff] %vm4267, %v4222
      %4270 = vst.msk [vmem:[#allocation5 + $0x10] sm:$0xff] %vm4267, %v4224
      %4271 = vst.msk [vmem:[#allocation5 + $0x18] sm:$0xff] %vm4267, %v4226
      %4272 = vst.msk [vmem:[#allocation5 + $0x20] sm:$0xff] %vm4267, %v4228
      %4273 = vst.msk [vmem:[#allocation5 + $0x28] sm:$0xff] %vm4267, %v4230
      %4274 = vst.msk [vmem:[#allocation5 + $0x30] sm:$0xff] %vm4267, %v4232
      %4275 = vst.msk [vmem:[#allocation5 + $0x38] sm:$0xff] %vm4267, %v4234
      %4276 = vst.msk [vmem:[#allocation5 + $0x40] sm:$0xff] %vm4267, %v4236
      %4277 = vst.msk [vmem:[#allocation5 + $0x48] sm:$0xff] %vm4267, %v4238
      %4278 = vst.msk [vmem:[#allocation5 + $0x50] sm:$0xff] %vm4267, %v4240
      %4279 = vst.msk [vmem:[#allocation5 + $0x58] sm:$0xff] %vm4267, %v4242
      %4280 = vst.msk [vmem:[#allocation5 + $0x60] sm:$0xff] %vm4267, %v4244
      %4281 = vst.msk [vmem:[#allocation5 + $0x68] sm:$0xff] %vm4267, %v4246
      %4282 = vst.msk [vmem:[#allocation5 + $0x70] sm:$0xff] %vm4267, %v4248
      %4283 = vst.msk [vmem:[#allocation5 + $0x78] sm:$0xff] %vm4267, %v4250
      %v4284 = vld [vmem:[%s3334] sm:$0xe]
      %v4285 = vld [vmem:[%s3334 + $0x4] sm:$0xf]
      %v4286 = vld [vmem:[%s3334 + $0x8] sm:$0x1]
      %v4287 = vld [vmem:[%s3334 + $0xc] sm:$0xe]
      %v4288 = vld [vmem:[%s3334 + $0x10] sm:$0xf]
      %v4289 = vld [vmem:[%s3334 + $0x14] sm:$0x1]
      %v4290 = vld [vmem:[%s3334 + $0x18] sm:$0xe]
      %v4291 = vld [vmem:[%s3334 + $0x1c] sm:$0xf]
      %v4292 = vld [vmem:[%s3334 + $0x20] sm:$0x1]
      %v4293 = vld [vmem:[%s3334 + $0x24] sm:$0xe]
      %v4294 = vld [vmem:[%s3334 + $0x28] sm:$0xf]
      %v4295 = vld [vmem:[%s3334 + $0x2c] sm:$0x1]
      %v4296 = vld [vmem:[%s3334 + $0x30] sm:$0xe]
      %v4297 = vld [vmem:[%s3334 + $0x34] sm:$0xf]
      %v4298 = vld [vmem:[%s3334 + $0x38] sm:$0x1]
      %v4299 = vld [vmem:[%s3334 + $0x3c] sm:$0xe]
      %v4300 = vld [vmem:[%s3334 + $0x40] sm:$0xf]
      %v4301 = vld [vmem:[%s3334 + $0x44] sm:$0x1]
      %v4302 = vld [vmem:[%s3334 + $0x48] sm:$0xe]
      %v4303 = vld [vmem:[%s3334 + $0x4c] sm:$0xf]
      %v4304 = vld [vmem:[%s3334 + $0x50] sm:$0x1]
      %v4305 = vld [vmem:[%s3334 + $0x54] sm:$0xe]
      %v4306 = vld [vmem:[%s3334 + $0x58] sm:$0xf]
      %v4307 = vld [vmem:[%s3334 + $0x5c] sm:$0x1]
      %v4308 = vld [vmem:[%s3334 + $0x60] sm:$0xe]
      %v4309 = vld [vmem:[%s3334 + $0x64] sm:$0xf]
      %v4310 = vld [vmem:[%s3334 + $0x68] sm:$0x1]
      %v4311 = vld [vmem:[%s3334 + $0x6c] sm:$0xe]
      %v4312 = vld [vmem:[%s3334 + $0x70] sm:$0xf]
      %v4313 = vld [vmem:[%s3334 + $0x74] sm:$0x1]
      %v4314 = vld [vmem:[%s3334 + $0x78] sm:$0xe]
      %v4315 = vld [vmem:[%s3334 + $0x7c] sm:$0xf]
      %v4316 = vld [vmem:[%s3334 + $0x80] sm:$0x1]
      %v4317 = vld [vmem:[%s3334 + $0x84] sm:$0xe]
      %v4318 = vld [vmem:[%s3334 + $0x88] sm:$0xf]
      %v4319 = vld [vmem:[%s3334 + $0x8c] sm:$0x1]
      %v4320 = vld [vmem:[%s3334 + $0x90] sm:$0xe]
      %v4321 = vld [vmem:[%s3334 + $0x94] sm:$0xf]
      %v4322 = vld [vmem:[%s3334 + $0x98] sm:$0x1]
      %v4323 = vld [vmem:[%s3334 + $0x9c] sm:$0xe]
      %v4324 = vld [vmem:[%s3334 + $0xa0] sm:$0xf]
      %v4325 = vld [vmem:[%s3334 + $0xa4] sm:$0x1]
      %v4326 = vld [vmem:[%s3334 + $0xa8] sm:$0xe]
      %v4327 = vld [vmem:[%s3334 + $0xac] sm:$0xf]
      %v4328 = vld [vmem:[%s3334 + $0xb0] sm:$0x1]
      %v4329 = vld [vmem:[%s3334 + $0xb4] sm:$0xe]
      %v4330 = vld [vmem:[%s3334 + $0xb8] sm:$0xf]
      %v4331 = vld [vmem:[%s3334 + $0xbc] sm:$0x1]
      %v4380 = vunpack.c.l.b16 %v4284
      %v4381 = vunpack.c.l.b16 %v4285
      %v4382 = vunpack.c.l.b16 %v4286
      %v4383 = vunpack.c.l.b16 %v4287
      %v4384 = vunpack.c.l.b16 %v4288
      %v4385 = vunpack.c.l.b16 %v4289
      %v4386 = vunpack.c.l.b16 %v4290
      %v4387 = vunpack.c.l.b16 %v4291
      %v4388 = vunpack.c.l.b16 %v4292
      %v4389 = vunpack.c.l.b16 %v4293
      %v4390 = vunpack.c.l.b16 %v4294
      %v4391 = vunpack.c.l.b16 %v4295
      %v4392 = vunpack.c.l.b16 %v4296
      %v4393 = vunpack.c.l.b16 %v4297
      %v4394 = vunpack.c.l.b16 %v4298
      %v4395 = vunpack.c.l.b16 %v4299
      %v4396 = vunpack.c.l.b16 %v4300
      %v4397 = vunpack.c.l.b16 %v4301
      %v4398 = vunpack.c.l.b16 %v4302
      %v4399 = vunpack.c.l.b16 %v4303
      %v4400 = vunpack.c.l.b16 %v4304
      %v4401 = vunpack.c.l.b16 %v4305
      %v4402 = vunpack.c.l.b16 %v4306
      %v4403 = vunpack.c.l.b16 %v4307
      %v4404 = vunpack.c.l.b16 %v4308
      %v4405 = vunpack.c.l.b16 %v4309
      %v4406 = vunpack.c.l.b16 %v4310
      %v4407 = vunpack.c.l.b16 %v4311
      %v4408 = vunpack.c.l.b16 %v4312
      %v4409 = vunpack.c.l.b16 %v4313
      %v4410 = vunpack.c.l.b16 %v4314
      %v4411 = vunpack.c.l.b16 %v4315
      %v4412 = vunpack.c.l.b16 %v4316
      %v4413 = vunpack.c.l.b16 %v4317
      %v4414 = vunpack.c.l.b16 %v4318
      %v4415 = vunpack.c.l.b16 %v4319
      %v4416 = vunpack.c.l.b16 %v4320
      %v4417 = vunpack.c.l.b16 %v4321
      %v4418 = vunpack.c.l.b16 %v4322
      %v4419 = vunpack.c.l.b16 %v4323
      %v4420 = vunpack.c.l.b16 %v4324
      %v4421 = vunpack.c.l.b16 %v4325
      %v4422 = vunpack.c.l.b16 %v4326
      %v4423 = vunpack.c.l.b16 %v4327
      %v4424 = vunpack.c.l.b16 %v4328
      %v4425 = vunpack.c.l.b16 %v4329
      %v4426 = vunpack.c.l.b16 %v4330
      %v4427 = vunpack.c.l.b16 %v4331
      %v4428 = vpack.c.b16 %v4381, %v4380
      %v4429 = vpack.c.b16 %v4382, %v4382
      %v4430 = vpack.c.b16 %v4384, %v4383
      %v4431 = vpack.c.b16 %v4385, %v4385
      %v4432 = vpack.c.b16 %v4387, %v4386
      %v4433 = vpack.c.b16 %v4388, %v4388
      %v4434 = vpack.c.b16 %v4390, %v4389
      %v4435 = vpack.c.b16 %v4391, %v4391
      %v4436 = vpack.c.b16 %v4393, %v4392
      %v4437 = vpack.c.b16 %v4394, %v4394
      %v4438 = vpack.c.b16 %v4396, %v4395
      %v4439 = vpack.c.b16 %v4397, %v4397
      %v4440 = vpack.c.b16 %v4399, %v4398
      %v4441 = vpack.c.b16 %v4400, %v4400
      %v4442 = vpack.c.b16 %v4402, %v4401
      %v4443 = vpack.c.b16 %v4403, %v4403
      %v4444 = vpack.c.b16 %v4405, %v4404
      %v4445 = vpack.c.b16 %v4406, %v4406
      %v4446 = vpack.c.b16 %v4408, %v4407
      %v4447 = vpack.c.b16 %v4409, %v4409
      %v4448 = vpack.c.b16 %v4411, %v4410
      %v4449 = vpack.c.b16 %v4412, %v4412
      %v4450 = vpack.c.b16 %v4414, %v4413
      %v4451 = vpack.c.b16 %v4415, %v4415
      %v4452 = vpack.c.b16 %v4417, %v4416
      %v4453 = vpack.c.b16 %v4418, %v4418
      %v4454 = vpack.c.b16 %v4420, %v4419
      %v4455 = vpack.c.b16 %v4421, %v4421
      %v4456 = vpack.c.b16 %v4423, %v4422
      %v4457 = vpack.c.b16 %v4424, %v4424
      %v4458 = vpack.c.b16 %v4426, %v4425
      %v4459 = vpack.c.b16 %v4427, %v4427
      %v4460 = vrot.slane %v4428, 1
      %v4461 = vrot.slane %v4429, 1
      %v4462 = vsel %vm849, %v4460, %v4461
      %v4463 = vrot.slane %v4430, 1
      %v4464 = vrot.slane %v4431, 1
      %v4465 = vsel %vm849, %v4463, %v4464
      %v4466 = vrot.slane %v4432, 1
      %v4467 = vrot.slane %v4433, 1
      %v4468 = vsel %vm849, %v4466, %v4467
      %v4469 = vrot.slane %v4434, 1
      %v4470 = vrot.slane %v4435, 1
      %v4471 = vsel %vm849, %v4469, %v4470
      %v4472 = vrot.slane %v4436, 1
      %v4473 = vrot.slane %v4437, 1
      %v4474 = vsel %vm849, %v4472, %v4473
      %v4475 = vrot.slane %v4438, 1
      %v4476 = vrot.slane %v4439, 1
      %v4477 = vsel %vm849, %v4475, %v4476
      %v4478 = vrot.slane %v4440, 1
      %v4479 = vrot.slane %v4441, 1
      %v4480 = vsel %vm849, %v4478, %v4479
      %v4481 = vrot.slane %v4442, 1
      %v4482 = vrot.slane %v4443, 1
      %v4483 = vsel %vm849, %v4481, %v4482
      %v4484 = vrot.slane %v4444, 1
      %v4485 = vrot.slane %v4445, 1
      %v4486 = vsel %vm849, %v4484, %v4485
      %v4487 = vrot.slane %v4446, 1
      %v4488 = vrot.slane %v4447, 1
      %v4489 = vsel %vm849, %v4487, %v4488
      %v4490 = vrot.slane %v4448, 1
      %v4491 = vrot.slane %v4449, 1
      %v4492 = vsel %vm849, %v4490, %v4491
      %v4493 = vrot.slane %v4450, 1
      %v4494 = vrot.slane %v4451, 1
      %v4495 = vsel %vm849, %v4493, %v4494
      %v4496 = vrot.slane %v4452, 1
      %v4497 = vrot.slane %v4453, 1
      %v4498 = vsel %vm849, %v4496, %v4497
      %v4499 = vrot.slane %v4454, 1
      %v4500 = vrot.slane %v4455, 1
      %v4501 = vsel %vm849, %v4499, %v4500
      %v4502 = vrot.slane %v4456, 1
      %v4503 = vrot.slane %v4457, 1
      %v4504 = vsel %vm849, %v4502, %v4503
      %v4505 = vrot.slane %v4458, 1
      %v4506 = vrot.slane %v4459, 1
      %v4507 = vsel %vm849, %v4505, %v4506
      %4508 = vrot.lane.b32.xlu0 %v4462, 32
      %v4509 = vpop.permute.xlu0 %4508
      %4510 = vrot.lane.b32.xlu0 %v4465, 32
      %v4511 = vpop.permute.xlu0 %4510
      %4512 = vrot.lane.b32.xlu0 %v4468, 32
      %v4513 = vpop.permute.xlu0 %4512
      %4514 = vrot.lane.b32.xlu0 %v4471, 32
      %v4515 = vpop.permute.xlu0 %4514
      %4516 = vrot.lane.b32.xlu0 %v4474, 32
      %v4517 = vpop.permute.xlu0 %4516
      %4518 = vrot.lane.b32.xlu0 %v4477, 32
      %v4519 = vpop.permute.xlu0 %4518
      %4520 = vrot.lane.b32.xlu0 %v4480, 32
      %v4521 = vpop.permute.xlu0 %4520
      %4522 = vrot.lane.b32.xlu0 %v4483, 32
      %v4523 = vpop.permute.xlu0 %4522
      %4524 = vrot.lane.b32.xlu0 %v4486, 32
      %v4525 = vpop.permute.xlu0 %4524
      %4526 = vrot.lane.b32.xlu0 %v4489, 32
      %v4527 = vpop.permute.xlu0 %4526
      %4528 = vrot.lane.b32.xlu0 %v4492, 32
      %v4529 = vpop.permute.xlu0 %4528
      %4530 = vrot.lane.b32.xlu0 %v4495, 32
      %v4531 = vpop.permute.xlu0 %4530
      %4532 = vrot.lane.b32.xlu0 %v4498, 32
      %v4533 = vpop.permute.xlu0 %4532
      %4534 = vrot.lane.b32.xlu0 %v4501, 32
      %v4535 = vpop.permute.xlu0 %4534
      %4536 = vrot.lane.b32.xlu0 %v4504, 32
      %v4537 = vpop.permute.xlu0 %4536
      %4538 = vrot.lane.b32.xlu0 %v4507, 32
      %v4539 = vpop.permute.xlu0 %4538
      %vm4556 = vcmask 326912
      %4557 = vst.msk [vmem:[#allocation5] sm:$0xff] %vm4556, %v4509
      %4558 = vst.msk [vmem:[#allocation5 + $0x8] sm:$0xff] %vm4556, %v4511
      %4559 = vst.msk [vmem:[#allocation5 + $0x10] sm:$0xff] %vm4556, %v4513
      %4560 = vst.msk [vmem:[#allocation5 + $0x18] sm:$0xff] %vm4556, %v4515
      %4561 = vst.msk [vmem:[#allocation5 + $0x20] sm:$0xff] %vm4556, %v4517
      %4562 = vst.msk [vmem:[#allocation5 + $0x28] sm:$0xff] %vm4556, %v4519
      %4563 = vst.msk [vmem:[#allocation5 + $0x30] sm:$0xff] %vm4556, %v4521
      %4564 = vst.msk [vmem:[#allocation5 + $0x38] sm:$0xff] %vm4556, %v4523
      %4565 = vst.msk [vmem:[#allocation5 + $0x40] sm:$0xff] %vm4556, %v4525
      %4566 = vst.msk [vmem:[#allocation5 + $0x48] sm:$0xff] %vm4556, %v4527
      %4567 = vst.msk [vmem:[#allocation5 + $0x50] sm:$0xff] %vm4556, %v4529
      %4568 = vst.msk [vmem:[#allocation5 + $0x58] sm:$0xff] %vm4556, %v4531
      %4569 = vst.msk [vmem:[#allocation5 + $0x60] sm:$0xff] %vm4556, %v4533
      %4570 = vst.msk [vmem:[#allocation5 + $0x68] sm:$0xff] %vm4556, %v4535
      %4571 = vst.msk [vmem:[#allocation5 + $0x70] sm:$0xff] %vm4556, %v4537
      %4572 = vst.msk [vmem:[#allocation5 + $0x78] sm:$0xff] %vm4556, %v4539
      %v4573 = vld [vmem:[%s3334] sm:$0xc]
      %v4574 = vld [vmem:[%s3334 + $0x4] sm:$0xf]
      %v4575 = vld [vmem:[%s3334 + $0x8] sm:$0x3]
      %v4576 = vld [vmem:[%s3334 + $0xc] sm:$0xc]
      %v4577 = vld [vmem:[%s3334 + $0x10] sm:$0xf]
      %v4578 = vld [vmem:[%s3334 + $0x14] sm:$0x3]
      %v4579 = vld [vmem:[%s3334 + $0x18] sm:$0xc]
      %v4580 = vld [vmem:[%s3334 + $0x1c] sm:$0xf]
      %v4581 = vld [vmem:[%s3334 + $0x20] sm:$0x3]
      %v4582 = vld [vmem:[%s3334 + $0x24] sm:$0xc]
      %v4583 = vld [vmem:[%s3334 + $0x28] sm:$0xf]
      %v4584 = vld [vmem:[%s3334 + $0x2c] sm:$0x3]
      %v4585 = vld [vmem:[%s3334 + $0x30] sm:$0xc]
      %v4586 = vld [vmem:[%s3334 + $0x34] sm:$0xf]
      %v4587 = vld [vmem:[%s3334 + $0x38] sm:$0x3]
      %v4588 = vld [vmem:[%s3334 + $0x3c] sm:$0xc]
      %v4589 = vld [vmem:[%s3334 + $0x40] sm:$0xf]
      %v4590 = vld [vmem:[%s3334 + $0x44] sm:$0x3]
      %v4591 = vld [vmem:[%s3334 + $0x48] sm:$0xc]
      %v4592 = vld [vmem:[%s3334 + $0x4c] sm:$0xf]
      %v4593 = vld [vmem:[%s3334 + $0x50] sm:$0x3]
      %v4594 = vld [vmem:[%s3334 + $0x54] sm:$0xc]
      %v4595 = vld [vmem:[%s3334 + $0x58] sm:$0xf]
      %v4596 = vld [vmem:[%s3334 + $0x5c] sm:$0x3]
      %v4597 = vld [vmem:[%s3334 + $0x60] sm:$0xc]
      %v4598 = vld [vmem:[%s3334 + $0x64] sm:$0xf]
      %v4599 = vld [vmem:[%s3334 + $0x68] sm:$0x3]
      %v4600 = vld [vmem:[%s3334 + $0x6c] sm:$0xc]
      %v4601 = vld [vmem:[%s3334 + $0x70] sm:$0xf]
      %v4602 = vld [vmem:[%s3334 + $0x74] sm:$0x3]
      %v4603 = vld [vmem:[%s3334 + $0x78] sm:$0xc]
      %v4604 = vld [vmem:[%s3334 + $0x7c] sm:$0xf]
      %v4605 = vld [vmem:[%s3334 + $0x80] sm:$0x3]
      %v4606 = vld [vmem:[%s3334 + $0x84] sm:$0xc]
      %v4607 = vld [vmem:[%s3334 + $0x88] sm:$0xf]
      %v4608 = vld [vmem:[%s3334 + $0x8c] sm:$0x3]
      %v4609 = vld [vmem:[%s3334 + $0x90] sm:$0xc]
      %v4610 = vld [vmem:[%s3334 + $0x94] sm:$0xf]
      %v4611 = vld [vmem:[%s3334 + $0x98] sm:$0x3]
      %v4612 = vld [vmem:[%s3334 + $0x9c] sm:$0xc]
      %v4613 = vld [vmem:[%s3334 + $0xa0] sm:$0xf]
      %v4614 = vld [vmem:[%s3334 + $0xa4] sm:$0x3]
      %v4615 = vld [vmem:[%s3334 + $0xa8] sm:$0xc]
      %v4616 = vld [vmem:[%s3334 + $0xac] sm:$0xf]
      %v4617 = vld [vmem:[%s3334 + $0xb0] sm:$0x3]
      %v4618 = vld [vmem:[%s3334 + $0xb4] sm:$0xc]
      %v4619 = vld [vmem:[%s3334 + $0xb8] sm:$0xf]
      %v4620 = vld [vmem:[%s3334 + $0xbc] sm:$0x3]
      %v4669 = vunpack.c.l.b16 %v4573
      %v4670 = vunpack.c.l.b16 %v4574
      %v4671 = vunpack.c.l.b16 %v4575
      %v4672 = vunpack.c.l.b16 %v4576
      %v4673 = vunpack.c.l.b16 %v4577
      %v4674 = vunpack.c.l.b16 %v4578
      %v4675 = vunpack.c.l.b16 %v4579
      %v4676 = vunpack.c.l.b16 %v4580
      %v4677 = vunpack.c.l.b16 %v4581
      %v4678 = vunpack.c.l.b16 %v4582
      %v4679 = vunpack.c.l.b16 %v4583
      %v4680 = vunpack.c.l.b16 %v4584
      %v4681 = vunpack.c.l.b16 %v4585
      %v4682 = vunpack.c.l.b16 %v4586
      %v4683 = vunpack.c.l.b16 %v4587
      %v4684 = vunpack.c.l.b16 %v4588
      %v4685 = vunpack.c.l.b16 %v4589
      %v4686 = vunpack.c.l.b16 %v4590
      %v4687 = vunpack.c.l.b16 %v4591
      %v4688 = vunpack.c.l.b16 %v4592
      %v4689 = vunpack.c.l.b16 %v4593
      %v4690 = vunpack.c.l.b16 %v4594
      %v4691 = vunpack.c.l.b16 %v4595
      %v4692 = vunpack.c.l.b16 %v4596
      %v4693 = vunpack.c.l.b16 %v4597
      %v4694 = vunpack.c.l.b16 %v4598
      %v4695 = vunpack.c.l.b16 %v4599
      %v4696 = vunpack.c.l.b16 %v4600
      %v4697 = vunpack.c.l.b16 %v4601
      %v4698 = vunpack.c.l.b16 %v4602
      %v4699 = vunpack.c.l.b16 %v4603
      %v4700 = vunpack.c.l.b16 %v4604
      %v4701 = vunpack.c.l.b16 %v4605
      %v4702 = vunpack.c.l.b16 %v4606
      %v4703 = vunpack.c.l.b16 %v4607
      %v4704 = vunpack.c.l.b16 %v4608
      %v4705 = vunpack.c.l.b16 %v4609
      %v4706 = vunpack.c.l.b16 %v4610
      %v4707 = vunpack.c.l.b16 %v4611
      %v4708 = vunpack.c.l.b16 %v4612
      %v4709 = vunpack.c.l.b16 %v4613
      %v4710 = vunpack.c.l.b16 %v4614
      %v4711 = vunpack.c.l.b16 %v4615
      %v4712 = vunpack.c.l.b16 %v4616
      %v4713 = vunpack.c.l.b16 %v4617
      %v4714 = vunpack.c.l.b16 %v4618
      %v4715 = vunpack.c.l.b16 %v4619
      %v4716 = vunpack.c.l.b16 %v4620
      %v4717 = vpack.c.b16 %v4670, %v4669
      %v4718 = vpack.c.b16 %v4671, %v4671
      %v4719 = vpack.c.b16 %v4673, %v4672
      %v4720 = vpack.c.b16 %v4674, %v4674
      %v4721 = vpack.c.b16 %v4676, %v4675
      %v4722 = vpack.c.b16 %v4677, %v4677
      %v4723 = vpack.c.b16 %v4679, %v4678
      %v4724 = vpack.c.b16 %v4680, %v4680
      %v4725 = vpack.c.b16 %v4682, %v4681
      %v4726 = vpack.c.b16 %v4683, %v4683
      %v4727 = vpack.c.b16 %v4685, %v4684
      %v4728 = vpack.c.b16 %v4686, %v4686
      %v4729 = vpack.c.b16 %v4688, %v4687
      %v4730 = vpack.c.b16 %v4689, %v4689
      %v4731 = vpack.c.b16 %v4691, %v4690
      %v4732 = vpack.c.b16 %v4692, %v4692
      %v4733 = vpack.c.b16 %v4694, %v4693
      %v4734 = vpack.c.b16 %v4695, %v4695
      %v4735 = vpack.c.b16 %v4697, %v4696
      %v4736 = vpack.c.b16 %v4698, %v4698
      %v4737 = vpack.c.b16 %v4700, %v4699
      %v4738 = vpack.c.b16 %v4701, %v4701
      %v4739 = vpack.c.b16 %v4703, %v4702
      %v4740 = vpack.c.b16 %v4704, %v4704
      %v4741 = vpack.c.b16 %v4706, %v4705
      %v4742 = vpack.c.b16 %v4707, %v4707
      %v4743 = vpack.c.b16 %v4709, %v4708
      %v4744 = vpack.c.b16 %v4710, %v4710
      %v4745 = vpack.c.b16 %v4712, %v4711
      %v4746 = vpack.c.b16 %v4713, %v4713
      %v4747 = vpack.c.b16 %v4715, %v4714
      %v4748 = vpack.c.b16 %v4716, %v4716
      %v4749 = vrot.slane %v4717, 2
      %v4750 = vrot.slane %v4718, 2
      %v4751 = vsel %vm1139, %v4749, %v4750
      %v4752 = vrot.slane %v4719, 2
      %v4753 = vrot.slane %v4720, 2
      %v4754 = vsel %vm1139, %v4752, %v4753
      %v4755 = vrot.slane %v4721, 2
      %v4756 = vrot.slane %v4722, 2
      %v4757 = vsel %vm1139, %v4755, %v4756
      %v4758 = vrot.slane %v4723, 2
      %v4759 = vrot.slane %v4724, 2
      %v4760 = vsel %vm1139, %v4758, %v4759
      %v4761 = vrot.slane %v4725, 2
      %v4762 = vrot.slane %v4726, 2
      %v4763 = vsel %vm1139, %v4761, %v4762
      %v4764 = vrot.slane %v4727, 2
      %v4765 = vrot.slane %v4728, 2
      %v4766 = vsel %vm1139, %v4764, %v4765
      %v4767 = vrot.slane %v4729, 2
      %v4768 = vrot.slane %v4730, 2
      %v4769 = vsel %vm1139, %v4767, %v4768
      %v4770 = vrot.slane %v4731, 2
      %v4771 = vrot.slane %v4732, 2
      %v4772 = vsel %vm1139, %v4770, %v4771
      %v4773 = vrot.slane %v4733, 2
      %v4774 = vrot.slane %v4734, 2
      %v4775 = vsel %vm1139, %v4773, %v4774
      %v4776 = vrot.slane %v4735, 2
      %v4777 = vrot.slane %v4736, 2
      %v4778 = vsel %vm1139, %v4776, %v4777
      %v4779 = vrot.slane %v4737, 2
      %v4780 = vrot.slane %v4738, 2
      %v4781 = vsel %vm1139, %v4779, %v4780
      %v4782 = vrot.slane %v4739, 2
      %v4783 = vrot.slane %v4740, 2
      %v4784 = vsel %vm1139, %v4782, %v4783
      %v4785 = vrot.slane %v4741, 2
      %v4786 = vrot.slane %v4742, 2
      %v4787 = vsel %vm1139, %v4785, %v4786
      %v4788 = vrot.slane %v4743, 2
      %v4789 = vrot.slane %v4744, 2
      %v4790 = vsel %vm1139, %v4788, %v4789
      %v4791 = vrot.slane %v4745, 2
      %v4792 = vrot.slane %v4746, 2
      %v4793 = vsel %vm1139, %v4791, %v4792
      %v4794 = vrot.slane %v4747, 2
      %v4795 = vrot.slane %v4748, 2
      %v4796 = vsel %vm1139, %v4794, %v4795
      %4797 = vrot.lane.b32.xlu0 %v4751, 40
      %v4798 = vpop.permute.xlu0 %4797
      %4799 = vrot.lane.b32.xlu0 %v4754, 40
      %v4800 = vpop.permute.xlu0 %4799
      %4801 = vrot.lane.b32.xlu0 %v4757, 40
      %v4802 = vpop.permute.xlu0 %4801
      %4803 = vrot.lane.b32.xlu0 %v4760, 40
      %v4804 = vpop.permute.xlu0 %4803
      %4805 = vrot.lane.b32.xlu0 %v4763, 40
      %v4806 = vpop.permute.xlu0 %4805
      %4807 = vrot.lane.b32.xlu0 %v4766, 40
      %v4808 = vpop.permute.xlu0 %4807
      %4809 = vrot.lane.b32.xlu0 %v4769, 40
      %v4810 = vpop.permute.xlu0 %4809
      %4811 = vrot.lane.b32.xlu0 %v4772, 40
      %v4812 = vpop.permute.xlu0 %4811
      %4813 = vrot.lane.b32.xlu0 %v4775, 40
      %v4814 = vpop.permute.xlu0 %4813
      %4815 = vrot.lane.b32.xlu0 %v4778, 40
      %v4816 = vpop.permute.xlu0 %4815
      %4817 = vrot.lane.b32.xlu0 %v4781, 40
      %v4818 = vpop.permute.xlu0 %4817
      %4819 = vrot.lane.b32.xlu0 %v4784, 40
      %v4820 = vpop.permute.xlu0 %4819
      %4821 = vrot.lane.b32.xlu0 %v4787, 40
      %v4822 = vpop.permute.xlu0 %4821
      %4823 = vrot.lane.b32.xlu0 %v4790, 40
      %v4824 = vpop.permute.xlu0 %4823
      %4825 = vrot.lane.b32.xlu0 %v4793, 40
      %v4826 = vpop.permute.xlu0 %4825
      %4827 = vrot.lane.b32.xlu0 %v4796, 40
      %v4828 = vpop.permute.xlu0 %4827
      %vm4845 = vcmask 392512
      %4846 = vst.msk [vmem:[#allocation5] sm:$0xff] %vm4845, %v4798
      %4847 = vst.msk [vmem:[#allocation5 + $0x8] sm:$0xff] %vm4845, %v4800
      %4848 = vst.msk [vmem:[#allocation5 + $0x10] sm:$0xff] %vm4845, %v4802
      %4849 = vst.msk [vmem:[#allocation5 + $0x18] sm:$0xff] %vm4845, %v4804
      %4850 = vst.msk [vmem:[#allocation5 + $0x20] sm:$0xff] %vm4845, %v4806
      %4851 = vst.msk [vmem:[#allocation5 + $0x28] sm:$0xff] %vm4845, %v4808
      %4852 = vst.msk [vmem:[#allocation5 + $0x30] sm:$0xff] %vm4845, %v4810
      %4853 = vst.msk [vmem:[#allocation5 + $0x38] sm:$0xff] %vm4845, %v4812
      %4854 = vst.msk [vmem:[#allocation5 + $0x40] sm:$0xff] %vm4845, %v4814
      %4855 = vst.msk [vmem:[#allocation5 + $0x48] sm:$0xff] %vm4845, %v4816
      %4856 = vst.msk [vmem:[#allocation5 + $0x50] sm:$0xff] %vm4845, %v4818
      %4857 = vst.msk [vmem:[#allocation5 + $0x58] sm:$0xff] %vm4845, %v4820
      %4858 = vst.msk [vmem:[#allocation5 + $0x60] sm:$0xff] %vm4845, %v4822
      %4859 = vst.msk [vmem:[#allocation5 + $0x68] sm:$0xff] %vm4845, %v4824
      %4860 = vst.msk [vmem:[#allocation5 + $0x70] sm:$0xff] %vm4845, %v4826
      %4861 = vst.msk [vmem:[#allocation5 + $0x78] sm:$0xff] %vm4845, %v4828
      %s4862 = scalar_lea.vmem [#allocation3], 48
      %v4863 = vld [vmem:[%s4862] sm:$0xf]
      %v4864 = vld [vmem:[%s4862 + $0x4] sm:$0xf]
      %v4865 = vld [vmem:[%s4862 + $0xc] sm:$0xf]
      %v4866 = vld [vmem:[%s4862 + $0x10] sm:$0xf]
      %v4867 = vld [vmem:[%s4862 + $0x18] sm:$0xf]
      %v4868 = vld [vmem:[%s4862 + $0x1c] sm:$0xf]
      %v4869 = vld [vmem:[%s4862 + $0x24] sm:$0xf]
      %v4870 = vld [vmem:[%s4862 + $0x28] sm:$0xf]
      %v4871 = vld [vmem:[%s4862 + $0x30] sm:$0xf]
      %v4872 = vld [vmem:[%s4862 + $0x34] sm:$0xf]
      %v4873 = vld [vmem:[%s4862 + $0x3c] sm:$0xf]
      %v4874 = vld [vmem:[%s4862 + $0x40] sm:$0xf]
      %v4875 = vld [vmem:[%s4862 + $0x48] sm:$0xf]
      %v4876 = vld [vmem:[%s4862 + $0x4c] sm:$0xf]
      %v4877 = vld [vmem:[%s4862 + $0x54] sm:$0xf]
      %v4878 = vld [vmem:[%s4862 + $0x58] sm:$0xf]
      %v4879 = vld [vmem:[%s4862 + $0x60] sm:$0xf]
      %v4880 = vld [vmem:[%s4862 + $0x64] sm:$0xf]
      %v4881 = vld [vmem:[%s4862 + $0x6c] sm:$0xf]
      %v4882 = vld [vmem:[%s4862 + $0x70] sm:$0xf]
      %v4883 = vld [vmem:[%s4862 + $0x78] sm:$0xf]
      %v4884 = vld [vmem:[%s4862 + $0x7c] sm:$0xf]
      %v4885 = vld [vmem:[%s4862 + $0x84] sm:$0xf]
      %v4886 = vld [vmem:[%s4862 + $0x88] sm:$0xf]
      %v4887 = vld [vmem:[%s4862 + $0x90] sm:$0xf]
      %v4888 = vld [vmem:[%s4862 + $0x94] sm:$0xf]
      %v4889 = vld [vmem:[%s4862 + $0x9c] sm:$0xf]
      %v4890 = vld [vmem:[%s4862 + $0xa0] sm:$0xf]
      %v4891 = vld [vmem:[%s4862 + $0xa8] sm:$0xf]
      %v4892 = vld [vmem:[%s4862 + $0xac] sm:$0xf]
      %v4893 = vld [vmem:[%s4862 + $0xb4] sm:$0xf]
      %v4894 = vld [vmem:[%s4862 + $0xb8] sm:$0xf]
      %v4927 = vunpack.c.l.b16 %v4863
      %v4928 = vunpack.c.l.b16 %v4864
      %v4929 = vunpack.c.l.b16 %v4865
      %v4930 = vunpack.c.l.b16 %v4866
      %v4931 = vunpack.c.l.b16 %v4867
      %v4932 = vunpack.c.l.b16 %v4868
      %v4933 = vunpack.c.l.b16 %v4869
      %v4934 = vunpack.c.l.b16 %v4870
      %v4935 = vunpack.c.l.b16 %v4871
      %v4936 = vunpack.c.l.b16 %v4872
      %v4937 = vunpack.c.l.b16 %v4873
      %v4938 = vunpack.c.l.b16 %v4874
      %v4939 = vunpack.c.l.b16 %v4875
      %v4940 = vunpack.c.l.b16 %v4876
      %v4941 = vunpack.c.l.b16 %v4877
      %v4942 = vunpack.c.l.b16 %v4878
      %v4943 = vunpack.c.l.b16 %v4879
      %v4944 = vunpack.c.l.b16 %v4880
      %v4945 = vunpack.c.l.b16 %v4881
      %v4946 = vunpack.c.l.b16 %v4882
      %v4947 = vunpack.c.l.b16 %v4883
      %v4948 = vunpack.c.l.b16 %v4884
      %v4949 = vunpack.c.l.b16 %v4885
      %v4950 = vunpack.c.l.b16 %v4886
      %v4951 = vunpack.c.l.b16 %v4887
      %v4952 = vunpack.c.l.b16 %v4888
      %v4953 = vunpack.c.l.b16 %v4889
      %v4954 = vunpack.c.l.b16 %v4890
      %v4955 = vunpack.c.l.b16 %v4891
      %v4956 = vunpack.c.l.b16 %v4892
      %v4957 = vunpack.c.l.b16 %v4893
      %v4958 = vunpack.c.l.b16 %v4894
      %v4959 = vpack.c.b16 %v4928, %v4927
      %v4960 = vpack.c.b16 %v4930, %v4929
      %v4961 = vpack.c.b16 %v4932, %v4931
      %v4962 = vpack.c.b16 %v4934, %v4933
      %v4963 = vpack.c.b16 %v4936, %v4935
      %v4964 = vpack.c.b16 %v4938, %v4937
      %v4965 = vpack.c.b16 %v4940, %v4939
      %v4966 = vpack.c.b16 %v4942, %v4941
      %v4967 = vpack.c.b16 %v4944, %v4943
      %v4968 = vpack.c.b16 %v4946, %v4945
      %v4969 = vpack.c.b16 %v4948, %v4947
      %v4970 = vpack.c.b16 %v4950, %v4949
      %v4971 = vpack.c.b16 %v4952, %v4951
      %v4972 = vpack.c.b16 %v4954, %v4953
      %v4973 = vpack.c.b16 %v4956, %v4955
      %v4974 = vpack.c.b16 %v4958, %v4957
      %4975 = vrot.lane.b32.xlu0 %v4959, 48
      %v4976 = vpop.permute.xlu0 %4975
      %4977 = vrot.lane.b32.xlu0 %v4960, 48
      %v4978 = vpop.permute.xlu0 %4977
      %4979 = vrot.lane.b32.xlu0 %v4961, 48
      %v4980 = vpop.permute.xlu0 %4979
      %4981 = vrot.lane.b32.xlu0 %v4962, 48
      %v4982 = vpop.permute.xlu0 %4981
      %4983 = vrot.lane.b32.xlu0 %v4963, 48
      %v4984 = vpop.permute.xlu0 %4983
      %4985 = vrot.lane.b32.xlu0 %v4964, 48
      %v4986 = vpop.permute.xlu0 %4985
      %4987 = vrot.lane.b32.xlu0 %v4965, 48
      %v4988 = vpop.permute.xlu0 %4987
      %4989 = vrot.lane.b32.xlu0 %v4966, 48
      %v4990 = vpop.permute.xlu0 %4989
      %4991 = vrot.lane.b32.xlu0 %v4967, 48
      %v4992 = vpop.permute.xlu0 %4991
      %4993 = vrot.lane.b32.xlu0 %v4968, 48
      %v4994 = vpop.permute.xlu0 %4993
      %4995 = vrot.lane.b32.xlu0 %v4969, 48
      %v4996 = vpop.permute.xlu0 %4995
      %4997 = vrot.lane.b32.xlu0 %v4970, 48
      %v4998 = vpop.permute.xlu0 %4997
      %4999 = vrot.lane.b32.xlu0 %v4971, 48
      %v5000 = vpop.permute.xlu0 %4999
      %5001 = vrot.lane.b32.xlu0 %v4972, 48
      %v5002 = vpop.permute.xlu0 %5001
      %5003 = vrot.lane.b32.xlu0 %v4973, 48
      %v5004 = vpop.permute.xlu0 %5003
      %5005 = vrot.lane.b32.xlu0 %v4974, 48
      %v5006 = vpop.permute.xlu0 %5005
      %vm5023 = vcmask 458112
      %5024 = vst.msk [vmem:[#allocation5] sm:$0xff] %vm5023, %v4976
      %5025 = vst.msk [vmem:[#allocation5 + $0x8] sm:$0xff] %vm5023, %v4978
      %5026 = vst.msk [vmem:[#allocation5 + $0x10] sm:$0xff] %vm5023, %v4980
      %5027 = vst.msk [vmem:[#allocation5 + $0x18] sm:$0xff] %vm5023, %v4982
      %5028 = vst.msk [vmem:[#allocation5 + $0x20] sm:$0xff] %vm5023, %v4984
      %5029 = vst.msk [vmem:[#allocation5 + $0x28] sm:$0xff] %vm5023, %v4986
      %5030 = vst.msk [vmem:[#allocation5 + $0x30] sm:$0xff] %vm5023, %v4988
      %5031 = vst.msk [vmem:[#allocation5 + $0x38] sm:$0xff] %vm5023, %v4990
      %5032 = vst.msk [vmem:[#allocation5 + $0x40] sm:$0xff] %vm5023, %v4992
      %5033 = vst.msk [vmem:[#allocation5 + $0x48] sm:$0xff] %vm5023, %v4994
      %5034 = vst.msk [vmem:[#allocation5 + $0x50] sm:$0xff] %vm5023, %v4996
      %5035 = vst.msk [vmem:[#allocation5 + $0x58] sm:$0xff] %vm5023, %v4998
      %5036 = vst.msk [vmem:[#allocation5 + $0x60] sm:$0xff] %vm5023, %v5000
      %5037 = vst.msk [vmem:[#allocation5 + $0x68] sm:$0xff] %vm5023, %v5002
      %5038 = vst.msk [vmem:[#allocation5 + $0x70] sm:$0xff] %vm5023, %v5004
      %5039 = vst.msk [vmem:[#allocation5 + $0x78] sm:$0xff] %vm5023, %v5006
      %v5040 = vld [vmem:[%s4862] sm:$0xe]
      %v5041 = vld [vmem:[%s4862 + $0x4] sm:$0xf]
      %v5042 = vld [vmem:[%s4862 + $0x8] sm:$0x1]
      %v5043 = vld [vmem:[%s4862 + $0xc] sm:$0xe]
      %v5044 = vld [vmem:[%s4862 + $0x10] sm:$0xf]
      %v5045 = vld [vmem:[%s4862 + $0x14] sm:$0x1]
      %v5046 = vld [vmem:[%s4862 + $0x18] sm:$0xe]
      %v5047 = vld [vmem:[%s4862 + $0x1c] sm:$0xf]
      %v5048 = vld [vmem:[%s4862 + $0x20] sm:$0x1]
      %v5049 = vld [vmem:[%s4862 + $0x24] sm:$0xe]
      %v5050 = vld [vmem:[%s4862 + $0x28] sm:$0xf]
      %v5051 = vld [vmem:[%s4862 + $0x2c] sm:$0x1]
      %v5052 = vld [vmem:[%s4862 + $0x30] sm:$0xe]
      %v5053 = vld [vmem:[%s4862 + $0x34] sm:$0xf]
      %v5054 = vld [vmem:[%s4862 + $0x38] sm:$0x1]
      %v5055 = vld [vmem:[%s4862 + $0x3c] sm:$0xe]
      %v5056 = vld [vmem:[%s4862 + $0x40] sm:$0xf]
      %v5057 = vld [vmem:[%s4862 + $0x44] sm:$0x1]
      %v5058 = vld [vmem:[%s4862 + $0x48] sm:$0xe]
      %v5059 = vld [vmem:[%s4862 + $0x4c] sm:$0xf]
      %v5060 = vld [vmem:[%s4862 + $0x50] sm:$0x1]
      %v5061 = vld [vmem:[%s4862 + $0x54] sm:$0xe]
      %v5062 = vld [vmem:[%s4862 + $0x58] sm:$0xf]
      %v5063 = vld [vmem:[%s4862 + $0x5c] sm:$0x1]
      %v5064 = vld [vmem:[%s4862 + $0x60] sm:$0xe]
      %v5065 = vld [vmem:[%s4862 + $0x64] sm:$0xf]
      %v5066 = vld [vmem:[%s4862 + $0x68] sm:$0x1]
      %v5067 = vld [vmem:[%s4862 + $0x6c] sm:$0xe]
      %v5068 = vld [vmem:[%s4862 + $0x70] sm:$0xf]
      %v5069 = vld [vmem:[%s4862 + $0x74] sm:$0x1]
      %v5070 = vld [vmem:[%s4862 + $0x78] sm:$0xe]
      %v5071 = vld [vmem:[%s4862 + $0x7c] sm:$0xf]
      %v5072 = vld [vmem:[%s4862 + $0x80] sm:$0x1]
      %v5073 = vld [vmem:[%s4862 + $0x84] sm:$0xe]
      %v5074 = vld [vmem:[%s4862 + $0x88] sm:$0xf]
      %v5075 = vld [vmem:[%s4862 + $0x8c] sm:$0x1]
      %v5076 = vld [vmem:[%s4862 + $0x90] sm:$0xe]
      %v5077 = vld [vmem:[%s4862 + $0x94] sm:$0xf]
      %v5078 = vld [vmem:[%s4862 + $0x98] sm:$0x1]
      %v5079 = vld [vmem:[%s4862 + $0x9c] sm:$0xe]
      %v5080 = vld [vmem:[%s4862 + $0xa0] sm:$0xf]
      %v5081 = vld [vmem:[%s4862 + $0xa4] sm:$0x1]
      %v5082 = vld [vmem:[%s4862 + $0xa8] sm:$0xe]
      %v5083 = vld [vmem:[%s4862 + $0xac] sm:$0xf]
      %v5084 = vld [vmem:[%s4862 + $0xb0] sm:$0x1]
      %v5085 = vld [vmem:[%s4862 + $0xb4] sm:$0xe]
      %v5086 = vld [vmem:[%s4862 + $0xb8] sm:$0xf]
      %v5087 = vld [vmem:[%s4862 + $0xbc] sm:$0x1]
      %v5136 = vunpack.c.l.b16 %v5040
      %v5137 = vunpack.c.l.b16 %v5041
      %v5138 = vunpack.c.l.b16 %v5042
      %v5139 = vunpack.c.l.b16 %v5043
      %v5140 = vunpack.c.l.b16 %v5044
      %v5141 = vunpack.c.l.b16 %v5045
      %v5142 = vunpack.c.l.b16 %v5046
      %v5143 = vunpack.c.l.b16 %v5047
      %v5144 = vunpack.c.l.b16 %v5048
      %v5145 = vunpack.c.l.b16 %v5049
      %v5146 = vunpack.c.l.b16 %v5050
      %v5147 = vunpack.c.l.b16 %v5051
      %v5148 = vunpack.c.l.b16 %v5052
      %v5149 = vunpack.c.l.b16 %v5053
      %v5150 = vunpack.c.l.b16 %v5054
      %v5151 = vunpack.c.l.b16 %v5055
      %v5152 = vunpack.c.l.b16 %v5056
      %v5153 = vunpack.c.l.b16 %v5057
      %v5154 = vunpack.c.l.b16 %v5058
      %v5155 = vunpack.c.l.b16 %v5059
      %v5156 = vunpack.c.l.b16 %v5060
      %v5157 = vunpack.c.l.b16 %v5061
      %v5158 = vunpack.c.l.b16 %v5062
      %v5159 = vunpack.c.l.b16 %v5063
      %v5160 = vunpack.c.l.b16 %v5064
      %v5161 = vunpack.c.l.b16 %v5065
      %v5162 = vunpack.c.l.b16 %v5066
      %v5163 = vunpack.c.l.b16 %v5067
      %v5164 = vunpack.c.l.b16 %v5068
      %v5165 = vunpack.c.l.b16 %v5069
      %v5166 = vunpack.c.l.b16 %v5070
      %v5167 = vunpack.c.l.b16 %v5071
      %v5168 = vunpack.c.l.b16 %v5072
      %v5169 = vunpack.c.l.b16 %v5073
      %v5170 = vunpack.c.l.b16 %v5074
      %v5171 = vunpack.c.l.b16 %v5075
      %v5172 = vunpack.c.l.b16 %v5076
      %v5173 = vunpack.c.l.b16 %v5077
      %v5174 = vunpack.c.l.b16 %v5078
      %v5175 = vunpack.c.l.b16 %v5079
      %v5176 = vunpack.c.l.b16 %v5080
      %v5177 = vunpack.c.l.b16 %v5081
      %v5178 = vunpack.c.l.b16 %v5082
      %v5179 = vunpack.c.l.b16 %v5083
      %v5180 = vunpack.c.l.b16 %v5084
      %v5181 = vunpack.c.l.b16 %v5085
      %v5182 = vunpack.c.l.b16 %v5086
      %v5183 = vunpack.c.l.b16 %v5087
      %v5184 = vpack.c.b16 %v5137, %v5136
      %v5185 = vpack.c.b16 %v5138, %v5138
      %v5186 = vpack.c.b16 %v5140, %v5139
      %v5187 = vpack.c.b16 %v5141, %v5141
      %v5188 = vpack.c.b16 %v5143, %v5142
      %v5189 = vpack.c.b16 %v5144, %v5144
      %v5190 = vpack.c.b16 %v5146, %v5145
      %v5191 = vpack.c.b16 %v5147, %v5147
      %v5192 = vpack.c.b16 %v5149, %v5148
      %v5193 = vpack.c.b16 %v5150, %v5150
      %v5194 = vpack.c.b16 %v5152, %v5151
      %v5195 = vpack.c.b16 %v5153, %v5153
      %v5196 = vpack.c.b16 %v5155, %v5154
      %v5197 = vpack.c.b16 %v5156, %v5156
      %v5198 = vpack.c.b16 %v5158, %v5157
      %v5199 = vpack.c.b16 %v5159, %v5159
      %v5200 = vpack.c.b16 %v5161, %v5160
      %v5201 = vpack.c.b16 %v5162, %v5162
      %v5202 = vpack.c.b16 %v5164, %v5163
      %v5203 = vpack.c.b16 %v5165, %v5165
      %v5204 = vpack.c.b16 %v5167, %v5166
      %v5205 = vpack.c.b16 %v5168, %v5168
      %v5206 = vpack.c.b16 %v5170, %v5169
      %v5207 = vpack.c.b16 %v5171, %v5171
      %v5208 = vpack.c.b16 %v5173, %v5172
      %v5209 = vpack.c.b16 %v5174, %v5174
      %v5210 = vpack.c.b16 %v5176, %v5175
      %v5211 = vpack.c.b16 %v5177, %v5177
      %v5212 = vpack.c.b16 %v5179, %v5178
      %v5213 = vpack.c.b16 %v5180, %v5180
      %v5214 = vpack.c.b16 %v5182, %v5181
      %v5215 = vpack.c.b16 %v5183, %v5183
      %v5216 = vrot.slane %v5184, 1
      %v5217 = vrot.slane %v5185, 1
      %v5218 = vsel %vm849, %v5216, %v5217
      %v5219 = vrot.slane %v5186, 1
      %v5220 = vrot.slane %v5187, 1
      %v5221 = vsel %vm849, %v5219, %v5220
      %v5222 = vrot.slane %v5188, 1
      %v5223 = vrot.slane %v5189, 1
      %v5224 = vsel %vm849, %v5222, %v5223
      %v5225 = vrot.slane %v5190, 1
      %v5226 = vrot.slane %v5191, 1
      %v5227 = vsel %vm849, %v5225, %v5226
      %v5228 = vrot.slane %v5192, 1
      %v5229 = vrot.slane %v5193, 1
      %v5230 = vsel %vm849, %v5228, %v5229
      %v5231 = vrot.slane %v5194, 1
      %v5232 = vrot.slane %v5195, 1
      %v5233 = vsel %vm849, %v5231, %v5232
      %v5234 = vrot.slane %v5196, 1
      %v5235 = vrot.slane %v5197, 1
      %v5236 = vsel %vm849, %v5234, %v5235
      %v5237 = vrot.slane %v5198, 1
      %v5238 = vrot.slane %v5199, 1
      %v5239 = vsel %vm849, %v5237, %v5238
      %v5240 = vrot.slane %v5200, 1
      %v5241 = vrot.slane %v5201, 1
      %v5242 = vsel %vm849, %v5240, %v5241
      %v5243 = vrot.slane %v5202, 1
      %v5244 = vrot.slane %v5203, 1
      %v5245 = vsel %vm849, %v5243, %v5244
      %v5246 = vrot.slane %v5204, 1
      %v5247 = vrot.slane %v5205, 1
      %v5248 = vsel %vm849, %v5246, %v5247
      %v5249 = vrot.slane %v5206, 1
      %v5250 = vrot.slane %v5207, 1
      %v5251 = vsel %vm849, %v5249, %v5250
      %v5252 = vrot.slane %v5208, 1
      %v5253 = vrot.slane %v5209, 1
      %v5254 = vsel %vm849, %v5252, %v5253
      %v5255 = vrot.slane %v5210, 1
      %v5256 = vrot.slane %v5211, 1
      %v5257 = vsel %vm849, %v5255, %v5256
      %v5258 = vrot.slane %v5212, 1
      %v5259 = vrot.slane %v5213, 1
      %v5260 = vsel %vm849, %v5258, %v5259
      %v5261 = vrot.slane %v5214, 1
      %v5262 = vrot.slane %v5215, 1
      %v5263 = vsel %vm849, %v5261, %v5262
      %5264 = vrot.lane.b32.xlu0 %v5218, 56
      %v5265 = vpop.permute.xlu0 %5264
      %5266 = vrot.lane.b32.xlu0 %v5221, 56
      %v5267 = vpop.permute.xlu0 %5266
      %5268 = vrot.lane.b32.xlu0 %v5224, 56
      %v5269 = vpop.permute.xlu0 %5268
      %5270 = vrot.lane.b32.xlu0 %v5227, 56
      %v5271 = vpop.permute.xlu0 %5270
      %5272 = vrot.lane.b32.xlu0 %v5230, 56
      %v5273 = vpop.permute.xlu0 %5272
      %5274 = vrot.lane.b32.xlu0 %v5233, 56
      %v5275 = vpop.permute.xlu0 %5274
      %5276 = vrot.lane.b32.xlu0 %v5236, 56
      %v5277 = vpop.permute.xlu0 %5276
      %5278 = vrot.lane.b32.xlu0 %v5239, 56
      %v5279 = vpop.permute.xlu0 %5278
      %5280 = vrot.lane.b32.xlu0 %v5242, 56
      %v5281 = vpop.permute.xlu0 %5280
      %5282 = vrot.lane.b32.xlu0 %v5245, 56
      %v5283 = vpop.permute.xlu0 %5282
      %5284 = vrot.lane.b32.xlu0 %v5248, 56
      %v5285 = vpop.permute.xlu0 %5284
      %5286 = vrot.lane.b32.xlu0 %v5251, 56
      %v5287 = vpop.permute.xlu0 %5286
      %5288 = vrot.lane.b32.xlu0 %v5254, 56
      %v5289 = vpop.permute.xlu0 %5288
      %5290 = vrot.lane.b32.xlu0 %v5257, 56
      %v5291 = vpop.permute.xlu0 %5290
      %5292 = vrot.lane.b32.xlu0 %v5260, 56
      %v5293 = vpop.permute.xlu0 %5292
      %5294 = vrot.lane.b32.xlu0 %v5263, 56
      %v5295 = vpop.permute.xlu0 %5294
      %vm5312 = vcmask 523712
      %5313 = vst.msk [vmem:[#allocation5] sm:$0xff] %vm5312, %v5265
      %5314 = vst.msk [vmem:[#allocation5 + $0x8] sm:$0xff] %vm5312, %v5267
      %5315 = vst.msk [vmem:[#allocation5 + $0x10] sm:$0xff] %vm5312, %v5269
      %5316 = vst.msk [vmem:[#allocation5 + $0x18] sm:$0xff] %vm5312, %v5271
      %5317 = vst.msk [vmem:[#allocation5 + $0x20] sm:$0xff] %vm5312, %v5273
      %5318 = vst.msk [vmem:[#allocation5 + $0x28] sm:$0xff] %vm5312, %v5275
      %5319 = vst.msk [vmem:[#allocation5 + $0x30] sm:$0xff] %vm5312, %v5277
      %5320 = vst.msk [vmem:[#allocation5 + $0x38] sm:$0xff] %vm5312, %v5279
      %5321 = vst.msk [vmem:[#allocation5 + $0x40] sm:$0xff] %vm5312, %v5281
      %5322 = vst.msk [vmem:[#allocation5 + $0x48] sm:$0xff] %vm5312, %v5283
      %5323 = vst.msk [vmem:[#allocation5 + $0x50] sm:$0xff] %vm5312, %v5285
      %5324 = vst.msk [vmem:[#allocation5 + $0x58] sm:$0xff] %vm5312, %v5287
      %5325 = vst.msk [vmem:[#allocation5 + $0x60] sm:$0xff] %vm5312, %v5289
      %5326 = vst.msk [vmem:[#allocation5 + $0x68] sm:$0xff] %vm5312, %v5291
      %5327 = vst.msk [vmem:[#allocation5 + $0x70] sm:$0xff] %vm5312, %v5293
      %5328 = vst.msk [vmem:[#allocation5 + $0x78] sm:$0xff] %vm5312, %v5295
      %v5329 = vld [vmem:[%s4862] sm:$0xc]
      %v5330 = vld [vmem:[%s4862 + $0x4] sm:$0xf]
      %v5331 = vld [vmem:[%s4862 + $0x8] sm:$0x3]
      %v5332 = vld [vmem:[%s4862 + $0xc] sm:$0xc]
      %v5333 = vld [vmem:[%s4862 + $0x10] sm:$0xf]
      %v5334 = vld [vmem:[%s4862 + $0x14] sm:$0x3]
      %v5335 = vld [vmem:[%s4862 + $0x18] sm:$0xc]
      %v5336 = vld [vmem:[%s4862 + $0x1c] sm:$0xf]
      %v5337 = vld [vmem:[%s4862 + $0x20] sm:$0x3]
      %v5338 = vld [vmem:[%s4862 + $0x24] sm:$0xc]
      %v5339 = vld [vmem:[%s4862 + $0x28] sm:$0xf]
      %v5340 = vld [vmem:[%s4862 + $0x2c] sm:$0x3]
      %v5341 = vld [vmem:[%s4862 + $0x30] sm:$0xc]
      %v5342 = vld [vmem:[%s4862 + $0x34] sm:$0xf]
      %v5343 = vld [vmem:[%s4862 + $0x38] sm:$0x3]
      %v5344 = vld [vmem:[%s4862 + $0x3c] sm:$0xc]
      %v5345 = vld [vmem:[%s4862 + $0x40] sm:$0xf]
      %v5346 = vld [vmem:[%s4862 + $0x44] sm:$0x3]
      %v5347 = vld [vmem:[%s4862 + $0x48] sm:$0xc]
      %v5348 = vld [vmem:[%s4862 + $0x4c] sm:$0xf]
      %v5349 = vld [vmem:[%s4862 + $0x50] sm:$0x3]
      %v5350 = vld [vmem:[%s4862 + $0x54] sm:$0xc]
      %v5351 = vld [vmem:[%s4862 + $0x58] sm:$0xf]
      %v5352 = vld [vmem:[%s4862 + $0x5c] sm:$0x3]
      %v5353 = vld [vmem:[%s4862 + $0x60] sm:$0xc]
      %v5354 = vld [vmem:[%s4862 + $0x64] sm:$0xf]
      %v5355 = vld [vmem:[%s4862 + $0x68] sm:$0x3]
      %v5356 = vld [vmem:[%s4862 + $0x6c] sm:$0xc]
      %v5357 = vld [vmem:[%s4862 + $0x70] sm:$0xf]
      %v5358 = vld [vmem:[%s4862 + $0x74] sm:$0x3]
      %v5359 = vld [vmem:[%s4862 + $0x78] sm:$0xc]
      %v5360 = vld [vmem:[%s4862 + $0x7c] sm:$0xf]
      %v5361 = vld [vmem:[%s4862 + $0x80] sm:$0x3]
      %v5362 = vld [vmem:[%s4862 + $0x84] sm:$0xc]
      %v5363 = vld [vmem:[%s4862 + $0x88] sm:$0xf]
      %v5364 = vld [vmem:[%s4862 + $0x8c] sm:$0x3]
      %v5365 = vld [vmem:[%s4862 + $0x90] sm:$0xc]
      %v5366 = vld [vmem:[%s4862 + $0x94] sm:$0xf]
      %v5367 = vld [vmem:[%s4862 + $0x98] sm:$0x3]
      %v5368 = vld [vmem:[%s4862 + $0x9c] sm:$0xc]
      %v5369 = vld [vmem:[%s4862 + $0xa0] sm:$0xf]
      %v5370 = vld [vmem:[%s4862 + $0xa4] sm:$0x3]
      %v5371 = vld [vmem:[%s4862 + $0xa8] sm:$0xc]
      %v5372 = vld [vmem:[%s4862 + $0xac] sm:$0xf]
      %v5373 = vld [vmem:[%s4862 + $0xb0] sm:$0x3]
      %v5374 = vld [vmem:[%s4862 + $0xb4] sm:$0xc]
      %v5375 = vld [vmem:[%s4862 + $0xb8] sm:$0xf]
      %v5376 = vld [vmem:[%s4862 + $0xbc] sm:$0x3]
      %v5425 = vunpack.c.l.b16 %v5329
      %v5426 = vunpack.c.l.b16 %v5330
      %v5427 = vunpack.c.l.b16 %v5331
      %v5428 = vunpack.c.l.b16 %v5332
      %v5429 = vunpack.c.l.b16 %v5333
      %v5430 = vunpack.c.l.b16 %v5334
      %v5431 = vunpack.c.l.b16 %v5335
      %v5432 = vunpack.c.l.b16 %v5336
      %v5433 = vunpack.c.l.b16 %v5337
      %v5434 = vunpack.c.l.b16 %v5338
      %v5435 = vunpack.c.l.b16 %v5339
      %v5436 = vunpack.c.l.b16 %v5340
      %v5437 = vunpack.c.l.b16 %v5341
      %v5438 = vunpack.c.l.b16 %v5342
      %v5439 = vunpack.c.l.b16 %v5343
      %v5440 = vunpack.c.l.b16 %v5344
      %v5441 = vunpack.c.l.b16 %v5345
      %v5442 = vunpack.c.l.b16 %v5346
      %v5443 = vunpack.c.l.b16 %v5347
      %v5444 = vunpack.c.l.b16 %v5348
      %v5445 = vunpack.c.l.b16 %v5349
      %v5446 = vunpack.c.l.b16 %v5350
      %v5447 = vunpack.c.l.b16 %v5351
      %v5448 = vunpack.c.l.b16 %v5352
      %v5449 = vunpack.c.l.b16 %v5353
      %v5450 = vunpack.c.l.b16 %v5354
      %v5451 = vunpack.c.l.b16 %v5355
      %v5452 = vunpack.c.l.b16 %v5356
      %v5453 = vunpack.c.l.b16 %v5357
      %v5454 = vunpack.c.l.b16 %v5358
      %v5455 = vunpack.c.l.b16 %v5359
      %v5456 = vunpack.c.l.b16 %v5360
      %v5457 = vunpack.c.l.b16 %v5361
      %v5458 = vunpack.c.l.b16 %v5362
      %v5459 = vunpack.c.l.b16 %v5363
      %v5460 = vunpack.c.l.b16 %v5364
      %v5461 = vunpack.c.l.b16 %v5365
      %v5462 = vunpack.c.l.b16 %v5366
      %v5463 = vunpack.c.l.b16 %v5367
      %v5464 = vunpack.c.l.b16 %v5368
      %v5465 = vunpack.c.l.b16 %v5369
      %v5466 = vunpack.c.l.b16 %v5370
      %v5467 = vunpack.c.l.b16 %v5371
      %v5468 = vunpack.c.l.b16 %v5372
      %v5469 = vunpack.c.l.b16 %v5373
      %v5470 = vunpack.c.l.b16 %v5374
      %v5471 = vunpack.c.l.b16 %v5375
      %v5472 = vunpack.c.l.b16 %v5376
      %v5473 = vpack.c.b16 %v5426, %v5425
      %v5474 = vpack.c.b16 %v5427, %v5427
      %v5475 = vpack.c.b16 %v5429, %v5428
      %v5476 = vpack.c.b16 %v5430, %v5430
      %v5477 = vpack.c.b16 %v5432, %v5431
      %v5478 = vpack.c.b16 %v5433, %v5433
      %v5479 = vpack.c.b16 %v5435, %v5434
      %v5480 = vpack.c.b16 %v5436, %v5436
      %v5481 = vpack.c.b16 %v5438, %v5437
      %v5482 = vpack.c.b16 %v5439, %v5439
      %v5483 = vpack.c.b16 %v5441, %v5440
      %v5484 = vpack.c.b16 %v5442, %v5442
      %v5485 = vpack.c.b16 %v5444, %v5443
      %v5486 = vpack.c.b16 %v5445, %v5445
      %v5487 = vpack.c.b16 %v5447, %v5446
      %v5488 = vpack.c.b16 %v5448, %v5448
      %v5489 = vpack.c.b16 %v5450, %v5449
      %v5490 = vpack.c.b16 %v5451, %v5451
      %v5491 = vpack.c.b16 %v5453, %v5452
      %v5492 = vpack.c.b16 %v5454, %v5454
      %v5493 = vpack.c.b16 %v5456, %v5455
      %v5494 = vpack.c.b16 %v5457, %v5457
      %v5495 = vpack.c.b16 %v5459, %v5458
      %v5496 = vpack.c.b16 %v5460, %v5460
      %v5497 = vpack.c.b16 %v5462, %v5461
      %v5498 = vpack.c.b16 %v5463, %v5463
      %v5499 = vpack.c.b16 %v5465, %v5464
      %v5500 = vpack.c.b16 %v5466, %v5466
      %v5501 = vpack.c.b16 %v5468, %v5467
      %v5502 = vpack.c.b16 %v5469, %v5469
      %v5503 = vpack.c.b16 %v5471, %v5470
      %v5504 = vpack.c.b16 %v5472, %v5472
      %v5505 = vrot.slane %v5473, 2
      %v5506 = vrot.slane %v5474, 2
      %v5507 = vsel %vm1139, %v5505, %v5506
      %v5508 = vrot.slane %v5475, 2
      %v5509 = vrot.slane %v5476, 2
      %v5510 = vsel %vm1139, %v5508, %v5509
      %v5511 = vrot.slane %v5477, 2
      %v5512 = vrot.slane %v5478, 2
      %v5513 = vsel %vm1139, %v5511, %v5512
      %v5514 = vrot.slane %v5479, 2
      %v5515 = vrot.slane %v5480, 2
      %v5516 = vsel %vm1139, %v5514, %v5515
      %v5517 = vrot.slane %v5481, 2
      %v5518 = vrot.slane %v5482, 2
      %v5519 = vsel %vm1139, %v5517, %v5518
      %v5520 = vrot.slane %v5483, 2
      %v5521 = vrot.slane %v5484, 2
      %v5522 = vsel %vm1139, %v5520, %v5521
      %v5523 = vrot.slane %v5485, 2
      %v5524 = vrot.slane %v5486, 2
      %v5525 = vsel %vm1139, %v5523, %v5524
      %v5526 = vrot.slane %v5487, 2
      %v5527 = vrot.slane %v5488, 2
      %v5528 = vsel %vm1139, %v5526, %v5527
      %v5529 = vrot.slane %v5489, 2
      %v5530 = vrot.slane %v5490, 2
      %v5531 = vsel %vm1139, %v5529, %v5530
      %v5532 = vrot.slane %v5491, 2
      %v5533 = vrot.slane %v5492, 2
      %v5534 = vsel %vm1139, %v5532, %v5533
      %v5535 = vrot.slane %v5493, 2
      %v5536 = vrot.slane %v5494, 2
      %v5537 = vsel %vm1139, %v5535, %v5536
      %v5538 = vrot.slane %v5495, 2
      %v5539 = vrot.slane %v5496, 2
      %v5540 = vsel %vm1139, %v5538, %v5539
      %v5541 = vrot.slane %v5497, 2
      %v5542 = vrot.slane %v5498, 2
      %v5543 = vsel %vm1139, %v5541, %v5542
      %v5544 = vrot.slane %v5499, 2
      %v5545 = vrot.slane %v5500, 2
      %v5546 = vsel %vm1139, %v5544, %v5545
      %v5547 = vrot.slane %v5501, 2
      %v5548 = vrot.slane %v5502, 2
      %v5549 = vsel %vm1139, %v5547, %v5548
      %v5550 = vrot.slane %v5503, 2
      %v5551 = vrot.slane %v5504, 2
      %v5552 = vsel %vm1139, %v5550, %v5551
      %5553 = vrot.lane.b32.xlu0 %v5507, 64
      %v5554 = vpop.permute.xlu0 %5553
      %5555 = vrot.lane.b32.xlu0 %v5510, 64
      %v5556 = vpop.permute.xlu0 %5555
      %5557 = vrot.lane.b32.xlu0 %v5513, 64
      %v5558 = vpop.permute.xlu0 %5557
      %5559 = vrot.lane.b32.xlu0 %v5516, 64
      %v5560 = vpop.permute.xlu0 %5559
      %5561 = vrot.lane.b32.xlu0 %v5519, 64
      %v5562 = vpop.permute.xlu0 %5561
      %5563 = vrot.lane.b32.xlu0 %v5522, 64
      %v5564 = vpop.permute.xlu0 %5563
      %5565 = vrot.lane.b32.xlu0 %v5525, 64
      %v5566 = vpop.permute.xlu0 %5565
      %5567 = vrot.lane.b32.xlu0 %v5528, 64
      %v5568 = vpop.permute.xlu0 %5567
      %5569 = vrot.lane.b32.xlu0 %v5531, 64
      %v5570 = vpop.permute.xlu0 %5569
      %5571 = vrot.lane.b32.xlu0 %v5534, 64
      %v5572 = vpop.permute.xlu0 %5571
      %5573 = vrot.lane.b32.xlu0 %v5537, 64
      %v5574 = vpop.permute.xlu0 %5573
      %5575 = vrot.lane.b32.xlu0 %v5540, 64
      %v5576 = vpop.permute.xlu0 %5575
      %5577 = vrot.lane.b32.xlu0 %v5543, 64
      %v5578 = vpop.permute.xlu0 %5577
      %5579 = vrot.lane.b32.xlu0 %v5546, 64
      %v5580 = vpop.permute.xlu0 %5579
      %5581 = vrot.lane.b32.xlu0 %v5549, 64
      %v5582 = vpop.permute.xlu0 %5581
      %5583 = vrot.lane.b32.xlu0 %v5552, 64
      %v5584 = vpop.permute.xlu0 %5583
      %vm5601 = vcmask 589312
      %5602 = vst.msk [vmem:[#allocation5] sm:$0xff] %vm5601, %v5554
      %5603 = vst.msk [vmem:[#allocation5 + $0x8] sm:$0xff] %vm5601, %v5556
      %5604 = vst.msk [vmem:[#allocation5 + $0x10] sm:$0xff] %vm5601, %v5558
      %5605 = vst.msk [vmem:[#allocation5 + $0x18] sm:$0xff] %vm5601, %v5560
      %5606 = vst.msk [vmem:[#allocation5 + $0x20] sm:$0xff] %vm5601, %v5562
      %5607 = vst.msk [vmem:[#allocation5 + $0x28] sm:$0xff] %vm5601, %v5564
      %5608 = vst.msk [vmem:[#allocation5 + $0x30] sm:$0xff] %vm5601, %v5566
      %5609 = vst.msk [vmem:[#allocation5 + $0x38] sm:$0xff] %vm5601, %v5568
      %5610 = vst.msk [vmem:[#allocation5 + $0x40] sm:$0xff] %vm5601, %v5570
      %5611 = vst.msk [vmem:[#allocation5 + $0x48] sm:$0xff] %vm5601, %v5572
      %5612 = vst.msk [vmem:[#allocation5 + $0x50] sm:$0xff] %vm5601, %v5574
      %5613 = vst.msk [vmem:[#allocation5 + $0x58] sm:$0xff] %vm5601, %v5576
      %5614 = vst.msk [vmem:[#allocation5 + $0x60] sm:$0xff] %vm5601, %v5578
      %5615 = vst.msk [vmem:[#allocation5 + $0x68] sm:$0xff] %vm5601, %v5580
      %5616 = vst.msk [vmem:[#allocation5 + $0x70] sm:$0xff] %vm5601, %v5582
      %5617 = vst.msk [vmem:[#allocation5 + $0x78] sm:$0xff] %vm5601, %v5584
      %v5618 = vld [vmem:[#allocation5] sm:$0xff]
      %v5619 = vld [vmem:[#allocation5 + $0x8] sm:$0xff]
      %v5620 = vld [vmem:[#allocation5 + $0x10] sm:$0xff]
      %v5621 = vld [vmem:[#allocation5 + $0x18] sm:$0xff]
      %v5622 = vld [vmem:[#allocation5 + $0x20] sm:$0xff]
      %v5623 = vld [vmem:[#allocation5 + $0x28] sm:$0xff]
      %v5624 = vld [vmem:[#allocation5 + $0x30] sm:$0xff]
      %v5625 = vld [vmem:[#allocation5 + $0x38] sm:$0xff]
      %v5626 = vld [vmem:[#allocation5 + $0x40] sm:$0xff]
      %v5627 = vld [vmem:[#allocation5 + $0x48] sm:$0xff]
      %v5628 = vld [vmem:[#allocation5 + $0x50] sm:$0xff]
      %v5629 = vld [vmem:[#allocation5 + $0x58] sm:$0xff]
      %v5630 = vld [vmem:[#allocation5 + $0x60] sm:$0xff]
      %v5631 = vld [vmem:[#allocation5 + $0x68] sm:$0xff]
      %v5632 = vld [vmem:[#allocation5 + $0x70] sm:$0xff]
      %v5633 = vld [vmem:[#allocation5 + $0x78] sm:$0xff]
      %v5634 = vld [vmem:[%s3] sm:$0xf]
      %v5635 = vld [vmem:[%s3 + $0x4] sm:$0xf]
      %v5636 = vld [vmem:[%s3 + $0x8] sm:$0xf]
      %v5637 = vld [vmem:[%s3 + $0xc] sm:$0xf]
      %v5638 = vld [vmem:[%s3 + $0x10] sm:$0xf]
      %v5639 = vld [vmem:[%s3 + $0x14] sm:$0xf]
      %v5640 = vld [vmem:[%s3 + $0x18] sm:$0xf]
      %v5641 = vld [vmem:[%s3 + $0x1c] sm:$0xf]
      %v5642 = vld [vmem:[%s3 + $0x20] sm:$0xf]
      %v5643 = vld [vmem:[%s4] sm:$0x1]
      %v5645 = vlaneseq
      %v5646 = vshrl.u32 %v5645, 7
      %v5647 = vsub.s32 0, %v5646
      %v5648 = vrot.slane %v5643, %v5647
      %v5659 = vunpack.c.l.b16 %v5634
      %v5660 = vunpack.c.l.b16 %v5635
      %v5661 = vunpack.c.l.b16 %v5636
      %v5662 = vunpack.c.l.b16 %v5637
      %v5663 = vunpack.c.l.b16 %v5638
      %v5664 = vunpack.c.l.b16 %v5639
      %v5665 = vunpack.c.l.b16 %v5640
      %v5666 = vunpack.c.l.b16 %v5641
      %v5667 = vunpack.c.l.b16 %v5642
      %v5668 = vpack.c.b16 %v5660, %v5659
      %v5669 = vpack.c.b16 %v5662, %v5661
      %v5670 = vpack.c.b16 %v5664, %v5663
      %v5671 = vpack.c.b16 %v5666, %v5665
      %v5672 = vpack.c.b16 %v5667, %v5667
      %vm5677 = vcmask 588800
      %v5679 = vsel %vm5677, %v5618, 0
      %v5682 = vsel %vm5677, %v5619, 0
      %v5685 = vsel %vm5677, %v5620, 0
      %v5688 = vsel %vm5677, %v5621, 0
      %v5691 = vsel %vm5677, %v5622, 0
      %v5694 = vsel %vm5677, %v5623, 0
      %v5697 = vsel %vm5677, %v5624, 0
      %v5700 = vsel %vm5677, %v5625, 0
      %v5703 = vsel %vm5677, %v5626, 0
      %v5706 = vsel %vm5677, %v5627, 0
      %v5709 = vsel %vm5677, %v5628, 0
      %v5712 = vsel %vm5677, %v5629, 0
      %v5715 = vsel %vm5677, %v5630, 0
      %v5718 = vsel %vm5677, %v5631, 0
      %v5721 = vsel %vm5677, %v5632, 0
      %v5724 = vsel %vm5677, %v5633, 0
      %vm5726 = vcmask 1043456
      %v5728 = vsel %vm5726, %v5672, 0
      %5730 = vmatprep.subr.bf16.mxu0 0
      %5731 = vmatpush1.bf16.msra.mxu0 %v5668
      %5732 = vmatprep.subr.bf16.mxu0 0
      %5733 = vmatpush1.bf16.msra.mxu0 %v5669
      %5734 = vmatprep.subr.bf16.mxu0 0
      %5735 = vmatpush1.bf16.msra.mxu0 %v5670
      %5736 = vmatprep.subr.bf16.mxu0 0
      %5737 = vmatpush1.bf16.msra.mxu0 %v5671
      %5738 = vmatprep.subr.bf16.mxu0 0
      %5739 = vmatpush1.bf16.msra.mxu0 %v5728
      %5740 = vmatprep.subr.bf16.mxu0 0
      %5741 = vmatpush1.bf16.msra.mxu0 0
      %5742 = vmatprep.subr.bf16.mxu0 0
      %5743 = vmatpush1.bf16.msra.mxu0 0
      %5744 = vmatprep.subr.bf16.mxu0 0
      %5745 = vmatpush1.bf16.msra.mxu0 0
      %5746 = vmatprep.subr.bf16.mxu0 0
      %5747 = vmatpush1.bf16.msra.mxu0 0
      %5748 = vmatprep.subr.bf16.mxu0 0
      %5749 = vmatpush1.bf16.msra.mxu0 0
      %5750 = vmatprep.subr.bf16.mxu0 0
      %5751 = vmatpush1.bf16.msra.mxu0 0
      %5752 = vmatprep.subr.bf16.mxu0 0
      %5753 = vmatpush1.bf16.msra.mxu0 0
      %5754 = vmatprep.subr.bf16.mxu0 0
      %5755 = vmatpush1.bf16.msra.mxu0 0
      %5756 = vmatprep.subr.bf16.mxu0 0
      %5757 = vmatpush1.bf16.msra.mxu0 0
      %5758 = vmatprep.subr.bf16.mxu0 0
      %5759 = vmatpush1.bf16.msra.mxu0 0
      %5760 = vmatprep.subr.bf16.mxu0 0
      %5761 = vmatpush1.bf16.msra.mxu0 0
      %5762 = vmatprep.mubr.bf16.mxu0 0
      %5763 = vmatmul.mubr.bf16.gmra.mrb[0].mxu0 %v5679
      %v5764 = vpop.f32.mrb[0].mxu0
      %v5765 = vadd.f32 %v5648, %v5764
      %v5766 = vpop.f32.mrb[0].mxu0
      %v5767 = vpop.f32.mrb[0].mxu0
      %v5768 = vadd.f32 %v5648, %v5767
      %v5769 = vpop.f32.mrb[0].mxu0
      %5770 = vmatprep.mubr.bf16.mxu0 0
      %5771 = vmatmul.mubr.bf16.gmra.mrb[0].mxu0 %v5682
      %v5772 = vpop.f32.mrb[0].mxu0
      %v5773 = vadd.f32 %v5648, %v5772
      %v5774 = vpop.f32.mrb[0].mxu0
      %v5775 = vpop.f32.mrb[0].mxu0
      %v5776 = vadd.f32 %v5648, %v5775
      %v5777 = vpop.f32.mrb[0].mxu0
      %5778 = vmatprep.mubr.bf16.mxu0 0
      %5779 = vmatmul.mubr.bf16.gmra.mrb[0].mxu0 %v5685
      %v5780 = vpop.f32.mrb[0].mxu0
      %v5781 = vadd.f32 %v5648, %v5780
      %v5782 = vpop.f32.mrb[0].mxu0
      %v5783 = vpop.f32.mrb[0].mxu0
      %v5784 = vadd.f32 %v5648, %v5783
      %v5785 = vpop.f32.mrb[0].mxu0
      %5786 = vmatprep.mubr.bf16.mxu0 0
      %5787 = vmatmul.mubr.bf16.gmra.mrb[0].mxu0 %v5688
      %v5788 = vpop.f32.mrb[0].mxu0
      %v5789 = vadd.f32 %v5648, %v5788
      %v5790 = vpop.f32.mrb[0].mxu0
      %v5791 = vpop.f32.mrb[0].mxu0
      %v5792 = vadd.f32 %v5648, %v5791
      %v5793 = vpop.f32.mrb[0].mxu0
      %5794 = vmatprep.mubr.bf16.mxu0 0
      %5795 = vmatmul.mubr.bf16.gmra.mrb[0].mxu0 %v5691
      %v5796 = vpop.f32.mrb[0].mxu0
      %v5797 = vadd.f32 %v5648, %v5796
      %v5798 = vpop.f32.mrb[0].mxu0
      %v5799 = vpop.f32.mrb[0].mxu0
      %v5800 = vadd.f32 %v5648, %v5799
      %v5801 = vpop.f32.mrb[0].mxu0
      %5802 = vmatprep.mubr.bf16.mxu0 0
      %5803 = vmatmul.mubr.bf16.gmra.mrb[0].mxu0 %v5694
      %v5804 = vpop.f32.mrb[0].mxu0
      %v5805 = vadd.f32 %v5648, %v5804
      %v5806 = vpop.f32.mrb[0].mxu0
      %v5807 = vpop.f32.mrb[0].mxu0
      %v5808 = vadd.f32 %v5648, %v5807
      %v5809 = vpop.f32.mrb[0].mxu0
      %5810 = vmatprep.mubr.bf16.mxu0 0
      %5811 = vmatmul.mubr.bf16.gmra.mrb[0].mxu0 %v5697
      %v5812 = vpop.f32.mrb[0].mxu0
      %v5813 = vadd.f32 %v5648, %v5812
      %v5814 = vpop.f32.mrb[0].mxu0
      %v5815 = vpop.f32.mrb[0].mxu0
      %v5816 = vadd.f32 %v5648, %v5815
      %v5817 = vpop.f32.mrb[0].mxu0
      %5818 = vmatprep.mubr.bf16.mxu0 0
      %5819 = vmatmul.mubr.bf16.gmra.mrb[0].mxu0 %v5700
      %v5820 = vpop.f32.mrb[0].mxu0
      %v5821 = vadd.f32 %v5648, %v5820
      %v5822 = vpop.f32.mrb[0].mxu0
      %v5823 = vpop.f32.mrb[0].mxu0
      %v5824 = vadd.f32 %v5648, %v5823
      %v5825 = vpop.f32.mrb[0].mxu0
      %5826 = vmatprep.mubr.bf16.mxu0 0
      %5827 = vmatmul.mubr.bf16.gmra.mrb[0].mxu0 %v5703
      %v5828 = vpop.f32.mrb[0].mxu0
      %v5829 = vadd.f32 %v5648, %v5828
      %v5830 = vpop.f32.mrb[0].mxu0
      %v5831 = vpop.f32.mrb[0].mxu0
      %v5832 = vadd.f32 %v5648, %v5831
      %v5833 = vpop.f32.mrb[0].mxu0
      %5834 = vmatprep.mubr.bf16.mxu0 0
      %5835 = vmatmul.mubr.bf16.gmra.mrb[0].mxu0 %v5706
      %v5836 = vpop.f32.mrb[0].mxu0
      %v5837 = vadd.f32 %v5648, %v5836
      %v5838 = vpop.f32.mrb[0].mxu0
      %v5839 = vpop.f32.mrb[0].mxu0
      %v5840 = vadd.f32 %v5648, %v5839
      %v5841 = vpop.f32.mrb[0].mxu0
      %5842 = vmatprep.mubr.bf16.mxu0 0
      %5843 = vmatmul.mubr.bf16.gmra.mrb[0].mxu0 %v5709
      %v5844 = vpop.f32.mrb[0].mxu0
      %v5845 = vadd.f32 %v5648, %v5844
      %v5846 = vpop.f32.mrb[0].mxu0
      %v5847 = vpop.f32.mrb[0].mxu0
      %v5848 = vadd.f32 %v5648, %v5847
      %v5849 = vpop.f32.mrb[0].mxu0
      %5850 = vmatprep.mubr.bf16.mxu0 0
      %5851 = vmatmul.mubr.bf16.gmra.mrb[0].mxu0 %v5712
      %v5852 = vpop.f32.mrb[0].mxu0
      %v5853 = vadd.f32 %v5648, %v5852
      %v5854 = vpop.f32.mrb[0].mxu0
      %v5855 = vpop.f32.mrb[0].mxu0
      %v5856 = vadd.f32 %v5648, %v5855
      %v5857 = vpop.f32.mrb[0].mxu0
      %5858 = vmatprep.mubr.bf16.mxu0 0
      %5859 = vmatmul.mubr.bf16.gmra.mrb[0].mxu0 %v5715
      %v5860 = vpop.f32.mrb[0].mxu0
      %v5861 = vadd.f32 %v5648, %v5860
      %v5862 = vpop.f32.mrb[0].mxu0
      %v5863 = vpop.f32.mrb[0].mxu0
      %v5864 = vadd.f32 %v5648, %v5863
      %v5865 = vpop.f32.mrb[0].mxu0
      %5866 = vmatprep.mubr.bf16.mxu0 0
      %5867 = vmatmul.mubr.bf16.gmra.mrb[0].mxu0 %v5718
      %v5868 = vpop.f32.mrb[0].mxu0
      %v5869 = vadd.f32 %v5648, %v5868
      %v5870 = vpop.f32.mrb[0].mxu0
      %v5871 = vpop.f32.mrb[0].mxu0
      %v5872 = vadd.f32 %v5648, %v5871
      %v5873 = vpop.f32.mrb[0].mxu0
      %5874 = vmatprep.mubr.bf16.mxu0 0
      %5875 = vmatmul.mubr.bf16.gmra.mrb[0].mxu0 %v5721
      %v5876 = vpop.f32.mrb[0].mxu0
      %v5877 = vadd.f32 %v5648, %v5876
      %v5878 = vpop.f32.mrb[0].mxu0
      %v5879 = vpop.f32.mrb[0].mxu0
      %v5880 = vadd.f32 %v5648, %v5879
      %v5881 = vpop.f32.mrb[0].mxu0
      %5882 = vmatprep.mubr.bf16.mxu0 0
      %5883 = vmatmul.mubr.bf16.gmra.mrb[0].mxu0 %v5724
      %v5884 = vpop.f32.mrb[0].mxu0
      %v5885 = vadd.f32 %v5648, %v5884
      %v5886 = vpop.f32.mrb[0].mxu0
      %v5887 = vpop.f32.mrb[0].mxu0
      %v5888 = vadd.f32 %v5648, %v5887
      %v5889 = vpop.f32.mrb[0].mxu0
      %5890 = vdwg.mxu0
      %v5891 = vmax.f32 %v5765, 0.0
      %v5892 = vmax.f32 %v5768, 0.0
      %v5893 = vmax.f32 %v5773, 0.0
      %v5894 = vmax.f32 %v5776, 0.0
      %v5895 = vmax.f32 %v5781, 0.0
      %v5896 = vmax.f32 %v5784, 0.0
      %v5897 = vmax.f32 %v5789, 0.0
      %v5898 = vmax.f32 %v5792, 0.0
      %v5899 = vmax.f32 %v5797, 0.0
      %v5900 = vmax.f32 %v5800, 0.0
      %v5901 = vmax.f32 %v5805, 0.0
      %v5902 = vmax.f32 %v5808, 0.0
      %v5903 = vmax.f32 %v5813, 0.0
      %v5904 = vmax.f32 %v5816, 0.0
      %v5905 = vmax.f32 %v5821, 0.0
      %v5906 = vmax.f32 %v5824, 0.0
      %v5907 = vmax.f32 %v5829, 0.0
      %v5908 = vmax.f32 %v5832, 0.0
      %v5909 = vmax.f32 %v5837, 0.0
      %v5910 = vmax.f32 %v5840, 0.0
      %v5911 = vmax.f32 %v5845, 0.0
      %v5912 = vmax.f32 %v5848, 0.0
      %v5913 = vmax.f32 %v5853, 0.0
      %v5914 = vmax.f32 %v5856, 0.0
      %v5915 = vmax.f32 %v5861, 0.0
      %v5916 = vmax.f32 %v5864, 0.0
      %v5917 = vmax.f32 %v5869, 0.0
      %v5918 = vmax.f32 %v5872, 0.0
      %v5919 = vmax.f32 %v5877, 0.0
      %v5920 = vmax.f32 %v5880, 0.0
      %v5921 = vmax.f32 %v5885, 0.0
      %v5922 = vmax.f32 %v5888, 0.0
      %5923 = vst.msk [vmem:[%s224] sm:$0xff] %vm3512, %v5891
      %5924 = vst.msk [vmem:[%s224 + $0x8] sm:$0xff] %vm3512, %v5892
      %5925 = vst.msk [vmem:[%s224 + $0x10] sm:$0xff] %vm3512, %v5893
      %5926 = vst.msk [vmem:[%s224 + $0x18] sm:$0xff] %vm3512, %v5894
      %5927 = vst.msk [vmem:[%s224 + $0x20] sm:$0xff] %vm3512, %v5895
      %5928 = vst.msk [vmem:[%s224 + $0x28] sm:$0xff] %vm3512, %v5896
      %5929 = vst.msk [vmem:[%s224 + $0x30] sm:$0xff] %vm3512, %v5897
      %5930 = vst.msk [vmem:[%s224 + $0x38] sm:$0xff] %vm3512, %v5898
      %5931 = vst.msk [vmem:[%s224 + $0x40] sm:$0xff] %vm3512, %v5899
      %5932 = vst.msk [vmem:[%s224 + $0x48] sm:$0xff] %vm3512, %v5900
      %5933 = vst.msk [vmem:[%s224 + $0x50] sm:$0xff] %vm3512, %v5901
      %5934 = vst.msk [vmem:[%s224 + $0x58] sm:$0xff] %vm3512, %v5902
      %5935 = vst.msk [vmem:[%s224 + $0x60] sm:$0xff] %vm3512, %v5903
      %5936 = vst.msk [vmem:[%s224 + $0x68] sm:$0xff] %vm3512, %v5904
      %5937 = vst.msk [vmem:[%s224 + $0x70] sm:$0xff] %vm3512, %v5905
      %5938 = vst.msk [vmem:[%s224 + $0x78] sm:$0xff] %vm3512, %v5906
      %5939 = vst.msk [vmem:[%s224 + $0x80] sm:$0xff] %vm3512, %v5907
      %5940 = vst.msk [vmem:[%s224 + $0x88] sm:$0xff] %vm3512, %v5908
      %5941 = vst.msk [vmem:[%s224 + $0x90] sm:$0xff] %vm3512, %v5909
      %5942 = vst.msk [vmem:[%s224 + $0x98] sm:$0xff] %vm3512, %v5910
      %5943 = vst.msk [vmem:[%s224 + $0xa0] sm:$0xff] %vm3512, %v5911
      %5944 = vst.msk [vmem:[%s224 + $0xa8] sm:$0xff] %vm3512, %v5912
      %5945 = vst.msk [vmem:[%s224 + $0xb0] sm:$0xff] %vm3512, %v5913
      %5946 = vst.msk [vmem:[%s224 + $0xb8] sm:$0xff] %vm3512, %v5914
      %5947 = vst.msk [vmem:[%s224 + $0xc0] sm:$0xff] %vm3512, %v5915
      %5948 = vst.msk [vmem:[%s224 + $0xc8] sm:$0xff] %vm3512, %v5916
      %5949 = vst.msk [vmem:[%s224 + $0xd0] sm:$0xff] %vm3512, %v5917
      %5950 = vst.msk [vmem:[%s224 + $0xd8] sm:$0xff] %vm3512, %v5918
      %5951 = vst.msk [vmem:[%s224 + $0xe0] sm:$0xff] %vm3512, %v5919
      %5952 = vst.msk [vmem:[%s224 + $0xe8] sm:$0xff] %vm3512, %v5920
      %5953 = vst.msk [vmem:[%s224 + $0xf0] sm:$0xff] %vm3512, %v5921
      %5954 = vst.msk [vmem:[%s224 + $0xf8] sm:$0xff] %vm3512, %v5922
      %p5955 = scmp.lt.s32.totalorder %s16, 1
      %s5956 = scalar_select %p5955, %s16, 1
      %s5957 = smul.addr %s5956, 32
      %s5958 = smul.addr %s5957, 8
      %s5959 = scalar_lea.vmem %s5, %s5958
      // Predicated region
      $region41: #{_double_conv_impl.1} parent=39 // pred_check
        %p5960 = pneg %p144
      $region42: #{_double_conv_impl.1} parent=39 // pred_check_branch
        %5962 = sbr.rel (%p5960) target = $region44
      $region43: #{_double_conv_impl.1} parent=39 // pred_region
        _
      $region44: #{_double_conv_impl.1} parent=39 // pred_fallthru
        _
    $region40: #{_double_conv_impl.1} parent=5 // pred_fallthru
      _
    %p5963 = scmp.le.s32.totalorder 2, %s11
    // Predicated region
    $region45: #{_double_conv_impl.1} parent=5 // pred_check
      %p5964 = pneg %p5963
    $region46: #{_double_conv_impl.1} parent=5 // pred_check_branch
      %5966 = sbr.rel (%p5964) target = $region48
    $region47: #{_double_conv_impl.1} parent=5 // pred_region
      %s5967 = ssub.s32 %s11, 2
      // Predicated region
      $region49: #{_double_conv_impl.1} parent=47 // pred_check
        %p5968 = pneg %p150
      $region50: #{_double_conv_impl.1} parent=47 // pred_check_branch
        %5970 = sbr.rel (%p5968) target = $region52
      $region51: #{_double_conv_impl.1} parent=47 // pred_region
        %p5971 = scmp.lt.s32.totalorder %s17, 1
        %s5972 = scalar_select %p5971, %s17, 1
        %s5973 = smul.addr %s5972, 32
        %s5974 = smul.addr %s5973, 8
        %s5975 = scalar_lea.vmem %s5, %s5974
      $region52: #{_double_conv_impl.1} parent=47 // pred_fallthru
        _
    $region48: #{_double_conv_impl.1} parent=5 // pred_fallthru
      _
  $region6: #{_double_conv_impl.1} parent=0 // loop_footer
    %s15 = sadd.s32 1, %s11
  $region7: #{_double_conv_impl.1} parent=0 // loop_footer_branch
    %10 = sbr.rel target = $region3
  $region8: #{_double_conv_impl.1} parent=0 // loop_exit
    _

// kernel: _double_conv_impl.1
$region0: #{_double_conv_impl.1}
  #allocation0 [shape = 'u32[]', space=smem, size = 0x4, offset = 0x4, fixed_abs, tag = 'smem constant byte address 0x4 - core index']
  #allocation1 [shape = 'u32[144,128]{1,0:T(1,128)}', space=vmem, size = 0x12000, scoped, tag = 'internal scratch']
  #allocation2 [shape = 'bf16[20,20,4]{2,1,0:T(8,128)(2,1)}', space=vmem, size = 0x1e000, scoped, tag = 'scratch operand']
  #allocation3 [shape = 'bf16[20,20,8]{2,1,0:T(8,128)(2,1)}', space=vmem, size = 0x1e000, scoped, tag = 'scratch operand']
  #allocation4 [shape = 'bf16[16,16,36]{2,1,0:T(16,128)(2,1)}', space=vmem, size = 0x10000, scoped, tag = 'scratch operand']
  #allocation5 [shape = 'bf16[16,16,72]{2,1,0:T(16,128)(2,1)}', space=vmem, size = 0x10000, scoped, tag = 'scratch operand']
  %s0 = inlined_call_operand.vmem [shape: bf16[2,16,16,4], index: 0, kind: input, shape index: {}]
  %s1 = inlined_call_operand.vmem [shape: bf16[36,8], index: 1, kind: input, shape index: {}]
  %s2 = inlined_call_operand.vmem [shape: f32[1,8], index: 2, kind: input, shape index: {}]
  %s3 = inlined_call_operand.vmem [shape: bf16[72,8], index: 3, kind: input, shape index: {}]
  %s4 = inlined_call_operand.vmem [shape: f32[1,8], index: 4, kind: input, shape index: {}]
  %s5 = inlined_call_operand.vmem [shape: f32[2,16,16,8], index: 5, kind: output, shape index: {}]
  %s6 = sld [smem:[#allocation0]]
  $region53: #{_double_conv_impl.1} parent=0
    _
  %s8 = ssub.s32 1, %s6
  %s9 = scalar_select 0, %s8, %s6
  loop: start=0, step=1, limit=4
  $region2: #{_double_conv_impl.1} parent=0 // loop_pre_header
    _
  $region3: #{_double_conv_impl.1} parent=0 // loop_header
    %s11 = sphi 0, %s15
    %p12 = scmp.ge.s32.totalorder %s11, 4
    %s21 = sphi 0, %s23
    %s24 = sphi 0, %s21
    %s25 = sphi 0, %s24
    %s41 = sphi 0, %s25
    %s45 = sphi 0, %s45
    %s47 = sphi 0, %s45
    %s48 = sphi 0, %s47
    %s62 = sphi 0, %s48
    %s66 = sphi 0, %s66
    %s68 = sphi 0, %s66
    %s69 = sphi 0, %s68
    %s83 = sphi 0, %s69
    %s87 = sphi 0, %s87
    %s89 = sphi 0, %s87
    %s90 = sphi 0, %s89
    %s104 = sphi 0, %s90
    %s108 = sphi 0, %s108
    %s110 = sphi 0, %s108
    %s111 = sphi 0, %s110
    %s125 = sphi 0, %s111
    %s131 = sphi 0, %s133
    %s134 = sphi 0, %s131
    %s135 = sphi 0, %s134
    %s151 = sphi 0, %s135
  $region4: #{_double_conv_impl.1} parent=0 // loop_header_branch
    %14 = sbr.rel (%p12) target = $region8
  $region5: #{_double_conv_impl.1} parent=0 // loop_body
    %s16 = ssub.s32 %s11, 1
    %s17 = ssub.s32 %s11, 2
    %s18 = sadd.s32 %s11, 1
    %s19 = ssub.s32 %s11, %s18
    %p20 = scmp.eq.s32.totalorder %s19, 0
    %s22 = sadd.s32 %s21, 1
    %s23 = scalar_select %p20, %s21, %s22
    %p26 = pneg %p20
    %p27 = scmp.eq.s32.totalorder %s11, 1
    %p28 = por %p26, %p27
    %p29 = scmp.ne.s32.totalorder %s21, %s24
    %p30 = scmp.eq.s32.totalorder %s11, 0
    %p31 = por %p29, %p30
    %p32 = scmp.ne.s32.totalorder %s21, %s24
    %p33 = scmp.eq.s32.totalorder %s16, 1
    %p34 = por %p32, %p33
    %p35 = scmp.ne.s32.totalorder %s24, %s25
    %p36 = scmp.eq.s32.totalorder %s16, 0
    %p37 = por %p35, %p36
    %p38 = scmp.ne.s32.totalorder %s24, %s25
    %p39 = scmp.eq.s32.totalorder %s17, 1
    %p40 = por %p38, %p39
    %p42 = scmp.ne.s32.totalorder %s25, %s41
    %p43 = scmp.eq.s32.totalorder %s17, 0
    %p44 = por %p42, %p43
    %s46 = sadd.s32 %s45, 1
    %p49 = scmp.eq.s32.totalorder %s11, 1
    %p50 = scmp.ne.s32.totalorder %s45, %s47
    %p51 = scmp.eq.s32.totalorder %s11, 0
    %p52 = por %p50, %p51
    %p53 = scmp.ne.s32.totalorder %s45, %s47
    %p54 = scmp.eq.s32.totalorder %s16, 1
    %p55 = por %p53, %p54
    %p56 = scmp.ne.s32.totalorder %s47, %s48
    %p57 = scmp.eq.s32.totalorder %s16, 0
    %p58 = por %p56, %p57
    %p59 = scmp.ne.s32.totalorder %s47, %s48
    %p60 = scmp.eq.s32.totalorder %s17, 1
    %p61 = por %p59, %p60
    %p63 = scmp.ne.s32.totalorder %s48, %s62
    %p64 = scmp.eq.s32.totalorder %s17, 0
    %p65 = por %p63, %p64
    %s67 = sadd.s32 %s66, 1
    %p70 = scmp.eq.s32.totalorder %s11, 1
    %p71 = scmp.ne.s32.totalorder %s66, %s68
    %p72 = scmp.eq.s32.totalorder %s11, 0
    %p73 = por %p71, %p72
    %p74 = scmp.ne.s32.totalorder %s66, %s68
    %p75 = scmp.eq.s32.totalorder %s16, 1
    %p76 = por %p74, %p75
    %p77 = scmp.ne.s32.totalorder %s68, %s69
    %p78 = scmp.eq.s32.totalorder %s16, 0
    %p79 = por %p77, %p78
    %p80 = scmp.ne.s32.totalorder %s68, %s69
    %p81 = scmp.eq.s32.totalorder %s17, 1
    %p82 = por %p80, %p81
    %p84 = scmp.ne.s32.totalorder %s69, %s83
    %p85 = scmp.eq.s32.totalorder %s17, 0
    %p86 = por %p84, %p85
    %s88 = sadd.s32 %s87, 1
    %p91 = scmp.eq.s32.totalorder %s11, 1
    %p92 = scmp.ne.s32.totalorder %s87, %s89
    %p93 = scmp.eq.s32.totalorder %s11, 0
    %p94 = por %p92, %p93
    %p95 = scmp.ne.s32.totalorder %s87, %s89
    %p96 = scmp.eq.s32.totalorder %s16, 1
    %p97 = por %p95, %p96
    %p98 = scmp.ne.s32.totalorder %s89, %s90
    %p99 = scmp.eq.s32.totalorder %s16, 0
    %p100 = por %p98, %p99
    %p101 = scmp.ne.s32.totalorder %s89, %s90
    %p102 = scmp.eq.s32.totalorder %s17, 1
    %p103 = por %p101, %p102
    %p105 = scmp.ne.s32.totalorder %s90, %s104
    %p106 = scmp.eq.s32.totalorder %s17, 0
    %p107 = por %p105, %p106
    %s109 = sadd.s32 %s108, 1
    %p112 = scmp.eq.s32.totalorder %s11, 1
    %p113 = scmp.ne.s32.totalorder %s108, %s110
    %p114 = scmp.eq.s32.totalorder %s11, 0
    %p115 = por %p113, %p114
    %p116 = scmp.ne.s32.totalorder %s108, %s110
    %p117 = scmp.eq.s32.totalorder %s16, 1
    %p118 = por %p116, %p117
    %p119 = scmp.ne.s32.totalorder %s110, %s111
    %p120 = scmp.eq.s32.totalorder %s16, 0
    %p121 = por %p119, %p120
    %p122 = scmp.ne.s32.totalorder %s110, %s111
    %p123 = scmp.eq.s32.totalorder %s17, 1
    %p124 = por %p122, %p123
    %p126 = scmp.ne.s32.totalorder %s111, %s125
    %p127 = scmp.eq.s32.totalorder %s17, 0
    %p128 = por %p126, %p127
    %s129 = ssub.s32 %s11, %s18
    %p130 = scmp.eq.s32.totalorder %s129, 0
    %s132 = sadd.s32 %s131, 1
    %s133 = scalar_select %p130, %s131, %s132
    %p136 = pneg %p130
    %p137 = scmp.eq.s32.totalorder %s11, 1
    %p138 = por %p136, %p137
    %p139 = scmp.ne.s32.totalorder %s131, %s134
    %p140 = scmp.eq.s32.totalorder %s11, 0
    %p141 = por %p139, %p140
    %p142 = scmp.ne.s32.totalorder %s131, %s134
    %p143 = scmp.eq.s32.totalorder %s16, 1
    %p144 = por %p142, %p143
    %p145 = scmp.ne.s32.totalorder %s134, %s135
    %p146 = scmp.eq.s32.totalorder %s16, 0
    %p147 = por %p145, %p146
    %p148 = scmp.ne.s32.totalorder %s134, %s135
    %p149 = scmp.eq.s32.totalorder %s17, 1
    %p150 = por %p148, %p149
    %p152 = scmp.ne.s32.totalorder %s135, %s151
    %p153 = scmp.eq.s32.totalorder %s17, 0
    %p154 = por %p152, %p153
    %p155 = scmp.le.s32.totalorder 1, %s11
    %p156 = scmp.lt.s32.totalorder %s11, 3
    %p157 = pnand %p155, %p156
    %p158 = pneg %p157
    // Predicated region
    $region9: #{_double_conv_impl.1} parent=5 // pred_check
      _
    $region10: #{_double_conv_impl.1} parent=5 // pred_check_branch
      %160 = sbr.rel (%p157) target = $region12
    $region11: #{_double_conv_impl.1} parent=5 // pred_region
      %s161 = ssub.s32 %s11, 1
      // Predicated region
      $region13: #{_double_conv_impl.1} parent=11 // pred_check
        %p162 = pneg %p58
      $region14: #{_double_conv_impl.1} parent=11 // pred_check_branch
        %164 = sbr.rel (%p162) target = $region16
      $region15: #{_double_conv_impl.1} parent=11 // pred_region
        _
      $region16: #{_double_conv_impl.1} parent=11 // pred_fallthru
        _
      // Predicated region
      $region17: #{_double_conv_impl.1} parent=11 // pred_check
        %p165 = pneg %p79
      $region18: #{_double_conv_impl.1} parent=11 // pred_check_branch
        %167 = sbr.rel (%p165) target = $region20
      $region19: #{_double_conv_impl.1} parent=11 // pred_region
        _
      $region20: #{_double_conv_impl.1} parent=11 // pred_fallthru
        _
      // Predicated region
      $region21: #{_double_conv_impl.1} parent=11 // pred_check
        %p168 = pneg %p100
      $region22: #{_double_conv_impl.1} parent=11 // pred_check_branch
        %170 = sbr.rel (%p168) target = $region24
      $region23: #{_double_conv_impl.1} parent=11 // pred_region
        _
      $region24: #{_double_conv_impl.1} parent=11 // pred_fallthru
        _
      // Predicated region
      $region25: #{_double_conv_impl.1} parent=11 // pred_check
        %p171 = pneg %p121
      $region26: #{_double_conv_impl.1} parent=11 // pred_check_branch
        %173 = sbr.rel (%p171) target = $region28
      $region27: #{_double_conv_impl.1} parent=11 // pred_region
        _
      $region28: #{_double_conv_impl.1} parent=11 // pred_fallthru
        _
    $region12: #{_double_conv_impl.1} parent=5 // pred_fallthru
      _
    %p174 = scmp.lt.s32.totalorder %s11, 2
    // Predicated region
    $region29: #{_double_conv_impl.1} parent=5 // pred_check
      %p175 = pneg %p174
    $region30: #{_double_conv_impl.1} parent=5 // pred_check_branch
      %177 = sbr.rel (%p175) target = $region32
    $region31: #{_double_conv_impl.1} parent=5 // pred_region
      // Predicated region
      $region33: #{_double_conv_impl.1} parent=31 // pred_check
        %p178 = pneg %p31
      $region34: #{_double_conv_impl.1} parent=31 // pred_check_branch
        %180 = sbr.rel (%p178) target = $region36
      $region35: #{_double_conv_impl.1} parent=31 // pred_region
        %p181 = scmp.lt.s32.totalorder %s11, 1
        %s182 = scalar_select %p181, %s11, 1
        %s183 = smul.addr %s182, 32
        %s184 = smul.addr %s183, 4
        %s185 = scalar_lea.vmem %s0, %s184
      $region36: #{_double_conv_impl.1} parent=31 // pred_fallthru
        _
    $region32: #{_double_conv_impl.1} parent=5 // pred_fallthru
      _
    %p186 = scmp.le.s32.totalorder 1, %s11
    %p187 = scmp.lt.s32.totalorder %s11, 3
    %p188 = pnand %p186, %p187
    %p189 = pneg %p188
    // Predicated region
    $region37: #{_double_conv_impl.1} parent=5 // pred_check
      _
    $region38: #{_double_conv_impl.1} parent=5 // pred_check_branch
      %191 = sbr.rel (%p188) target = $region40
    $region39: #{_double_conv_impl.1} parent=5 // pred_region
      %s192 = ssub.s32 %s11, 1
      %p193 = scmp.lt.s32.totalorder %s16, 1
      %s194 = scalar_select %p193, %s16, 1
      %s195 = smul.addr %s194, 32
      %s196 = smul.addr %s195, 4
      %s197 = scalar_lea.vmem %s0, %s196
      %p198 = pneg %p37
      %p199 = pneg %p34
      %p200 = pneg %p58
      %p201 = pneg %p55
      %p202 = pneg %p79
      %p203 = pneg %p76
      %p204 = pneg %p100
      %p205 = pneg %p97
      %p206 = pneg %p121
      %p207 = pneg %p118
      %p208 = pneg %p147
      %p209 = pneg %p144
      %p210 = scmp.lt.s32.totalorder %s16, 1
      %s211 = scalar_select %p210, %s16, 1
      %s212 = smul.addr %s211, 32
      %s213 = smul.addr %s212, 8
      %s214 = scalar_lea.vmem %s5, %s213
      %p215 = scmp.lt.s32.totalorder %s16, 1
      %s216 = scalar_select %p215, %s16, 1
      %s217 = smul.addr %s216, 32
      %s218 = smul.addr %s217, 4
      %s219 = scalar_lea.vmem %s0, %s218
      %p220 = scmp.lt.s32.totalorder %s16, 1
      %s221 = scalar_select %p220, %s16, 1
      %s222 = smul.addr %s221, 32
      %s223 = smul.addr %s222, 8
      %s224 = scalar_lea.vmem %s5, %s223
      %vm226 = vcmask 27648
      %227 = vst.msk [vmem:[#allocation2] sm:$0xf] %vm226, 0
      %228 = vst.msk [vmem:[#allocation2 + $0x4] sm:$0xf] %vm226, 0
      %vm229 = vcmask 25600
      %230 = vst.msk [vmem:[#allocation2 + $0x8] sm:$0x3] %vm229, 0
      %231 = vst.msk [vmem:[#allocation2 + $0xc] sm:$0xf] %vm226, 0
      %232 = vst.msk [vmem:[#allocation2 + $0x10] sm:$0xf] %vm226, 0
      %233 = vst.msk [vmem:[#allocation2 + $0x14] sm:$0x3] %vm229, 0
      %s234 = scalar_lea.vmem [#allocation2], 216
      %235 = vst.msk [vmem:[%s234] sm:$0xf] %vm226, 0
      %236 = vst.msk [vmem:[%s234 + $0x4] sm:$0xf] %vm226, 0
      %237 = vst.msk [vmem:[%s234 + $0x8] sm:$0x3] %vm229, 0
      %238 = vst.msk [vmem:[%s234 + $0xc] sm:$0xf] %vm226, 0
      %239 = vst.msk [vmem:[%s234 + $0x10] sm:$0xf] %vm226, 0
      %240 = vst.msk [vmem:[%s234 + $0x14] sm:$0x3] %vm229, 0
      %vm241 = vcmask 24576
      %242 = vst.msk [vmem:[#allocation2] sm:$0x1] %vm241, 0
      %243 = vst.msk [vmem:[#allocation2 + $0xc] sm:$0x1] %vm241, 0
      %244 = vst.msk [vmem:[#allocation2 + $0x18] sm:$0x1] %vm241, 0
      %245 = vst.msk [vmem:[#allocation2 + $0x24] sm:$0x1] %vm241, 0
      %246 = vst.msk [vmem:[#allocation2 + $0x30] sm:$0x1] %vm241, 0
      %247 = vst.msk [vmem:[#allocation2 + $0x3c] sm:$0x1] %vm241, 0
      %248 = vst.msk [vmem:[#allocation2 + $0x48] sm:$0x1] %vm241, 0
      %249 = vst.msk [vmem:[#allocation2 + $0x54] sm:$0x1] %vm241, 0
      %250 = vst.msk [vmem:[#allocation2 + $0x60] sm:$0x1] %vm241, 0
      %251 = vst.msk [vmem:[#allocation2 + $0x6c] sm:$0x1] %vm241, 0
      %252 = vst.msk [vmem:[#allocation2 + $0x78] sm:$0x1] %vm241, 0
      %253 = vst.msk [vmem:[#allocation2 + $0x84] sm:$0x1] %vm241, 0
      %254 = vst.msk [vmem:[#allocation2 + $0x90] sm:$0x1] %vm241, 0
      %255 = vst.msk [vmem:[#allocation2 + $0x9c] sm:$0x1] %vm241, 0
      %256 = vst.msk [vmem:[#allocation2 + $0xa8] sm:$0x1] %vm241, 0
      %257 = vst.msk [vmem:[#allocation2 + $0xb4] sm:$0x1] %vm241, 0
      %258 = vst.msk [vmem:[#allocation2 + $0xc0] sm:$0x1] %vm241, 0
      %259 = vst.msk [vmem:[#allocation2 + $0xcc] sm:$0x1] %vm241, 0
      %260 = vst.msk [vmem:[#allocation2 + $0xd8] sm:$0x1] %vm241, 0
      %261 = vst.msk [vmem:[#allocation2 + $0xe4] sm:$0x1] %vm241, 0
      %vm262 = vcmask 25601
      %263 = vst.msk [vmem:[#allocation2 + $0x8] sm:$0x2] %vm262, 0
      %264 = vst.msk [vmem:[#allocation2 + $0x14] sm:$0x2] %vm262, 0
      %265 = vst.msk [vmem:[#allocation2 + $0x20] sm:$0x2] %vm262, 0
      %266 = vst.msk [vmem:[#allocation2 + $0x2c] sm:$0x2] %vm262, 0
      %267 = vst.msk [vmem:[#allocation2 + $0x38] sm:$0x2] %vm262, 0
      %268 = vst.msk [vmem:[#allocation2 + $0x44] sm:$0x2] %vm262, 0
      %269 = vst.msk [vmem:[#allocation2 + $0x50] sm:$0x2] %vm262, 0
      %270 = vst.msk [vmem:[#allocation2 + $0x5c] sm:$0x2] %vm262, 0
      %271 = vst.msk [vmem:[#allocation2 + $0x68] sm:$0x2] %vm262, 0
      %272 = vst.msk [vmem:[#allocation2 + $0x74] sm:$0x2] %vm262, 0
      %273 = vst.msk [vmem:[#allocation2 + $0x80] sm:$0x2] %vm262, 0
      %274 = vst.msk [vmem:[#allocation2 + $0x8c] sm:$0x2] %vm262, 0
      %275 = vst.msk [vmem:[#allocation2 + $0x98] sm:$0x2] %vm262, 0
      %276 = vst.msk [vmem:[#allocation2 + $0xa4] sm:$0x2] %vm262, 0
      %277 = vst.msk [vmem:[#allocation2 + $0xb0] sm:$0x2] %vm262, 0
      %278 = vst.msk [vmem:[#allocation2 + $0xbc] sm:$0x2] %vm262, 0
      %279 = vst.msk [vmem:[#allocation2 + $0xc8] sm:$0x2] %vm262, 0
      %280 = vst.msk [vmem:[#allocation2 + $0xd4] sm:$0x2] %vm262, 0
      %281 = vst.msk [vmem:[#allocation2 + $0xe0] sm:$0x2] %vm262, 0
      %282 = vst.msk [vmem:[#allocation2 + $0xec] sm:$0x2] %vm262, 0
      %v283 = vld [vmem:[%s219] sm:$0xf]
      %v284 = vld [vmem:[%s219 + $0x4] sm:$0xf]
      %v285 = vld [vmem:[%s219 + $0x8] sm:$0xf]
      %v286 = vld [vmem:[%s219 + $0xc] sm:$0xf]
      %v287 = vld [vmem:[%s219 + $0x10] sm:$0xf]
      %v288 = vld [vmem:[%s219 + $0x14] sm:$0xf]
      %v289 = vld [vmem:[%s219 + $0x18] sm:$0xf]
      %v290 = vld [vmem:[%s219 + $0x1c] sm:$0xf]
      %v291 = vld [vmem:[%s219 + $0x20] sm:$0xf]
      %v292 = vld [vmem:[%s219 + $0x24] sm:$0xf]
      %v293 = vld [vmem:[%s219 + $0x28] sm:$0xf]
      %v294 = vld [vmem:[%s219 + $0x2c] sm:$0xf]
      %v295 = vld [vmem:[%s219 + $0x30] sm:$0xf]
      %v296 = vld [vmem:[%s219 + $0x34] sm:$0xf]
      %v297 = vld [vmem:[%s219 + $0x38] sm:$0xf]
      %v298 = vld [vmem:[%s219 + $0x3c] sm:$0xf]
      %v299 = vld [vmem:[%s219 + $0x40] sm:$0xf]
      %v300 = vld [vmem:[%s219 + $0x44] sm:$0xf]
      %v301 = vld [vmem:[%s219 + $0x48] sm:$0xf]
      %v302 = vld [vmem:[%s219 + $0x4c] sm:$0xf]
      %v303 = vld [vmem:[%s219 + $0x50] sm:$0xf]
      %v304 = vld [vmem:[%s219 + $0x54] sm:$0xf]
      %v305 = vld [vmem:[%s219 + $0x58] sm:$0xf]
      %v306 = vld [vmem:[%s219 + $0x5c] sm:$0xf]
      %v307 = vld [vmem:[%s219 + $0x60] sm:$0xf]
      %v308 = vld [vmem:[%s219 + $0x64] sm:$0xf]
      %v309 = vld [vmem:[%s219 + $0x68] sm:$0xf]
      %v310 = vld [vmem:[%s219 + $0x6c] sm:$0xf]
      %v311 = vld [vmem:[%s219 + $0x70] sm:$0xf]
      %v312 = vld [vmem:[%s219 + $0x74] sm:$0xf]
      %v313 = vld [vmem:[%s219 + $0x78] sm:$0xf]
      %v314 = vld [vmem:[%s219 + $0x7c] sm:$0xf]
      %vm347 = vcmask 1040384
      %vm348 = vcmask 1044484
      %vm349 = vmor %vm347, %vm348
      %v350 = vrot.slane %v283, 7
      %v351 = vrot.slane %v350, 4
      %v352 = vrot.slane %v284, 7
      %v353 = vsel %vm349, %v351, %v352
      %v354 = vrot.slane %v352, 4
      %v355 = vrot.slane %v285, 7
      %v356 = vrot.slane %v355, 4
      %v357 = vrot.slane %v286, 7
      %v358 = vsel %vm349, %v356, %v357
      %v359 = vrot.slane %v357, 4
      %v360 = vrot.slane %v287, 7
      %v361 = vrot.slane %v360, 4
      %v362 = vrot.slane %v288, 7
      %v363 = vsel %vm349, %v361, %v362
      %v364 = vrot.slane %v362, 4
      %v365 = vrot.slane %v289, 7
      %v366 = vrot.slane %v365, 4
      %v367 = vrot.slane %v290, 7
      %v368 = vsel %vm349, %v366, %v367
      %v369 = vrot.slane %v367, 4
      %v370 = vrot.slane %v291, 7
      %v371 = vrot.slane %v370, 4
      %v372 = vrot.slane %v292, 7
      %v373 = vsel %vm349, %v371, %v372
      %v374 = vrot.slane %v372, 4
      %v375 = vrot.slane %v293, 7
      %v376 = vrot.slane %v375, 4
      %v377 = vrot.slane %v294, 7
      %v378 = vsel %vm349, %v376, %v377
      %v379 = vrot.slane %v377, 4
      %v380 = vrot.slane %v295, 7
      %v381 = vrot.slane %v380, 4
      %v382 = vrot.slane %v296, 7
      %v383 = vsel %vm349, %v381, %v382
      %v384 = vrot.slane %v382, 4
      %v385 = vrot.slane %v297, 7
      %v386 = vrot.slane %v385, 4
      %v387 = vrot.slane %v298, 7
      %v388 = vsel %vm349, %v386, %v387
      %v389 = vrot.slane %v387, 4
      %v390 = vrot.slane %v299, 7
      %v391 = vrot.slane %v390, 4
      %v392 = vrot.slane %v300, 7
      %v393 = vsel %vm349, %v391, %v392
      %v394 = vrot.slane %v392, 4
      %v395 = vrot.slane %v301, 7
      %v396 = vrot.slane %v395, 4
      %v397 = vrot.slane %v302, 7
      %v398 = vsel %vm349, %v396, %v397
      %v399 = vrot.slane %v397, 4
      %v400 = vrot.slane %v303, 7
      %v401 = vrot.slane %v400, 4
      %v402 = vrot.slane %v304, 7
      %v403 = vsel %vm349, %v401, %v402
      %v404 = vrot.slane %v402, 4
      %v405 = vrot.slane %v305, 7
      %v406 = vrot.slane %v405, 4
      %v407 = vrot.slane %v306, 7
      %v408 = vsel %vm349, %v406, %v407
      %v409 = vrot.slane %v407, 4
      %v410 = vrot.slane %v307, 7
      %v411 = vrot.slane %v410, 4
      %v412 = vrot.slane %v308, 7
      %v413 = vsel %vm349, %v411, %v412
      %v414 = vrot.slane %v412, 4
      %v415 = vrot.slane %v309, 7
      %v416 = vrot.slane %v415, 4
      %v417 = vrot.slane %v310, 7
      %v418 = vsel %vm349, %v416, %v417
      %v419 = vrot.slane %v417, 4
      %v420 = vrot.slane %v311, 7
      %v421 = vrot.slane %v420, 4
      %v422 = vrot.slane %v312, 7
      %v423 = vsel %vm349, %v421, %v422
      %v424 = vrot.slane %v422, 4
      %v425 = vrot.slane %v313, 7
      %v426 = vrot.slane %v425, 4
      %v427 = vrot.slane %v314, 7
      %v428 = vsel %vm349, %v426, %v427
      %v429 = vrot.slane %v427, 4
      %s478 = scalar_lea.vmem [#allocation2], 24
      %vm479 = vcmask 27649
      %480 = vst.msk [vmem:[%s478] sm:$0xe] %vm479, %v350
      %481 = vst.msk [vmem:[%s478 + $0x4] sm:$0xf] %vm226, %v353
      %482 = vst.msk [vmem:[%s478 + $0x8] sm:$0x1] %vm241, %v354
      %483 = vst.msk [vmem:[%s478 + $0xc] sm:$0xe] %vm479, %v355
      %484 = vst.msk [vmem:[%s478 + $0x10] sm:$0xf] %vm226, %v358
      %485 = vst.msk [vmem:[%s478 + $0x14] sm:$0x1] %vm241, %v359
      %486 = vst.msk [vmem:[%s478 + $0x18] sm:$0xe] %vm479, %v360
      %487 = vst.msk [vmem:[%s478 + $0x1c] sm:$0xf] %vm226, %v363
      %488 = vst.msk [vmem:[%s478 + $0x20] sm:$0x1] %vm241, %v364
      %489 = vst.msk [vmem:[%s478 + $0x24] sm:$0xe] %vm479, %v365
      %490 = vst.msk [vmem:[%s478 + $0x28] sm:$0xf] %vm226, %v368
      %491 = vst.msk [vmem:[%s478 + $0x2c] sm:$0x1] %vm241, %v369
      %492 = vst.msk [vmem:[%s478 + $0x30] sm:$0xe] %vm479, %v370
      %493 = vst.msk [vmem:[%s478 + $0x34] sm:$0xf] %vm226, %v373
      %494 = vst.msk [vmem:[%s478 + $0x38] sm:$0x1] %vm241, %v374
      %495 = vst.msk [vmem:[%s478 + $0x3c] sm:$0xe] %vm479, %v375
      %496 = vst.msk [vmem:[%s478 + $0x40] sm:$0xf] %vm226, %v378
      %497 = vst.msk [vmem:[%s478 + $0x44] sm:$0x1] %vm241, %v379
      %498 = vst.msk [vmem:[%s478 + $0x48] sm:$0xe] %vm479, %v380
      %499 = vst.msk [vmem:[%s478 + $0x4c] sm:$0xf] %vm226, %v383
      %500 = vst.msk [vmem:[%s478 + $0x50] sm:$0x1] %vm241, %v384
      %501 = vst.msk [vmem:[%s478 + $0x54] sm:$0xe] %vm479, %v385
      %502 = vst.msk [vmem:[%s478 + $0x58] sm:$0xf] %vm226, %v388
      %503 = vst.msk [vmem:[%s478 + $0x5c] sm:$0x1] %vm241, %v389
      %504 = vst.msk [vmem:[%s478 + $0x60] sm:$0xe] %vm479, %v390
      %505 = vst.msk [vmem:[%s478 + $0x64] sm:$0xf] %vm226, %v393
      %506 = vst.msk [vmem:[%s478 + $0x68] sm:$0x1] %vm241, %v394
      %507 = vst.msk [vmem:[%s478 + $0x6c] sm:$0xe] %vm479, %v395
      %508 = vst.msk [vmem:[%s478 + $0x70] sm:$0xf] %vm226, %v398
      %509 = vst.msk [vmem:[%s478 + $0x74] sm:$0x1] %vm241, %v399
      %510 = vst.msk [vmem:[%s478 + $0x78] sm:$0xe] %vm479, %v400
      %511 = vst.msk [vmem:[%s478 + $0x7c] sm:$0xf] %vm226, %v403
      %512 = vst.msk [vmem:[%s478 + $0x80] sm:$0x1] %vm241, %v404
      %513 = vst.msk [vmem:[%s478 + $0x84] sm:$0xe] %vm479, %v405
      %514 = vst.msk [vmem:[%s478 + $0x88] sm:$0xf] %vm226, %v408
      %515 = vst.msk [vmem:[%s478 + $0x8c] sm:$0x1] %vm241, %v409
      %516 = vst.msk [vmem:[%s478 + $0x90] sm:$0xe] %vm479, %v410
      %517 = vst.msk [vmem:[%s478 + $0x94] sm:$0xf] %vm226, %v413
      %518 = vst.msk [vmem:[%s478 + $0x98] sm:$0x1] %vm241, %v414
      %519 = vst.msk [vmem:[%s478 + $0x9c] sm:$0xe] %vm479, %v415
      %520 = vst.msk [vmem:[%s478 + $0xa0] sm:$0xf] %vm226, %v418
      %521 = vst.msk [vmem:[%s478 + $0xa4] sm:$0x1] %vm241, %v419
      %522 = vst.msk [vmem:[%s478 + $0xa8] sm:$0xe] %vm479, %v420
      %523 = vst.msk [vmem:[%s478 + $0xac] sm:$0xf] %vm226, %v423
      %524 = vst.msk [vmem:[%s478 + $0xb0] sm:$0x1] %vm241, %v424
      %525 = vst.msk [vmem:[%s478 + $0xb4] sm:$0xe] %vm479, %v425
      %526 = vst.msk [vmem:[%s478 + $0xb8] sm:$0xf] %vm226, %v428
      %527 = vst.msk [vmem:[%s478 + $0xbc] sm:$0x1] %vm241, %v429
      %v528 = vld [vmem:[#allocation2] sm:$0xf]
      %v529 = vld [vmem:[#allocation2 + $0x4] sm:$0xf]
      %v530 = vld [vmem:[#allocation2 + $0xc] sm:$0xf]
      %v531 = vld [vmem:[#allocation2 + $0x10] sm:$0xf]
      %v532 = vld [vmem:[#allocation2 + $0x18] sm:$0xf]
      %v533 = vld [vmem:[#allocation2 + $0x1c] sm:$0xf]
      %v534 = vld [vmem:[#allocation2 + $0x24] sm:$0xf]
      %v535 = vld [vmem:[#allocation2 + $0x28] sm:$0xf]
      %v536 = vld [vmem:[#allocation2 + $0x30] sm:$0xf]
      %v537 = vld [vmem:[#allocation2 + $0x34] sm:$0xf]
      %v538 = vld [vmem:[#allocation2 + $0x3c] sm:$0xf]
      %v539 = vld [vmem:[#allocation2 + $0x40] sm:$0xf]
      %v540 = vld [vmem:[#allocation2 + $0x48] sm:$0xf]
      %v541 = vld [vmem:[#allocation2 + $0x4c] sm:$0xf]
      %v542 = vld [vmem:[#allocation2 + $0x54] sm:$0xf]
      %v543 = vld [vmem:[#allocation2 + $0x58] sm:$0xf]
      %v544 = vld [vmem:[#allocation2 + $0x60] sm:$0xf]
      %v545 = vld [vmem:[#allocation2 + $0x64] sm:$0xf]
      %v546 = vld [vmem:[#allocation2 + $0x6c] sm:$0xf]
      %v547 = vld [vmem:[#allocation2 + $0x70] sm:$0xf]
      %v548 = vld [vmem:[#allocation2 + $0x78] sm:$0xf]
      %v549 = vld [vmem:[#allocation2 + $0x7c] sm:$0xf]
      %v550 = vld [vmem:[#allocation2 + $0x84] sm:$0xf]
      %v551 = vld [vmem:[#allocation2 + $0x88] sm:$0xf]
      %v552 = vld [vmem:[#allocation2 + $0x90] sm:$0xf]
      %v553 = vld [vmem:[#allocation2 + $0x94] sm:$0xf]
      %v554 = vld [vmem:[#allocation2 + $0x9c] sm:$0xf]
      %v555 = vld [vmem:[#allocation2 + $0xa0] sm:$0xf]
      %v556 = vld [vmem:[#allocation2 + $0xa8] sm:$0xf]
      %v557 = vld [vmem:[#allocation2 + $0xac] sm:$0xf]
      %v558 = vld [vmem:[#allocation2 + $0xb4] sm:$0xf]
      %v559 = vld [vmem:[#allocation2 + $0xb8] sm:$0xf]
      %v592 = vunpack.c.l.b16 %v528
      %v593 = vunpack.c.l.b16 %v529
      %v594 = vunpack.c.l.b16 %v530
      %v595 = vunpack.c.l.b16 %v531
      %v596 = vunpack.c.l.b16 %v532
      %v597 = vunpack.c.l.b16 %v533
      %v598 = vunpack.c.l.b16 %v534
      %v599 = vunpack.c.l.b16 %v535
      %v600 = vunpack.c.l.b16 %v536
      %v601 = vunpack.c.l.b16 %v537
      %v602 = vunpack.c.l.b16 %v538
      %v603 = vunpack.c.l.b16 %v539
      %v604 = vunpack.c.l.b16 %v540
      %v605 = vunpack.c.l.b16 %v541
      %v606 = vunpack.c.l.b16 %v542
      %v607 = vunpack.c.l.b16 %v543
      %v608 = vunpack.c.l.b16 %v544
      %v609 = vunpack.c.l.b16 %v545
      %v610 = vunpack.c.l.b16 %v546
      %v611 = vunpack.c.l.b16 %v547
      %v612 = vunpack.c.l.b16 %v548
      %v613 = vunpack.c.l.b16 %v549
      %v614 = vunpack.c.l.b16 %v550
      %v615 = vunpack.c.l.b16 %v551
      %v616 = vunpack.c.l.b16 %v552
      %v617 = vunpack.c.l.b16 %v553
      %v618 = vunpack.c.l.b16 %v554
      %v619 = vunpack.c.l.b16 %v555
      %v620 = vunpack.c.l.b16 %v556
      %v621 = vunpack.c.l.b16 %v557
      %v622 = vunpack.c.l.b16 %v558
      %v623 = vunpack.c.l.b16 %v559
      %v624 = vpack.c.b16 %v593, %v592
      %v625 = vpack.c.b16 %v595, %v594
      %v626 = vpack.c.b16 %v597, %v596
      %v627 = vpack.c.b16 %v599, %v598
      %v628 = vpack.c.b16 %v601, %v600
      %v629 = vpack.c.b16 %v603, %v602
      %v630 = vpack.c.b16 %v605, %v604
      %v631 = vpack.c.b16 %v607, %v606
      %v632 = vpack.c.b16 %v609, %v608
      %v633 = vpack.c.b16 %v611, %v610
      %v634 = vpack.c.b16 %v613, %v612
      %v635 = vpack.c.b16 %v615, %v614
      %v636 = vpack.c.b16 %v617, %v616
      %v637 = vpack.c.b16 %v619, %v618
      %v638 = vpack.c.b16 %v621, %v620
      %v639 = vpack.c.b16 %v623, %v622
      %vm656 = vcmask 31744
      %657 = vst.msk [vmem:[#allocation4] sm:$0xff] %vm656, %v624
      %658 = vst.msk [vmem:[#allocation4 + $0x8] sm:$0xff] %vm656, %v625
      %659 = vst.msk [vmem:[#allocation4 + $0x10] sm:$0xff] %vm656, %v626
      %660 = vst.msk [vmem:[#allocation4 + $0x18] sm:$0xff] %vm656, %v627
      %661 = vst.msk [vmem:[#allocation4 + $0x20] sm:$0xff] %vm656, %v628
      %662 = vst.msk [vmem:[#allocation4 + $0x28] sm:$0xff] %vm656, %v629
      %663 = vst.msk [vmem:[#allocation4 + $0x30] sm:$0xff] %vm656, %v630
      %664 = vst.msk [vmem:[#allocation4 + $0x38] sm:$0xff] %vm656, %v631
      %665 = vst.msk [vmem:[#allocation4 + $0x40] sm:$0xff] %vm656, %v632
      %666 = vst.msk [vmem:[#allocation4 + $0x48] sm:$0xff] %vm656, %v633
      %667 = vst.msk [vmem:[#allocation4 + $0x50] sm:$0xff] %vm656, %v634
      %668 = vst.msk [vmem:[#allocation4 + $0x58] sm:$0xff] %vm656, %v635
      %669 = vst.msk [vmem:[#allocation4 + $0x60] sm:$0xff] %vm656, %v636
      %670 = vst.msk [vmem:[#allocation4 + $0x68] sm:$0xff] %vm656, %v637
      %671 = vst.msk [vmem:[#allocation4 + $0x70] sm:$0xff] %vm656, %v638
      %672 = vst.msk [vmem:[#allocation4 + $0x78] sm:$0xff] %vm656, %v639
      %v673 = vld [vmem:[#allocation2] sm:$0xe]
      %v674 = vld [vmem:[#allocation2 + $0x4] sm:$0xf]
      %v675 = vld [vmem:[#allocation2 + $0x8] sm:$0x1]
      %v676 = vld [vmem:[#allocation2 + $0xc] sm:$0xe]
      %v677 = vld [vmem:[#allocation2 + $0x10] sm:$0xf]
      %v678 = vld [vmem:[#allocation2 + $0x14] sm:$0x1]
      %v679 = vld [vmem:[#allocation2 + $0x18] sm:$0xe]
      %v680 = vld [vmem:[#allocation2 + $0x1c] sm:$0xf]
      %v681 = vld [vmem:[#allocation2 + $0x20] sm:$0x1]
      %v682 = vld [vmem:[#allocation2 + $0x24] sm:$0xe]
      %v683 = vld [vmem:[#allocation2 + $0x28] sm:$0xf]
      %v684 = vld [vmem:[#allocation2 + $0x2c] sm:$0x1]
      %v685 = vld [vmem:[#allocation2 + $0x30] sm:$0xe]
      %v686 = vld [vmem:[#allocation2 + $0x34] sm:$0xf]
      %v687 = vld [vmem:[#allocation2 + $0x38] sm:$0x1]
      %v688 = vld [vmem:[#allocation2 + $0x3c] sm:$0xe]
      %v689 = vld [vmem:[#allocation2 + $0x40] sm:$0xf]
      %v690 = vld [vmem:[#allocation2 + $0x44] sm:$0x1]
      %v691 = vld [vmem:[#allocation2 + $0x48] sm:$0xe]
      %v692 = vld [vmem:[#allocation2 + $0x4c] sm:$0xf]
      %v693 = vld [vmem:[#allocation2 + $0x50] sm:$0x1]
      %v694 = vld [vmem:[#allocation2 + $0x54] sm:$0xe]
      %v695 = vld [vmem:[#allocation2 + $0x58] sm:$0xf]
      %v696 = vld [vmem:[#allocation2 + $0x5c] sm:$0x1]
      %v697 = vld [vmem:[#allocation2 + $0x60] sm:$0xe]
      %v698 = vld [vmem:[#allocation2 + $0x64] sm:$0xf]
      %v699 = vld [vmem:[#allocation2 + $0x68] sm:$0x1]
      %v700 = vld [vmem:[#allocation2 + $0x6c] sm:$0xe]
      %v701 = vld [vmem:[#allocation2 + $0x70] sm:$0xf]
      %v702 = vld [vmem:[#allocation2 + $0x74] sm:$0x1]
      %v703 = vld [vmem:[#allocation2 + $0x78] sm:$0xe]
      %v704 = vld [vmem:[#allocation2 + $0x7c] sm:$0xf]
      %v705 = vld [vmem:[#allocation2 + $0x80] sm:$0x1]
      %v706 = vld [vmem:[#allocation2 + $0x84] sm:$0xe]
      %v707 = vld [vmem:[#allocation2 + $0x88] sm:$0xf]
      %v708 = vld [vmem:[#allocation2 + $0x8c] sm:$0x1]
      %v709 = vld [vmem:[#allocation2 + $0x90] sm:$0xe]
      %v710 = vld [vmem:[#allocation2 + $0x94] sm:$0xf]
      %v711 = vld [vmem:[#allocation2 + $0x98] sm:$0x1]
      %v712 = vld [vmem:[#allocation2 + $0x9c] sm:$0xe]
      %v713 = vld [vmem:[#allocation2 + $0xa0] sm:$0xf]
      %v714 = vld [vmem:[#allocation2 + $0xa4] sm:$0x1]
      %v715 = vld [vmem:[#allocation2 + $0xa8] sm:$0xe]
      %v716 = vld [vmem:[#allocation2 + $0xac] sm:$0xf]
      %v717 = vld [vmem:[#allocation2 + $0xb0] sm:$0x1]
      %v718 = vld [vmem:[#allocation2 + $0xb4] sm:$0xe]
      %v719 = vld [vmem:[#allocation2 + $0xb8] sm:$0xf]
      %v720 = vld [vmem:[#allocation2 + $0xbc] sm:$0x1]
      %v769 = vunpack.c.l.b16 %v673
      %v770 = vunpack.c.l.b16 %v674
      %v771 = vunpack.c.l.b16 %v675
      %v772 = vunpack.c.l.b16 %v676
      %v773 = vunpack.c.l.b16 %v677
      %v774 = vunpack.c.l.b16 %v678
      %v775 = vunpack.c.l.b16 %v679
      %v776 = vunpack.c.l.b16 %v680
      %v777 = vunpack.c.l.b16 %v681
      %v778 = vunpack.c.l.b16 %v682
      %v779 = vunpack.c.l.b16 %v683
      %v780 = vunpack.c.l.b16 %v684
      %v781 = vunpack.c.l.b16 %v685
      %v782 = vunpack.c.l.b16 %v686
      %v783 = vunpack.c.l.b16 %v687
      %v784 = vunpack.c.l.b16 %v688
      %v785 = vunpack.c.l.b16 %v689
      %v786 = vunpack.c.l.b16 %v690
      %v787 = vunpack.c.l.b16 %v691
      %v788 = vunpack.c.l.b16 %v692
      %v789 = vunpack.c.l.b16 %v693
      %v790 = vunpack.c.l.b16 %v694
      %v791 = vunpack.c.l.b16 %v695
      %v792 = vunpack.c.l.b16 %v696
      %v793 = vunpack.c.l.b16 %v697
      %v794 = vunpack.c.l.b16 %v698
      %v795 = vunpack.c.l.b16 %v699
      %v796 = vunpack.c.l.b16 %v700
      %v797 = vunpack.c.l.b16 %v701
      %v798 = vunpack.c.l.b16 %v702
      %v799 = vunpack.c.l.b16 %v703
      %v800 = vunpack.c.l.b16 %v704
      %v801 = vunpack.c.l.b16 %v705
      %v802 = vunpack.c.l.b16 %v706
      %v803 = vunpack.c.l.b16 %v707
      %v804 = vunpack.c.l.b16 %v708
      %v805 = vunpack.c.l.b16 %v709
      %v806 = vunpack.c.l.b16 %v710
      %v807 = vunpack.c.l.b16 %v711
      %v808 = vunpack.c.l.b16 %v712
      %v809 = vunpack.c.l.b16 %v713
      %v810 = vunpack.c.l.b16 %v714
      %v811 = vunpack.c.l.b16 %v715
      %v812 = vunpack.c.l.b16 %v716
      %v813 = vunpack.c.l.b16 %v717
      %v814 = vunpack.c.l.b16 %v718
      %v815 = vunpack.c.l.b16 %v719
      %v816 = vunpack.c.l.b16 %v720
      %v817 = vpack.c.b16 %v770, %v769
      %v818 = vpack.c.b16 %v771, %v771
      %v819 = vpack.c.b16 %v773, %v772
      %v820 = vpack.c.b16 %v774, %v774
      %v821 = vpack.c.b16 %v776, %v775
      %v822 = vpack.c.b16 %v777, %v777
      %v823 = vpack.c.b16 %v779, %v778
      %v824 = vpack.c.b16 %v780, %v780
      %v825 = vpack.c.b16 %v782, %v781
      %v826 = vpack.c.b16 %v783, %v783
      %v827 = vpack.c.b16 %v785, %v784
      %v828 = vpack.c.b16 %v786, %v786
      %v829 = vpack.c.b16 %v788, %v787
      %v830 = vpack.c.b16 %v789, %v789
      %v831 = vpack.c.b16 %v791, %v790
      %v832 = vpack.c.b16 %v792, %v792
      %v833 = vpack.c.b16 %v794, %v793
      %v834 = vpack.c.b16 %v795, %v795
      %v835 = vpack.c.b16 %v797, %v796
      %v836 = vpack.c.b16 %v798, %v798
      %v837 = vpack.c.b16 %v800, %v799
      %v838 = vpack.c.b16 %v801, %v801
      %v839 = vpack.c.b16 %v803, %v802
      %v840 = vpack.c.b16 %v804, %v804
      %v841 = vpack.c.b16 %v806, %v805
      %v842 = vpack.c.b16 %v807, %v807
      %v843 = vpack.c.b16 %v809, %v808
      %v844 = vpack.c.b16 %v810, %v810
      %v845 = vpack.c.b16 %v812, %v811
      %v846 = vpack.c.b16 %v813, %v813
      %v847 = vpack.c.b16 %v815, %v814
      %v848 = vpack.c.b16 %v816, %v816
      %vm849 = vcmask 1046528
      %v850 = vrot.slane %v817, 1
      %v851 = vrot.slane %v818, 1
      %v852 = vsel %vm849, %v850, %v851
      %v853 = vrot.slane %v819, 1
      %v854 = vrot.slane %v820, 1
      %v855 = vsel %vm849, %v853, %v854
      %v856 = vrot.slane %v821, 1
      %v857 = vrot.slane %v822, 1
      %v858 = vsel %vm849, %v856, %v857
      %v859 = vrot.slane %v823, 1
      %v860 = vrot.slane %v824, 1
      %v861 = vsel %vm849, %v859, %v860
      %v862 = vrot.slane %v825, 1
      %v863 = vrot.slane %v826, 1
      %v864 = vsel %vm849, %v862, %v863
      %v865 = vrot.slane %v827, 1
      %v866 = vrot.slane %v828, 1
      %v867 = vsel %vm849, %v865, %v866
      %v868 = vrot.slane %v829, 1
      %v869 = vrot.slane %v830, 1
      %v870 = vsel %vm849, %v868, %v869
      %v871 = vrot.slane %v831, 1
      %v872 = vrot.slane %v832, 1
      %v873 = vsel %vm849, %v871, %v872
      %v874 = vrot.slane %v833, 1
      %v875 = vrot.slane %v834, 1
      %v876 = vsel %vm849, %v874, %v875
      %v877 = vrot.slane %v835, 1
      %v878 = vrot.slane %v836, 1
      %v879 = vsel %vm849, %v877, %v878
      %v880 = vrot.slane %v837, 1
      %v881 = vrot.slane %v838, 1
      %v882 = vsel %vm849, %v880, %v881
      %v883 = vrot.slane %v839, 1
      %v884 = vrot.slane %v840, 1
      %v885 = vsel %vm849, %v883, %v884
      %v886 = vrot.slane %v841, 1
      %v887 = vrot.slane %v842, 1
      %v888 = vsel %vm849, %v886, %v887
      %v889 = vrot.slane %v843, 1
      %v890 = vrot.slane %v844, 1
      %v891 = vsel %vm849, %v889, %v890
      %v892 = vrot.slane %v845, 1
      %v893 = vrot.slane %v846, 1
      %v894 = vsel %vm849, %v892, %v893
      %v895 = vrot.slane %v847, 1
      %v896 = vrot.slane %v848, 1
      %v897 = vsel %vm849, %v895, %v896
      %898 = vrot.lane.b32.xlu0 %v852, 4
      %v899 = vpop.permute.xlu0 %898
      %900 = vrot.lane.b32.xlu0 %v855, 4
      %v901 = vpop.permute.xlu0 %900
      %902 = vrot.lane.b32.xlu0 %v858, 4
      %v903 = vpop.permute.xlu0 %902
      %904 = vrot.lane.b32.xlu0 %v861, 4
      %v905 = vpop.permute.xlu0 %904
      %906 = vrot.lane.b32.xlu0 %v864, 4
      %v907 = vpop.permute.xlu0 %906
      %908 = vrot.lane.b32.xlu0 %v867, 4
      %v909 = vpop.permute.xlu0 %908
      %910 = vrot.lane.b32.xlu0 %v870, 4
      %v911 = vpop.permute.xlu0 %910
      %912 = vrot.lane.b32.xlu0 %v873, 4
      %v913 = vpop.permute.xlu0 %912
      %914 = vrot.lane.b32.xlu0 %v876, 4
      %v915 = vpop.permute.xlu0 %914
      %916 = vrot.lane.b32.xlu0 %v879, 4
      %v917 = vpop.permute.xlu0 %916
      %918 = vrot.lane.b32.xlu0 %v882, 4
      %v919 = vpop.permute.xlu0 %918
      %920 = vrot.lane.b32.xlu0 %v885, 4
      %v921 = vpop.permute.xlu0 %920
      %922 = vrot.lane.b32.xlu0 %v888, 4
      %v923 = vpop.permute.xlu0 %922
      %924 = vrot.lane.b32.xlu0 %v891, 4
      %v925 = vpop.permute.xlu0 %924
      %926 = vrot.lane.b32.xlu0 %v894, 4
      %v927 = vpop.permute.xlu0 %926
      %928 = vrot.lane.b32.xlu0 %v897, 4
      %v929 = vpop.permute.xlu0 %928
      %vm946 = vcmask 64544
      %947 = vst.msk [vmem:[#allocation4] sm:$0xff] %vm946, %v899
      %948 = vst.msk [vmem:[#allocation4 + $0x8] sm:$0xff] %vm946, %v901
      %949 = vst.msk [vmem:[#allocation4 + $0x10] sm:$0xff] %vm946, %v903
      %950 = vst.msk [vmem:[#allocation4 + $0x18] sm:$0xff] %vm946, %v905
      %951 = vst.msk [vmem:[#allocation4 + $0x20] sm:$0xff] %vm946, %v907
      %952 = vst.msk [vmem:[#allocation4 + $0x28] sm:$0xff] %vm946, %v909
      %953 = vst.msk [vmem:[#allocation4 + $0x30] sm:$0xff] %vm946, %v911
      %954 = vst.msk [vmem:[#allocation4 + $0x38] sm:$0xff] %vm946, %v913
      %955 = vst.msk [vmem:[#allocation4 + $0x40] sm:$0xff] %vm946, %v915
      %956 = vst.msk [vmem:[#allocation4 + $0x48] sm:$0xff] %vm946, %v917
      %957 = vst.msk [vmem:[#allocation4 + $0x50] sm:$0xff] %vm946, %v919
      %958 = vst.msk [vmem:[#allocation4 + $0x58] sm:$0xff] %vm946, %v921
      %959 = vst.msk [vmem:[#allocation4 + $0x60] sm:$0xff] %vm946, %v923
      %960 = vst.msk [vmem:[#allocation4 + $0x68] sm:$0xff] %vm946, %v925
      %961 = vst.msk [vmem:[#allocation4 + $0x70] sm:$0xff] %vm946, %v927
      %962 = vst.msk [vmem:[#allocation4 + $0x78] sm:$0xff] %vm946, %v929
      %v963 = vld [vmem:[#allocation2] sm:$0xc]
      %v964 = vld [vmem:[#allocation2 + $0x4] sm:$0xf]
      %v965 = vld [vmem:[#allocation2 + $0x8] sm:$0x3]
      %v966 = vld [vmem:[#allocation2 + $0xc] sm:$0xc]
      %v967 = vld [vmem:[#allocation2 + $0x10] sm:$0xf]
      %v968 = vld [vmem:[#allocation2 + $0x14] sm:$0x3]
      %v969 = vld [vmem:[#allocation2 + $0x18] sm:$0xc]
      %v970 = vld [vmem:[#allocation2 + $0x1c] sm:$0xf]
      %v971 = vld [vmem:[#allocation2 + $0x20] sm:$0x3]
      %v972 = vld [vmem:[#allocation2 + $0x24] sm:$0xc]
      %v973 = vld [vmem:[#allocation2 + $0x28] sm:$0xf]
      %v974 = vld [vmem:[#allocation2 + $0x2c] sm:$0x3]
      %v975 = vld [vmem:[#allocation2 + $0x30] sm:$0xc]
      %v976 = vld [vmem:[#allocation2 + $0x34] sm:$0xf]
      %v977 = vld [vmem:[#allocation2 + $0x38] sm:$0x3]
      %v978 = vld [vmem:[#allocation2 + $0x3c] sm:$0xc]
      %v979 = vld [vmem:[#allocation2 + $0x40] sm:$0xf]
      %v980 = vld [vmem:[#allocation2 + $0x44] sm:$0x3]
      %v981 = vld [vmem:[#allocation2 + $0x48] sm:$0xc]
      %v982 = vld [vmem:[#allocation2 + $0x4c] sm:$0xf]
      %v983 = vld [vmem:[#allocation2 + $0x50] sm:$0x3]
      %v984 = vld [vmem:[#allocation2 + $0x54] sm:$0xc]
      %v985 = vld [vmem:[#allocation2 + $0x58] sm:$0xf]
      %v986 = vld [vmem:[#allocation2 + $0x5c] sm:$0x3]
      %v987 = vld [vmem:[#allocation2 + $0x60] sm:$0xc]
      %v988 = vld [vmem:[#allocation2 + $0x64] sm:$0xf]
      %v989 = vld [vmem:[#allocation2 + $0x68] sm:$0x3]
      %v990 = vld [vmem:[#allocation2 + $0x6c] sm:$0xc]
      %v991 = vld [vmem:[#allocation2 + $0x70] sm:$0xf]
      %v992 = vld [vmem:[#allocation2 + $0x74] sm:$0x3]
      %v993 = vld [vmem:[#allocation2 + $0x78] sm:$0xc]
      %v994 = vld [vmem:[#allocation2 + $0x7c] sm:$0xf]
      %v995 = vld [vmem:[#allocation2 + $0x80] sm:$0x3]
      %v996 = vld [vmem:[#allocation2 + $0x84] sm:$0xc]
      %v997 = vld [vmem:[#allocation2 + $0x88] sm:$0xf]
      %v998 = vld [vmem:[#allocation2 + $0x8c] sm:$0x3]
      %v999 = vld [vmem:[#allocation2 + $0x90] sm:$0xc]
      %v1000 = vld [vmem:[#allocation2 + $0x94] sm:$0xf]
      %v1001 = vld [vmem:[#allocation2 + $0x98] sm:$0x3]
      %v1002 = vld [vmem:[#allocation2 + $0x9c] sm:$0xc]
      %v1003 = vld [vmem:[#allocation2 + $0xa0] sm:$0xf]
      %v1004 = vld [vmem:[#allocation2 + $0xa4] sm:$0x3]
      %v1005 = vld [vmem:[#allocation2 + $0xa8] sm:$0xc]
      %v1006 = vld [vmem:[#allocation2 + $0xac] sm:$0xf]
      %v1007 = vld [vmem:[#allocation2 + $0xb0] sm:$0x3]
      %v1008 = vld [vmem:[#allocation2 + $0xb4] sm:$0xc]
      %v1009 = vld [vmem:[#allocation2 + $0xb8] sm:$0xf]
      %v1010 = vld [vmem:[#allocation2 + $0xbc] sm:$0x3]
      %v1059 = vunpack.c.l.b16 %v963
      %v1060 = vunpack.c.l.b16 %v964
      %v1061 = vunpack.c.l.b16 %v965
      %v1062 = vunpack.c.l.b16 %v966
      %v1063 = vunpack.c.l.b16 %v967
      %v1064 = vunpack.c.l.b16 %v968
      %v1065 = vunpack.c.l.b16 %v969
      %v1066 = vunpack.c.l.b16 %v970
      %v1067 = vunpack.c.l.b16 %v971
      %v1068 = vunpack.c.l.b16 %v972
      %v1069 = vunpack.c.l.b16 %v973
      %v1070 = vunpack.c.l.b16 %v974
      %v1071 = vunpack.c.l.b16 %v975
      %v1072 = vunpack.c.l.b16 %v976
      %v1073 = vunpack.c.l.b16 %v977
      %v1074 = vunpack.c.l.b16 %v978
      %v1075 = vunpack.c.l.b16 %v979
      %v1076 = vunpack.c.l.b16 %v980
      %v1077 = vunpack.c.l.b16 %v981
      %v1078 = vunpack.c.l.b16 %v982
      %v1079 = vunpack.c.l.b16 %v983
      %v1080 = vunpack.c.l.b16 %v984
      %v1081 = vunpack.c.l.b16 %v985
      %v1082 = vunpack.c.l.b16 %v986
      %v1083 = vunpack.c.l.b16 %v987
      %v1084 = vunpack.c.l.b16 %v988
      %v1085 = vunpack.c.l.b16 %v989
      %v1086 = vunpack.c.l.b16 %v990
      %v1087 = vunpack.c.l.b16 %v991
      %v1088 = vunpack.c.l.b16 %v992
      %v1089 = vunpack.c.l.b16 %v993
      %v1090 = vunpack.c.l.b16 %v994
      %v1091 = vunpack.c.l.b16 %v995
      %v1092 = vunpack.c.l.b16 %v996
      %v1093 = vunpack.c.l.b16 %v997
      %v1094 = vunpack.c.l.b16 %v998
      %v1095 = vunpack.c.l.b16 %v999
      %v1096 = vunpack.c.l.b16 %v1000
      %v1097 = vunpack.c.l.b16 %v1001
      %v1098 = vunpack.c.l.b16 %v1002
      %v1099 = vunpack.c.l.b16 %v1003
      %v1100 = vunpack.c.l.b16 %v1004
      %v1101 = vunpack.c.l.b16 %v1005
      %v1102 = vunpack.c.l.b16 %v1006
      %v1103 = vunpack.c.l.b16 %v1007
      %v1104 = vunpack.c.l.b16 %v1008
      %v1105 = vunpack.c.l.b16 %v1009
      %v1106 = vunpack.c.l.b16 %v1010
      %v1107 = vpack.c.b16 %v1060, %v1059
      %v1108 = vpack.c.b16 %v1061, %v1061
      %v1109 = vpack.c.b16 %v1063, %v1062
      %v1110 = vpack.c.b16 %v1064, %v1064
      %v1111 = vpack.c.b16 %v1066, %v1065
      %v1112 = vpack.c.b16 %v1067, %v1067
      %v1113 = vpack.c.b16 %v1069, %v1068
      %v1114 = vpack.c.b16 %v1070, %v1070
      %v1115 = vpack.c.b16 %v1072, %v1071
      %v1116 = vpack.c.b16 %v1073, %v1073
      %v1117 = vpack.c.b16 %v1075, %v1074
      %v1118 = vpack.c.b16 %v1076, %v1076
      %v1119 = vpack.c.b16 %v1078, %v1077
      %v1120 = vpack.c.b16 %v1079, %v1079
      %v1121 = vpack.c.b16 %v1081, %v1080
      %v1122 = vpack.c.b16 %v1082, %v1082
      %v1123 = vpack.c.b16 %v1084, %v1083
      %v1124 = vpack.c.b16 %v1085, %v1085
      %v1125 = vpack.c.b16 %v1087, %v1086
      %v1126 = vpack.c.b16 %v1088, %v1088
      %v1127 = vpack.c.b16 %v1090, %v1089
      %v1128 = vpack.c.b16 %v1091, %v1091
      %v1129 = vpack.c.b16 %v1093, %v1092
      %v1130 = vpack.c.b16 %v1094, %v1094
      %v1131 = vpack.c.b16 %v1096, %v1095
      %v1132 = vpack.c.b16 %v1097, %v1097
      %v1133 = vpack.c.b16 %v1099, %v1098
      %v1134 = vpack.c.b16 %v1100, %v1100
      %v1135 = vpack.c.b16 %v1102, %v1101
      %v1136 = vpack.c.b16 %v1103, %v1103
      %v1137 = vpack.c.b16 %v1105, %v1104
      %v1138 = vpack.c.b16 %v1106, %v1106
      %vm1139 = vcmask 1045504
      %v1140 = vrot.slane %v1107, 2
      %v1141 = vrot.slane %v1108, 2
      %v1142 = vsel %vm1139, %v1140, %v1141
      %v1143 = vrot.slane %v1109, 2
      %v1144 = vrot.slane %v1110, 2
      %v1145 = vsel %vm1139, %v1143, %v1144
      %v1146 = vrot.slane %v1111, 2
      %v1147 = vrot.slane %v1112, 2
      %v1148 = vsel %vm1139, %v1146, %v1147
      %v1149 = vrot.slane %v1113, 2
      %v1150 = vrot.slane %v1114, 2
      %v1151 = vsel %vm1139, %v1149, %v1150
      %v1152 = vrot.slane %v1115, 2
      %v1153 = vrot.slane %v1116, 2
      %v1154 = vsel %vm1139, %v1152, %v1153
      %v1155 = vrot.slane %v1117, 2
      %v1156 = vrot.slane %v1118, 2
      %v1157 = vsel %vm1139, %v1155, %v1156
      %v1158 = vrot.slane %v1119, 2
      %v1159 = vrot.slane %v1120, 2
      %v1160 = vsel %vm1139, %v1158, %v1159
      %v1161 = vrot.slane %v1121, 2
      %v1162 = vrot.slane %v1122, 2
      %v1163 = vsel %vm1139, %v1161, %v1162
      %v1164 = vrot.slane %v1123, 2
      %v1165 = vrot.slane %v1124, 2
      %v1166 = vsel %vm1139, %v1164, %v1165
      %v1167 = vrot.slane %v1125, 2
      %v1168 = vrot.slane %v1126, 2
      %v1169 = vsel %vm1139, %v1167, %v1168
      %v1170 = vrot.slane %v1127, 2
      %v1171 = vrot.slane %v1128, 2
      %v1172 = vsel %vm1139, %v1170, %v1171
      %v1173 = vrot.slane %v1129, 2
      %v1174 = vrot.slane %v1130, 2
      %v1175 = vsel %vm1139, %v1173, %v1174
      %v1176 = vrot.slane %v1131, 2
      %v1177 = vrot.slane %v1132, 2
      %v1178 = vsel %vm1139, %v1176, %v1177
      %v1179 = vrot.slane %v1133, 2
      %v1180 = vrot.slane %v1134, 2
      %v1181 = vsel %vm1139, %v1179, %v1180
      %v1182 = vrot.slane %v1135, 2
      %v1183 = vrot.slane %v1136, 2
      %v1184 = vsel %vm1139, %v1182, %v1183
      %v1185 = vrot.slane %v1137, 2
      %v1186 = vrot.slane %v1138, 2
      %v1187 = vsel %vm1139, %v1185, %v1186
      %1188 = vrot.lane.b32.xlu0 %v1142, 8
      %v1189 = vpop.permute.xlu0 %1188
      %1190 = vrot.lane.b32.xlu0 %v1145, 8
      %v1191 = vpop.permute.xlu0 %1190
      %1192 = vrot.lane.b32.xlu0 %v1148, 8
      %v1193 = vpop.permute.xlu0 %1192
      %1194 = vrot.lane.b32.xlu0 %v1151, 8
      %v1195 = vpop.permute.xlu0 %1194
      %1196 = vrot.lane.b32.xlu0 %v1154, 8
      %v1197 = vpop.permute.xlu0 %1196
      %1198 = vrot.lane.b32.xlu0 %v1157, 8
      %v1199 = vpop.permute.xlu0 %1198
      %1200 = vrot.lane.b32.xlu0 %v1160, 8
      %v1201 = vpop.permute.xlu0 %1200
      %1202 = vrot.lane.b32.xlu0 %v1163, 8
      %v1203 = vpop.permute.xlu0 %1202
      %1204 = vrot.lane.b32.xlu0 %v1166, 8
      %v1205 = vpop.permute.xlu0 %1204
      %1206 = vrot.lane.b32.xlu0 %v1169, 8
      %v1207 = vpop.permute.xlu0 %1206
      %1208 = vrot.lane.b32.xlu0 %v1172, 8
      %v1209 = vpop.permute.xlu0 %1208
      %1210 = vrot.lane.b32.xlu0 %v1175, 8
      %v1211 = vpop.permute.xlu0 %1210
      %1212 = vrot.lane.b32.xlu0 %v1178, 8
      %v1213 = vpop.permute.xlu0 %1212
      %1214 = vrot.lane.b32.xlu0 %v1181, 8
      %v1215 = vpop.permute.xlu0 %1214
      %1216 = vrot.lane.b32.xlu0 %v1184, 8
      %v1217 = vpop.permute.xlu0 %1216
      %1218 = vrot.lane.b32.xlu0 %v1187, 8
      %v1219 = vpop.permute.xlu0 %1218
      %vm1236 = vcmask 97344
      %1237 = vst.msk [vmem:[#allocation4] sm:$0xff] %vm1236, %v1189
      %1238 = vst.msk [vmem:[#allocation4 + $0x8] sm:$0xff] %vm1236, %v1191
      %1239 = vst.msk [vmem:[#allocation4 + $0x10] sm:$0xff] %vm1236, %v1193
      %1240 = vst.msk [vmem:[#allocation4 + $0x18] sm:$0xff] %vm1236, %v1195
      %1241 = vst.msk [vmem:[#allocation4 + $0x20] sm:$0xff] %vm1236, %v1197
      %1242 = vst.msk [vmem:[#allocation4 + $0x28] sm:$0xff] %vm1236, %v1199
      %1243 = vst.msk [vmem:[#allocation4 + $0x30] sm:$0xff] %vm1236, %v1201
      %1244 = vst.msk [vmem:[#allocation4 + $0x38] sm:$0xff] %vm1236, %v1203
      %1245 = vst.msk [vmem:[#allocation4 + $0x40] sm:$0xff] %vm1236, %v1205
      %1246 = vst.msk [vmem:[#allocation4 + $0x48] sm:$0xff] %vm1236, %v1207
      %1247 = vst.msk [vmem:[#allocation4 + $0x50] sm:$0xff] %vm1236, %v1209
      %1248 = vst.msk [vmem:[#allocation4 + $0x58] sm:$0xff] %vm1236, %v1211
      %1249 = vst.msk [vmem:[#allocation4 + $0x60] sm:$0xff] %vm1236, %v1213
      %1250 = vst.msk [vmem:[#allocation4 + $0x68] sm:$0xff] %vm1236, %v1215
      %1251 = vst.msk [vmem:[#allocation4 + $0x70] sm:$0xff] %vm1236, %v1217
      %1252 = vst.msk [vmem:[#allocation4 + $0x78] sm:$0xff] %vm1236, %v1219
      %v1253 = vld [vmem:[%s478] sm:$0xf]
      %v1254 = vld [vmem:[%s478 + $0x4] sm:$0xf]
      %v1255 = vld [vmem:[%s478 + $0xc] sm:$0xf]
      %v1256 = vld [vmem:[%s478 + $0x10] sm:$0xf]
      %v1257 = vld [vmem:[%s478 + $0x18] sm:$0xf]
      %v1258 = vld [vmem:[%s478 + $0x1c] sm:$0xf]
      %v1259 = vld [vmem:[%s478 + $0x24] sm:$0xf]
      %v1260 = vld [vmem:[%s478 + $0x28] sm:$0xf]
      %v1261 = vld [vmem:[%s478 + $0x30] sm:$0xf]
      %v1262 = vld [vmem:[%s478 + $0x34] sm:$0xf]
      %v1263 = vld [vmem:[%s478 + $0x3c] sm:$0xf]
      %v1264 = vld [vmem:[%s478 + $0x40] sm:$0xf]
      %v1265 = vld [vmem:[%s478 + $0x48] sm:$0xf]
      %v1266 = vld [vmem:[%s478 + $0x4c] sm:$0xf]
      %v1267 = vld [vmem:[%s478 + $0x54] sm:$0xf]
      %v1268 = vld [vmem:[%s478 + $0x58] sm:$0xf]
      %v1269 = vld [vmem:[%s478 + $0x60] sm:$0xf]
      %v1270 = vld [vmem:[%s478 + $0x64] sm:$0xf]
      %v1271 = vld [vmem:[%s478 + $0x6c] sm:$0xf]
      %v1272 = vld [vmem:[%s478 + $0x70] sm:$0xf]
      %v1273 = vld [vmem:[%s478 + $0x78] sm:$0xf]
      %v1274 = vld [vmem:[%s478 + $0x7c] sm:$0xf]
      %v1275 = vld [vmem:[%s478 + $0x84] sm:$0xf]
      %v1276 = vld [vmem:[%s478 + $0x88] sm:$0xf]
      %v1277 = vld [vmem:[%s478 + $0x90] sm:$0xf]
      %v1278 = vld [vmem:[%s478 + $0x94] sm:$0xf]
      %v1279 = vld [vmem:[%s478 + $0x9c] sm:$0xf]
      %v1280 = vld [vmem:[%s478 + $0xa0] sm:$0xf]
      %v1281 = vld [vmem:[%s478 + $0xa8] sm:$0xf]
      %v1282 = vld [vmem:[%s478 + $0xac] sm:$0xf]
      %v1283 = vld [vmem:[%s478 + $0xb4] sm:$0xf]
      %v1284 = vld [vmem:[%s478 + $0xb8] sm:$0xf]
      %v1317 = vunpack.c.l.b16 %v1253
      %v1318 = vunpack.c.l.b16 %v1254
      %v1319 = vunpack.c.l.b16 %v1255
      %v1320 = vunpack.c.l.b16 %v1256
      %v1321 = vunpack.c.l.b16 %v1257
      %v1322 = vunpack.c.l.b16 %v1258
      %v1323 = vunpack.c.l.b16 %v1259
      %v1324 = vunpack.c.l.b16 %v1260
      %v1325 = vunpack.c.l.b16 %v1261
      %v1326 = vunpack.c.l.b16 %v1262
      %v1327 = vunpack.c.l.b16 %v1263
      %v1328 = vunpack.c.l.b16 %v1264
      %v1329 = vunpack.c.l.b16 %v1265
      %v1330 = vunpack.c.l.b16 %v1266
      %v1331 = vunpack.c.l.b16 %v1267
      %v1332 = vunpack.c.l.b16 %v1268
      %v1333 = vunpack.c.l.b16 %v1269
      %v1334 = vunpack.c.l.b16 %v1270
      %v1335 = vunpack.c.l.b16 %v1271
      %v1336 = vunpack.c.l.b16 %v1272
      %v1337 = vunpack.c.l.b16 %v1273
      %v1338 = vunpack.c.l.b16 %v1274
      %v1339 = vunpack.c.l.b16 %v1275
      %v1340 = vunpack.c.l.b16 %v1276
      %v1341 = vunpack.c.l.b16 %v1277
      %v1342 = vunpack.c.l.b16 %v1278
      %v1343 = vunpack.c.l.b16 %v1279
      %v1344 = vunpack.c.l.b16 %v1280
      %v1345 = vunpack.c.l.b16 %v1281
      %v1346 = vunpack.c.l.b16 %v1282
      %v1347 = vunpack.c.l.b16 %v1283
      %v1348 = vunpack.c.l.b16 %v1284
      %v1349 = vpack.c.b16 %v1318, %v1317
      %v1350 = vpack.c.b16 %v1320, %v1319
      %v1351 = vpack.c.b16 %v1322, %v1321
      %v1352 = vpack.c.b16 %v1324, %v1323
      %v1353 = vpack.c.b16 %v1326, %v1325
      %v1354 = vpack.c.b16 %v1328, %v1327
      %v1355 = vpack.c.b16 %v1330, %v1329
      %v1356 = vpack.c.b16 %v1332, %v1331
      %v1357 = vpack.c.b16 %v1334, %v1333
      %v1358 = vpack.c.b16 %v1336, %v1335
      %v1359 = vpack.c.b16 %v1338, %v1337
      %v1360 = vpack.c.b16 %v1340, %v1339
      %v1361 = vpack.c.b16 %v1342, %v1341
      %v1362 = vpack.c.b16 %v1344, %v1343
      %v1363 = vpack.c.b16 %v1346, %v1345
      %v1364 = vpack.c.b16 %v1348, %v1347
      %1365 = vrot.lane.b32.xlu0 %v1349, 12
      %v1366 = vpop.permute.xlu0 %1365
      %1367 = vrot.lane.b32.xlu0 %v1350, 12
      %v1368 = vpop.permute.xlu0 %1367
      %1369 = vrot.lane.b32.xlu0 %v1351, 12
      %v1370 = vpop.permute.xlu0 %1369
      %1371 = vrot.lane.b32.xlu0 %v1352, 12
      %v1372 = vpop.permute.xlu0 %1371
      %1373 = vrot.lane.b32.xlu0 %v1353, 12
      %v1374 = vpop.permute.xlu0 %1373
      %1375 = vrot.lane.b32.xlu0 %v1354, 12
      %v1376 = vpop.permute.xlu0 %1375
      %1377 = vrot.lane.b32.xlu0 %v1355, 12
      %v1378 = vpop.permute.xlu0 %1377
      %1379 = vrot.lane.b32.xlu0 %v1356, 12
      %v1380 = vpop.permute.xlu0 %1379
      %1381 = vrot.lane.b32.xlu0 %v1357, 12
      %v1382 = vpop.permute.xlu0 %1381
      %1383 = vrot.lane.b32.xlu0 %v1358, 12
      %v1384 = vpop.permute.xlu0 %1383
      %1385 = vrot.lane.b32.xlu0 %v1359, 12
      %v1386 = vpop.permute.xlu0 %1385
      %1387 = vrot.lane.b32.xlu0 %v1360, 12
      %v1388 = vpop.permute.xlu0 %1387
      %1389 = vrot.lane.b32.xlu0 %v1361, 12
      %v1390 = vpop.permute.xlu0 %1389
      %1391 = vrot.lane.b32.xlu0 %v1362, 12
      %v1392 = vpop.permute.xlu0 %1391
      %1393 = vrot.lane.b32.xlu0 %v1363, 12
      %v1394 = vpop.permute.xlu0 %1393
      %1395 = vrot.lane.b32.xlu0 %v1364, 12
      %v1396 = vpop.permute.xlu0 %1395
      %vm1413 = vcmask 130144
      %1414 = vst.msk [vmem:[#allocation4] sm:$0xff] %vm1413, %v1366
      %1415 = vst.msk [vmem:[#allocation4 + $0x8] sm:$0xff] %vm1413, %v1368
      %1416 = vst.msk [vmem:[#allocation4 + $0x10] sm:$0xff] %vm1413, %v1370
      %1417 = vst.msk [vmem:[#allocation4 + $0x18] sm:$0xff] %vm1413, %v1372
      %1418 = vst.msk [vmem:[#allocation4 + $0x20] sm:$0xff] %vm1413, %v1374
      %1419 = vst.msk [vmem:[#allocation4 + $0x28] sm:$0xff] %vm1413, %v1376
      %1420 = vst.msk [vmem:[#allocation4 + $0x30] sm:$0xff] %vm1413, %v1378
      %1421 = vst.msk [vmem:[#allocation4 + $0x38] sm:$0xff] %vm1413, %v1380
      %1422 = vst.msk [vmem:[#allocation4 + $0x40] sm:$0xff] %vm1413, %v1382
      %1423 = vst.msk [vmem:[#allocation4 + $0x48] sm:$0xff] %vm1413, %v1384
      %1424 = vst.msk [vmem:[#allocation4 + $0x50] sm:$0xff] %vm1413, %v1386
      %1425 = vst.msk [vmem:[#allocation4 + $0x58] sm:$0xff] %vm1413, %v1388
      %1426 = vst.msk [vmem:[#allocation4 + $0x60] sm:$0xff] %vm1413, %v1390
      %1427 = vst.msk [vmem:[#allocation4 + $0x68] sm:$0xff] %vm1413, %v1392
      %1428 = vst.msk [vmem:[#allocation4 + $0x70] sm:$0xff] %vm1413, %v1394
      %1429 = vst.msk [vmem:[#allocation4 + $0x78] sm:$0xff] %vm1413, %v1396
      %v1430 = vld [vmem:[%s478] sm:$0xe]
      %v1431 = vld [vmem:[%s478 + $0x4] sm:$0xf]
      %v1432 = vld [vmem:[%s478 + $0x8] sm:$0x1]
      %v1433 = vld [vmem:[%s478 + $0xc] sm:$0xe]
      %v1434 = vld [vmem:[%s478 + $0x10] sm:$0xf]
      %v1435 = vld [vmem:[%s478 + $0x14] sm:$0x1]
      %v1436 = vld [vmem:[%s478 + $0x18] sm:$0xe]
      %v1437 = vld [vmem:[%s478 + $0x1c] sm:$0xf]
      %v1438 = vld [vmem:[%s478 + $0x20] sm:$0x1]
      %v1439 = vld [vmem:[%s478 + $0x24] sm:$0xe]
      %v1440 = vld [vmem:[%s478 + $0x28] sm:$0xf]
      %v1441 = vld [vmem:[%s478 + $0x2c] sm:$0x1]
      %v1442 = vld [vmem:[%s478 + $0x30] sm:$0xe]
      %v1443 = vld [vmem:[%s478 + $0x34] sm:$0xf]
      %v1444 = vld [vmem:[%s478 + $0x38] sm:$0x1]
      %v1445 = vld [vmem:[%s478 + $0x3c] sm:$0xe]
      %v1446 = vld [vmem:[%s478 + $0x40] sm:$0xf]
      %v1447 = vld [vmem:[%s478 + $0x44] sm:$0x1]
      %v1448 = vld [vmem:[%s478 + $0x48] sm:$0xe]
      %v1449 = vld [vmem:[%s478 + $0x4c] sm:$0xf]
      %v1450 = vld [vmem:[%s478 + $0x50] sm:$0x1]
      %v1451 = vld [vmem:[%s478 + $0x54] sm:$0xe]
      %v1452 = vld [vmem:[%s478 + $0x58] sm:$0xf]
      %v1453 = vld [vmem:[%s478 + $0x5c] sm:$0x1]
      %v1454 = vld [vmem:[%s478 + $0x60] sm:$0xe]
      %v1455 = vld [vmem:[%s478 + $0x64] sm:$0xf]
      %v1456 = vld [vmem:[%s478 + $0x68] sm:$0x1]
      %v1457 = vld [vmem:[%s478 + $0x6c] sm:$0xe]
      %v1458 = vld [vmem:[%s478 + $0x70] sm:$0xf]
      %v1459 = vld [vmem:[%s478 + $0x74] sm:$0x1]
      %v1460 = vld [vmem:[%s478 + $0x78] sm:$0xe]
      %v1461 = vld [vmem:[%s478 + $0x7c] sm:$0xf]
      %v1462 = vld [vmem:[%s478 + $0x80] sm:$0x1]
      %v1463 = vld [vmem:[%s478 + $0x84] sm:$0xe]
      %v1464 = vld [vmem:[%s478 + $0x88] sm:$0xf]
      %v1465 = vld [vmem:[%s478 + $0x8c] sm:$0x1]
      %v1466 = vld [vmem:[%s478 + $0x90] sm:$0xe]
      %v1467 = vld [vmem:[%s478 + $0x94] sm:$0xf]
      %v1468 = vld [vmem:[%s478 + $0x98] sm:$0x1]
      %v1469 = vld [vmem:[%s478 + $0x9c] sm:$0xe]
      %v1470 = vld [vmem:[%s478 + $0xa0] sm:$0xf]
      %v1471 = vld [vmem:[%s478 + $0xa4] sm:$0x1]
      %v1472 = vld [vmem:[%s478 + $0xa8] sm:$0xe]
      %v1473 = vld [vmem:[%s478 + $0xac] sm:$0xf]
      %v1474 = vld [vmem:[%s478 + $0xb0] sm:$0x1]
      %v1475 = vld [vmem:[%s478 + $0xb4] sm:$0xe]
      %v1476 = vld [vmem:[%s478 + $0xb8] sm:$0xf]
      %v1477 = vld [vmem:[%s478 + $0xbc] sm:$0x1]
      %v1526 = vunpack.c.l.b16 %v1430
      %v1527 = vunpack.c.l.b16 %v1431
      %v1528 = vunpack.c.l.b16 %v1432
      %v1529 = vunpack.c.l.b16 %v1433
      %v1530 = vunpack.c.l.b16 %v1434
      %v1531 = vunpack.c.l.b16 %v1435
      %v1532 = vunpack.c.l.b16 %v1436
      %v1533 = vunpack.c.l.b16 %v1437
      %v1534 = vunpack.c.l.b16 %v1438
      %v1535 = vunpack.c.l.b16 %v1439
      %v1536 = vunpack.c.l.b16 %v1440
      %v1537 = vunpack.c.l.b16 %v1441
      %v1538 = vunpack.c.l.b16 %v1442
      %v1539 = vunpack.c.l.b16 %v1443
      %v1540 = vunpack.c.l.b16 %v1444
      %v1541 = vunpack.c.l.b16 %v1445
      %v1542 = vunpack.c.l.b16 %v1446
      %v1543 = vunpack.c.l.b16 %v1447
      %v1544 = vunpack.c.l.b16 %v1448
      %v1545 = vunpack.c.l.b16 %v1449
      %v1546 = vunpack.c.l.b16 %v1450
      %v1547 = vunpack.c.l.b16 %v1451
      %v1548 = vunpack.c.l.b16 %v1452
      %v1549 = vunpack.c.l.b16 %v1453
      %v1550 = vunpack.c.l.b16 %v1454
      %v1551 = vunpack.c.l.b16 %v1455
      %v1552 = vunpack.c.l.b16 %v1456
      %v1553 = vunpack.c.l.b16 %v1457
      %v1554 = vunpack.c.l.b16 %v1458
      %v1555 = vunpack.c.l.b16 %v1459
      %v1556 = vunpack.c.l.b16 %v1460
      %v1557 = vunpack.c.l.b16 %v1461
      %v1558 = vunpack.c.l.b16 %v1462
      %v1559 = vunpack.c.l.b16 %v1463
      %v1560 = vunpack.c.l.b16 %v1464
      %v1561 = vunpack.c.l.b16 %v1465
      %v1562 = vunpack.c.l.b16 %v1466
      %v1563 = vunpack.c.l.b16 %v1467
      %v1564 = vunpack.c.l.b16 %v1468
      %v1565 = vunpack.c.l.b16 %v1469
      %v1566 = vunpack.c.l.b16 %v1470
      %v1567 = vunpack.c.l.b16 %v1471
      %v1568 = vunpack.c.l.b16 %v1472
      %v1569 = vunpack.c.l.b16 %v1473
      %v1570 = vunpack.c.l.b16 %v1474
      %v1571 = vunpack.c.l.b16 %v1475
      %v1572 = vunpack.c.l.b16 %v1476
      %v1573 = vunpack.c.l.b16 %v1477
      %v1574 = vpack.c.b16 %v1527, %v1526
      %v1575 = vpack.c.b16 %v1528, %v1528
      %v1576 = vpack.c.b16 %v1530, %v1529
      %v1577 = vpack.c.b16 %v1531, %v1531
      %v1578 = vpack.c.b16 %v1533, %v1532
      %v1579 = vpack.c.b16 %v1534, %v1534
      %v1580 = vpack.c.b16 %v1536, %v1535
      %v1581 = vpack.c.b16 %v1537, %v1537
      %v1582 = vpack.c.b16 %v1539, %v1538
      %v1583 = vpack.c.b16 %v1540, %v1540
      %v1584 = vpack.c.b16 %v1542, %v1541
      %v1585 = vpack.c.b16 %v1543, %v1543
      %v1586 = vpack.c.b16 %v1545, %v1544
      %v1587 = vpack.c.b16 %v1546, %v1546
      %v1588 = vpack.c.b16 %v1548, %v1547
      %v1589 = vpack.c.b16 %v1549, %v1549
      %v1590 = vpack.c.b16 %v1551, %v1550
      %v1591 = vpack.c.b16 %v1552, %v1552
      %v1592 = vpack.c.b16 %v1554, %v1553
      %v1593 = vpack.c.b16 %v1555, %v1555
      %v1594 = vpack.c.b16 %v1557, %v1556
      %v1595 = vpack.c.b16 %v1558, %v1558
      %v1596 = vpack.c.b16 %v1560, %v1559
      %v1597 = vpack.c.b16 %v1561, %v1561
      %v1598 = vpack.c.b16 %v1563, %v1562
      %v1599 = vpack.c.b16 %v1564, %v1564
      %v1600 = vpack.c.b16 %v1566, %v1565
      %v1601 = vpack.c.b16 %v1567, %v1567
      %v1602 = vpack.c.b16 %v1569, %v1568
      %v1603 = vpack.c.b16 %v1570, %v1570
      %v1604 = vpack.c.b16 %v1572, %v1571
      %v1605 = vpack.c.b16 %v1573, %v1573
      %v1606 = vrot.slane %v1574, 1
      %v1607 = vrot.slane %v1575, 1
      %v1608 = vsel %vm849, %v1606, %v1607
      %v1609 = vrot.slane %v1576, 1
      %v1610 = vrot.slane %v1577, 1
      %v1611 = vsel %vm849, %v1609, %v1610
      %v1612 = vrot.slane %v1578, 1
      %v1613 = vrot.slane %v1579, 1
      %v1614 = vsel %vm849, %v1612, %v1613
      %v1615 = vrot.slane %v1580, 1
      %v1616 = vrot.slane %v1581, 1
      %v1617 = vsel %vm849, %v1615, %v1616
      %v1618 = vrot.slane %v1582, 1
      %v1619 = vrot.slane %v1583, 1
      %v1620 = vsel %vm849, %v1618, %v1619
      %v1621 = vrot.slane %v1584, 1
      %v1622 = vrot.slane %v1585, 1
      %v1623 = vsel %vm849, %v1621, %v1622
      %v1624 = vrot.slane %v1586, 1
      %v1625 = vrot.slane %v1587, 1
      %v1626 = vsel %vm849, %v1624, %v1625
      %v1627 = vrot.slane %v1588, 1
      %v1628 = vrot.slane %v1589, 1
      %v1629 = vsel %vm849, %v1627, %v1628
      %v1630 = vrot.slane %v1590, 1
      %v1631 = vrot.slane %v1591, 1
      %v1632 = vsel %vm849, %v1630, %v1631
      %v1633 = vrot.slane %v1592, 1
      %v1634 = vrot.slane %v1593, 1
      %v1635 = vsel %vm849, %v1633, %v1634
      %v1636 = vrot.slane %v1594, 1
      %v1637 = vrot.slane %v1595, 1
      %v1638 = vsel %vm849, %v1636, %v1637
      %v1639 = vrot.slane %v1596, 1
      %v1640 = vrot.slane %v1597, 1
      %v1641 = vsel %vm849, %v1639, %v1640
      %v1642 = vrot.slane %v1598, 1
      %v1643 = vrot.slane %v1599, 1
      %v1644 = vsel %vm849, %v1642, %v1643
      %v1645 = vrot.slane %v1600, 1
      %v1646 = vrot.slane %v1601, 1
      %v1647 = vsel %vm849, %v1645, %v1646
      %v1648 = vrot.slane %v1602, 1
      %v1649 = vrot.slane %v1603, 1
      %v1650 = vsel %vm849, %v1648, %v1649
      %v1651 = vrot.slane %v1604, 1
      %v1652 = vrot.slane %v1605, 1
      %v1653 = vsel %vm849, %v1651, %v1652
      %1654 = vrot.lane.b32.xlu0 %v1608, 16
      %v1655 = vpop.permute.xlu0 %1654
      %1656 = vrot.lane.b32.xlu0 %v1611, 16
      %v1657 = vpop.permute.xlu0 %1656
      %1658 = vrot.lane.b32.xlu0 %v1614, 16
      %v1659 = vpop.permute.xlu0 %1658
      %1660 = vrot.lane.b32.xlu0 %v1617, 16
      %v1661 = vpop.permute.xlu0 %1660
      %1662 = vrot.lane.b32.xlu0 %v1620, 16
      %v1663 = vpop.permute.xlu0 %1662
      %1664 = vrot.lane.b32.xlu0 %v1623, 16
      %v1665 = vpop.permute.xlu0 %1664
      %1666 = vrot.lane.b32.xlu0 %v1626, 16
      %v1667 = vpop.permute.xlu0 %1666
      %1668 = vrot.lane.b32.xlu0 %v1629, 16
      %v1669 = vpop.permute.xlu0 %1668
      %1670 = vrot.lane.b32.xlu0 %v1632, 16
      %v1671 = vpop.permute.xlu0 %1670
      %1672 = vrot.lane.b32.xlu0 %v1635, 16
      %v1673 = vpop.permute.xlu0 %1672
      %1674 = vrot.lane.b32.xlu0 %v1638, 16
      %v1675 = vpop.permute.xlu0 %1674
      %1676 = vrot.lane.b32.xlu0 %v1641, 16
      %v1677 = vpop.permute.xlu0 %1676
      %1678 = vrot.lane.b32.xlu0 %v1644, 16
      %v1679 = vpop.permute.xlu0 %1678
      %1680 = vrot.lane.b32.xlu0 %v1647, 16
      %v1681 = vpop.permute.xlu0 %1680
      %1682 = vrot.lane.b32.xlu0 %v1650, 16
      %v1683 = vpop.permute.xlu0 %1682
      %1684 = vrot.lane.b32.xlu0 %v1653, 16
      %v1685 = vpop.permute.xlu0 %1684
      %vm1702 = vcmask 162944
      %1703 = vst.msk [vmem:[#allocation4] sm:$0xff] %vm1702, %v1655
      %1704 = vst.msk [vmem:[#allocation4 + $0x8] sm:$0xff] %vm1702, %v1657
      %1705 = vst.msk [vmem:[#allocation4 + $0x10] sm:$0xff] %vm1702, %v1659
      %1706 = vst.msk [vmem:[#allocation4 + $0x18] sm:$0xff] %vm1702, %v1661
      %1707 = vst.msk [vmem:[#allocation4 + $0x20] sm:$0xff] %vm1702, %v1663
      %1708 = vst.msk [vmem:[#allocation4 + $0x28] sm:$0xff] %vm1702, %v1665
      %1709 = vst.msk [vmem:[#allocation4 + $0x30] sm:$0xff] %vm1702, %v1667
      %1710 = vst.msk [vmem:[#allocation4 + $0x38] sm:$0xff] %vm1702, %v1669
      %1711 = vst.msk [vmem:[#allocation4 + $0x40] sm:$0xff] %vm1702, %v1671
      %1712 = vst.msk [vmem:[#allocation4 + $0x48] sm:$0xff] %vm1702, %v1673
      %1713 = vst.msk [vmem:[#allocation4 + $0x50] sm:$0xff] %vm1702, %v1675
      %1714 = vst.msk [vmem:[#allocation4 + $0x58] sm:$0xff] %vm1702, %v1677
      %1715 = vst.msk [vmem:[#allocation4 + $0x60] sm:$0xff] %vm1702, %v1679
      %1716 = vst.msk [vmem:[#allocation4 + $0x68] sm:$0xff] %vm1702, %v1681
      %1717 = vst.msk [vmem:[#allocation4 + $0x70] sm:$0xff] %vm1702, %v1683
      %1718 = vst.msk [vmem:[#allocation4 + $0x78] sm:$0xff] %vm1702, %v1685
      %v1719 = vld [vmem:[%s478] sm:$0xc]
      %v1720 = vld [vmem:[%s478 + $0x4] sm:$0xf]
      %v1721 = vld [vmem:[%s478 + $0x8] sm:$0x3]
      %v1722 = vld [vmem:[%s478 + $0xc] sm:$0xc]
      %v1723 = vld [vmem:[%s478 + $0x10] sm:$0xf]
      %v1724 = vld [vmem:[%s478 + $0x14] sm:$0x3]
      %v1725 = vld [vmem:[%s478 + $0x18] sm:$0xc]
      %v1726 = vld [vmem:[%s478 + $0x1c] sm:$0xf]
      %v1727 = vld [vmem:[%s478 + $0x20] sm:$0x3]
      %v1728 = vld [vmem:[%s478 + $0x24] sm:$0xc]
      %v1729 = vld [vmem:[%s478 + $0x28] sm:$0xf]
      %v1730 = vld [vmem:[%s478 + $0x2c] sm:$0x3]
      %v1731 = vld [vmem:[%s478 + $0x30] sm:$0xc]
      %v1732 = vld [vmem:[%s478 + $0x34] sm:$0xf]
      %v1733 = vld [vmem:[%s478 + $0x38] sm:$0x3]
      %v1734 = vld [vmem:[%s478 + $0x3c] sm:$0xc]
      %v1735 = vld [vmem:[%s478 + $0x40] sm:$0xf]
      %v1736 = vld [vmem:[%s478 + $0x44] sm:$0x3]
      %v1737 = vld [vmem:[%s478 + $0x48] sm:$0xc]
      %v1738 = vld [vmem:[%s478 + $0x4c] sm:$0xf]
      %v1739 = vld [vmem:[%s478 + $0x50] sm:$0x3]
      %v1740 = vld [vmem:[%s478 + $0x54] sm:$0xc]
      %v1741 = vld [vmem:[%s478 + $0x58] sm:$0xf]
      %v1742 = vld [vmem:[%s478 + $0x5c] sm:$0x3]
      %v1743 = vld [vmem:[%s478 + $0x60] sm:$0xc]
      %v1744 = vld [vmem:[%s478 + $0x64] sm:$0xf]
      %v1745 = vld [vmem:[%s478 + $0x68] sm:$0x3]
      %v1746 = vld [vmem:[%s478 + $0x6c] sm:$0xc]
      %v1747 = vld [vmem:[%s478 + $0x70] sm:$0xf]
      %v1748 = vld [vmem:[%s478 + $0x74] sm:$0x3]
      %v1749 = vld [vmem:[%s478 + $0x78] sm:$0xc]
      %v1750 = vld [vmem:[%s478 + $0x7c] sm:$0xf]
      %v1751 = vld [vmem:[%s478 + $0x80] sm:$0x3]
      %v1752 = vld [vmem:[%s478 + $0x84] sm:$0xc]
      %v1753 = vld [vmem:[%s478 + $0x88] sm:$0xf]
      %v1754 = vld [vmem:[%s478 + $0x8c] sm:$0x3]
      %v1755 = vld [vmem:[%s478 + $0x90] sm:$0xc]
      %v1756 = vld [vmem:[%s478 + $0x94] sm:$0xf]
      %v1757 = vld [vmem:[%s478 + $0x98] sm:$0x3]
      %v1758 = vld [vmem:[%s478 + $0x9c] sm:$0xc]
      %v1759 = vld [vmem:[%s478 + $0xa0] sm:$0xf]
      %v1760 = vld [vmem:[%s478 + $0xa4] sm:$0x3]
      %v1761 = vld [vmem:[%s478 + $0xa8] sm:$0xc]
      %v1762 = vld [vmem:[%s478 + $0xac] sm:$0xf]
      %v1763 = vld [vmem:[%s478 + $0xb0] sm:$0x3]
      %v1764 = vld [vmem:[%s478 + $0xb4] sm:$0xc]
      %v1765 = vld [vmem:[%s478 + $0xb8] sm:$0xf]
      %v1766 = vld [vmem:[%s478 + $0xbc] sm:$0x3]
      %v1815 = vunpack.c.l.b16 %v1719
      %v1816 = vunpack.c.l.b16 %v1720
      %v1817 = vunpack.c.l.b16 %v1721
      %v1818 = vunpack.c.l.b16 %v1722
      %v1819 = vunpack.c.l.b16 %v1723
      %v1820 = vunpack.c.l.b16 %v1724
      %v1821 = vunpack.c.l.b16 %v1725
      %v1822 = vunpack.c.l.b16 %v1726
      %v1823 = vunpack.c.l.b16 %v1727
      %v1824 = vunpack.c.l.b16 %v1728
      %v1825 = vunpack.c.l.b16 %v1729
      %v1826 = vunpack.c.l.b16 %v1730
      %v1827 = vunpack.c.l.b16 %v1731
      %v1828 = vunpack.c.l.b16 %v1732
      %v1829 = vunpack.c.l.b16 %v1733
      %v1830 = vunpack.c.l.b16 %v1734
      %v1831 = vunpack.c.l.b16 %v1735
      %v1832 = vunpack.c.l.b16 %v1736
      %v1833 = vunpack.c.l.b16 %v1737
      %v1834 = vunpack.c.l.b16 %v1738
      %v1835 = vunpack.c.l.b16 %v1739
      %v1836 = vunpack.c.l.b16 %v1740
      %v1837 = vunpack.c.l.b16 %v1741
      %v1838 = vunpack.c.l.b16 %v1742
      %v1839 = vunpack.c.l.b16 %v1743
      %v1840 = vunpack.c.l.b16 %v1744
      %v1841 = vunpack.c.l.b16 %v1745
      %v1842 = vunpack.c.l.b16 %v1746
      %v1843 = vunpack.c.l.b16 %v1747
      %v1844 = vunpack.c.l.b16 %v1748
      %v1845 = vunpack.c.l.b16 %v1749
      %v1846 = vunpack.c.l.b16 %v1750
      %v1847 = vunpack.c.l.b16 %v1751
      %v1848 = vunpack.c.l.b16 %v1752
      %v1849 = vunpack.c.l.b16 %v1753
      %v1850 = vunpack.c.l.b16 %v1754
      %v1851 = vunpack.c.l.b16 %v1755
      %v1852 = vunpack.c.l.b16 %v1756
      %v1853 = vunpack.c.l.b16 %v1757
      %v1854 = vunpack.c.l.b16 %v1758
      %v1855 = vunpack.c.l.b16 %v1759
      %v1856 = vunpack.c.l.b16 %v1760
      %v1857 = vunpack.c.l.b16 %v1761
      %v1858 = vunpack.c.l.b16 %v1762
      %v1859 = vunpack.c.l.b16 %v1763
      %v1860 = vunpack.c.l.b16 %v1764
      %v1861 = vunpack.c.l.b16 %v1765
      %v1862 = vunpack.c.l.b16 %v1766
      %v1863 = vpack.c.b16 %v1816, %v1815
      %v1864 = vpack.c.b16 %v1817, %v1817
      %v1865 = vpack.c.b16 %v1819, %v1818
      %v1866 = vpack.c.b16 %v1820, %v1820
      %v1867 = vpack.c.b16 %v1822, %v1821
      %v1868 = vpack.c.b16 %v1823, %v1823
      %v1869 = vpack.c.b16 %v1825, %v1824
      %v1870 = vpack.c.b16 %v1826, %v1826
      %v1871 = vpack.c.b16 %v1828, %v1827
      %v1872 = vpack.c.b16 %v1829, %v1829
      %v1873 = vpack.c.b16 %v1831, %v1830
      %v1874 = vpack.c.b16 %v1832, %v1832
      %v1875 = vpack.c.b16 %v1834, %v1833
      %v1876 = vpack.c.b16 %v1835, %v1835
      %v1877 = vpack.c.b16 %v1837, %v1836
      %v1878 = vpack.c.b16 %v1838, %v1838
      %v1879 = vpack.c.b16 %v1840, %v1839
      %v1880 = vpack.c.b16 %v1841, %v1841
      %v1881 = vpack.c.b16 %v1843, %v1842
      %v1882 = vpack.c.b16 %v1844, %v1844
      %v1883 = vpack.c.b16 %v1846, %v1845
      %v1884 = vpack.c.b16 %v1847, %v1847
      %v1885 = vpack.c.b16 %v1849, %v1848
      %v1886 = vpack.c.b16 %v1850, %v1850
      %v1887 = vpack.c.b16 %v1852, %v1851
      %v1888 = vpack.c.b16 %v1853, %v1853
      %v1889 = vpack.c.b16 %v1855, %v1854
      %v1890 = vpack.c.b16 %v1856, %v1856
      %v1891 = vpack.c.b16 %v1858, %v1857
      %v1892 = vpack.c.b16 %v1859, %v1859
      %v1893 = vpack.c.b16 %v1861, %v1860
      %v1894 = vpack.c.b16 %v1862, %v1862
      %v1895 = vrot.slane %v1863, 2
      %v1896 = vrot.slane %v1864, 2
      %v1897 = vsel %vm1139, %v1895, %v1896
      %v1898 = vrot.slane %v1865, 2
      %v1899 = vrot.slane %v1866, 2
      %v1900 = vsel %vm1139, %v1898, %v1899
      %v1901 = vrot.slane %v1867, 2
      %v1902 = vrot.slane %v1868, 2
      %v1903 = vsel %vm1139, %v1901, %v1902
      %v1904 = vrot.slane %v1869, 2
      %v1905 = vrot.slane %v1870, 2
      %v1906 = vsel %vm1139, %v1904, %v1905
      %v1907 = vrot.slane %v1871, 2
      %v1908 = vrot.slane %v1872, 2
      %v1909 = vsel %vm1139, %v1907, %v1908
      %v1910 = vrot.slane %v1873, 2
      %v1911 = vrot.slane %v1874, 2
      %v1912 = vsel %vm1139, %v1910, %v1911
      %v1913 = vrot.slane %v1875, 2
      %v1914 = vrot.slane %v1876, 2
      %v1915 = vsel %vm1139, %v1913, %v1914
      %v1916 = vrot.slane %v1877, 2
      %v1917 = vrot.slane %v1878, 2
      %v1918 = vsel %vm1139, %v1916, %v1917
      %v1919 = vrot.slane %v1879, 2
      %v1920 = vrot.slane %v1880, 2
      %v1921 = vsel %vm1139, %v1919, %v1920
      %v1922 = vrot.slane %v1881, 2
      %v1923 = vrot.slane %v1882, 2
      %v1924 = vsel %vm1139, %v1922, %v1923
      %v1925 = vrot.slane %v1883, 2
      %v1926 = vrot.slane %v1884, 2
      %v1927 = vsel %vm1139, %v1925, %v1926
      %v1928 = vrot.slane %v1885, 2
      %v1929 = vrot.slane %v1886, 2
      %v1930 = vsel %vm1139, %v1928, %v1929
      %v1931 = vrot.slane %v1887, 2
      %v1932 = vrot.slane %v1888, 2
      %v1933 = vsel %vm1139, %v1931, %v1932
      %v1934 = vrot.slane %v1889, 2
      %v1935 = vrot.slane %v1890, 2
      %v1936 = vsel %vm1139, %v1934, %v1935
      %v1937 = vrot.slane %v1891, 2
      %v1938 = vrot.slane %v1892, 2
      %v1939 = vsel %vm1139, %v1937, %v1938
      %v1940 = vrot.slane %v1893, 2
      %v1941 = vrot.slane %v1894, 2
      %v1942 = vsel %vm1139, %v1940, %v1941
      %1943 = vrot.lane.b32.xlu0 %v1897, 20
      %v1944 = vpop.permute.xlu0 %1943
      %1945 = vrot.lane.b32.xlu0 %v1900, 20
      %v1946 = vpop.permute.xlu0 %1945
      %1947 = vrot.lane.b32.xlu0 %v1903, 20
      %v1948 = vpop.permute.xlu0 %1947
      %1949 = vrot.lane.b32.xlu0 %v1906, 20
      %v1950 = vpop.permute.xlu0 %1949
      %1951 = vrot.lane.b32.xlu0 %v1909, 20
      %v1952 = vpop.permute.xlu0 %1951
      %1953 = vrot.lane.b32.xlu0 %v1912, 20
      %v1954 = vpop.permute.xlu0 %1953
      %1955 = vrot.lane.b32.xlu0 %v1915, 20
      %v1956 = vpop.permute.xlu0 %1955
      %1957 = vrot.lane.b32.xlu0 %v1918, 20
      %v1958 = vpop.permute.xlu0 %1957
      %1959 = vrot.lane.b32.xlu0 %v1921, 20
      %v1960 = vpop.permute.xlu0 %1959
      %1961 = vrot.lane.b32.xlu0 %v1924, 20
      %v1962 = vpop.permute.xlu0 %1961
      %1963 = vrot.lane.b32.xlu0 %v1927, 20
      %v1964 = vpop.permute.xlu0 %1963
      %1965 = vrot.lane.b32.xlu0 %v1930, 20
      %v1966 = vpop.permute.xlu0 %1965
      %1967 = vrot.lane.b32.xlu0 %v1933, 20
      %v1968 = vpop.permute.xlu0 %1967
      %1969 = vrot.lane.b32.xlu0 %v1936, 20
      %v1970 = vpop.permute.xlu0 %1969
      %1971 = vrot.lane.b32.xlu0 %v1939, 20
      %v1972 = vpop.permute.xlu0 %1971
      %1973 = vrot.lane.b32.xlu0 %v1942, 20
      %v1974 = vpop.permute.xlu0 %1973
      %vm1991 = vcmask 195744
      %1992 = vst.msk [vmem:[#allocation4] sm:$0xff] %vm1991, %v1944
      %1993 = vst.msk [vmem:[#allocation4 + $0x8] sm:$0xff] %vm1991, %v1946
      %1994 = vst.msk [vmem:[#allocation4 + $0x10] sm:$0xff] %vm1991, %v1948
      %1995 = vst.msk [vmem:[#allocation4 + $0x18] sm:$0xff] %vm1991, %v1950
      %1996 = vst.msk [vmem:[#allocation4 + $0x20] sm:$0xff] %vm1991, %v1952
      %1997 = vst.msk [vmem:[#allocation4 + $0x28] sm:$0xff] %vm1991, %v1954
      %1998 = vst.msk [vmem:[#allocation4 + $0x30] sm:$0xff] %vm1991, %v1956
      %1999 = vst.msk [vmem:[#allocation4 + $0x38] sm:$0xff] %vm1991, %v1958
      %2000 = vst.msk [vmem:[#allocation4 + $0x40] sm:$0xff] %vm1991, %v1960
      %2001 = vst.msk [vmem:[#allocation4 + $0x48] sm:$0xff] %vm1991, %v1962
      %2002 = vst.msk [vmem:[#allocation4 + $0x50] sm:$0xff] %vm1991, %v1964
      %2003 = vst.msk [vmem:[#allocation4 + $0x58] sm:$0xff] %vm1991, %v1966
      %2004 = vst.msk [vmem:[#allocation4 + $0x60] sm:$0xff] %vm1991, %v1968
      %2005 = vst.msk [vmem:[#allocation4 + $0x68] sm:$0xff] %vm1991, %v1970
      %2006 = vst.msk [vmem:[#allocation4 + $0x70] sm:$0xff] %vm1991, %v1972
      %2007 = vst.msk [vmem:[#allocation4 + $0x78] sm:$0xff] %vm1991, %v1974
      %s2008 = scalar_lea.vmem [#allocation2], 48
      %v2009 = vld [vmem:[%s2008] sm:$0xf]
      %v2010 = vld [vmem:[%s2008 + $0x4] sm:$0xf]
      %v2011 = vld [vmem:[%s2008 + $0xc] sm:$0xf]
      %v2012 = vld [vmem:[%s2008 + $0x10] sm:$0xf]
      %v2013 = vld [vmem:[%s2008 + $0x18] sm:$0xf]
      %v2014 = vld [vmem:[%s2008 + $0x1c] sm:$0xf]
      %v2015 = vld [vmem:[%s2008 + $0x24] sm:$0xf]
      %v2016 = vld [vmem:[%s2008 + $0x28] sm:$0xf]
      %v2017 = vld [vmem:[%s2008 + $0x30] sm:$0xf]
      %v2018 = vld [vmem:[%s2008 + $0x34] sm:$0xf]
      %v2019 = vld [vmem:[%s2008 + $0x3c] sm:$0xf]
      %v2020 = vld [vmem:[%s2008 + $0x40] sm:$0xf]
      %v2021 = vld [vmem:[%s2008 + $0x48] sm:$0xf]
      %v2022 = vld [vmem:[%s2008 + $0x4c] sm:$0xf]
      %v2023 = vld [vmem:[%s2008 + $0x54] sm:$0xf]
      %v2024 = vld [vmem:[%s2008 + $0x58] sm:$0xf]
      %v2025 = vld [vmem:[%s2008 + $0x60] sm:$0xf]
      %v2026 = vld [vmem:[%s2008 + $0x64] sm:$0xf]
      %v2027 = vld [vmem:[%s2008 + $0x6c] sm:$0xf]
      %v2028 = vld [vmem:[%s2008 + $0x70] sm:$0xf]
      %v2029 = vld [vmem:[%s2008 + $0x78] sm:$0xf]
      %v2030 = vld [vmem:[%s2008 + $0x7c] sm:$0xf]
      %v2031 = vld [vmem:[%s2008 + $0x84] sm:$0xf]
      %v2032 = vld [vmem:[%s2008 + $0x88] sm:$0xf]
      %v2033 = vld [vmem:[%s2008 + $0x90] sm:$0xf]
      %v2034 = vld [vmem:[%s2008 + $0x94] sm:$0xf]
      %v2035 = vld [vmem:[%s2008 + $0x9c] sm:$0xf]
      %v2036 = vld [vmem:[%s2008 + $0xa0] sm:$0xf]
      %v2037 = vld [vmem:[%s2008 + $0xa8] sm:$0xf]
      %v2038 = vld [vmem:[%s2008 + $0xac] sm:$0xf]
      %v2039 = vld [vmem:[%s2008 + $0xb4] sm:$0xf]
      %v2040 = vld [vmem:[%s2008 + $0xb8] sm:$0xf]
      %v2073 = vunpack.c.l.b16 %v2009
      %v2074 = vunpack.c.l.b16 %v2010
      %v2075 = vunpack.c.l.b16 %v2011
      %v2076 = vunpack.c.l.b16 %v2012
      %v2077 = vunpack.c.l.b16 %v2013
      %v2078 = vunpack.c.l.b16 %v2014
      %v2079 = vunpack.c.l.b16 %v2015
      %v2080 = vunpack.c.l.b16 %v2016
      %v2081 = vunpack.c.l.b16 %v2017
      %v2082 = vunpack.c.l.b16 %v2018
      %v2083 = vunpack.c.l.b16 %v2019
      %v2084 = vunpack.c.l.b16 %v2020
      %v2085 = vunpack.c.l.b16 %v2021
      %v2086 = vunpack.c.l.b16 %v2022
      %v2087 = vunpack.c.l.b16 %v2023
      %v2088 = vunpack.c.l.b16 %v2024
      %v2089 = vunpack.c.l.b16 %v2025
      %v2090 = vunpack.c.l.b16 %v2026
      %v2091 = vunpack.c.l.b16 %v2027
      %v2092 = vunpack.c.l.b16 %v2028
      %v2093 = vunpack.c.l.b16 %v2029
      %v2094 = vunpack.c.l.b16 %v2030
      %v2095 = vunpack.c.l.b16 %v2031
      %v2096 = vunpack.c.l.b16 %v2032
      %v2097 = vunpack.c.l.b16 %v2033
      %v2098 = vunpack.c.l.b16 %v2034
      %v2099 = vunpack.c.l.b16 %v2035
      %v2100 = vunpack.c.l.b16 %v2036
      %v2101 = vunpack.c.l.b16 %v2037
      %v2102 = vunpack.c.l.b16 %v2038
      %v2103 = vunpack.c.l.b16 %v2039
      %v2104 = vunpack.c.l.b16 %v2040
      %v2105 = vpack.c.b16 %v2074, %v2073
      %v2106 = vpack.c.b16 %v2076, %v2075
      %v2107 = vpack.c.b16 %v2078, %v2077
      %v2108 = vpack.c.b16 %v2080, %v2079
      %v2109 = vpack.c.b16 %v2082, %v2081
      %v2110 = vpack.c.b16 %v2084, %v2083
      %v2111 = vpack.c.b16 %v2086, %v2085
      %v2112 = vpack.c.b16 %v2088, %v2087
      %v2113 = vpack.c.b16 %v2090, %v2089
      %v2114 = vpack.c.b16 %v2092, %v2091
      %v2115 = vpack.c.b16 %v2094, %v2093
      %v2116 = vpack.c.b16 %v2096, %v2095
      %v2117 = vpack.c.b16 %v2098, %v2097
      %v2118 = vpack.c.b16 %v2100, %v2099
      %v2119 = vpack.c.b16 %v2102, %v2101
      %v2120 = vpack.c.b16 %v2104, %v2103
      %2121 = vrot.lane.b32.xlu0 %v2105, 24
      %v2122 = vpop.permute.xlu0 %2121
      %2123 = vrot.lane.b32.xlu0 %v2106, 24
      %v2124 = vpop.permute.xlu0 %2123
      %2125 = vrot.lane.b32.xlu0 %v2107, 24
      %v2126 = vpop.permute.xlu0 %2125
      %2127 = vrot.lane.b32.xlu0 %v2108, 24
      %v2128 = vpop.permute.xlu0 %2127
      %2129 = vrot.lane.b32.xlu0 %v2109, 24
      %v2130 = vpop.permute.xlu0 %2129
      %2131 = vrot.lane.b32.xlu0 %v2110, 24
      %v2132 = vpop.permute.xlu0 %2131
      %2133 = vrot.lane.b32.xlu0 %v2111, 24
      %v2134 = vpop.permute.xlu0 %2133
      %2135 = vrot.lane.b32.xlu0 %v2112, 24
      %v2136 = vpop.permute.xlu0 %2135
      %2137 = vrot.lane.b32.xlu0 %v2113, 24
      %v2138 = vpop.permute.xlu0 %2137
      %2139 = vrot.lane.b32.xlu0 %v2114, 24
      %v2140 = vpop.permute.xlu0 %2139
      %2141 = vrot.lane.b32.xlu0 %v2115, 24
      %v2142 = vpop.permute.xlu0 %2141
      %2143 = vrot.lane.b32.xlu0 %v2116, 24
      %v2144 = vpop.permute.xlu0 %2143
      %2145 = vrot.lane.b32.xlu0 %v2117, 24
      %v2146 = vpop.permute.xlu0 %2145
      %2147 = vrot.lane.b32.xlu0 %v2118, 24
      %v2148 = vpop.permute.xlu0 %2147
      %2149 = vrot.lane.b32.xlu0 %v2119, 24
      %v2150 = vpop.permute.xlu0 %2149
      %2151 = vrot.lane.b32.xlu0 %v2120, 24
      %v2152 = vpop.permute.xlu0 %2151
      %vm2169 = vcmask 228544
      %2170 = vst.msk [vmem:[#allocation4] sm:$0xff] %vm2169, %v2122
      %2171 = vst.msk [vmem:[#allocation4 + $0x8] sm:$0xff] %vm2169, %v2124
      %2172 = vst.msk [vmem:[#allocation4 + $0x10] sm:$0xff] %vm2169, %v2126
      %2173 = vst.msk [vmem:[#allocation4 + $0x18] sm:$0xff] %vm2169, %v2128
      %2174 = vst.msk [vmem:[#allocation4 + $0x20] sm:$0xff] %vm2169, %v2130
      %2175 = vst.msk [vmem:[#allocation4 + $0x28] sm:$0xff] %vm2169, %v2132
      %2176 = vst.msk [vmem:[#allocation4 + $0x30] sm:$0xff] %vm2169, %v2134
      %2177 = vst.msk [vmem:[#allocation4 + $0x38] sm:$0xff] %vm2169, %v2136
      %2178 = vst.msk [vmem:[#allocation4 + $0x40] sm:$0xff] %vm2169, %v2138
      %2179 = vst.msk [vmem:[#allocation4 + $0x48] sm:$0xff] %vm2169, %v2140
      %2180 = vst.msk [vmem:[#allocation4 + $0x50] sm:$0xff] %vm2169, %v2142
      %2181 = vst.msk [vmem:[#allocation4 + $0x58] sm:$0xff] %vm2169, %v2144
      %2182 = vst.msk [vmem:[#allocation4 + $0x60] sm:$0xff] %vm2169, %v2146
      %2183 = vst.msk [vmem:[#allocation4 + $0x68] sm:$0xff] %vm2169, %v2148
      %2184 = vst.msk [vmem:[#allocation4 + $0x70] sm:$0xff] %vm2169, %v2150
      %2185 = vst.msk [vmem:[#allocation4 + $0x78] sm:$0xff] %vm2169, %v2152
      %v2186 = vld [vmem:[%s2008] sm:$0xe]
      %v2187 = vld [vmem:[%s2008 + $0x4] sm:$0xf]
      %v2188 = vld [vmem:[%s2008 + $0x8] sm:$0x1]
      %v2189 = vld [vmem:[%s2008 + $0xc] sm:$0xe]
      %v2190 = vld [vmem:[%s2008 + $0x10] sm:$0xf]
      %v2191 = vld [vmem:[%s2008 + $0x14] sm:$0x1]
      %v2192 = vld [vmem:[%s2008 + $0x18] sm:$0xe]
      %v2193 = vld [vmem:[%s2008 + $0x1c] sm:$0xf]
      %v2194 = vld [vmem:[%s2008 + $0x20] sm:$0x1]
      %v2195 = vld [vmem:[%s2008 + $0x24] sm:$0xe]
      %v2196 = vld [vmem:[%s2008 + $0x28] sm:$0xf]
      %v2197 = vld [vmem:[%s2008 + $0x2c] sm:$0x1]
      %v2198 = vld [vmem:[%s2008 + $0x30] sm:$0xe]
      %v2199 = vld [vmem:[%s2008 + $0x34] sm:$0xf]
      %v2200 = vld [vmem:[%s2008 + $0x38] sm:$0x1]
      %v2201 = vld [vmem:[%s2008 + $0x3c] sm:$0xe]
      %v2202 = vld [vmem:[%s2008 + $0x40] sm:$0xf]
      %v2203 = vld [vmem:[%s2008 + $0x44] sm:$0x1]
      %v2204 = vld [vmem:[%s2008 + $0x48] sm:$0xe]
      %v2205 = vld [vmem:[%s2008 + $0x4c] sm:$0xf]
      %v2206 = vld [vmem:[%s2008 + $0x50] sm:$0x1]
      %v2207 = vld [vmem:[%s2008 + $0x54] sm:$0xe]
      %v2208 = vld [vmem:[%s2008 + $0x58] sm:$0xf]
      %v2209 = vld [vmem:[%s2008 + $0x5c] sm:$0x1]
      %v2210 = vld [vmem:[%s2008 + $0x60] sm:$0xe]
      %v2211 = vld [vmem:[%s2008 + $0x64] sm:$0xf]
      %v2212 = vld [vmem:[%s2008 + $0x68] sm:$0x1]
      %v2213 = vld [vmem:[%s2008 + $0x6c] sm:$0xe]
      %v2214 = vld [vmem:[%s2008 + $0x70] sm:$0xf]
      %v2215 = vld [vmem:[%s2008 + $0x74] sm:$0x1]
      %v2216 = vld [vmem:[%s2008 + $0x78] sm:$0xe]
      %v2217 = vld [vmem:[%s2008 + $0x7c] sm:$0xf]
      %v2218 = vld [vmem:[%s2008 + $0x80] sm:$0x1]
      %v2219 = vld [vmem:[%s2008 + $0x84] sm:$0xe]
      %v2220 = vld [vmem:[%s2008 + $0x88] sm:$0xf]
      %v2221 = vld [vmem:[%s2008 + $0x8c] sm:$0x1]
      %v2222 = vld [vmem:[%s2008 + $0x90] sm:$0xe]
      %v2223 = vld [vmem:[%s2008 + $0x94] sm:$0xf]
      %v2224 = vld [vmem:[%s2008 + $0x98] sm:$0x1]
      %v2225 = vld [vmem:[%s2008 + $0x9c] sm:$0xe]
      %v2226 = vld [vmem:[%s2008 + $0xa0] sm:$0xf]
      %v2227 = vld [vmem:[%s2008 + $0xa4] sm:$0x1]
      %v2228 = vld [vmem:[%s2008 + $0xa8] sm:$0xe]
      %v2229 = vld [vmem:[%s2008 + $0xac] sm:$0xf]
      %v2230 = vld [vmem:[%s2008 + $0xb0] sm:$0x1]
      %v2231 = vld [vmem:[%s2008 + $0xb4] sm:$0xe]
      %v2232 = vld [vmem:[%s2008 + $0xb8] sm:$0xf]
      %v2233 = vld [vmem:[%s2008 + $0xbc] sm:$0x1]
      %v2282 = vunpack.c.l.b16 %v2186
      %v2283 = vunpack.c.l.b16 %v2187
      %v2284 = vunpack.c.l.b16 %v2188
      %v2285 = vunpack.c.l.b16 %v2189
      %v2286 = vunpack.c.l.b16 %v2190
      %v2287 = vunpack.c.l.b16 %v2191
      %v2288 = vunpack.c.l.b16 %v2192
      %v2289 = vunpack.c.l.b16 %v2193
      %v2290 = vunpack.c.l.b16 %v2194
      %v2291 = vunpack.c.l.b16 %v2195
      %v2292 = vunpack.c.l.b16 %v2196
      %v2293 = vunpack.c.l.b16 %v2197
      %v2294 = vunpack.c.l.b16 %v2198
      %v2295 = vunpack.c.l.b16 %v2199
      %v2296 = vunpack.c.l.b16 %v2200
      %v2297 = vunpack.c.l.b16 %v2201
      %v2298 = vunpack.c.l.b16 %v2202
      %v2299 = vunpack.c.l.b16 %v2203
      %v2300 = vunpack.c.l.b16 %v2204
      %v2301 = vunpack.c.l.b16 %v2205
      %v2302 = vunpack.c.l.b16 %v2206
      %v2303 = vunpack.c.l.b16 %v2207
      %v2304 = vunpack.c.l.b16 %v2208
      %v2305 = vunpack.c.l.b16 %v2209
      %v2306 = vunpack.c.l.b16 %v2210
      %v2307 = vunpack.c.l.b16 %v2211
      %v2308 = vunpack.c.l.b16 %v2212
      %v2309 = vunpack.c.l.b16 %v2213
      %v2310 = vunpack.c.l.b16 %v2214
      %v2311 = vunpack.c.l.b16 %v2215
      %v2312 = vunpack.c.l.b16 %v2216
      %v2313 = vunpack.c.l.b16 %v2217
      %v2314 = vunpack.c.l.b16 %v2218
      %v2315 = vunpack.c.l.b16 %v2219
      %v2316 = vunpack.c.l.b16 %v2220
      %v2317 = vunpack.c.l.b16 %v2221
      %v2318 = vunpack.c.l.b16 %v2222
      %v2319 = vunpack.c.l.b16 %v2223
      %v2320 = vunpack.c.l.b16 %v2224
      %v2321 = vunpack.c.l.b16 %v2225
      %v2322 = vunpack.c.l.b16 %v2226
      %v2323 = vunpack.c.l.b16 %v2227
      %v2324 = vunpack.c.l.b16 %v2228
      %v2325 = vunpack.c.l.b16 %v2229
      %v2326 = vunpack.c.l.b16 %v2230
      %v2327 = vunpack.c.l.b16 %v2231
      %v2328 = vunpack.c.l.b16 %v2232
      %v2329 = vunpack.c.l.b16 %v2233
      %v2330 = vpack.c.b16 %v2283, %v2282
      %v2331 = vpack.c.b16 %v2284, %v2284
      %v2332 = vpack.c.b16 %v2286, %v2285
      %v2333 = vpack.c.b16 %v2287, %v2287
      %v2334 = vpack.c.b16 %v2289, %v2288
      %v2335 = vpack.c.b16 %v2290, %v2290
      %v2336 = vpack.c.b16 %v2292, %v2291
      %v2337 = vpack.c.b16 %v2293, %v2293
      %v2338 = vpack.c.b16 %v2295, %v2294
      %v2339 = vpack.c.b16 %v2296, %v2296
      %v2340 = vpack.c.b16 %v2298, %v2297
      %v2341 = vpack.c.b16 %v2299, %v2299
      %v2342 = vpack.c.b16 %v2301, %v2300
      %v2343 = vpack.c.b16 %v2302, %v2302
      %v2344 = vpack.c.b16 %v2304, %v2303
      %v2345 = vpack.c.b16 %v2305, %v2305
      %v2346 = vpack.c.b16 %v2307, %v2306
      %v2347 = vpack.c.b16 %v2308, %v2308
      %v2348 = vpack.c.b16 %v2310, %v2309
      %v2349 = vpack.c.b16 %v2311, %v2311
      %v2350 = vpack.c.b16 %v2313, %v2312
      %v2351 = vpack.c.b16 %v2314, %v2314
      %v2352 = vpack.c.b16 %v2316, %v2315
      %v2353 = vpack.c.b16 %v2317, %v2317
      %v2354 = vpack.c.b16 %v2319, %v2318
      %v2355 = vpack.c.b16 %v2320, %v2320
      %v2356 = vpack.c.b16 %v2322, %v2321
      %v2357 = vpack.c.b16 %v2323, %v2323
      %v2358 = vpack.c.b16 %v2325, %v2324
      %v2359 = vpack.c.b16 %v2326, %v2326
      %v2360 = vpack.c.b16 %v2328, %v2327
      %v2361 = vpack.c.b16 %v2329, %v2329
      %v2362 = vrot.slane %v2330, 1
      %v2363 = vrot.slane %v2331, 1
      %v2364 = vsel %vm849, %v2362, %v2363
      %v2365 = vrot.slane %v2332, 1
      %v2366 = vrot.slane %v2333, 1
      %v2367 = vsel %vm849, %v2365, %v2366
      %v2368 = vrot.slane %v2334, 1
      %v2369 = vrot.slane %v2335, 1
      %v2370 = vsel %vm849, %v2368, %v2369
      %v2371 = vrot.slane %v2336, 1
      %v2372 = vrot.slane %v2337, 1
      %v2373 = vsel %vm849, %v2371, %v2372
      %v2374 = vrot.slane %v2338, 1
      %v2375 = vrot.slane %v2339, 1
      %v2376 = vsel %vm849, %v2374, %v2375
      %v2377 = vrot.slane %v2340, 1
      %v2378 = vrot.slane %v2341, 1
      %v2379 = vsel %vm849, %v2377, %v2378
      %v2380 = vrot.slane %v2342, 1
      %v2381 = vrot.slane %v2343, 1
      %v2382 = vsel %vm849, %v2380, %v2381
      %v2383 = vrot.slane %v2344, 1
      %v2384 = vrot.slane %v2345, 1
      %v2385 = vsel %vm849, %v2383, %v2384
      %v2386 = vrot.slane %v2346, 1
      %v2387 = vrot.slane %v2347, 1
      %v2388 = vsel %vm849, %v2386, %v2387
      %v2389 = vrot.slane %v2348, 1
      %v2390 = vrot.slane %v2349, 1
      %v2391 = vsel %vm849, %v2389, %v2390
      %v2392 = vrot.slane %v2350, 1
      %v2393 = vrot.slane %v2351, 1
      %v2394 = vsel %vm849, %v2392, %v2393
      %v2395 = vrot.slane %v2352, 1
      %v2396 = vrot.slane %v2353, 1
      %v2397 = vsel %vm849, %v2395, %v2396
      %v2398 = vrot.slane %v2354, 1
      %v2399 = vrot.slane %v2355, 1
      %v2400 = vsel %vm849, %v2398, %v2399
      %v2401 = vrot.slane %v2356, 1
      %v2402 = vrot.slane %v2357, 1
      %v2403 = vsel %vm849, %v2401, %v2402
      %v2404 = vrot.slane %v2358, 1
      %v2405 = vrot.slane %v2359, 1
      %v2406 = vsel %vm849, %v2404, %v2405
      %v2407 = vrot.slane %v2360, 1
      %v2408 = vrot.slane %v2361, 1
      %v2409 = vsel %vm849, %v2407, %v2408
      %2410 = vrot.lane.b32.xlu0 %v2364, 28
      %v2411 = vpop.permute.xlu0 %2410
      %2412 = vrot.lane.b32.xlu0 %v2367, 28
      %v2413 = vpop.permute.xlu0 %2412
      %2414 = vrot.lane.b32.xlu0 %v2370, 28
      %v2415 = vpop.permute.xlu0 %2414
      %2416 = vrot.lane.b32.xlu0 %v2373, 28
      %v2417 = vpop.permute.xlu0 %2416
      %2418 = vrot.lane.b32.xlu0 %v2376, 28
      %v2419 = vpop.permute.xlu0 %2418
      %2420 = vrot.lane.b32.xlu0 %v2379, 28
      %v2421 = vpop.permute.xlu0 %2420
      %2422 = vrot.lane.b32.xlu0 %v2382, 28
      %v2423 = vpop.permute.xlu0 %2422
      %2424 = vrot.lane.b32.xlu0 %v2385, 28
      %v2425 = vpop.permute.xlu0 %2424
      %2426 = vrot.lane.b32.xlu0 %v2388, 28
      %v2427 = vpop.permute.xlu0 %2426
      %2428 = vrot.lane.b32.xlu0 %v2391, 28
      %v2429 = vpop.permute.xlu0 %2428
      %2430 = vrot.lane.b32.xlu0 %v2394, 28
      %v2431 = vpop.permute.xlu0 %2430
      %2432 = vrot.lane.b32.xlu0 %v2397, 28
      %v2433 = vpop.permute.xlu0 %2432
      %2434 = vrot.lane.b32.xlu0 %v2400, 28
      %v2435 = vpop.permute.xlu0 %2434
      %2436 = vrot.lane.b32.xlu0 %v2403, 28
      %v2437 = vpop.permute.xlu0 %2436
      %2438 = vrot.lane.b32.xlu0 %v2406, 28
      %v2439 = vpop.permute.xlu0 %2438
      %2440 = vrot.lane.b32.xlu0 %v2409, 28
      %v2441 = vpop.permute.xlu0 %2440
      %vm2458 = vcmask 261344
      %2459 = vst.msk [vmem:[#allocation4] sm:$0xff] %vm2458, %v2411
      %2460 = vst.msk [vmem:[#allocation4 + $0x8] sm:$0xff] %vm2458, %v2413
      %2461 = vst.msk [vmem:[#allocation4 + $0x10] sm:$0xff] %vm2458, %v2415
      %2462 = vst.msk [vmem:[#allocation4 + $0x18] sm:$0xff] %vm2458, %v2417
      %2463 = vst.msk [vmem:[#allocation4 + $0x20] sm:$0xff] %vm2458, %v2419
      %2464 = vst.msk [vmem:[#allocation4 + $0x28] sm:$0xff] %vm2458, %v2421
      %2465 = vst.msk [vmem:[#allocation4 + $0x30] sm:$0xff] %vm2458, %v2423
      %2466 = vst.msk [vmem:[#allocation4 + $0x38] sm:$0xff] %vm2458, %v2425
      %2467 = vst.msk [vmem:[#allocation4 + $0x40] sm:$0xff] %vm2458, %v2427
      %2468 = vst.msk [vmem:[#allocation4 + $0x48] sm:$0xff] %vm2458, %v2429
      %2469 = vst.msk [vmem:[#allocation4 + $0x50] sm:$0xff] %vm2458, %v2431
      %2470 = vst.msk [vmem:[#allocation4 + $0x58] sm:$0xff] %vm2458, %v2433
      %2471 = vst.msk [vmem:[#allocation4 + $0x60] sm:$0xff] %vm2458, %v2435
      %2472 = vst.msk [vmem:[#allocation4 + $0x68] sm:$0xff] %vm2458, %v2437
      %2473 = vst.msk [vmem:[#allocation4 + $0x70] sm:$0xff] %vm2458, %v2439
      %2474 = vst.msk [vmem:[#allocation4 + $0x78] sm:$0xff] %vm2458, %v2441
      %v2475 = vld [vmem:[%s2008] sm:$0xc]
      %v2476 = vld [vmem:[%s2008 + $0x4] sm:$0xf]
      %v2477 = vld [vmem:[%s2008 + $0x8] sm:$0x3]
      %v2478 = vld [vmem:[%s2008 + $0xc] sm:$0xc]
      %v2479 = vld [vmem:[%s2008 + $0x10] sm:$0xf]
      %v2480 = vld [vmem:[%s2008 + $0x14] sm:$0x3]
      %v2481 = vld [vmem:[%s2008 + $0x18] sm:$0xc]
      %v2482 = vld [vmem:[%s2008 + $0x1c] sm:$0xf]
      %v2483 = vld [vmem:[%s2008 + $0x20] sm:$0x3]
      %v2484 = vld [vmem:[%s2008 + $0x24] sm:$0xc]
      %v2485 = vld [vmem:[%s2008 + $0x28] sm:$0xf]
      %v2486 = vld [vmem:[%s2008 + $0x2c] sm:$0x3]
      %v2487 = vld [vmem:[%s2008 + $0x30] sm:$0xc]
      %v2488 = vld [vmem:[%s2008 + $0x34] sm:$0xf]
      %v2489 = vld [vmem:[%s2008 + $0x38] sm:$0x3]
      %v2490 = vld [vmem:[%s2008 + $0x3c] sm:$0xc]
      %v2491 = vld [vmem:[%s2008 + $0x40] sm:$0xf]
      %v2492 = vld [vmem:[%s2008 + $0x44] sm:$0x3]
      %v2493 = vld [vmem:[%s2008 + $0x48] sm:$0xc]
      %v2494 = vld [vmem:[%s2008 + $0x4c] sm:$0xf]
      %v2495 = vld [vmem:[%s2008 + $0x50] sm:$0x3]
      %v2496 = vld [vmem:[%s2008 + $0x54] sm:$0xc]
      %v2497 = vld [vmem:[%s2008 + $0x58] sm:$0xf]
      %v2498 = vld [vmem:[%s2008 + $0x5c] sm:$0x3]
      %v2499 = vld [vmem:[%s2008 + $0x60] sm:$0xc]
      %v2500 = vld [vmem:[%s2008 + $0x64] sm:$0xf]
      %v2501 = vld [vmem:[%s2008 + $0x68] sm:$0x3]
      %v2502 = vld [vmem:[%s2008 + $0x6c] sm:$0xc]
      %v2503 = vld [vmem:[%s2008 + $0x70] sm:$0xf]
      %v2504 = vld [vmem:[%s2008 + $0x74] sm:$0x3]
      %v2505 = vld [vmem:[%s2008 + $0x78] sm:$0xc]
      %v2506 = vld [vmem:[%s2008 + $0x7c] sm:$0xf]
      %v2507 = vld [vmem:[%s2008 + $0x80] sm:$0x3]
      %v2508 = vld [vmem:[%s2008 + $0x84] sm:$0xc]
      %v2509 = vld [vmem:[%s2008 + $0x88] sm:$0xf]
      %v2510 = vld [vmem:[%s2008 + $0x8c] sm:$0x3]
      %v2511 = vld [vmem:[%s2008 + $0x90] sm:$0xc]
      %v2512 = vld [vmem:[%s2008 + $0x94] sm:$0xf]
      %v2513 = vld [vmem:[%s2008 + $0x98] sm:$0x3]
      %v2514 = vld [vmem:[%s2008 + $0x9c] sm:$0xc]
      %v2515 = vld [vmem:[%s2008 + $0xa0] sm:$0xf]
      %v2516 = vld [vmem:[%s2008 + $0xa4] sm:$0x3]
      %v2517 = vld [vmem:[%s2008 + $0xa8] sm:$0xc]
      %v2518 = vld [vmem:[%s2008 + $0xac] sm:$0xf]
      %v2519 = vld [vmem:[%s2008 + $0xb0] sm:$0x3]
      %v2520 = vld [vmem:[%s2008 + $0xb4] sm:$0xc]
      %v2521 = vld [vmem:[%s2008 + $0xb8] sm:$0xf]
      %v2522 = vld [vmem:[%s2008 + $0xbc] sm:$0x3]
      %v2571 = vunpack.c.l.b16 %v2475
      %v2572 = vunpack.c.l.b16 %v2476
      %v2573 = vunpack.c.l.b16 %v2477
      %v2574 = vunpack.c.l.b16 %v2478
      %v2575 = vunpack.c.l.b16 %v2479
      %v2576 = vunpack.c.l.b16 %v2480
      %v2577 = vunpack.c.l.b16 %v2481
      %v2578 = vunpack.c.l.b16 %v2482
      %v2579 = vunpack.c.l.b16 %v2483
      %v2580 = vunpack.c.l.b16 %v2484
      %v2581 = vunpack.c.l.b16 %v2485
      %v2582 = vunpack.c.l.b16 %v2486
      %v2583 = vunpack.c.l.b16 %v2487
      %v2584 = vunpack.c.l.b16 %v2488
      %v2585 = vunpack.c.l.b16 %v2489
      %v2586 = vunpack.c.l.b16 %v2490
      %v2587 = vunpack.c.l.b16 %v2491
      %v2588 = vunpack.c.l.b16 %v2492
      %v2589 = vunpack.c.l.b16 %v2493
      %v2590 = vunpack.c.l.b16 %v2494
      %v2591 = vunpack.c.l.b16 %v2495
      %v2592 = vunpack.c.l.b16 %v2496
      %v2593 = vunpack.c.l.b16 %v2497
      %v2594 = vunpack.c.l.b16 %v2498
      %v2595 = vunpack.c.l.b16 %v2499
      %v2596 = vunpack.c.l.b16 %v2500
      %v2597 = vunpack.c.l.b16 %v2501
      %v2598 = vunpack.c.l.b16 %v2502
      %v2599 = vunpack.c.l.b16 %v2503
      %v2600 = vunpack.c.l.b16 %v2504
      %v2601 = vunpack.c.l.b16 %v2505
      %v2602 = vunpack.c.l.b16 %v2506
      %v2603 = vunpack.c.l.b16 %v2507
      %v2604 = vunpack.c.l.b16 %v2508
      %v2605 = vunpack.c.l.b16 %v2509
      %v2606 = vunpack.c.l.b16 %v2510
      %v2607 = vunpack.c.l.b16 %v2511
      %v2608 = vunpack.c.l.b16 %v2512
      %v2609 = vunpack.c.l.b16 %v2513
      %v2610 = vunpack.c.l.b16 %v2514
      %v2611 = vunpack.c.l.b16 %v2515
      %v2612 = vunpack.c.l.b16 %v2516
      %v2613 = vunpack.c.l.b16 %v2517
      %v2614 = vunpack.c.l.b16 %v2518
      %v2615 = vunpack.c.l.b16 %v2519
      %v2616 = vunpack.c.l.b16 %v2520
      %v2617 = vunpack.c.l.b16 %v2521
      %v2618 = vunpack.c.l.b16 %v2522
      %v2619 = vpack.c.b16 %v2572, %v2571
      %v2620 = vpack.c.b16 %v2573, %v2573
      %v2621 = vpack.c.b16 %v2575, %v2574
      %v2622 = vpack.c.b16 %v2576, %v2576
      %v2623 = vpack.c.b16 %v2578, %v2577
      %v2624 = vpack.c.b16 %v2579, %v2579
      %v2625 = vpack.c.b16 %v2581, %v2580
      %v2626 = vpack.c.b16 %v2582, %v2582
      %v2627 = vpack.c.b16 %v2584, %v2583
      %v2628 = vpack.c.b16 %v2585, %v2585
      %v2629 = vpack.c.b16 %v2587, %v2586
      %v2630 = vpack.c.b16 %v2588, %v2588
      %v2631 = vpack.c.b16 %v2590, %v2589
      %v2632 = vpack.c.b16 %v2591, %v2591
      %v2633 = vpack.c.b16 %v2593, %v2592
      %v2634 = vpack.c.b16 %v2594, %v2594
      %v2635 = vpack.c.b16 %v2596, %v2595
      %v2636 = vpack.c.b16 %v2597, %v2597
      %v2637 = vpack.c.b16 %v2599, %v2598
      %v2638 = vpack.c.b16 %v2600, %v2600
      %v2639 = vpack.c.b16 %v2602, %v2601
      %v2640 = vpack.c.b16 %v2603, %v2603
      %v2641 = vpack.c.b16 %v2605, %v2604
      %v2642 = vpack.c.b16 %v2606, %v2606
      %v2643 = vpack.c.b16 %v2608, %v2607
      %v2644 = vpack.c.b16 %v2609, %v2609
      %v2645 = vpack.c.b16 %v2611, %v2610
      %v2646 = vpack.c.b16 %v2612, %v2612
      %v2647 = vpack.c.b16 %v2614, %v2613
      %v2648 = vpack.c.b16 %v2615, %v2615
      %v2649 = vpack.c.b16 %v2617, %v2616
      %v2650 = vpack.c.b16 %v2618, %v2618
      %v2651 = vrot.slane %v2619, 2
      %v2652 = vrot.slane %v2620, 2
      %v2653 = vsel %vm1139, %v2651, %v2652
      %v2654 = vrot.slane %v2621, 2
      %v2655 = vrot.slane %v2622, 2
      %v2656 = vsel %vm1139, %v2654, %v2655
      %v2657 = vrot.slane %v2623, 2
      %v2658 = vrot.slane %v2624, 2
      %v2659 = vsel %vm1139, %v2657, %v2658
      %v2660 = vrot.slane %v2625, 2
      %v2661 = vrot.slane %v2626, 2
      %v2662 = vsel %vm1139, %v2660, %v2661
      %v2663 = vrot.slane %v2627, 2
      %v2664 = vrot.slane %v2628, 2
      %v2665 = vsel %vm1139, %v2663, %v2664
      %v2666 = vrot.slane %v2629, 2
      %v2667 = vrot.slane %v2630, 2
      %v2668 = vsel %vm1139, %v2666, %v2667
      %v2669 = vrot.slane %v2631, 2
      %v2670 = vrot.slane %v2632, 2
      %v2671 = vsel %vm1139, %v2669, %v2670
      %v2672 = vrot.slane %v2633, 2
      %v2673 = vrot.slane %v2634, 2
      %v2674 = vsel %vm1139, %v2672, %v2673
      %v2675 = vrot.slane %v2635, 2
      %v2676 = vrot.slane %v2636, 2
      %v2677 = vsel %vm1139, %v2675, %v2676
      %v2678 = vrot.slane %v2637, 2
      %v2679 = vrot.slane %v2638, 2
      %v2680 = vsel %vm1139, %v2678, %v2679
      %v2681 = vrot.slane %v2639, 2
      %v2682 = vrot.slane %v2640, 2
      %v2683 = vsel %vm1139, %v2681, %v2682
      %v2684 = vrot.slane %v2641, 2
      %v2685 = vrot.slane %v2642, 2
      %v2686 = vsel %vm1139, %v2684, %v2685
      %v2687 = vrot.slane %v2643, 2
      %v2688 = vrot.slane %v2644, 2
      %v2689 = vsel %vm1139, %v2687, %v2688
      %v2690 = vrot.slane %v2645, 2
      %v2691 = vrot.slane %v2646, 2
      %v2692 = vsel %vm1139, %v2690, %v2691
      %v2693 = vrot.slane %v2647, 2
      %v2694 = vrot.slane %v2648, 2
      %v2695 = vsel %vm1139, %v2693, %v2694
      %v2696 = vrot.slane %v2649, 2
      %v2697 = vrot.slane %v2650, 2
      %v2698 = vsel %vm1139, %v2696, %v2697
      %2699 = vrot.lane.b32.xlu0 %v2653, 32
      %v2700 = vpop.permute.xlu0 %2699
      %2701 = vrot.lane.b32.xlu0 %v2656, 32
      %v2702 = vpop.permute.xlu0 %2701
      %2703 = vrot.lane.b32.xlu0 %v2659, 32
      %v2704 = vpop.permute.xlu0 %2703
      %2705 = vrot.lane.b32.xlu0 %v2662, 32
      %v2706 = vpop.permute.xlu0 %2705
      %2707 = vrot.lane.b32.xlu0 %v2665, 32
      %v2708 = vpop.permute.xlu0 %2707
      %2709 = vrot.lane.b32.xlu0 %v2668, 32
      %v2710 = vpop.permute.xlu0 %2709
      %2711 = vrot.lane.b32.xlu0 %v2671, 32
      %v2712 = vpop.permute.xlu0 %2711
      %2713 = vrot.lane.b32.xlu0 %v2674, 32
      %v2714 = vpop.permute.xlu0 %2713
      %2715 = vrot.lane.b32.xlu0 %v2677, 32
      %v2716 = vpop.permute.xlu0 %2715
      %2717 = vrot.lane.b32.xlu0 %v2680, 32
      %v2718 = vpop.permute.xlu0 %2717
      %2719 = vrot.lane.b32.xlu0 %v2683, 32
      %v2720 = vpop.permute.xlu0 %2719
      %2721 = vrot.lane.b32.xlu0 %v2686, 32
      %v2722 = vpop.permute.xlu0 %2721
      %2723 = vrot.lane.b32.xlu0 %v2689, 32
      %v2724 = vpop.permute.xlu0 %2723
      %2725 = vrot.lane.b32.xlu0 %v2692, 32
      %v2726 = vpop.permute.xlu0 %2725
      %2727 = vrot.lane.b32.xlu0 %v2695, 32
      %v2728 = vpop.permute.xlu0 %2727
      %2729 = vrot.lane.b32.xlu0 %v2698, 32
      %v2730 = vpop.permute.xlu0 %2729
      %vm2747 = vcmask 294144
      %2748 = vst.msk [vmem:[#allocation4] sm:$0xff] %vm2747, %v2700
      %2749 = vst.msk [vmem:[#allocation4 + $0x8] sm:$0xff] %vm2747, %v2702
      %2750 = vst.msk [vmem:[#allocation4 + $0x10] sm:$0xff] %vm2747, %v2704
      %2751 = vst.msk [vmem:[#allocation4 + $0x18] sm:$0xff] %vm2747, %v2706
      %2752 = vst.msk [vmem:[#allocation4 + $0x20] sm:$0xff] %vm2747, %v2708
      %2753 = vst.msk [vmem:[#allocation4 + $0x28] sm:$0xff] %vm2747, %v2710
      %2754 = vst.msk [vmem:[#allocation4 + $0x30] sm:$0xff] %vm2747, %v2712
      %2755 = vst.msk [vmem:[#allocation4 + $0x38] sm:$0xff] %vm2747, %v2714
      %2756 = vst.msk [vmem:[#allocation4 + $0x40] sm:$0xff] %vm2747, %v2716
      %2757 = vst.msk [vmem:[#allocation4 + $0x48] sm:$0xff] %vm2747, %v2718
      %2758 = vst.msk [vmem:[#allocation4 + $0x50] sm:$0xff] %vm2747, %v2720
      %2759 = vst.msk [vmem:[#allocation4 + $0x58] sm:$0xff] %vm2747, %v2722
      %2760 = vst.msk [vmem:[#allocation4 + $0x60] sm:$0xff] %vm2747, %v2724
      %2761 = vst.msk [vmem:[#allocation4 + $0x68] sm:$0xff] %vm2747, %v2726
      %2762 = vst.msk [vmem:[#allocation4 + $0x70] sm:$0xff] %vm2747, %v2728
      %2763 = vst.msk [vmem:[#allocation4 + $0x78] sm:$0xff] %vm2747, %v2730
      %v2764 = vld [vmem:[#allocation4] sm:$0xff]
      %v2765 = vld [vmem:[#allocation4 + $0x8] sm:$0xff]
      %v2766 = vld [vmem:[#allocation4 + $0x10] sm:$0xff]
      %v2767 = vld [vmem:[#allocation4 + $0x18] sm:$0xff]
      %v2768 = vld [vmem:[#allocation4 + $0x20] sm:$0xff]
      %v2769 = vld [vmem:[#allocation4 + $0x28] sm:$0xff]
      %v2770 = vld [vmem:[#allocation4 + $0x30] sm:$0xff]
      %v2771 = vld [vmem:[#allocation4 + $0x38] sm:$0xff]
      %v2772 = vld [vmem:[#allocation4 + $0x40] sm:$0xff]
      %v2773 = vld [vmem:[#allocation4 + $0x48] sm:$0xff]
      %v2774 = vld [vmem:[#allocation4 + $0x50] sm:$0xff]
      %v2775 = vld [vmem:[#allocation4 + $0x58] sm:$0xff]
      %v2776 = vld [vmem:[#allocation4 + $0x60] sm:$0xff]
      %v2777 = vld [vmem:[#allocation4 + $0x68] sm:$0xff]
      %v2778 = vld [vmem:[#allocation4 + $0x70] sm:$0xff]
      %v2779 = vld [vmem:[#allocation4 + $0x78] sm:$0xff]
      %v2780 = vld [vmem:[%s1] sm:$0xf]
      %v2781 = vld [vmem:[%s1 + $0x4] sm:$0xf]
      %v2782 = vld [vmem:[%s1 + $0x8] sm:$0xf]
      %v2783 = vld [vmem:[%s1 + $0xc] sm:$0xf]
      %v2784 = vld [vmem:[%s1 + $0x10] sm:$0x3]
      %v2785 = vld [vmem:[%s2] sm:$0x1]
      %v2787 = vlaneseq
      %v2788 = vshrl.u32 %v2787, 7
      %v2789 = vsub.s32 0, %v2788
      %v2790 = vrot.slane %v2785, %v2789
      %v2797 = vunpack.c.l.b16 %v2780
      %v2798 = vunpack.c.l.b16 %v2781
      %v2799 = vunpack.c.l.b16 %v2782
      %v2800 = vunpack.c.l.b16 %v2783
      %v2801 = vunpack.c.l.b16 %v2784
      %v2802 = vpack.c.b16 %v2798, %v2797
      %v2803 = vpack.c.b16 %v2800, %v2799
      %v2804 = vpack.c.b16 %v2801, %v2801
      %vm2807 = vcmask 293888
      %v2809 = vsel %vm2807, %v2764, 0
      %v2812 = vsel %vm2807, %v2765, 0
      %v2815 = vsel %vm2807, %v2766, 0
      %v2818 = vsel %vm2807, %v2767, 0
      %v2821 = vsel %vm2807, %v2768, 0
      %v2824 = vsel %vm2807, %v2769, 0
      %v2827 = vsel %vm2807, %v2770, 0
      %v2830 = vsel %vm2807, %v2771, 0
      %v2833 = vsel %vm2807, %v2772, 0
      %v2836 = vsel %vm2807, %v2773, 0
      %v2839 = vsel %vm2807, %v2774, 0
      %v2842 = vsel %vm2807, %v2775, 0
      %v2845 = vsel %vm2807, %v2776, 0
      %v2848 = vsel %vm2807, %v2777, 0
      %v2851 = vsel %vm2807, %v2778, 0
      %v2854 = vsel %vm2807, %v2779, 0
      %vm2856 = vcmask 1041408
      %v2858 = vsel %vm2856, %v2804, 0
      %2860 = vmatprep.subr.bf16.mxu0 0
      %2861 = vmatpush1.bf16.msra.mxu0 %v2802
      %2862 = vmatprep.subr.bf16.mxu0 0
      %2863 = vmatpush1.bf16.msra.mxu0 %v2803
      %2864 = vmatprep.subr.bf16.mxu0 0
      %2865 = vmatpush1.bf16.msra.mxu0 %v2858
      %2866 = vmatprep.subr.bf16.mxu0 0
      %2867 = vmatpush1.bf16.msra.mxu0 0
      %2868 = vmatprep.subr.bf16.mxu0 0
      %2869 = vmatpush1.bf16.msra.mxu0 0
      %2870 = vmatprep.subr.bf16.mxu0 0
      %2871 = vmatpush1.bf16.msra.mxu0 0
      %2872 = vmatprep.subr.bf16.mxu0 0
      %2873 = vmatpush1.bf16.msra.mxu0 0
      %2874 = vmatprep.subr.bf16.mxu0 0
      %2875 = vmatpush1.bf16.msra.mxu0 0
      %2876 = vmatprep.subr.bf16.mxu0 0
      %2877 = vmatpush1.bf16.msra.mxu0 0
      %2878 = vmatprep.subr.bf16.mxu0 0
      %2879 = vmatpush1.bf16.msra.mxu0 0
      %2880 = vmatprep.subr.bf16.mxu0 0
      %2881 = vmatpush1.bf16.msra.mxu0 0
      %2882 = vmatprep.subr.bf16.mxu0 0
      %2883 = vmatpush1.bf16.msra.mxu0 0
      %2884 = vmatprep.subr.bf16.mxu0 0
      %2885 = vmatpush1.bf16.msra.mxu0 0
      %2886 = vmatprep.subr.bf16.mxu0 0
      %2887 = vmatpush1.bf16.msra.mxu0 0
      %2888 = vmatprep.subr.bf16.mxu0 0
      %2889 = vmatpush1.bf16.msra.mxu0 0
      %2890 = vmatprep.subr.bf16.mxu0 0
      %2891 = vmatpush1.bf16.msra.mxu0 0
      %2892 = vmatprep.mubr.bf16.mxu0 0
      %2893 = vmatmul.mubr.bf16.gmra.mrb[0].mxu0 %v2809
      %v2894 = vpop.f32.mrb[0].mxu0
      %v2895 = vadd.f32 %v2790, %v2894
      %v2896 = vpop.f32.mrb[0].mxu0
      %v2897 = vpop.f32.mrb[0].mxu0
      %v2898 = vadd.f32 %v2790, %v2897
      %v2899 = vpop.f32.mrb[0].mxu0
      %2900 = vmatprep.mubr.bf16.mxu0 0
      %2901 = vmatmul.mubr.bf16.gmra.mrb[0].mxu0 %v2812
      %v2902 = vpop.f32.mrb[0].mxu0
      %v2903 = vadd.f32 %v2790, %v2902
      %v2904 = vpop.f32.mrb[0].mxu0
      %v2905 = vpop.f32.mrb[0].mxu0
      %v2906 = vadd.f32 %v2790, %v2905
      %v2907 = vpop.f32.mrb[0].mxu0
      %2908 = vmatprep.mubr.bf16.mxu0 0
      %2909 = vmatmul.mubr.bf16.gmra.mrb[0].mxu0 %v2815
      %v2910 = vpop.f32.mrb[0].mxu0
      %v2911 = vadd.f32 %v2790, %v2910
      %v2912 = vpop.f32.mrb[0].mxu0
      %v2913 = vpop.f32.mrb[0].mxu0
      %v2914 = vadd.f32 %v2790, %v2913
      %v2915 = vpop.f32.mrb[0].mxu0
      %2916 = vmatprep.mubr.bf16.mxu0 0
      %2917 = vmatmul.mubr.bf16.gmra.mrb[0].mxu0 %v2818
      %v2918 = vpop.f32.mrb[0].mxu0
      %v2919 = vadd.f32 %v2790, %v2918
      %v2920 = vpop.f32.mrb[0].mxu0
      %v2921 = vpop.f32.mrb[0].mxu0
      %v2922 = vadd.f32 %v2790, %v2921
      %v2923 = vpop.f32.mrb[0].mxu0
      %2924 = vmatprep.mubr.bf16.mxu0 0
      %2925 = vmatmul.mubr.bf16.gmra.mrb[0].mxu0 %v2821
      %v2926 = vpop.f32.mrb[0].mxu0
      %v2927 = vadd.f32 %v2790, %v2926
      %v2928 = vpop.f32.mrb[0].mxu0
      %v2929 = vpop.f32.mrb[0].mxu0
      %v2930 = vadd.f32 %v2790, %v2929
      %v2931 = vpop.f32.mrb[0].mxu0
      %2932 = vmatprep.mubr.bf16.mxu0 0
      %2933 = vmatmul.mubr.bf16.gmra.mrb[0].mxu0 %v2824
      %v2934 = vpop.f32.mrb[0].mxu0
      %v2935 = vadd.f32 %v2790, %v2934
      %v2936 = vpop.f32.mrb[0].mxu0
      %v2937 = vpop.f32.mrb[0].mxu0
      %v2938 = vadd.f32 %v2790, %v2937
      %v2939 = vpop.f32.mrb[0].mxu0
      %2940 = vmatprep.mubr.bf16.mxu0 0
      %2941 = vmatmul.mubr.bf16.gmra.mrb[0].mxu0 %v2827
      %v2942 = vpop.f32.mrb[0].mxu0
      %v2943 = vadd.f32 %v2790, %v2942
      %v2944 = vpop.f32.mrb[0].mxu0
      %v2945 = vpop.f32.mrb[0].mxu0
      %v2946 = vadd.f32 %v2790, %v2945
      %v2947 = vpop.f32.mrb[0].mxu0
      %2948 = vmatprep.mubr.bf16.mxu0 0
      %2949 = vmatmul.mubr.bf16.gmra.mrb[0].mxu0 %v2830
      %v2950 = vpop.f32.mrb[0].mxu0
      %v2951 = vadd.f32 %v2790, %v2950
      %v2952 = vpop.f32.mrb[0].mxu0
      %v2953 = vpop.f32.mrb[0].mxu0
      %v2954 = vadd.f32 %v2790, %v2953
      %v2955 = vpop.f32.mrb[0].mxu0
      %2956 = vmatprep.mubr.bf16.mxu0 0
      %2957 = vmatmul.mubr.bf16.gmra.mrb[0].mxu0 %v2833
      %v2958 = vpop.f32.mrb[0].mxu0
      %v2959 = vadd.f32 %v2790, %v2958
      %v2960 = vpop.f32.mrb[0].mxu0
      %v2961 = vpop.f32.mrb[0].mxu0
      %v2962 = vadd.f32 %v2790, %v2961
      %v2963 = vpop.f32.mrb[0].mxu0
      %2964 = vmatprep.mubr.bf16.mxu0 0
      %2965 = vmatmul.mubr.bf16.gmra.mrb[0].mxu0 %v2836
      %v2966 = vpop.f32.mrb[0].mxu0
      %v2967 = vadd.f32 %v2790, %v2966
      %v2968 = vpop.f32.mrb[0].mxu0
      %v2969 = vpop.f32.mrb[0].mxu0
      %v2970 = vadd.f32 %v2790, %v2969
      %v2971 = vpop.f32.mrb[0].mxu0
      %2972 = vmatprep.mubr.bf16.mxu0 0
      %2973 = vmatmul.mubr.bf16.gmra.mrb[0].mxu0 %v2839
      %v2974 = vpop.f32.mrb[0].mxu0
      %v2975 = vadd.f32 %v2790, %v2974
      %v2976 = vpop.f32.mrb[0].mxu0
      %v2977 = vpop.f32.mrb[0].mxu0
      %v2978 = vadd.f32 %v2790, %v2977
      %v2979 = vpop.f32.mrb[0].mxu0
      %2980 = vmatprep.mubr.bf16.mxu0 0
      %2981 = vmatmul.mubr.bf16.gmra.mrb[0].mxu0 %v2842
      %v2982 = vpop.f32.mrb[0].mxu0
      %v2983 = vadd.f32 %v2790, %v2982
      %v2984 = vpop.f32.mrb[0].mxu0
      %v2985 = vpop.f32.mrb[0].mxu0
      %v2986 = vadd.f32 %v2790, %v2985
      %v2987 = vpop.f32.mrb[0].mxu0
      %2988 = vmatprep.mubr.bf16.mxu0 0
      %2989 = vmatmul.mubr.bf16.gmra.mrb[0].mxu0 %v2845
      %v2990 = vpop.f32.mrb[0].mxu0
      %v2991 = vadd.f32 %v2790, %v2990
      %v2992 = vpop.f32.mrb[0].mxu0
      %v2993 = vpop.f32.mrb[0].mxu0
      %v2994 = vadd.f32 %v2790, %v2993
      %v2995 = vpop.f32.mrb[0].mxu0
      %2996 = vmatprep.mubr.bf16.mxu0 0
      %2997 = vmatmul.mubr.bf16.gmra.mrb[0].mxu0 %v2848
      %v2998 = vpop.f32.mrb[0].mxu0
      %v2999 = vadd.f32 %v2790, %v2998
      %v3000 = vpop.f32.mrb[0].mxu0
      %v3001 = vpop.f32.mrb[0].mxu0
      %v3002 = vadd.f32 %v2790, %v3001
      %v3003 = vpop.f32.mrb[0].mxu0
      %3004 = vmatprep.mubr.bf16.mxu0 0
      %3005 = vmatmul.mubr.bf16.gmra.mrb[0].mxu0 %v2851
      %v3006 = vpop.f32.mrb[0].mxu0
      %v3007 = vadd.f32 %v2790, %v3006
      %v3008 = vpop.f32.mrb[0].mxu0
      %v3009 = vpop.f32.mrb[0].mxu0
      %v3010 = vadd.f32 %v2790, %v3009
      %v3011 = vpop.f32.mrb[0].mxu0
      %3012 = vmatprep.mubr.bf16.mxu0 0
      %3013 = vmatmul.mubr.bf16.gmra.mrb[0].mxu0 %v2854
      %v3014 = vpop.f32.mrb[0].mxu0
      %v3015 = vadd.f32 %v2790, %v3014
      %v3016 = vpop.f32.mrb[0].mxu0
      %v3017 = vpop.f32.mrb[0].mxu0
      %v3018 = vadd.f32 %v2790, %v3017
      %v3019 = vpop.f32.mrb[0].mxu0
      %3020 = vdwg.mxu0
      %v3021 = vmax.f32 %v2895, 0.0
      %v3022 = vmax.f32 %v2898, 0.0
      %v3023 = vmax.f32 %v2903, 0.0
      %v3024 = vmax.f32 %v2906, 0.0
      %v3025 = vmax.f32 %v2911, 0.0
      %v3026 = vmax.f32 %v2914, 0.0
      %v3027 = vmax.f32 %v2919, 0.0
      %v3028 = vmax.f32 %v2922, 0.0
      %v3029 = vmax.f32 %v2927, 0.0
      %v3030 = vmax.f32 %v2930, 0.0
      %v3031 = vmax.f32 %v2935, 0.0
      %v3032 = vmax.f32 %v2938, 0.0
      %v3033 = vmax.f32 %v2943, 0.0
      %v3034 = vmax.f32 %v2946, 0.0
      %v3035 = vmax.f32 %v2951, 0.0
      %v3036 = vmax.f32 %v2954, 0.0
      %v3037 = vmax.f32 %v2959, 0.0
      %v3038 = vmax.f32 %v2962, 0.0
      %v3039 = vmax.f32 %v2967, 0.0
      %v3040 = vmax.f32 %v2970, 0.0
      %v3041 = vmax.f32 %v2975, 0.0
      %v3042 = vmax.f32 %v2978, 0.0
      %v3043 = vmax.f32 %v2983, 0.0
      %v3044 = vmax.f32 %v2986, 0.0
      %v3045 = vmax.f32 %v2991, 0.0
      %v3046 = vmax.f32 %v2994, 0.0
      %v3047 = vmax.f32 %v2999, 0.0
      %v3048 = vmax.f32 %v3002, 0.0
      %v3049 = vmax.f32 %v3007, 0.0
      %v3050 = vmax.f32 %v3010, 0.0
      %v3051 = vmax.f32 %v3015, 0.0
      %v3052 = vmax.f32 %v3018, 0.0
      %vm3053 = vcmask 60416
      %3054 = vst.msk [vmem:[#allocation3] sm:$0xf] %vm3053, 0
      %3055 = vst.msk [vmem:[#allocation3 + $0x4] sm:$0xf] %vm3053, 0
      %vm3056 = vcmask 58368
      %3057 = vst.msk [vmem:[#allocation3 + $0x8] sm:$0x3] %vm3056, 0
      %3058 = vst.msk [vmem:[#allocation3 + $0xc] sm:$0xf] %vm3053, 0
      %3059 = vst.msk [vmem:[#allocation3 + $0x10] sm:$0xf] %vm3053, 0
      %3060 = vst.msk [vmem:[#allocation3 + $0x14] sm:$0x3] %vm3056, 0
      %s3061 = scalar_lea.vmem [#allocation3], 216
      %3062 = vst.msk [vmem:[%s3061] sm:$0xf] %vm3053, 0
      %3063 = vst.msk [vmem:[%s3061 + $0x4] sm:$0xf] %vm3053, 0
      %3064 = vst.msk [vmem:[%s3061 + $0x8] sm:$0x3] %vm3056, 0
      %3065 = vst.msk [vmem:[%s3061 + $0xc] sm:$0xf] %vm3053, 0
      %3066 = vst.msk [vmem:[%s3061 + $0x10] sm:$0xf] %vm3053, 0
      %3067 = vst.msk [vmem:[%s3061 + $0x14] sm:$0x3] %vm3056, 0
      %vm3068 = vcmask 57344
      %3069 = vst.msk [vmem:[#allocation3] sm:$0x1] %vm3068, 0
      %3070 = vst.msk [vmem:[#allocation3 + $0xc] sm:$0x1] %vm3068, 0
      %3071 = vst.msk [vmem:[#allocation3 + $0x18] sm:$0x1] %vm3068, 0
      %3072 = vst.msk [vmem:[#allocation3 + $0x24] sm:$0x1] %vm3068, 0
      %3073 = vst.msk [vmem:[#allocation3 + $0x30] sm:$0x1] %vm3068, 0
      %3074 = vst.msk [vmem:[#allocation3 + $0x3c] sm:$0x1] %vm3068, 0
      %3075 = vst.msk [vmem:[#allocation3 + $0x48] sm:$0x1] %vm3068, 0
      %3076 = vst.msk [vmem:[#allocation3 + $0x54] sm:$0x1] %vm3068, 0
      %3077 = vst.msk [vmem:[#allocation3 + $0x60] sm:$0x1] %vm3068, 0
      %3078 = vst.msk [vmem:[#allocation3 + $0x6c] sm:$0x1] %vm3068, 0
      %3079 = vst.msk [vmem:[#allocation3 + $0x78] sm:$0x1] %vm3068, 0
      %3080 = vst.msk [vmem:[#allocation3 + $0x84] sm:$0x1] %vm3068, 0
      %3081 = vst.msk [vmem:[#allocation3 + $0x90] sm:$0x1] %vm3068, 0
      %3082 = vst.msk [vmem:[#allocation3 + $0x9c] sm:$0x1] %vm3068, 0
      %3083 = vst.msk [vmem:[#allocation3 + $0xa8] sm:$0x1] %vm3068, 0
      %3084 = vst.msk [vmem:[#allocation3 + $0xb4] sm:$0x1] %vm3068, 0
      %3085 = vst.msk [vmem:[#allocation3 + $0xc0] sm:$0x1] %vm3068, 0
      %3086 = vst.msk [vmem:[#allocation3 + $0xcc] sm:$0x1] %vm3068, 0
      %3087 = vst.msk [vmem:[#allocation3 + $0xd8] sm:$0x1] %vm3068, 0
      %3088 = vst.msk [vmem:[#allocation3 + $0xe4] sm:$0x1] %vm3068, 0
      %vm3089 = vcmask 58369
      %3090 = vst.msk [vmem:[#allocation3 + $0x8] sm:$0x2] %vm3089, 0
      %3091 = vst.msk [vmem:[#allocation3 + $0x14] sm:$0x2] %vm3089, 0
      %3092 = vst.msk [vmem:[#allocation3 + $0x20] sm:$0x2] %vm3089, 0
      %3093 = vst.msk [vmem:[#allocation3 + $0x2c] sm:$0x2] %vm3089, 0
      %3094 = vst.msk [vmem:[#allocation3 + $0x38] sm:$0x2] %vm3089, 0
      %3095 = vst.msk [vmem:[#allocation3 + $0x44] sm:$0x2] %vm3089, 0
      %3096 = vst.msk [vmem:[#allocation3 + $0x50] sm:$0x2] %vm3089, 0
      %3097 = vst.msk [vmem:[#allocation3 + $0x5c] sm:$0x2] %vm3089, 0
      %3098 = vst.msk [vmem:[#allocation3 + $0x68] sm:$0x2] %vm3089, 0
      %3099 = vst.msk [vmem:[#allocation3 + $0x74] sm:$0x2] %vm3089, 0
      %3100 = vst.msk [vmem:[#allocation3 + $0x80] sm:$0x2] %vm3089, 0
      %3101 = vst.msk [vmem:[#allocation3 + $0x8c] sm:$0x2] %vm3089, 0
      %3102 = vst.msk [vmem:[#allocation3 + $0x98] sm:$0x2] %vm3089, 0
      %3103 = vst.msk [vmem:[#allocation3 + $0xa4] sm:$0x2] %vm3089, 0
      %3104 = vst.msk [vmem:[#allocation3 + $0xb0] sm:$0x2] %vm3089, 0
      %3105 = vst.msk [vmem:[#allocation3 + $0xbc] sm:$0x2] %vm3089, 0
      %3106 = vst.msk [vmem:[#allocation3 + $0xc8] sm:$0x2] %vm3089, 0
      %3107 = vst.msk [vmem:[#allocation3 + $0xd4] sm:$0x2] %vm3089, 0
      %3108 = vst.msk [vmem:[#allocation3 + $0xe0] sm:$0x2] %vm3089, 0
      %3109 = vst.msk [vmem:[#allocation3 + $0xec] sm:$0x2] %vm3089, 0
      %v3110 = vpack.c.bf16 %v3022, %v3021
      %v3111 = vpack.c.bf16 %v3024, %v3023
      %v3112 = vpack.c.bf16 %v3026, %v3025
      %v3113 = vpack.c.bf16 %v3028, %v3027
      %v3114 = vpack.c.bf16 %v3030, %v3029
      %v3115 = vpack.c.bf16 %v3032, %v3031
      %v3116 = vpack.c.bf16 %v3034, %v3033
      %v3117 = vpack.c.bf16 %v3036, %v3035
      %v3118 = vpack.c.bf16 %v3038, %v3037
      %v3119 = vpack.c.bf16 %v3040, %v3039
      %v3120 = vpack.c.bf16 %v3042, %v3041
      %v3121 = vpack.c.bf16 %v3044, %v3043
      %v3122 = vpack.c.bf16 %v3046, %v3045
      %v3123 = vpack.c.bf16 %v3048, %v3047
      %v3124 = vpack.c.bf16 %v3050, %v3049
      %v3125 = vpack.c.bf16 %v3052, %v3051
      %v3142 = vunpack.c.l.b16 %v3110
      %v3143 = vunpack.c.h.b16 %v3110
      %v3144 = vunpack.c.l.b16 %v3111
      %v3145 = vunpack.c.h.b16 %v3111
      %v3146 = vunpack.c.l.b16 %v3112
      %v3147 = vunpack.c.h.b16 %v3112
      %v3148 = vunpack.c.l.b16 %v3113
      %v3149 = vunpack.c.h.b16 %v3113
      %v3150 = vunpack.c.l.b16 %v3114
      %v3151 = vunpack.c.h.b16 %v3114
      %v3152 = vunpack.c.l.b16 %v3115
      %v3153 = vunpack.c.h.b16 %v3115
      %v3154 = vunpack.c.l.b16 %v3116
      %v3155 = vunpack.c.h.b16 %v3116
      %v3156 = vunpack.c.l.b16 %v3117
      %v3157 = vunpack.c.h.b16 %v3117
      %v3158 = vunpack.c.l.b16 %v3118
      %v3159 = vunpack.c.h.b16 %v3118
      %v3160 = vunpack.c.l.b16 %v3119
      %v3161 = vunpack.c.h.b16 %v3119
      %v3162 = vunpack.c.l.b16 %v3120
      %v3163 = vunpack.c.h.b16 %v3120
      %v3164 = vunpack.c.l.b16 %v3121
      %v3165 = vunpack.c.h.b16 %v3121
      %v3166 = vunpack.c.l.b16 %v3122
      %v3167 = vunpack.c.h.b16 %v3122
      %v3168 = vunpack.c.l.b16 %v3123
      %v3169 = vunpack.c.h.b16 %v3123
      %v3170 = vunpack.c.l.b16 %v3124
      %v3171 = vunpack.c.h.b16 %v3124
      %v3172 = vunpack.c.l.b16 %v3125
      %v3173 = vunpack.c.h.b16 %v3125
      %v3174 = vpack.c.b16 %v3142, %v3142
      %v3175 = vpack.c.b16 %v3143, %v3143
      %v3176 = vpack.c.b16 %v3144, %v3144
      %v3177 = vpack.c.b16 %v3145, %v3145
      %v3178 = vpack.c.b16 %v3146, %v3146
      %v3179 = vpack.c.b16 %v3147, %v3147
      %v3180 = vpack.c.b16 %v3148, %v3148
      %v3181 = vpack.c.b16 %v3149, %v3149
      %v3182 = vpack.c.b16 %v3150, %v3150
      %v3183 = vpack.c.b16 %v3151, %v3151
      %v3184 = vpack.c.b16 %v3152, %v3152
      %v3185 = vpack.c.b16 %v3153, %v3153
      %v3186 = vpack.c.b16 %v3154, %v3154
      %v3187 = vpack.c.b16 %v3155, %v3155
      %v3188 = vpack.c.b16 %v3156, %v3156
      %v3189 = vpack.c.b16 %v3157, %v3157
      %v3190 = vpack.c.b16 %v3158, %v3158
      %v3191 = vpack.c.b16 %v3159, %v3159
      %v3192 = vpack.c.b16 %v3160, %v3160
      %v3193 = vpack.c.b16 %v3161, %v3161
      %v3194 = vpack.c.b16 %v3162, %v3162
      %v3195 = vpack.c.b16 %v3163, %v3163
      %v3196 = vpack.c.b16 %v3164, %v3164
      %v3197 = vpack.c.b16 %v3165, %v3165
      %v3198 = vpack.c.b16 %v3166, %v3166
      %v3199 = vpack.c.b16 %v3167, %v3167
      %v3200 = vpack.c.b16 %v3168, %v3168
      %v3201 = vpack.c.b16 %v3169, %v3169
      %v3202 = vpack.c.b16 %v3170, %v3170
      %v3203 = vpack.c.b16 %v3171, %v3171
      %v3204 = vpack.c.b16 %v3172, %v3172
      %v3205 = vpack.c.b16 %v3173, %v3173
      %v3206 = vrot.slane %v3174, 7
      %v3207 = vrot.slane %v3206, 4
      %v3208 = vrot.slane %v3175, 7
      %v3209 = vsel %vm349, %v3207, %v3208
      %v3210 = vrot.slane %v3208, 4
      %v3211 = vrot.slane %v3176, 7
      %v3212 = vrot.slane %v3211, 4
      %v3213 = vrot.slane %v3177, 7
      %v3214 = vsel %vm349, %v3212, %v3213
      %v3215 = vrot.slane %v3213, 4
      %v3216 = vrot.slane %v3178, 7
      %v3217 = vrot.slane %v3216, 4
      %v3218 = vrot.slane %v3179, 7
      %v3219 = vsel %vm349, %v3217, %v3218
      %v3220 = vrot.slane %v3218, 4
      %v3221 = vrot.slane %v3180, 7
      %v3222 = vrot.slane %v3221, 4
      %v3223 = vrot.slane %v3181, 7
      %v3224 = vsel %vm349, %v3222, %v3223
      %v3225 = vrot.slane %v3223, 4
      %v3226 = vrot.slane %v3182, 7
      %v3227 = vrot.slane %v3226, 4
      %v3228 = vrot.slane %v3183, 7
      %v3229 = vsel %vm349, %v3227, %v3228
      %v3230 = vrot.slane %v3228, 4
      %v3231 = vrot.slane %v3184, 7
      %v3232 = vrot.slane %v3231, 4
      %v3233 = vrot.slane %v3185, 7
      %v3234 = vsel %vm349, %v3232, %v3233
      %v3235 = vrot.slane %v3233, 4
      %v3236 = vrot.slane %v3186, 7
      %v3237 = vrot.slane %v3236, 4
      %v3238 = vrot.slane %v3187, 7
      %v3239 = vsel %vm349, %v3237, %v3238
      %v3240 = vrot.slane %v3238, 4
      %v3241 = vrot.slane %v3188, 7
      %v3242 = vrot.slane %v3241, 4
      %v3243 = vrot.slane %v3189, 7
      %v3244 = vsel %vm349, %v3242, %v3243
      %v3245 = vrot.slane %v3243, 4
      %v3246 = vrot.slane %v3190, 7
      %v3247 = vrot.slane %v3246, 4
      %v3248 = vrot.slane %v3191, 7
      %v3249 = vsel %vm349, %v3247, %v3248
      %v3250 = vrot.slane %v3248, 4
      %v3251 = vrot.slane %v3192, 7
      %v3252 = vrot.slane %v3251, 4
      %v3253 = vrot.slane %v3193, 7
      %v3254 = vsel %vm349, %v3252, %v3253
      %v3255 = vrot.slane %v3253, 4
      %v3256 = vrot.slane %v3194, 7
      %v3257 = vrot.slane %v3256, 4
      %v3258 = vrot.slane %v3195, 7
      %v3259 = vsel %vm349, %v3257, %v3258
      %v3260 = vrot.slane %v3258, 4
      %v3261 = vrot.slane %v3196, 7
      %v3262 = vrot.slane %v3261, 4
      %v3263 = vrot.slane %v3197, 7
      %v3264 = vsel %vm349, %v3262, %v3263
      %v3265 = vrot.slane %v3263, 4
      %v3266 = vrot.slane %v3198, 7
      %v3267 = vrot.slane %v3266, 4
      %v3268 = vrot.slane %v3199, 7
      %v3269 = vsel %vm349, %v3267, %v3268
      %v3270 = vrot.slane %v3268, 4
      %v3271 = vrot.slane %v3200, 7
      %v3272 = vrot.slane %v3271, 4
      %v3273 = vrot.slane %v3201, 7
      %v3274 = vsel %vm349, %v3272, %v3273
      %v3275 = vrot.slane %v3273, 4
      %v3276 = vrot.slane %v3202, 7
      %v3277 = vrot.slane %v3276, 4
      %v3278 = vrot.slane %v3203, 7
      %v3279 = vsel %vm349, %v3277, %v3278
      %v3280 = vrot.slane %v3278, 4
      %v3281 = vrot.slane %v3204, 7
      %v3282 = vrot.slane %v3281, 4
      %v3283 = vrot.slane %v3205, 7
      %v3284 = vsel %vm349, %v3282, %v3283
      %v3285 = vrot.slane %v3283, 4
      %s3334 = scalar_lea.vmem [#allocation3], 24
      %vm3335 = vcmask 60417
      %3336 = vst.msk [vmem:[%s3334] sm:$0xe] %vm3335, %v3206
      %3337 = vst.msk [vmem:[%s3334 + $0x4] sm:$0xf] %vm3053, %v3209
      %3338 = vst.msk [vmem:[%s3334 + $0x8] sm:$0x1] %vm3068, %v3210
      %3339 = vst.msk [vmem:[%s3334 + $0xc] sm:$0xe] %vm3335, %v3211
      %3340 = vst.msk [vmem:[%s3334 + $0x10] sm:$0xf] %vm3053, %v3214
      %3341 = vst.msk [vmem:[%s3334 + $0x14] sm:$0x1] %vm3068, %v3215
      %3342 = vst.msk [vmem:[%s3334 + $0x18] sm:$0xe] %vm3335, %v3216
      %3343 = vst.msk [vmem:[%s3334 + $0x1c] sm:$0xf] %vm3053, %v3219
      %3344 = vst.msk [vmem:[%s3334 + $0x20] sm:$0x1] %vm3068, %v3220
      %3345 = vst.msk [vmem:[%s3334 + $0x24] sm:$0xe] %vm3335, %v3221
      %3346 = vst.msk [vmem:[%s3334 + $0x28] sm:$0xf] %vm3053, %v3224
      %3347 = vst.msk [vmem:[%s3334 + $0x2c] sm:$0x1] %vm3068, %v3225
      %3348 = vst.msk [vmem:[%s3334 + $0x30] sm:$0xe] %vm3335, %v3226
      %3349 = vst.msk [vmem:[%s3334 + $0x34] sm:$0xf] %vm3053, %v3229
      %3350 = vst.msk [vmem:[%s3334 + $0x38] sm:$0x1] %vm3068, %v3230
      %3351 = vst.msk [vmem:[%s3334 + $0x3c] sm:$0xe] %vm3335, %v3231
      %3352 = vst.msk [vmem:[%s3334 + $0x40] sm:$0xf] %vm3053, %v3234
      %3353 = vst.msk [vmem:[%s3334 + $0x44] sm:$0x1] %vm3068, %v3235
      %3354 = vst.msk [vmem:[%s3334 + $0x48] sm:$0xe] %vm3335, %v3236
      %3355 = vst.msk [vmem:[%s3334 + $0x4c] sm:$0xf] %vm3053, %v3239
      %3356 = vst.msk [vmem:[%s3334 + $0x50] sm:$0x1] %vm3068, %v3240
      %3357 = vst.msk [vmem:[%s3334 + $0x54] sm:$0xe] %vm3335, %v3241
      %3358 = vst.msk [vmem:[%s3334 + $0x58] sm:$0xf] %vm3053, %v3244
      %3359 = vst.msk [vmem:[%s3334 + $0x5c] sm:$0x1] %vm3068, %v3245
      %3360 = vst.msk [vmem:[%s3334 + $0x60] sm:$0xe] %vm3335, %v3246
      %3361 = vst.msk [vmem:[%s3334 + $0x64] sm:$0xf] %vm3053, %v3249
      %3362 = vst.msk [vmem:[%s3334 + $0x68] sm:$0x1] %vm3068, %v3250
      %3363 = vst.msk [vmem:[%s3334 + $0x6c] sm:$0xe] %vm3335, %v3251
      %3364 = vst.msk [vmem:[%s3334 + $0x70] sm:$0xf] %vm3053, %v3254
      %3365 = vst.msk [vmem:[%s3334 + $0x74] sm:$0x1] %vm3068, %v3255
      %3366 = vst.msk [vmem:[%s3334 + $0x78] sm:$0xe] %vm3335, %v3256
      %3367 = vst.msk [vmem:[%s3334 + $0x7c] sm:$0xf] %vm3053, %v3259
      %3368 = vst.msk [vmem:[%s3334 + $0x80] sm:$0x1] %vm3068, %v3260
      %3369 = vst.msk [vmem:[%s3334 + $0x84] sm:$0xe] %vm3335, %v3261
      %3370 = vst.msk [vmem:[%s3334 + $0x88] sm:$0xf] %vm3053, %v3264
      %3371 = vst.msk [vmem:[%s3334 + $0x8c] sm:$0x1] %vm3068, %v3265
      %3372 = vst.msk [vmem:[%s3334 + $0x90] sm:$0xe] %vm3335, %v3266
      %3373 = vst.msk [vmem:[%s3334 + $0x94] sm:$0xf] %vm3053, %v3269
      %3374 = vst.msk [vmem:[%s3334 + $0x98] sm:$0x1] %vm3068, %v3270
      %3375 = vst.msk [vmem:[%s3334 + $0x9c] sm:$0xe] %vm3335, %v3271
      %3376 = vst.msk [vmem:[%s3334 + $0xa0] sm:$0xf] %vm3053, %v3274
      %3377 = vst.msk [vmem:[%s3334 + $0xa4] sm:$0x1] %vm3068, %v3275
      %3378 = vst.msk [vmem:[%s3334 + $0xa8] sm:$0xe] %vm3335, %v3276
      %3379 = vst.msk [vmem:[%s3334 + $0xac] sm:$0xf] %vm3053, %v3279
      %3380 = vst.msk [vmem:[%s3334 + $0xb0] sm:$0x1] %vm3068, %v3280
      %3381 = vst.msk [vmem:[%s3334 + $0xb4] sm:$0xe] %vm3335, %v3281
      %3382 = vst.msk [vmem:[%s3334 + $0xb8] sm:$0xf] %vm3053, %v3284
      %3383 = vst.msk [vmem:[%s3334 + $0xbc] sm:$0x1] %vm3068, %v3285
      %v3384 = vld [vmem:[#allocation3] sm:$0xf]
      %v3385 = vld [vmem:[#allocation3 + $0x4] sm:$0xf]
      %v3386 = vld [vmem:[#allocation3 + $0xc] sm:$0xf]
      %v3387 = vld [vmem:[#allocation3 + $0x10] sm:$0xf]
      %v3388 = vld [vmem:[#allocation3 + $0x18] sm:$0xf]
      %v3389 = vld [vmem:[#allocation3 + $0x1c] sm:$0xf]
      %v3390 = vld [vmem:[#allocation3 + $0x24] sm:$0xf]
      %v3391 = vld [vmem:[#allocation3 + $0x28] sm:$0xf]
      %v3392 = vld [vmem:[#allocation3 + $0x30] sm:$0xf]
      %v3393 = vld [vmem:[#allocation3 + $0x34] sm:$0xf]
      %v3394 = vld [vmem:[#allocation3 + $0x3c] sm:$0xf]
      %v3395 = vld [vmem:[#allocation3 + $0x40] sm:$0xf]
      %v3396 = vld [vmem:[#allocation3 + $0x48] sm:$0xf]
      %v3397 = vld [vmem:[#allocation3 + $0x4c] sm:$0xf]
      %v3398 = vld [vmem:[#allocation3 + $0x54] sm:$0xf]
      %v3399 = vld [vmem:[#allocation3 + $0x58] sm:$0xf]
      %v3400 = vld [vmem:[#allocation3 + $0x60] sm:$0xf]
      %v3401 = vld [vmem:[#allocation3 + $0x64] sm:$0xf]
      %v3402 = vld [vmem:[#allocation3 + $0x6c] sm:$0xf]
      %v3403 = vld [vmem:[#allocation3 + $0x70] sm:$0xf]
      %v3404 = vld [vmem:[#allocation3 + $0x78] sm:$0xf]
      %v3405 = vld [vmem:[#allocation3 + $0x7c] sm:$0xf]
      %v3406 = vld [vmem:[#allocation3 + $0x84] sm:$0xf]
      %v3407 = vld [vmem:[#allocation3 + $0x88] sm:$0xf]
      %v3408 = vld [vmem:[#allocation3 + $0x90] sm:$0xf]
      %v3409 = vld [vmem:[#allocation3 + $0x94] sm:$0xf]
      %v3410 = vld [vmem:[#allocation3 + $0x9c] sm:$0xf]
      %v3411 = vld [vmem:[#allocation3 + $0xa0] sm:$0xf]
      %v3412 = vld [vmem:[#allocation3 + $0xa8] sm:$0xf]
      %v3413 = vld [vmem:[#allocation3 + $0xac] sm:$0xf]
      %v3414 = vld [vmem:[#allocation3 + $0xb4] sm:$0xf]
      %v3415 = vld [vmem:[#allocation3 + $0xb8] sm:$0xf]
      %v3448 = vunpack.c.l.b16 %v3384
      %v3449 = vunpack.c.l.b16 %v3385
      %v3450 = vunpack.c.l.b16 %v3386
      %v3451 = vunpack.c.l.b16 %v3387
      %v3452 = vunpack.c.l.b16 %v3388
      %v3453 = vunpack.c.l.b16 %v3389
      %v3454 = vunpack.c.l.b16 %v3390
      %v3455 = vunpack.c.l.b16 %v3391
      %v3456 = vunpack.c.l.b16 %v3392
      %v3457 = vunpack.c.l.b16 %v3393
      %v3458 = vunpack.c.l.b16 %v3394
      %v3459 = vunpack.c.l.b16 %v3395
      %v3460 = vunpack.c.l.b16 %v3396
      %v3461 = vunpack.c.l.b16 %v3397
      %v3462 = vunpack.c.l.b16 %v3398
      %v3463 = vunpack.c.l.b16 %v3399
      %v3464 = vunpack.c.l.b16 %v3400
      %v3465 = vunpack.c.l.b16 %v3401
      %v3466 = vunpack.c.l.b16 %v3402
      %v3467 = vunpack.c.l.b16 %v3403
      %v3468 = vunpack.c.l.b16 %v3404
      %v3469 = vunpack.c.l.b16 %v3405
      %v3470 = vunpack.c.l.b16 %v3406
      %v3471 = vunpack.c.l.b16 %v3407
      %v3472 = vunpack.c.l.b16 %v3408
      %v3473 = vunpack.c.l.b16 %v3409
      %v3474 = vunpack.c.l.b16 %v3410
      %v3475 = vunpack.c.l.b16 %v3411
      %v3476 = vunpack.c.l.b16 %v3412
      %v3477 = vunpack.c.l.b16 %v3413
      %v3478 = vunpack.c.l.b16 %v3414
      %v3479 = vunpack.c.l.b16 %v3415
      %v3480 = vpack.c.b16 %v3449, %v3448
      %v3481 = vpack.c.b16 %v3451, %v3450
      %v3482 = vpack.c.b16 %v3453, %v3452
      %v3483 = vpack.c.b16 %v3455, %v3454
      %v3484 = vpack.c.b16 %v3457, %v3456
      %v3485 = vpack.c.b16 %v3459, %v3458
      %v3486 = vpack.c.b16 %v3461, %v3460
      %v3487 = vpack.c.b16 %v3463, %v3462
      %v3488 = vpack.c.b16 %v3465, %v3464
      %v3489 = vpack.c.b16 %v3467, %v3466
      %v3490 = vpack.c.b16 %v3469, %v3468
      %v3491 = vpack.c.b16 %v3471, %v3470
      %v3492 = vpack.c.b16 %v3473, %v3472
      %v3493 = vpack.c.b16 %v3475, %v3474
      %v3494 = vpack.c.b16 %v3477, %v3476
      %v3495 = vpack.c.b16 %v3479, %v3478
      %vm3512 = vcmask 64512
      %3513 = vst.msk [vmem:[#allocation5] sm:$0xff] %vm3512, %v3480
      %3514 = vst.msk [vmem:[#allocation5 + $0x8] sm:$0xff] %vm3512, %v3481
      %3515 = vst.msk [vmem:[#allocation5 + $0x10] sm:$0xff] %vm3512, %v3482
      %3516 = vst.msk [vmem:[#allocation5 + $0x18] sm:$0xff] %vm3512, %v3483
      %3517 = vst.msk [vmem:[#allocation5 + $0x20] sm:$0xff] %vm3512, %v3484
      %3518 = vst.msk [vmem:[#allocation5 + $0x28] sm:$0xff] %vm3512, %v3485
      %3519 = vst.msk [vmem:[#allocation5 + $0x30] sm:$0xff] %vm3512, %v3486
      %3520 = vst.msk [vmem:[#allocation5 + $0x38] sm:$0xff] %vm3512, %v3487
      %3521 = vst.msk [vmem:[#allocation5 + $0x40] sm:$0xff] %vm3512, %v3488
      %3522 = vst.msk [vmem:[#allocation5 + $0x48] sm:$0xff] %vm3512, %v3489
      %3523 = vst.msk [vmem:[#allocation5 + $0x50] sm:$0xff] %vm3512, %v3490
      %3524 = vst.msk [vmem:[#allocation5 + $0x58] sm:$0xff] %vm3512, %v3491
      %3525 = vst.msk [vmem:[#allocation5 + $0x60] sm:$0xff] %vm3512, %v3492
      %3526 = vst.msk [vmem:[#allocation5 + $0x68] sm:$0xff] %vm3512, %v3493
      %3527 = vst.msk [vmem:[#allocation5 + $0x70] sm:$0xff] %vm3512, %v3494
      %3528 = vst.msk [vmem:[#allocation5 + $0x78] sm:$0xff] %vm3512, %v3495
      %v3529 = vld [vmem:[#allocation3] sm:$0xe]
      %v3530 = vld [vmem:[#allocation3 + $0x4] sm:$0xf]
      %v3531 = vld [vmem:[#allocation3 + $0x8] sm:$0x1]
      %v3532 = vld [vmem:[#allocation3 + $0xc] sm:$0xe]
      %v3533 = vld [vmem:[#allocation3 + $0x10] sm:$0xf]
      %v3534 = vld [vmem:[#allocation3 + $0x14] sm:$0x1]
      %v3535 = vld [vmem:[#allocation3 + $0x18] sm:$0xe]
      %v3536 = vld [vmem:[#allocation3 + $0x1c] sm:$0xf]
      %v3537 = vld [vmem:[#allocation3 + $0x20] sm:$0x1]
      %v3538 = vld [vmem:[#allocation3 + $0x24] sm:$0xe]
      %v3539 = vld [vmem:[#allocation3 + $0x28] sm:$0xf]
      %v3540 = vld [vmem:[#allocation3 + $0x2c] sm:$0x1]
      %v3541 = vld [vmem:[#allocation3 + $0x30] sm:$0xe]
      %v3542 = vld [vmem:[#allocation3 + $0x34] sm:$0xf]
      %v3543 = vld [vmem:[#allocation3 + $0x38] sm:$0x1]
      %v3544 = vld [vmem:[#allocation3 + $0x3c] sm:$0xe]
      %v3545 = vld [vmem:[#allocation3 + $0x40] sm:$0xf]
      %v3546 = vld [vmem:[#allocation3 + $0x44] sm:$0x1]
      %v3547 = vld [vmem:[#allocation3 + $0x48] sm:$0xe]
      %v3548 = vld [vmem:[#allocation3 + $0x4c] sm:$0xf]
      %v3549 = vld [vmem:[#allocation3 + $0x50] sm:$0x1]
      %v3550 = vld [vmem:[#allocation3 + $0x54] sm:$0xe]
      %v3551 = vld [vmem:[#allocation3 + $0x58] sm:$0xf]
      %v3552 = vld [vmem:[#allocation3 + $0x5c] sm:$0x1]
      %v3553 = vld [vmem:[#allocation3 + $0x60] sm:$0xe]
      %v3554 = vld [vmem:[#allocation3 + $0x64] sm:$0xf]
      %v3555 = vld [vmem:[#allocation3 + $0x68] sm:$0x1]
      %v3556 = vld [vmem:[#allocation3 + $0x6c] sm:$0xe]
      %v3557 = vld [vmem:[#allocation3 + $0x70] sm:$0xf]
      %v3558 = vld [vmem:[#allocation3 + $0x74] sm:$0x1]
      %v3559 = vld [vmem:[#allocation3 + $0x78] sm:$0xe]
      %v3560 = vld [vmem:[#allocation3 + $0x7c] sm:$0xf]
      %v3561 = vld [vmem:[#allocation3 + $0x80] sm:$0x1]
      %v3562 = vld [vmem:[#allocation3 + $0x84] sm:$0xe]
      %v3563 = vld [vmem:[#allocation3 + $0x88] sm:$0xf]
      %v3564 = vld [vmem:[#allocation3 + $0x8c] sm:$0x1]
      %v3565 = vld [vmem:[#allocation3 + $0x90] sm:$0xe]
      %v3566 = vld [vmem:[#allocation3 + $0x94] sm:$0xf]
      %v3567 = vld [vmem:[#allocation3 + $0x98] sm:$0x1]
      %v3568 = vld [vmem:[#allocation3 + $0x9c] sm:$0xe]
      %v3569 = vld [vmem:[#allocation3 + $0xa0] sm:$0xf]
      %v3570 = vld [vmem:[#allocation3 + $0xa4] sm:$0x1]
      %v3571 = vld [vmem:[#allocation3 + $0xa8] sm:$0xe]
      %v3572 = vld [vmem:[#allocation3 + $0xac] sm:$0xf]
      %v3573 = vld [vmem:[#allocation3 + $0xb0] sm:$0x1]
      %v3574 = vld [vmem:[#allocation3 + $0xb4] sm:$0xe]
      %v3575 = vld [vmem:[#allocation3 + $0xb8] sm:$0xf]
      %v3576 = vld [vmem:[#allocation3 + $0xbc] sm:$0x1]
      %v3625 = vunpack.c.l.b16 %v3529
      %v3626 = vunpack.c.l.b16 %v3530
      %v3627 = vunpack.c.l.b16 %v3531
      %v3628 = vunpack.c.l.b16 %v3532
      %v3629 = vunpack.c.l.b16 %v3533
      %v3630 = vunpack.c.l.b16 %v3534
      %v3631 = vunpack.c.l.b16 %v3535
      %v3632 = vunpack.c.l.b16 %v3536
      %v3633 = vunpack.c.l.b16 %v3537
      %v3634 = vunpack.c.l.b16 %v3538
      %v3635 = vunpack.c.l.b16 %v3539
      %v3636 = vunpack.c.l.b16 %v3540
      %v3637 = vunpack.c.l.b16 %v3541
      %v3638 = vunpack.c.l.b16 %v3542
      %v3639 = vunpack.c.l.b16 %v3543
      %v3640 = vunpack.c.l.b16 %v3544
      %v3641 = vunpack.c.l.b16 %v3545
      %v3642 = vunpack.c.l.b16 %v3546
      %v3643 = vunpack.c.l.b16 %v3547
      %v3644 = vunpack.c.l.b16 %v3548
      %v3645 = vunpack.c.l.b16 %v3549
      %v3646 = vunpack.c.l.b16 %v3550
      %v3647 = vunpack.c.l.b16 %v3551
      %v3648 = vunpack.c.l.b16 %v3552
      %v3649 = vunpack.c.l.b16 %v3553
      %v3650 = vunpack.c.l.b16 %v3554
      %v3651 = vunpack.c.l.b16 %v3555
      %v3652 = vunpack.c.l.b16 %v3556
      %v3653 = vunpack.c.l.b16 %v3557
      %v3654 = vunpack.c.l.b16 %v3558
      %v3655 = vunpack.c.l.b16 %v3559
      %v3656 = vunpack.c.l.b16 %v3560
      %v3657 = vunpack.c.l.b16 %v3561
      %v3658 = vunpack.c.l.b16 %v3562
      %v3659 = vunpack.c.l.b16 %v3563
      %v3660 = vunpack.c.l.b16 %v3564
      %v3661 = vunpack.c.l.b16 %v3565
      %v3662 = vunpack.c.l.b16 %v3566
      %v3663 = vunpack.c.l.b16 %v3567
      %v3664 = vunpack.c.l.b16 %v3568
      %v3665 = vunpack.c.l.b16 %v3569
      %v3666 = vunpack.c.l.b16 %v3570
      %v3667 = vunpack.c.l.b16 %v3571
      %v3668 = vunpack.c.l.b16 %v3572
      %v3669 = vunpack.c.l.b16 %v3573
      %v3670 = vunpack.c.l.b16 %v3574
      %v3671 = vunpack.c.l.b16 %v3575
      %v3672 = vunpack.c.l.b16 %v3576
      %v3673 = vpack.c.b16 %v3626, %v3625
      %v3674 = vpack.c.b16 %v3627, %v3627
      %v3675 = vpack.c.b16 %v3629, %v3628
      %v3676 = vpack.c.b16 %v3630, %v3630
      %v3677 = vpack.c.b16 %v3632, %v3631
      %v3678 = vpack.c.b16 %v3633, %v3633
      %v3679 = vpack.c.b16 %v3635, %v3634
      %v3680 = vpack.c.b16 %v3636, %v3636
      %v3681 = vpack.c.b16 %v3638, %v3637
      %v3682 = vpack.c.b16 %v3639, %v3639
      %v3683 = vpack.c.b16 %v3641, %v3640
      %v3684 = vpack.c.b16 %v3642, %v3642
      %v3685 = vpack.c.b16 %v3644, %v3643
      %v3686 = vpack.c.b16 %v3645, %v3645
      %v3687 = vpack.c.b16 %v3647, %v3646
      %v3688 = vpack.c.b16 %v3648, %v3648
      %v3689 = vpack.c.b16 %v3650, %v3649
      %v3690 = vpack.c.b16 %v3651, %v3651
      %v3691 = vpack.c.b16 %v3653, %v3652
      %v3692 = vpack.c.b16 %v3654, %v3654
      %v3693 = vpack.c.b16 %v3656, %v3655
      %v3694 = vpack.c.b16 %v3657, %v3657
      %v3695 = vpack.c.b16 %v3659, %v3658
      %v3696 = vpack.c.b16 %v3660, %v3660
      %v3697 = vpack.c.b16 %v3662, %v3661
      %v3698 = vpack.c.b16 %v3663, %v3663
      %v3699 = vpack.c.b16 %v3665, %v3664
      %v3700 = vpack.c.b16 %v3666, %v3666
      %v3701 = vpack.c.b16 %v3668, %v3667
      %v3702 = vpack.c.b16 %v3669, %v3669
      %v3703 = vpack.c.b16 %v3671, %v3670
      %v3704 = vpack.c.b16 %v3672, %v3672
      %v3705 = vrot.slane %v3673, 1
      %v3706 = vrot.slane %v3674, 1
      %v3707 = vsel %vm849, %v3705, %v3706
      %v3708 = vrot.slane %v3675, 1
      %v3709 = vrot.slane %v3676, 1
      %v3710 = vsel %vm849, %v3708, %v3709
      %v3711 = vrot.slane %v3677, 1
      %v3712 = vrot.slane %v3678, 1
      %v3713 = vsel %vm849, %v3711, %v3712
      %v3714 = vrot.slane %v3679, 1
      %v3715 = vrot.slane %v3680, 1
      %v3716 = vsel %vm849, %v3714, %v3715
      %v3717 = vrot.slane %v3681, 1
      %v3718 = vrot.slane %v3682, 1
      %v3719 = vsel %vm849, %v3717, %v3718
      %v3720 = vrot.slane %v3683, 1
      %v3721 = vrot.slane %v3684, 1
      %v3722 = vsel %vm849, %v3720, %v3721
      %v3723 = vrot.slane %v3685, 1
      %v3724 = vrot.slane %v3686, 1
      %v3725 = vsel %vm849, %v3723, %v3724
      %v3726 = vrot.slane %v3687, 1
      %v3727 = vrot.slane %v3688, 1
      %v3728 = vsel %vm849, %v3726, %v3727
      %v3729 = vrot.slane %v3689, 1
      %v3730 = vrot.slane %v3690, 1
      %v3731 = vsel %vm849, %v3729, %v3730
      %v3732 = vrot.slane %v3691, 1
      %v3733 = vrot.slane %v3692, 1
      %v3734 = vsel %vm849, %v3732, %v3733
      %v3735 = vrot.slane %v3693, 1
      %v3736 = vrot.slane %v3694, 1
      %v3737 = vsel %vm849, %v3735, %v3736
      %v3738 = vrot.slane %v3695, 1
      %v3739 = vrot.slane %v3696, 1
      %v3740 = vsel %vm849, %v3738, %v3739
      %v3741 = vrot.slane %v3697, 1
      %v3742 = vrot.slane %v3698, 1
      %v3743 = vsel %vm849, %v3741, %v3742
      %v3744 = vrot.slane %v3699, 1
      %v3745 = vrot.slane %v3700, 1
      %v3746 = vsel %vm849, %v3744, %v3745
      %v3747 = vrot.slane %v3701, 1
      %v3748 = vrot.slane %v3702, 1
      %v3749 = vsel %vm849, %v3747, %v3748
      %v3750 = vrot.slane %v3703, 1
      %v3751 = vrot.slane %v3704, 1
      %v3752 = vsel %vm849, %v3750, %v3751
      %3753 = vrot.lane.b32.xlu0 %v3707, 8
      %v3754 = vpop.permute.xlu0 %3753
      %3755 = vrot.lane.b32.xlu0 %v3710, 8
      %v3756 = vpop.permute.xlu0 %3755
      %3757 = vrot.lane.b32.xlu0 %v3713, 8
      %v3758 = vpop.permute.xlu0 %3757
      %3759 = vrot.lane.b32.xlu0 %v3716, 8
      %v3760 = vpop.permute.xlu0 %3759
      %3761 = vrot.lane.b32.xlu0 %v3719, 8
      %v3762 = vpop.permute.xlu0 %3761
      %3763 = vrot.lane.b32.xlu0 %v3722, 8
      %v3764 = vpop.permute.xlu0 %3763
      %3765 = vrot.lane.b32.xlu0 %v3725, 8
      %v3766 = vpop.permute.xlu0 %3765
      %3767 = vrot.lane.b32.xlu0 %v3728, 8
      %v3768 = vpop.permute.xlu0 %3767
      %3769 = vrot.lane.b32.xlu0 %v3731, 8
      %v3770 = vpop.permute.xlu0 %3769
      %3771 = vrot.lane.b32.xlu0 %v3734, 8
      %v3772 = vpop.permute.xlu0 %3771
      %3773 = vrot.lane.b32.xlu0 %v3737, 8
      %v3774 = vpop.permute.xlu0 %3773
      %3775 = vrot.lane.b32.xlu0 %v3740, 8
      %v3776 = vpop.permute.xlu0 %3775
      %3777 = vrot.lane.b32.xlu0 %v3743, 8
      %v3778 = vpop.permute.xlu0 %3777
      %3779 = vrot.lane.b32.xlu0 %v3746, 8
      %v3780 = vpop.permute.xlu0 %3779
      %3781 = vrot.lane.b32.xlu0 %v3749, 8
      %v3782 = vpop.permute.xlu0 %3781
      %3783 = vrot.lane.b32.xlu0 %v3752, 8
      %v3784 = vpop.permute.xlu0 %3783
      %vm3801 = vcmask 130112
      %3802 = vst.msk [vmem:[#allocation5] sm:$0xff] %vm3801, %v3754
      %3803 = vst.msk [vmem:[#allocation5 + $0x8] sm:$0xff] %vm3801, %v3756
      %3804 = vst.msk [vmem:[#allocation5 + $0x10] sm:$0xff] %vm3801, %v3758
      %3805 = vst.msk [vmem:[#allocation5 + $0x18] sm:$0xff] %vm3801, %v3760
      %3806 = vst.msk [vmem:[#allocation5 + $0x20] sm:$0xff] %vm3801, %v3762
      %3807 = vst.msk [vmem:[#allocation5 + $0x28] sm:$0xff] %vm3801, %v3764
      %3808 = vst.msk [vmem:[#allocation5 + $0x30] sm:$0xff] %vm3801, %v3766
      %3809 = vst.msk [vmem:[#allocation5 + $0x38] sm:$0xff] %vm3801, %v3768
      %3810 = vst.msk [vmem:[#allocation5 + $0x40] sm:$0xff] %vm3801, %v3770
      %3811 = vst.msk [vmem:[#allocation5 + $0x48] sm:$0xff] %vm3801, %v3772
      %3812 = vst.msk [vmem:[#allocation5 + $0x50] sm:$0xff] %vm3801, %v3774
      %3813 = vst.msk [vmem:[#allocation5 + $0x58] sm:$0xff] %vm3801, %v3776
      %3814 = vst.msk [vmem:[#allocation5 + $0x60] sm:$0xff] %vm3801, %v3778
      %3815 = vst.msk [vmem:[#allocation5 + $0x68] sm:$0xff] %vm3801, %v3780
      %3816 = vst.msk [vmem:[#allocation5 + $0x70] sm:$0xff] %vm3801, %v3782
      %3817 = vst.msk [vmem:[#allocation5 + $0x78] sm:$0xff] %vm3801, %v3784
      %v3818 = vld [vmem:[#allocation3] sm:$0xc]
      %v3819 = vld [vmem:[#allocation3 + $0x4] sm:$0xf]
      %v3820 = vld [vmem:[#allocation3 + $0x8] sm:$0x3]
      %v3821 = vld [vmem:[#allocation3 + $0xc] sm:$0xc]
      %v3822 = vld [vmem:[#allocation3 + $0x10] sm:$0xf]
      %v3823 = vld [vmem:[#allocation3 + $0x14] sm:$0x3]
      %v3824 = vld [vmem:[#allocation3 + $0x18] sm:$0xc]
      %v3825 = vld [vmem:[#allocation3 + $0x1c] sm:$0xf]
      %v3826 = vld [vmem:[#allocation3 + $0x20] sm:$0x3]
      %v3827 = vld [vmem:[#allocation3 + $0x24] sm:$0xc]
      %v3828 = vld [vmem:[#allocation3 + $0x28] sm:$0xf]
      %v3829 = vld [vmem:[#allocation3 + $0x2c] sm:$0x3]
      %v3830 = vld [vmem:[#allocation3 + $0x30] sm:$0xc]
      %v3831 = vld [vmem:[#allocation3 + $0x34] sm:$0xf]
      %v3832 = vld [vmem:[#allocation3 + $0x38] sm:$0x3]
      %v3833 = vld [vmem:[#allocation3 + $0x3c] sm:$0xc]
      %v3834 = vld [vmem:[#allocation3 + $0x40] sm:$0xf]
      %v3835 = vld [vmem:[#allocation3 + $0x44] sm:$0x3]
      %v3836 = vld [vmem:[#allocation3 + $0x48] sm:$0xc]
      %v3837 = vld [vmem:[#allocation3 + $0x4c] sm:$0xf]
      %v3838 = vld [vmem:[#allocation3 + $0x50] sm:$0x3]
      %v3839 = vld [vmem:[#allocation3 + $0x54] sm:$0xc]
      %v3840 = vld [vmem:[#allocation3 + $0x58] sm:$0xf]
      %v3841 = vld [vmem:[#allocation3 + $0x5c] sm:$0x3]
      %v3842 = vld [vmem:[#allocation3 + $0x60] sm:$0xc]
      %v3843 = vld [vmem:[#allocation3 + $0x64] sm:$0xf]
      %v3844 = vld [vmem:[#allocation3 + $0x68] sm:$0x3]
      %v3845 = vld [vmem:[#allocation3 + $0x6c] sm:$0xc]
      %v3846 = vld [vmem:[#allocation3 + $0x70] sm:$0xf]
      %v3847 = vld [vmem:[#allocation3 + $0x74] sm:$0x3]
      %v3848 = vld [vmem:[#allocation3 + $0x78] sm:$0xc]
      %v3849 = vld [vmem:[#allocation3 + $0x7c] sm:$0xf]
      %v3850 = vld [vmem:[#allocation3 + $0x80] sm:$0x3]
      %v3851 = vld [vmem:[#allocation3 + $0x84] sm:$0xc]
      %v3852 = vld [vmem:[#allocation3 + $0x88] sm:$0xf]
      %v3853 = vld [vmem:[#allocation3 + $0x8c] sm:$0x3]
      %v3854 = vld [vmem:[#allocation3 + $0x90] sm:$0xc]
      %v3855 = vld [vmem:[#allocation3 + $0x94] sm:$0xf]
      %v3856 = vld [vmem:[#allocation3 + $0x98] sm:$0x3]
      %v3857 = vld [vmem:[#allocation3 + $0x9c] sm:$0xc]
      %v3858 = vld [vmem:[#allocation3 + $0xa0] sm:$0xf]
      %v3859 = vld [vmem:[#allocation3 + $0xa4] sm:$0x3]
      %v3860 = vld [vmem:[#allocation3 + $0xa8] sm:$0xc]
      %v3861 = vld [vmem:[#allocation3 + $0xac] sm:$0xf]
      %v3862 = vld [vmem:[#allocation3 + $0xb0] sm:$0x3]
      %v3863 = vld [vmem:[#allocation3 + $0xb4] sm:$0xc]
      %v3864 = vld [vmem:[#allocation3 + $0xb8] sm:$0xf]
      %v3865 = vld [vmem:[#allocation3 + $0xbc] sm:$0x3]
      %v3914 = vunpack.c.l.b16 %v3818
      %v3915 = vunpack.c.l.b16 %v3819
      %v3916 = vunpack.c.l.b16 %v3820
      %v3917 = vunpack.c.l.b16 %v3821
      %v3918 = vunpack.c.l.b16 %v3822
      %v3919 = vunpack.c.l.b16 %v3823
      %v3920 = vunpack.c.l.b16 %v3824
      %v3921 = vunpack.c.l.b16 %v3825
      %v3922 = vunpack.c.l.b16 %v3826
      %v3923 = vunpack.c.l.b16 %v3827
      %v3924 = vunpack.c.l.b16 %v3828
      %v3925 = vunpack.c.l.b16 %v3829
      %v3926 = vunpack.c.l.b16 %v3830
      %v3927 = vunpack.c.l.b16 %v3831
      %v3928 = vunpack.c.l.b16 %v3832
      %v3929 = vunpack.c.l.b16 %v3833
      %v3930 = vunpack.c.l.b16 %v3834
      %v3931 = vunpack.c.l.b16 %v3835
      %v3932 = vunpack.c.l.b16 %v3836
      %v3933 = vunpack.c.l.b16 %v3837
      %v3934 = vunpack.c.l.b16 %v3838
      %v3935 = vunpack.c.l.b16 %v3839
      %v3936 = vunpack.c.l.b16 %v3840
      %v3937 = vunpack.c.l.b16 %v3841
      %v3938 = vunpack.c.l.b16 %v3842
      %v3939 = vunpack.c.l.b16 %v3843
      %v3940 = vunpack.c.l.b16 %v3844
      %v3941 = vunpack.c.l.b16 %v3845
      %v3942 = vunpack.c.l.b16 %v3846
      %v3943 = vunpack.c.l.b16 %v3847
      %v3944 = vunpack.c.l.b16 %v3848
      %v3945 = vunpack.c.l.b16 %v3849
      %v3946 = vunpack.c.l.b16 %v3850
      %v3947 = vunpack.c.l.b16 %v3851
      %v3948 = vunpack.c.l.b16 %v3852
      %v3949 = vunpack.c.l.b16 %v3853
      %v3950 = vunpack.c.l.b16 %v3854
      %v3951 = vunpack.c.l.b16 %v3855
      %v3952 = vunpack.c.l.b16 %v3856
      %v3953 = vunpack.c.l.b16 %v3857
      %v3954 = vunpack.c.l.b16 %v3858
      %v3955 = vunpack.c.l.b16 %v3859
      %v3956 = vunpack.c.l.b16 %v3860
      %v3957 = vunpack.c.l.b16 %v3861
      %v3958 = vunpack.c.l.b16 %v3862
      %v3959 = vunpack.c.l.b16 %v3863
      %v3960 = vunpack.c.l.b16 %v3864
      %v3961 = vunpack.c.l.b16 %v3865
      %v3962 = vpack.c.b16 %v3915, %v3914
      %v3963 = vpack.c.b16 %v3916, %v3916
      %v3964 = vpack.c.b16 %v3918, %v3917
      %v3965 = vpack.c.b16 %v3919, %v3919
      %v3966 = vpack.c.b16 %v3921, %v3920
      %v3967 = vpack.c.b16 %v3922, %v3922
      %v3968 = vpack.c.b16 %v3924, %v3923
      %v3969 = vpack.c.b16 %v3925, %v3925
      %v3970 = vpack.c.b16 %v3927, %v3926
      %v3971 = vpack.c.b16 %v3928, %v3928
      %v3972 = vpack.c.b16 %v3930, %v3929
      %v3973 = vpack.c.b16 %v3931, %v3931
      %v3974 = vpack.c.b16 %v3933, %v3932
      %v3975 = vpack.c.b16 %v3934, %v3934
      %v3976 = vpack.c.b16 %v3936, %v3935
      %v3977 = vpack.c.b16 %v3937, %v3937
      %v3978 = vpack.c.b16 %v3939, %v3938
      %v3979 = vpack.c.b16 %v3940, %v3940
      %v3980 = vpack.c.b16 %v3942, %v3941
      %v3981 = vpack.c.b16 %v3943, %v3943
      %v3982 = vpack.c.b16 %v3945, %v3944
      %v3983 = vpack.c.b16 %v3946, %v3946
      %v3984 = vpack.c.b16 %v3948, %v3947
      %v3985 = vpack.c.b16 %v3949, %v3949
      %v3986 = vpack.c.b16 %v3951, %v3950
      %v3987 = vpack.c.b16 %v3952, %v3952
      %v3988 = vpack.c.b16 %v3954, %v3953
      %v3989 = vpack.c.b16 %v3955, %v3955
      %v3990 = vpack.c.b16 %v3957, %v3956
      %v3991 = vpack.c.b16 %v3958, %v3958
      %v3992 = vpack.c.b16 %v3960, %v3959
      %v3993 = vpack.c.b16 %v3961, %v3961
      %v3994 = vrot.slane %v3962, 2
      %v3995 = vrot.slane %v3963, 2
      %v3996 = vsel %vm1139, %v3994, %v3995
      %v3997 = vrot.slane %v3964, 2
      %v3998 = vrot.slane %v3965, 2
      %v3999 = vsel %vm1139, %v3997, %v3998
      %v4000 = vrot.slane %v3966, 2
      %v4001 = vrot.slane %v3967, 2
      %v4002 = vsel %vm1139, %v4000, %v4001
      %v4003 = vrot.slane %v3968, 2
      %v4004 = vrot.slane %v3969, 2
      %v4005 = vsel %vm1139, %v4003, %v4004
      %v4006 = vrot.slane %v3970, 2
      %v4007 = vrot.slane %v3971, 2
      %v4008 = vsel %vm1139, %v4006, %v4007
      %v4009 = vrot.slane %v3972, 2
      %v4010 = vrot.slane %v3973, 2
      %v4011 = vsel %vm1139, %v4009, %v4010
      %v4012 = vrot.slane %v3974, 2
      %v4013 = vrot.slane %v3975, 2
      %v4014 = vsel %vm1139, %v4012, %v4013
      %v4015 = vrot.slane %v3976, 2
      %v4016 = vrot.slane %v3977, 2
      %v4017 = vsel %vm1139, %v4015, %v4016
      %v4018 = vrot.slane %v3978, 2
      %v4019 = vrot.slane %v3979, 2
      %v4020 = vsel %vm1139, %v4018, %v4019
      %v4021 = vrot.slane %v3980, 2
      %v4022 = vrot.slane %v3981, 2
      %v4023 = vsel %vm1139, %v4021, %v4022
      %v4024 = vrot.slane %v3982, 2
      %v4025 = vrot.slane %v3983, 2
      %v4026 = vsel %vm1139, %v4024, %v4025
      %v4027 = vrot.slane %v3984, 2
      %v4028 = vrot.slane %v3985, 2
      %v4029 = vsel %vm1139, %v4027, %v4028
      %v4030 = vrot.slane %v3986, 2
      %v4031 = vrot.slane %v3987, 2
      %v4032 = vsel %vm1139, %v4030, %v4031
      %v4033 = vrot.slane %v3988, 2
      %v4034 = vrot.slane %v3989, 2
      %v4035 = vsel %vm1139, %v4033, %v4034
      %v4036 = vrot.slane %v3990, 2
      %v4037 = vrot.slane %v3991, 2
      %v4038 = vsel %vm1139, %v4036, %v4037
      %v4039 = vrot.slane %v3992, 2
      %v4040 = vrot.slane %v3993, 2
      %v4041 = vsel %vm1139, %v4039, %v4040
      %4042 = vrot.lane.b32.xlu0 %v3996, 16
      %v4043 = vpop.permute.xlu0 %4042
      %4044 = vrot.lane.b32.xlu0 %v3999, 16
      %v4045 = vpop.permute.xlu0 %4044
      %4046 = vrot.lane.b32.xlu0 %v4002, 16
      %v4047 = vpop.permute.xlu0 %4046
      %4048 = vrot.lane.b32.xlu0 %v4005, 16
      %v4049 = vpop.permute.xlu0 %4048
      %4050 = vrot.lane.b32.xlu0 %v4008, 16
      %v4051 = vpop.permute.xlu0 %4050
      %4052 = vrot.lane.b32.xlu0 %v4011, 16
      %v4053 = vpop.permute.xlu0 %4052
      %4054 = vrot.lane.b32.xlu0 %v4014, 16
      %v4055 = vpop.permute.xlu0 %4054
      %4056 = vrot.lane.b32.xlu0 %v4017, 16
      %v4057 = vpop.permute.xlu0 %4056
      %4058 = vrot.lane.b32.xlu0 %v4020, 16
      %v4059 = vpop.permute.xlu0 %4058
      %4060 = vrot.lane.b32.xlu0 %v4023, 16
      %v4061 = vpop.permute.xlu0 %4060
      %4062 = vrot.lane.b32.xlu0 %v4026, 16
      %v4063 = vpop.permute.xlu0 %4062
      %4064 = vrot.lane.b32.xlu0 %v4029, 16
      %v4065 = vpop.permute.xlu0 %4064
      %4066 = vrot.lane.b32.xlu0 %v4032, 16
      %v4067 = vpop.permute.xlu0 %4066
      %4068 = vrot.lane.b32.xlu0 %v4035, 16
      %v4069 = vpop.permute.xlu0 %4068
      %4070 = vrot.lane.b32.xlu0 %v4038, 16
      %v4071 = vpop.permute.xlu0 %4070
      %4072 = vrot.lane.b32.xlu0 %v4041, 16
      %v4073 = vpop.permute.xlu0 %4072
      %vm4090 = vcmask 195712
      %4091 = vst.msk [vmem:[#allocation5] sm:$0xff] %vm4090, %v4043
      %4092 = vst.msk [vmem:[#allocation5 + $0x8] sm:$0xff] %vm4090, %v4045
      %4093 = vst.msk [vmem:[#allocation5 + $0x10] sm:$0xff] %vm4090, %v4047
      %4094 = vst.msk [vmem:[#allocation5 + $0x18] sm:$0xff] %vm4090, %v4049
      %4095 = vst.msk [vmem:[#allocation5 + $0x20] sm:$0xff] %vm4090, %v4051
      %4096 = vst.msk [vmem:[#allocation5 + $0x28] sm:$0xff] %vm4090, %v4053
      %4097 = vst.msk [vmem:[#allocation5 + $0x30] sm:$0xff] %vm4090, %v4055
      %4098 = vst.msk [vmem:[#allocation5 + $0x38] sm:$0xff] %vm4090, %v4057
      %4099 = vst.msk [vmem:[#allocation5 + $0x40] sm:$0xff] %vm4090, %v4059
      %4100 = vst.msk [vmem:[#allocation5 + $0x48] sm:$0xff] %vm4090, %v4061
      %4101 = vst.msk [vmem:[#allocation5 + $0x50] sm:$0xff] %vm4090, %v4063
      %4102 = vst.msk [vmem:[#allocation5 + $0x58] sm:$0xff] %vm4090, %v4065
      %4103 = vst.msk [vmem:[#allocation5 + $0x60] sm:$0xff] %vm4090, %v4067
      %4104 = vst.msk [vmem:[#allocation5 + $0x68] sm:$0xff] %vm4090, %v4069
      %4105 = vst.msk [vmem:[#allocation5 + $0x70] sm:$0xff] %vm4090, %v4071
      %4106 = vst.msk [vmem:[#allocation5 + $0x78] sm:$0xff] %vm4090, %v4073
      %v4107 = vld [vmem:[%s3334] sm:$0xf]
      %v4108 = vld [vmem:[%s3334 + $0x4] sm:$0xf]
      %v4109 = vld [vmem:[%s3334 + $0xc] sm:$0xf]
      %v4110 = vld [vmem:[%s3334 + $0x10] sm:$0xf]
      %v4111 = vld [vmem:[%s3334 + $0x18] sm:$0xf]
      %v4112 = vld [vmem:[%s3334 + $0x1c] sm:$0xf]
      %v4113 = vld [vmem:[%s3334 + $0x24] sm:$0xf]
      %v4114 = vld [vmem:[%s3334 + $0x28] sm:$0xf]
      %v4115 = vld [vmem:[%s3334 + $0x30] sm:$0xf]
      %v4116 = vld [vmem:[%s3334 + $0x34] sm:$0xf]
      %v4117 = vld [vmem:[%s3334 + $0x3c] sm:$0xf]
      %v4118 = vld [vmem:[%s3334 + $0x40] sm:$0xf]
      %v4119 = vld [vmem:[%s3334 + $0x48] sm:$0xf]
      %v4120 = vld [vmem:[%s3334 + $0x4c] sm:$0xf]
      %v4121 = vld [vmem:[%s3334 + $0x54] sm:$0xf]
      %v4122 = vld [vmem:[%s3334 + $0x58] sm:$0xf]
      %v4123 = vld [vmem:[%s3334 + $0x60] sm:$0xf]
      %v4124 = vld [vmem:[%s3334 + $0x64] sm:$0xf]
      %v4125 = vld [vmem:[%s3334 + $0x6c] sm:$0xf]
      %v4126 = vld [vmem:[%s3334 + $0x70] sm:$0xf]
      %v4127 = vld [vmem:[%s3334 + $0x78] sm:$0xf]
      %v4128 = vld [vmem:[%s3334 + $0x7c] sm:$0xf]
      %v4129 = vld [vmem:[%s3334 + $0x84] sm:$0xf]
      %v4130 = vld [vmem:[%s3334 + $0x88] sm:$0xf]
      %v4131 = vld [vmem:[%s3334 + $0x90] sm:$0xf]
      %v4132 = vld [vmem:[%s3334 + $0x94] sm:$0xf]
      %v4133 = vld [vmem:[%s3334 + $0x9c] sm:$0xf]
      %v4134 = vld [vmem:[%s3334 + $0xa0] sm:$0xf]
      %v4135 = vld [vmem:[%s3334 + $0xa8] sm:$0xf]
      %v4136 = vld [vmem:[%s3334 + $0xac] sm:$0xf]
      %v4137 = vld [vmem:[%s3334 + $0xb4] sm:$0xf]
      %v4138 = vld [vmem:[%s3334 + $0xb8] sm:$0xf]
      %v4171 = vunpack.c.l.b16 %v4107
      %v4172 = vunpack.c.l.b16 %v4108
      %v4173 = vunpack.c.l.b16 %v4109
      %v4174 = vunpack.c.l.b16 %v4110
      %v4175 = vunpack.c.l.b16 %v4111
      %v4176 = vunpack.c.l.b16 %v4112
      %v4177 = vunpack.c.l.b16 %v4113
      %v4178 = vunpack.c.l.b16 %v4114
      %v4179 = vunpack.c.l.b16 %v4115
      %v4180 = vunpack.c.l.b16 %v4116
      %v4181 = vunpack.c.l.b16 %v4117
      %v4182 = vunpack.c.l.b16 %v4118
      %v4183 = vunpack.c.l.b16 %v4119
      %v4184 = vunpack.c.l.b16 %v4120
      %v4185 = vunpack.c.l.b16 %v4121
      %v4186 = vunpack.c.l.b16 %v4122
      %v4187 = vunpack.c.l.b16 %v4123
      %v4188 = vunpack.c.l.b16 %v4124
      %v4189 = vunpack.c.l.b16 %v4125
      %v4190 = vunpack.c.l.b16 %v4126
      %v4191 = vunpack.c.l.b16 %v4127
      %v4192 = vunpack.c.l.b16 %v4128
      %v4193 = vunpack.c.l.b16 %v4129
      %v4194 = vunpack.c.l.b16 %v4130
      %v4195 = vunpack.c.l.b16 %v4131
      %v4196 = vunpack.c.l.b16 %v4132
      %v4197 = vunpack.c.l.b16 %v4133
      %v4198 = vunpack.c.l.b16 %v4134
      %v4199 = vunpack.c.l.b16 %v4135
      %v4200 = vunpack.c.l.b16 %v4136
      %v4201 = vunpack.c.l.b16 %v4137
      %v4202 = vunpack.c.l.b16 %v4138
      %v4203 = vpack.c.b16 %v4172, %v4171
      %v4204 = vpack.c.b16 %v4174, %v4173
      %v4205 = vpack.c.b16 %v4176, %v4175
      %v4206 = vpack.c.b16 %v4178, %v4177
      %v4207 = vpack.c.b16 %v4180, %v4179
      %v4208 = vpack.c.b16 %v4182, %v4181
      %v4209 = vpack.c.b16 %v4184, %v4183
      %v4210 = vpack.c.b16 %v4186, %v4185
      %v4211 = vpack.c.b16 %v4188, %v4187
      %v4212 = vpack.c.b16 %v4190, %v4189
      %v4213 = vpack.c.b16 %v4192, %v4191
      %v4214 = vpack.c.b16 %v4194, %v4193
      %v4215 = vpack.c.b16 %v4196, %v4195
      %v4216 = vpack.c.b16 %v4198, %v4197
      %v4217 = vpack.c.b16 %v4200, %v4199
      %v4218 = vpack.c.b16 %v4202, %v4201
      %4219 = vrot.lane.b32.xlu0 %v4203, 24
      %v4220 = vpop.permute.xlu0 %4219
      %4221 = vrot.lane.b32.xlu0 %v4204, 24
      %v4222 = vpop.permute.xlu0 %4221
      %4223 = vrot.lane.b32.xlu0 %v4205, 24
      %v4224 = vpop.permute.xlu0 %4223
      %4225 = vrot.lane.b32.xlu0 %v4206, 24
      %v4226 = vpop.permute.xlu0 %4225
      %4227 = vrot.lane.b32.xlu0 %v4207, 24
      %v4228 = vpop.permute.xlu0 %4227
      %4229 = vrot.lane.b32.xlu0 %v4208, 24
      %v4230 = vpop.permute.xlu0 %4229
      %4231 = vrot.lane.b32.xlu0 %v4209, 24
      %v4232 = vpop.permute.xlu0 %4231
      %4233 = vrot.lane.b32.xlu0 %v4210, 24
      %v4234 = vpop.permute.xlu0 %4233
      %4235 = vrot.lane.b32.xlu0 %v4211, 24
      %v4236 = vpop.permute.xlu0 %4235
      %4237 = vrot.lane.b32.xlu0 %v4212, 24
      %v4238 = vpop.permute.xlu0 %4237
      %4239 = vrot.lane.b32.xlu0 %v4213, 24
      %v4240 = vpop.permute.xlu0 %4239
      %4241 = vrot.lane.b32.xlu0 %v4214, 24
      %v4242 = vpop.permute.xlu0 %4241
      %4243 = vrot.lane.b32.xlu0 %v4215, 24
      %v4244 = vpop.permute.xlu0 %4243
      %4245 = vrot.lane.b32.xlu0 %v4216, 24
      %v4246 = vpop.permute.xlu0 %4245
      %4247 = vrot.lane.b32.xlu0 %v4217, 24
      %v4248 = vpop.permute.xlu0 %4247
      %4249 = vrot.lane.b32.xlu0 %v4218, 24
      %v4250 = vpop.permute.xlu0 %4249
      %vm4267 = vcmask 261312
      %4268 = vst.msk [vmem:[#allocation5] sm:$0xff] %vm4267, %v4220
      %4269 = vst.msk [vmem:[#allocation5 + $0x8] sm:$0xff] %vm4267, %v4222
      %4270 = vst.msk [vmem:[#allocation5 + $0x10] sm:$0xff] %vm4267, %v4224
      %4271 = vst.msk [vmem:[#allocation5 + $0x18] sm:$0xff] %vm4267, %v4226
      %4272 = vst.msk [vmem:[#allocation5 + $0x20] sm:$0xff] %vm4267, %v4228
      %4273 = vst.msk [vmem:[#allocation5 + $0x28] sm:$0xff] %vm4267, %v4230
      %4274 = vst.msk [vmem:[#allocation5 + $0x30] sm:$0xff] %vm4267, %v4232
      %4275 = vst.msk [vmem:[#allocation5 + $0x38] sm:$0xff] %vm4267, %v4234
      %4276 = vst.msk [vmem:[#allocation5 + $0x40] sm:$0xff] %vm4267, %v4236
      %4277 = vst.msk [vmem:[#allocation5 + $0x48] sm:$0xff] %vm4267, %v4238
      %4278 = vst.msk [vmem:[#allocation5 + $0x50] sm:$0xff] %vm4267, %v4240
      %4279 = vst.msk [vmem:[#allocation5 + $0x58] sm:$0xff] %vm4267, %v4242
      %4280 = vst.msk [vmem:[#allocation5 + $0x60] sm:$0xff] %vm4267, %v4244
      %4281 = vst.msk [vmem:[#allocation5 + $0x68] sm:$0xff] %vm4267, %v4246
      %4282 = vst.msk [vmem:[#allocation5 + $0x70] sm:$0xff] %vm4267, %v4248
      %4283 = vst.msk [vmem:[#allocation5 + $0x78] sm:$0xff] %vm4267, %v4250
      %v4284 = vld [vmem:[%s3334] sm:$0xe]
      %v4285 = vld [vmem:[%s3334 + $0x4] sm:$0xf]
      %v4286 = vld [vmem:[%s3334 + $0x8] sm:$0x1]
      %v4287 = vld [vmem:[%s3334 + $0xc] sm:$0xe]
      %v4288 = vld [vmem:[%s3334 + $0x10] sm:$0xf]
      %v4289 = vld [vmem:[%s3334 + $0x14] sm:$0x1]
      %v4290 = vld [vmem:[%s3334 + $0x18] sm:$0xe]
      %v4291 = vld [vmem:[%s3334 + $0x1c] sm:$0xf]
      %v4292 = vld [vmem:[%s3334 + $0x20] sm:$0x1]
      %v4293 = vld [vmem:[%s3334 + $0x24] sm:$0xe]
      %v4294 = vld [vmem:[%s3334 + $0x28] sm:$0xf]
      %v4295 = vld [vmem:[%s3334 + $0x2c] sm:$0x1]
      %v4296 = vld [vmem:[%s3334 + $0x30] sm:$0xe]
      %v4297 = vld [vmem:[%s3334 + $0x34] sm:$0xf]
      %v4298 = vld [vmem:[%s3334 + $0x38] sm:$0x1]
      %v4299 = vld [vmem:[%s3334 + $0x3c] sm:$0xe]
      %v4300 = vld [vmem:[%s3334 + $0x40] sm:$0xf]
      %v4301 = vld [vmem:[%s3334 + $0x44] sm:$0x1]
      %v4302 = vld [vmem:[%s3334 + $0x48] sm:$0xe]
      %v4303 = vld [vmem:[%s3334 + $0x4c] sm:$0xf]
      %v4304 = vld [vmem:[%s3334 + $0x50] sm:$0x1]
      %v4305 = vld [vmem:[%s3334 + $0x54] sm:$0xe]
      %v4306 = vld [vmem:[%s3334 + $0x58] sm:$0xf]
      %v4307 = vld [vmem:[%s3334 + $0x5c] sm:$0x1]
      %v4308 = vld [vmem:[%s3334 + $0x60] sm:$0xe]
      %v4309 = vld [vmem:[%s3334 + $0x64] sm:$0xf]
      %v4310 = vld [vmem:[%s3334 + $0x68] sm:$0x1]
      %v4311 = vld [vmem:[%s3334 + $0x6c] sm:$0xe]
      %v4312 = vld [vmem:[%s3334 + $0x70] sm:$0xf]
      %v4313 = vld [vmem:[%s3334 + $0x74] sm:$0x1]
      %v4314 = vld [vmem:[%s3334 + $0x78] sm:$0xe]
      %v4315 = vld [vmem:[%s3334 + $0x7c] sm:$0xf]
      %v4316 = vld [vmem:[%s3334 + $0x80] sm:$0x1]
      %v4317 = vld [vmem:[%s3334 + $0x84] sm:$0xe]
      %v4318 = vld [vmem:[%s3334 + $0x88] sm:$0xf]
      %v4319 = vld [vmem:[%s3334 + $0x8c] sm:$0x1]
      %v4320 = vld [vmem:[%s3334 + $0x90] sm:$0xe]
      %v4321 = vld [vmem:[%s3334 + $0x94] sm:$0xf]
      %v4322 = vld [vmem:[%s3334 + $0x98] sm:$0x1]
      %v4323 = vld [vmem:[%s3334 + $0x9c] sm:$0xe]
      %v4324 = vld [vmem:[%s3334 + $0xa0] sm:$0xf]
      %v4325 = vld [vmem:[%s3334 + $0xa4] sm:$0x1]
      %v4326 = vld [vmem:[%s3334 + $0xa8] sm:$0xe]
      %v4327 = vld [vmem:[%s3334 + $0xac] sm:$0xf]
      %v4328 = vld [vmem:[%s3334 + $0xb0] sm:$0x1]
      %v4329 = vld [vmem:[%s3334 + $0xb4] sm:$0xe]
      %v4330 = vld [vmem:[%s3334 + $0xb8] sm:$0xf]
      %v4331 = vld [vmem:[%s3334 + $0xbc] sm:$0x1]
      %v4380 = vunpack.c.l.b16 %v4284
      %v4381 = vunpack.c.l.b16 %v4285
      %v4382 = vunpack.c.l.b16 %v4286
      %v4383 = vunpack.c.l.b16 %v4287
      %v4384 = vunpack.c.l.b16 %v4288
      %v4385 = vunpack.c.l.b16 %v4289
      %v4386 = vunpack.c.l.b16 %v4290
      %v4387 = vunpack.c.l.b16 %v4291
      %v4388 = vunpack.c.l.b16 %v4292
      %v4389 = vunpack.c.l.b16 %v4293
      %v4390 = vunpack.c.l.b16 %v4294
      %v4391 = vunpack.c.l.b16 %v4295
      %v4392 = vunpack.c.l.b16 %v4296
      %v4393 = vunpack.c.l.b16 %v4297
      %v4394 = vunpack.c.l.b16 %v4298
      %v4395 = vunpack.c.l.b16 %v4299
      %v4396 = vunpack.c.l.b16 %v4300
      %v4397 = vunpack.c.l.b16 %v4301
      %v4398 = vunpack.c.l.b16 %v4302
      %v4399 = vunpack.c.l.b16 %v4303
      %v4400 = vunpack.c.l.b16 %v4304
      %v4401 = vunpack.c.l.b16 %v4305
      %v4402 = vunpack.c.l.b16 %v4306
      %v4403 = vunpack.c.l.b16 %v4307
      %v4404 = vunpack.c.l.b16 %v4308
      %v4405 = vunpack.c.l.b16 %v4309
      %v4406 = vunpack.c.l.b16 %v4310
      %v4407 = vunpack.c.l.b16 %v4311
      %v4408 = vunpack.c.l.b16 %v4312
      %v4409 = vunpack.c.l.b16 %v4313
      %v4410 = vunpack.c.l.b16 %v4314
      %v4411 = vunpack.c.l.b16 %v4315
      %v4412 = vunpack.c.l.b16 %v4316
      %v4413 = vunpack.c.l.b16 %v4317
      %v4414 = vunpack.c.l.b16 %v4318
      %v4415 = vunpack.c.l.b16 %v4319
      %v4416 = vunpack.c.l.b16 %v4320
      %v4417 = vunpack.c.l.b16 %v4321
      %v4418 = vunpack.c.l.b16 %v4322
      %v4419 = vunpack.c.l.b16 %v4323
      %v4420 = vunpack.c.l.b16 %v4324
      %v4421 = vunpack.c.l.b16 %v4325
      %v4422 = vunpack.c.l.b16 %v4326
      %v4423 = vunpack.c.l.b16 %v4327
      %v4424 = vunpack.c.l.b16 %v4328
      %v4425 = vunpack.c.l.b16 %v4329
      %v4426 = vunpack.c.l.b16 %v4330
      %v4427 = vunpack.c.l.b16 %v4331
      %v4428 = vpack.c.b16 %v4381, %v4380
      %v4429 = vpack.c.b16 %v4382, %v4382
      %v4430 = vpack.c.b16 %v4384, %v4383
      %v4431 = vpack.c.b16 %v4385, %v4385
      %v4432 = vpack.c.b16 %v4387, %v4386
      %v4433 = vpack.c.b16 %v4388, %v4388
      %v4434 = vpack.c.b16 %v4390, %v4389
      %v4435 = vpack.c.b16 %v4391, %v4391
      %v4436 = vpack.c.b16 %v4393, %v4392
      %v4437 = vpack.c.b16 %v4394, %v4394
      %v4438 = vpack.c.b16 %v4396, %v4395
      %v4439 = vpack.c.b16 %v4397, %v4397
      %v4440 = vpack.c.b16 %v4399, %v4398
      %v4441 = vpack.c.b16 %v4400, %v4400
      %v4442 = vpack.c.b16 %v4402, %v4401
      %v4443 = vpack.c.b16 %v4403, %v4403
      %v4444 = vpack.c.b16 %v4405, %v4404
      %v4445 = vpack.c.b16 %v4406, %v4406
      %v4446 = vpack.c.b16 %v4408, %v4407
      %v4447 = vpack.c.b16 %v4409, %v4409
      %v4448 = vpack.c.b16 %v4411, %v4410
      %v4449 = vpack.c.b16 %v4412, %v4412
      %v4450 = vpack.c.b16 %v4414, %v4413
      %v4451 = vpack.c.b16 %v4415, %v4415
      %v4452 = vpack.c.b16 %v4417, %v4416
      %v4453 = vpack.c.b16 %v4418, %v4418
      %v4454 = vpack.c.b16 %v4420, %v4419
      %v4455 = vpack.c.b16 %v4421, %v4421
      %v4456 = vpack.c.b16 %v4423, %v4422
      %v4457 = vpack.c.b16 %v4424, %v4424
      %v4458 = vpack.c.b16 %v4426, %v4425
      %v4459 = vpack.c.b16 %v4427, %v4427
      %v4460 = vrot.slane %v4428, 1
      %v4461 = vrot.slane %v4429, 1
      %v4462 = vsel %vm849, %v4460, %v4461
      %v4463 = vrot.slane %v4430, 1
      %v4464 = vrot.slane %v4431, 1
      %v4465 = vsel %vm849, %v4463, %v4464
      %v4466 = vrot.slane %v4432, 1
      %v4467 = vrot.slane %v4433, 1
      %v4468 = vsel %vm849, %v4466, %v4467
      %v4469 = vrot.slane %v4434, 1
      %v4470 = vrot.slane %v4435, 1
      %v4471 = vsel %vm849, %v4469, %v4470
      %v4472 = vrot.slane %v4436, 1
      %v4473 = vrot.slane %v4437, 1
      %v4474 = vsel %vm849, %v4472, %v4473
      %v4475 = vrot.slane %v4438, 1
      %v4476 = vrot.slane %v4439, 1
      %v4477 = vsel %vm849, %v4475, %v4476
      %v4478 = vrot.slane %v4440, 1
      %v4479 = vrot.slane %v4441, 1
      %v4480 = vsel %vm849, %v4478, %v4479
      %v4481 = vrot.slane %v4442, 1
      %v4482 = vrot.slane %v4443, 1
      %v4483 = vsel %vm849, %v4481, %v4482
      %v4484 = vrot.slane %v4444, 1
      %v4485 = vrot.slane %v4445, 1
      %v4486 = vsel %vm849, %v4484, %v4485
      %v4487 = vrot.slane %v4446, 1
      %v4488 = vrot.slane %v4447, 1
      %v4489 = vsel %vm849, %v4487, %v4488
      %v4490 = vrot.slane %v4448, 1
      %v4491 = vrot.slane %v4449, 1
      %v4492 = vsel %vm849, %v4490, %v4491
      %v4493 = vrot.slane %v4450, 1
      %v4494 = vrot.slane %v4451, 1
      %v4495 = vsel %vm849, %v4493, %v4494
      %v4496 = vrot.slane %v4452, 1
      %v4497 = vrot.slane %v4453, 1
      %v4498 = vsel %vm849, %v4496, %v4497
      %v4499 = vrot.slane %v4454, 1
      %v4500 = vrot.slane %v4455, 1
      %v4501 = vsel %vm849, %v4499, %v4500
      %v4502 = vrot.slane %v4456, 1
      %v4503 = vrot.slane %v4457, 1
      %v4504 = vsel %vm849, %v4502, %v4503
      %v4505 = vrot.slane %v4458, 1
      %v4506 = vrot.slane %v4459, 1
      %v4507 = vsel %vm849, %v4505, %v4506
      %4508 = vrot.lane.b32.xlu0 %v4462, 32
      %v4509 = vpop.permute.xlu0 %4508
      %4510 = vrot.lane.b32.xlu0 %v4465, 32
      %v4511 = vpop.permute.xlu0 %4510
      %4512 = vrot.lane.b32.xlu0 %v4468, 32
      %v4513 = vpop.permute.xlu0 %4512
      %4514 = vrot.lane.b32.xlu0 %v4471, 32
      %v4515 = vpop.permute.xlu0 %4514
      %4516 = vrot.lane.b32.xlu0 %v4474, 32
      %v4517 = vpop.permute.xlu0 %4516
      %4518 = vrot.lane.b32.xlu0 %v4477, 32
      %v4519 = vpop.permute.xlu0 %4518
      %4520 = vrot.lane.b32.xlu0 %v4480, 32
      %v4521 = vpop.permute.xlu0 %4520
      %4522 = vrot.lane.b32.xlu0 %v4483, 32
      %v4523 = vpop.permute.xlu0 %4522
      %4524 = vrot.lane.b32.xlu0 %v4486, 32
      %v4525 = vpop.permute.xlu0 %4524
      %4526 = vrot.lane.b32.xlu0 %v4489, 32
      %v4527 = vpop.permute.xlu0 %4526
      %4528 = vrot.lane.b32.xlu0 %v4492, 32
      %v4529 = vpop.permute.xlu0 %4528
      %4530 = vrot.lane.b32.xlu0 %v4495, 32
      %v4531 = vpop.permute.xlu0 %4530
      %4532 = vrot.lane.b32.xlu0 %v4498, 32
      %v4533 = vpop.permute.xlu0 %4532
      %4534 = vrot.lane.b32.xlu0 %v4501, 32
      %v4535 = vpop.permute.xlu0 %4534
      %4536 = vrot.lane.b32.xlu0 %v4504, 32
      %v4537 = vpop.permute.xlu0 %4536
      %4538 = vrot.lane.b32.xlu0 %v4507, 32
      %v4539 = vpop.permute.xlu0 %4538
      %vm4556 = vcmask 326912
      %4557 = vst.msk [vmem:[#allocation5] sm:$0xff] %vm4556, %v4509
      %4558 = vst.msk [vmem:[#allocation5 + $0x8] sm:$0xff] %vm4556, %v4511
      %4559 = vst.msk [vmem:[#allocation5 + $0x10] sm:$0xff] %vm4556, %v4513
      %4560 = vst.msk [vmem:[#allocation5 + $0x18] sm:$0xff] %vm4556, %v4515
      %4561 = vst.msk [vmem:[#allocation5 + $0x20] sm:$0xff] %vm4556, %v4517
      %4562 = vst.msk [vmem:[#allocation5 + $0x28] sm:$0xff] %vm4556, %v4519
      %4563 = vst.msk [vmem:[#allocation5 + $0x30] sm:$0xff] %vm4556, %v4521
      %4564 = vst.msk [vmem:[#allocation5 + $0x38] sm:$0xff] %vm4556, %v4523
      %4565 = vst.msk [vmem:[#allocation5 + $0x40] sm:$0xff] %vm4556, %v4525
      %4566 = vst.msk [vmem:[#allocation5 + $0x48] sm:$0xff] %vm4556, %v4527
      %4567 = vst.msk [vmem:[#allocation5 + $0x50] sm:$0xff] %vm4556, %v4529
      %4568 = vst.msk [vmem:[#allocation5 + $0x58] sm:$0xff] %vm4556, %v4531
      %4569 = vst.msk [vmem:[#allocation5 + $0x60] sm:$0xff] %vm4556, %v4533
      %4570 = vst.msk [vmem:[#allocation5 + $0x68] sm:$0xff] %vm4556, %v4535
      %4571 = vst.msk [vmem:[#allocation5 + $0x70] sm:$0xff] %vm4556, %v4537
      %4572 = vst.msk [vmem:[#allocation5 + $0x78] sm:$0xff] %vm4556, %v4539
      %v4573 = vld [vmem:[%s3334] sm:$0xc]
      %v4574 = vld [vmem:[%s3334 + $0x4] sm:$0xf]
      %v4575 = vld [vmem:[%s3334 + $0x8] sm:$0x3]
      %v4576 = vld [vmem:[%s3334 + $0xc] sm:$0xc]
      %v4577 = vld [vmem:[%s3334 + $0x10] sm:$0xf]
      %v4578 = vld [vmem:[%s3334 + $0x14] sm:$0x3]
      %v4579 = vld [vmem:[%s3334 + $0x18] sm:$0xc]
      %v4580 = vld [vmem:[%s3334 + $0x1c] sm:$0xf]
      %v4581 = vld [vmem:[%s3334 + $0x20] sm:$0x3]
      %v4582 = vld [vmem:[%s3334 + $0x24] sm:$0xc]
      %v4583 = vld [vmem:[%s3334 + $0x28] sm:$0xf]
      %v4584 = vld [vmem:[%s3334 + $0x2c] sm:$0x3]
      %v4585 = vld [vmem:[%s3334 + $0x30] sm:$0xc]
      %v4586 = vld [vmem:[%s3334 + $0x34] sm:$0xf]
      %v4587 = vld [vmem:[%s3334 + $0x38] sm:$0x3]
      %v4588 = vld [vmem:[%s3334 + $0x3c] sm:$0xc]
      %v4589 = vld [vmem:[%s3334 + $0x40] sm:$0xf]
      %v4590 = vld [vmem:[%s3334 + $0x44] sm:$0x3]
      %v4591 = vld [vmem:[%s3334 + $0x48] sm:$0xc]
      %v4592 = vld [vmem:[%s3334 + $0x4c] sm:$0xf]
      %v4593 = vld [vmem:[%s3334 + $0x50] sm:$0x3]
      %v4594 = vld [vmem:[%s3334 + $0x54] sm:$0xc]
      %v4595 = vld [vmem:[%s3334 + $0x58] sm:$0xf]
      %v4596 = vld [vmem:[%s3334 + $0x5c] sm:$0x3]
      %v4597 = vld [vmem:[%s3334 + $0x60] sm:$0xc]
      %v4598 = vld [vmem:[%s3334 + $0x64] sm:$0xf]
      %v4599 = vld [vmem:[%s3334 + $0x68] sm:$0x3]
      %v4600 = vld [vmem:[%s3334 + $0x6c] sm:$0xc]
      %v4601 = vld [vmem:[%s3334 + $0x70] sm:$0xf]
      %v4602 = vld [vmem:[%s3334 + $0x74] sm:$0x3]
      %v4603 = vld [vmem:[%s3334 + $0x78] sm:$0xc]
      %v4604 = vld [vmem:[%s3334 + $0x7c] sm:$0xf]
      %v4605 = vld [vmem:[%s3334 + $0x80] sm:$0x3]
      %v4606 = vld [vmem:[%s3334 + $0x84] sm:$0xc]
      %v4607 = vld [vmem:[%s3334 + $0x88] sm:$0xf]
      %v4608 = vld [vmem:[%s3334 + $0x8c] sm:$0x3]
      %v4609 = vld [vmem:[%s3334 + $0x90] sm:$0xc]
      %v4610 = vld [vmem:[%s3334 + $0x94] sm:$0xf]
      %v4611 = vld [vmem:[%s3334 + $0x98] sm:$0x3]
      %v4612 = vld [vmem:[%s3334 + $0x9c] sm:$0xc]
      %v4613 = vld [vmem:[%s3334 + $0xa0] sm:$0xf]
      %v4614 = vld [vmem:[%s3334 + $0xa4] sm:$0x3]
      %v4615 = vld [vmem:[%s3334 + $0xa8] sm:$0xc]
      %v4616 = vld [vmem:[%s3334 + $0xac] sm:$0xf]
      %v4617 = vld [vmem:[%s3334 + $0xb0] sm:$0x3]
      %v4618 = vld [vmem:[%s3334 + $0xb4] sm:$0xc]
      %v4619 = vld [vmem:[%s3334 + $0xb8] sm:$0xf]
      %v4620 = vld [vmem:[%s3334 + $0xbc] sm:$0x3]
      %v4669 = vunpack.c.l.b16 %v4573
      %v4670 = vunpack.c.l.b16 %v4574
      %v4671 = vunpack.c.l.b16 %v4575
      %v4672 = vunpack.c.l.b16 %v4576
      %v4673 = vunpack.c.l.b16 %v4577
      %v4674 = vunpack.c.l.b16 %v4578
      %v4675 = vunpack.c.l.b16 %v4579
      %v4676 = vunpack.c.l.b16 %v4580
      %v4677 = vunpack.c.l.b16 %v4581
      %v4678 = vunpack.c.l.b16 %v4582
      %v4679 = vunpack.c.l.b16 %v4583
      %v4680 = vunpack.c.l.b16 %v4584
      %v4681 = vunpack.c.l.b16 %v4585
      %v4682 = vunpack.c.l.b16 %v4586
      %v4683 = vunpack.c.l.b16 %v4587
      %v4684 = vunpack.c.l.b16 %v4588
      %v4685 = vunpack.c.l.b16 %v4589
      %v4686 = vunpack.c.l.b16 %v4590
      %v4687 = vunpack.c.l.b16 %v4591
      %v4688 = vunpack.c.l.b16 %v4592
      %v4689 = vunpack.c.l.b16 %v4593
      %v4690 = vunpack.c.l.b16 %v4594
      %v4691 = vunpack.c.l.b16 %v4595
      %v4692 = vunpack.c.l.b16 %v4596
      %v4693 = vunpack.c.l.b16 %v4597
      %v4694 = vunpack.c.l.b16 %v4598
      %v4695 = vunpack.c.l.b16 %v4599
      %v4696 = vunpack.c.l.b16 %v4600
      %v4697 = vunpack.c.l.b16 %v4601
      %v4698 = vunpack.c.l.b16 %v4602
      %v4699 = vunpack.c.l.b16 %v4603
      %v4700 = vunpack.c.l.b16 %v4604
      %v4701 = vunpack.c.l.b16 %v4605
      %v4702 = vunpack.c.l.b16 %v4606
      %v4703 = vunpack.c.l.b16 %v4607
      %v4704 = vunpack.c.l.b16 %v4608
      %v4705 = vunpack.c.l.b16 %v4609
      %v4706 = vunpack.c.l.b16 %v4610
      %v4707 = vunpack.c.l.b16 %v4611
      %v4708 = vunpack.c.l.b16 %v4612
      %v4709 = vunpack.c.l.b16 %v4613
      %v4710 = vunpack.c.l.b16 %v4614
      %v4711 = vunpack.c.l.b16 %v4615
      %v4712 = vunpack.c.l.b16 %v4616
      %v4713 = vunpack.c.l.b16 %v4617
      %v4714 = vunpack.c.l.b16 %v4618
      %v4715 = vunpack.c.l.b16 %v4619
      %v4716 = vunpack.c.l.b16 %v4620
      %v4717 = vpack.c.b16 %v4670, %v4669
      %v4718 = vpack.c.b16 %v4671, %v4671
      %v4719 = vpack.c.b16 %v4673, %v4672
      %v4720 = vpack.c.b16 %v4674, %v4674
      %v4721 = vpack.c.b16 %v4676, %v4675
      %v4722 = vpack.c.b16 %v4677, %v4677
      %v4723 = vpack.c.b16 %v4679, %v4678
      %v4724 = vpack.c.b16 %v4680, %v4680
      %v4725 = vpack.c.b16 %v4682, %v4681
      %v4726 = vpack.c.b16 %v4683, %v4683
      %v4727 = vpack.c.b16 %v4685, %v4684
      %v4728 = vpack.c.b16 %v4686, %v4686
      %v4729 = vpack.c.b16 %v4688, %v4687
      %v4730 = vpack.c.b16 %v4689, %v4689
      %v4731 = vpack.c.b16 %v4691, %v4690
      %v4732 = vpack.c.b16 %v4692, %v4692
      %v4733 = vpack.c.b16 %v4694, %v4693
      %v4734 = vpack.c.b16 %v4695, %v4695
      %v4735 = vpack.c.b16 %v4697, %v4696
      %v4736 = vpack.c.b16 %v4698, %v4698
      %v4737 = vpack.c.b16 %v4700, %v4699
      %v4738 = vpack.c.b16 %v4701, %v4701
      %v4739 = vpack.c.b16 %v4703, %v4702
      %v4740 = vpack.c.b16 %v4704, %v4704
      %v4741 = vpack.c.b16 %v4706, %v4705
      %v4742 = vpack.c.b16 %v4707, %v4707
      %v4743 = vpack.c.b16 %v4709, %v4708
      %v4744 = vpack.c.b16 %v4710, %v4710
      %v4745 = vpack.c.b16 %v4712, %v4711
      %v4746 = vpack.c.b16 %v4713, %v4713
      %v4747 = vpack.c.b16 %v4715, %v4714
      %v4748 = vpack.c.b16 %v4716, %v4716
      %v4749 = vrot.slane %v4717, 2
      %v4750 = vrot.slane %v4718, 2
      %v4751 = vsel %vm1139, %v4749, %v4750
      %v4752 = vrot.slane %v4719, 2
      %v4753 = vrot.slane %v4720, 2
      %v4754 = vsel %vm1139, %v4752, %v4753
      %v4755 = vrot.slane %v4721, 2
      %v4756 = vrot.slane %v4722, 2
      %v4757 = vsel %vm1139, %v4755, %v4756
      %v4758 = vrot.slane %v4723, 2
      %v4759 = vrot.slane %v4724, 2
      %v4760 = vsel %vm1139, %v4758, %v4759
      %v4761 = vrot.slane %v4725, 2
      %v4762 = vrot.slane %v4726, 2
      %v4763 = vsel %vm1139, %v4761, %v4762
      %v4764 = vrot.slane %v4727, 2
      %v4765 = vrot.slane %v4728, 2
      %v4766 = vsel %vm1139, %v4764, %v4765
      %v4767 = vrot.slane %v4729, 2
      %v4768 = vrot.slane %v4730, 2
      %v4769 = vsel %vm1139, %v4767, %v4768
      %v4770 = vrot.slane %v4731, 2
      %v4771 = vrot.slane %v4732, 2
      %v4772 = vsel %vm1139, %v4770, %v4771
      %v4773 = vrot.slane %v4733, 2
      %v4774 = vrot.slane %v4734, 2
      %v4775 = vsel %vm1139, %v4773, %v4774
      %v4776 = vrot.slane %v4735, 2
      %v4777 = vrot.slane %v4736, 2
      %v4778 = vsel %vm1139, %v4776, %v4777
      %v4779 = vrot.slane %v4737, 2
      %v4780 = vrot.slane %v4738, 2
      %v4781 = vsel %vm1139, %v4779, %v4780
      %v4782 = vrot.slane %v4739, 2
      %v4783 = vrot.slane %v4740, 2
      %v4784 = vsel %vm1139, %v4782, %v4783
      %v4785 = vrot.slane %v4741, 2
      %v4786 = vrot.slane %v4742, 2
      %v4787 = vsel %vm1139, %v4785, %v4786
      %v4788 = vrot.slane %v4743, 2
      %v4789 = vrot.slane %v4744, 2
      %v4790 = vsel %vm1139, %v4788, %v4789
      %v4791 = vrot.slane %v4745, 2
      %v4792 = vrot.slane %v4746, 2
      %v4793 = vsel %vm1139, %v4791, %v4792
      %v4794 = vrot.slane %v4747, 2
      %v4795 = vrot.slane %v4748, 2
      %v4796 = vsel %vm1139, %v4794, %v4795
      %4797 = vrot.lane.b32.xlu0 %v4751, 40
      %v4798 = vpop.permute.xlu0 %4797
      %4799 = vrot.lane.b32.xlu0 %v4754, 40
      %v4800 = vpop.permute.xlu0 %4799
      %4801 = vrot.lane.b32.xlu0 %v4757, 40
      %v4802 = vpop.permute.xlu0 %4801
      %4803 = vrot.lane.b32.xlu0 %v4760, 40
      %v4804 = vpop.permute.xlu0 %4803
      %4805 = vrot.lane.b32.xlu0 %v4763, 40
      %v4806 = vpop.permute.xlu0 %4805
      %4807 = vrot.lane.b32.xlu0 %v4766, 40
      %v4808 = vpop.permute.xlu0 %4807
      %4809 = vrot.lane.b32.xlu0 %v4769, 40
      %v4810 = vpop.permute.xlu0 %4809
      %4811 = vrot.lane.b32.xlu0 %v4772, 40
      %v4812 = vpop.permute.xlu0 %4811
      %4813 = vrot.lane.b32.xlu0 %v4775, 40
      %v4814 = vpop.permute.xlu0 %4813
      %4815 = vrot.lane.b32.xlu0 %v4778, 40
      %v4816 = vpop.permute.xlu0 %4815
      %4817 = vrot.lane.b32.xlu0 %v4781, 40
      %v4818 = vpop.permute.xlu0 %4817
      %4819 = vrot.lane.b32.xlu0 %v4784, 40
      %v4820 = vpop.permute.xlu0 %4819
      %4821 = vrot.lane.b32.xlu0 %v4787, 40
      %v4822 = vpop.permute.xlu0 %4821
      %4823 = vrot.lane.b32.xlu0 %v4790, 40
      %v4824 = vpop.permute.xlu0 %4823
      %4825 = vrot.lane.b32.xlu0 %v4793, 40
      %v4826 = vpop.permute.xlu0 %4825
      %4827 = vrot.lane.b32.xlu0 %v4796, 40
      %v4828 = vpop.permute.xlu0 %4827
      %vm4845 = vcmask 392512
      %4846 = vst.msk [vmem:[#allocation5] sm:$0xff] %vm4845, %v4798
      %4847 = vst.msk [vmem:[#allocation5 + $0x8] sm:$0xff] %vm4845, %v4800
      %4848 = vst.msk [vmem:[#allocation5 + $0x10] sm:$0xff] %vm4845, %v4802
      %4849 = vst.msk [vmem:[#allocation5 + $0x18] sm:$0xff] %vm4845, %v4804
      %4850 = vst.msk [vmem:[#allocation5 + $0x20] sm:$0xff] %vm4845, %v4806
      %4851 = vst.msk [vmem:[#allocation5 + $0x28] sm:$0xff] %vm4845, %v4808
      %4852 = vst.msk [vmem:[#allocation5 + $0x30] sm:$0xff] %vm4845, %v4810
      %4853 = vst.msk [vmem:[#allocation5 + $0x38] sm:$0xff] %vm4845, %v4812
      %4854 = vst.msk [vmem:[#allocation5 + $0x40] sm:$0xff] %vm4845, %v4814
      %4855 = vst.msk [vmem:[#allocation5 + $0x48] sm:$0xff] %vm4845, %v4816
      %4856 = vst.msk [vmem:[#allocation5 + $0x50] sm:$0xff] %vm4845, %v4818
      %4857 = vst.msk [vmem:[#allocation5 + $0x58] sm:$0xff] %vm4845, %v4820
      %4858 = vst.msk [vmem:[#allocation5 + $0x60] sm:$0xff] %vm4845, %v4822
      %4859 = vst.msk [vmem:[#allocation5 + $0x68] sm:$0xff] %vm4845, %v4824
      %4860 = vst.msk [vmem:[#allocation5 + $0x70] sm:$0xff] %vm4845, %v4826
      %4861 = vst.msk [vmem:[#allocation5 + $0x78] sm:$0xff] %vm4845, %v4828
      %s4862 = scalar_lea.vmem [#allocation3], 48
      %v4863 = vld [vmem:[%s4862] sm:$0xf]
      %v4864 = vld [vmem:[%s4862 + $0x4] sm:$0xf]
      %v4865 = vld [vmem:[%s4862 + $0xc] sm:$0xf]
      %v4866 = vld [vmem:[%s4862 + $0x10] sm:$0xf]
      %v4867 = vld [vmem:[%s4862 + $0x18] sm:$0xf]
      %v4868 = vld [vmem:[%s4862 + $0x1c] sm:$0xf]
      %v4869 = vld [vmem:[%s4862 + $0x24] sm:$0xf]
      %v4870 = vld [vmem:[%s4862 + $0x28] sm:$0xf]
      %v4871 = vld [vmem:[%s4862 + $0x30] sm:$0xf]
      %v4872 = vld [vmem:[%s4862 + $0x34] sm:$0xf]
      %v4873 = vld [vmem:[%s4862 + $0x3c] sm:$0xf]
      %v4874 = vld [vmem:[%s4862 + $0x40] sm:$0xf]
      %v4875 = vld [vmem:[%s4862 + $0x48] sm:$0xf]
      %v4876 = vld [vmem:[%s4862 + $0x4c] sm:$0xf]
      %v4877 = vld [vmem:[%s4862 + $0x54] sm:$0xf]
      %v4878 = vld [vmem:[%s4862 + $0x58] sm:$0xf]
      %v4879 = vld [vmem:[%s4862 + $0x60] sm:$0xf]
      %v4880 = vld [vmem:[%s4862 + $0x64] sm:$0xf]
      %v4881 = vld [vmem:[%s4862 + $0x6c] sm:$0xf]
      %v4882 = vld [vmem:[%s4862 + $0x70] sm:$0xf]
      %v4883 = vld [vmem:[%s4862 + $0x78] sm:$0xf]
      %v4884 = vld [vmem:[%s4862 + $0x7c] sm:$0xf]
      %v4885 = vld [vmem:[%s4862 + $0x84] sm:$0xf]
      %v4886 = vld [vmem:[%s4862 + $0x88] sm:$0xf]
      %v4887 = vld [vmem:[%s4862 + $0x90] sm:$0xf]
      %v4888 = vld [vmem:[%s4862 + $0x94] sm:$0xf]
      %v4889 = vld [vmem:[%s4862 + $0x9c] sm:$0xf]
      %v4890 = vld [vmem:[%s4862 + $0xa0] sm:$0xf]
      %v4891 = vld [vmem:[%s4862 + $0xa8] sm:$0xf]
      %v4892 = vld [vmem:[%s4862 + $0xac] sm:$0xf]
      %v4893 = vld [vmem:[%s4862 + $0xb4] sm:$0xf]
      %v4894 = vld [vmem:[%s4862 + $0xb8] sm:$0xf]
      %v4927 = vunpack.c.l.b16 %v4863
      %v4928 = vunpack.c.l.b16 %v4864
      %v4929 = vunpack.c.l.b16 %v4865
      %v4930 = vunpack.c.l.b16 %v4866
      %v4931 = vunpack.c.l.b16 %v4867
      %v4932 = vunpack.c.l.b16 %v4868
      %v4933 = vunpack.c.l.b16 %v4869
      %v4934 = vunpack.c.l.b16 %v4870
      %v4935 = vunpack.c.l.b16 %v4871
      %v4936 = vunpack.c.l.b16 %v4872
      %v4937 = vunpack.c.l.b16 %v4873
      %v4938 = vunpack.c.l.b16 %v4874
      %v4939 = vunpack.c.l.b16 %v4875
      %v4940 = vunpack.c.l.b16 %v4876
      %v4941 = vunpack.c.l.b16 %v4877
      %v4942 = vunpack.c.l.b16 %v4878
      %v4943 = vunpack.c.l.b16 %v4879
      %v4944 = vunpack.c.l.b16 %v4880
      %v4945 = vunpack.c.l.b16 %v4881
      %v4946 = vunpack.c.l.b16 %v4882
      %v4947 = vunpack.c.l.b16 %v4883
      %v4948 = vunpack.c.l.b16 %v4884
      %v4949 = vunpack.c.l.b16 %v4885
      %v4950 = vunpack.c.l.b16 %v4886
      %v4951 = vunpack.c.l.b16 %v4887
      %v4952 = vunpack.c.l.b16 %v4888
      %v4953 = vunpack.c.l.b16 %v4889
      %v4954 = vunpack.c.l.b16 %v4890
      %v4955 = vunpack.c.l.b16 %v4891
      %v4956 = vunpack.c.l.b16 %v4892
      %v4957 = vunpack.c.l.b16 %v4893
      %v4958 = vunpack.c.l.b16 %v4894
      %v4959 = vpack.c.b16 %v4928, %v4927
      %v4960 = vpack.c.b16 %v4930, %v4929
      %v4961 = vpack.c.b16 %v4932, %v4931
      %v4962 = vpack.c.b16 %v4934, %v4933
      %v4963 = vpack.c.b16 %v4936, %v4935
      %v4964 = vpack.c.b16 %v4938, %v4937
      %v4965 = vpack.c.b16 %v4940, %v4939
      %v4966 = vpack.c.b16 %v4942, %v4941
      %v4967 = vpack.c.b16 %v4944, %v4943
      %v4968 = vpack.c.b16 %v4946, %v4945
      %v4969 = vpack.c.b16 %v4948, %v4947
      %v4970 = vpack.c.b16 %v4950, %v4949
      %v4971 = vpack.c.b16 %v4952, %v4951
      %v4972 = vpack.c.b16 %v4954, %v4953
      %v4973 = vpack.c.b16 %v4956, %v4955
      %v4974 = vpack.c.b16 %v4958, %v4957
      %4975 = vrot.lane.b32.xlu0 %v4959, 48
      %v4976 = vpop.permute.xlu0 %4975
      %4977 = vrot.lane.b32.xlu0 %v4960, 48
      %v4978 = vpop.permute.xlu0 %4977
      %4979 = vrot.lane.b32.xlu0 %v4961, 48
      %v4980 = vpop.permute.xlu0 %4979
      %4981 = vrot.lane.b32.xlu0 %v4962, 48
      %v4982 = vpop.permute.xlu0 %4981
      %4983 = vrot.lane.b32.xlu0 %v4963, 48
      %v4984 = vpop.permute.xlu0 %4983
      %4985 = vrot.lane.b32.xlu0 %v4964, 48
      %v4986 = vpop.permute.xlu0 %4985
      %4987 = vrot.lane.b32.xlu0 %v4965, 48
      %v4988 = vpop.permute.xlu0 %4987
      %4989 = vrot.lane.b32.xlu0 %v4966, 48
      %v4990 = vpop.permute.xlu0 %4989
      %4991 = vrot.lane.b32.xlu0 %v4967, 48
      %v4992 = vpop.permute.xlu0 %4991
      %4993 = vrot.lane.b32.xlu0 %v4968, 48
      %v4994 = vpop.permute.xlu0 %4993
      %4995 = vrot.lane.b32.xlu0 %v4969, 48
      %v4996 = vpop.permute.xlu0 %4995
      %4997 = vrot.lane.b32.xlu0 %v4970, 48
      %v4998 = vpop.permute.xlu0 %4997
      %4999 = vrot.lane.b32.xlu0 %v4971, 48
      %v5000 = vpop.permute.xlu0 %4999
      %5001 = vrot.lane.b32.xlu0 %v4972, 48
      %v5002 = vpop.permute.xlu0 %5001
      %5003 = vrot.lane.b32.xlu0 %v4973, 48
      %v5004 = vpop.permute.xlu0 %5003
      %5005 = vrot.lane.b32.xlu0 %v4974, 48
      %v5006 = vpop.permute.xlu0 %5005
      %vm5023 = vcmask 458112
      %5024 = vst.msk [vmem:[#allocation5] sm:$0xff] %vm5023, %v4976
      %5025 = vst.msk [vmem:[#allocation5 + $0x8] sm:$0xff] %vm5023, %v4978
      %5026 = vst.msk [vmem:[#allocation5 + $0x10] sm:$0xff] %vm5023, %v4980
      %5027 = vst.msk [vmem:[#allocation5 + $0x18] sm:$0xff] %vm5023, %v4982
      %5028 = vst.msk [vmem:[#allocation5 + $0x20] sm:$0xff] %vm5023, %v4984
      %5029 = vst.msk [vmem:[#allocation5 + $0x28] sm:$0xff] %vm5023, %v4986
      %5030 = vst.msk [vmem:[#allocation5 + $0x30] sm:$0xff] %vm5023, %v4988
      %5031 = vst.msk [vmem:[#allocation5 + $0x38] sm:$0xff] %vm5023, %v4990
      %5032 = vst.msk [vmem:[#allocation5 + $0x40] sm:$0xff] %vm5023, %v4992
      %5033 = vst.msk [vmem:[#allocation5 + $0x48] sm:$0xff] %vm5023, %v4994
      %5034 = vst.msk [vmem:[#allocation5 + $0x50] sm:$0xff] %vm5023, %v4996
      %5035 = vst.msk [vmem:[#allocation5 + $0x58] sm:$0xff] %vm5023, %v4998
      %5036 = vst.msk [vmem:[#allocation5 + $0x60] sm:$0xff] %vm5023, %v5000
      %5037 = vst.msk [vmem:[#allocation5 + $0x68] sm:$0xff] %vm5023, %v5002
      %5038 = vst.msk [vmem:[#allocation5 + $0x70] sm:$0xff] %vm5023, %v5004
      %5039 = vst.msk [vmem:[#allocation5 + $0x78] sm:$0xff] %vm5023, %v5006
      %v5040 = vld [vmem:[%s4862] sm:$0xe]
      %v5041 = vld [vmem:[%s4862 + $0x4] sm:$0xf]
      %v5042 = vld [vmem:[%s4862 + $0x8] sm:$0x1]
      %v5043 = vld [vmem:[%s4862 + $0xc] sm:$0xe]
      %v5044 = vld [vmem:[%s4862 + $0x10] sm:$0xf]
      %v5045 = vld [vmem:[%s4862 + $0x14] sm:$0x1]
      %v5046 = vld [vmem:[%s4862 + $0x18] sm:$0xe]
      %v5047 = vld [vmem:[%s4862 + $0x1c] sm:$0xf]
      %v5048 = vld [vmem:[%s4862 + $0x20] sm:$0x1]
      %v5049 = vld [vmem:[%s4862 + $0x24] sm:$0xe]
      %v5050 = vld [vmem:[%s4862 + $0x28] sm:$0xf]
      %v5051 = vld [vmem:[%s4862 + $0x2c] sm:$0x1]
      %v5052 = vld [vmem:[%s4862 + $0x30] sm:$0xe]
      %v5053 = vld [vmem:[%s4862 + $0x34] sm:$0xf]
      %v5054 = vld [vmem:[%s4862 + $0x38] sm:$0x1]
      %v5055 = vld [vmem:[%s4862 + $0x3c] sm:$0xe]
      %v5056 = vld [vmem:[%s4862 + $0x40] sm:$0xf]
      %v5057 = vld [vmem:[%s4862 + $0x44] sm:$0x1]
      %v5058 = vld [vmem:[%s4862 + $0x48] sm:$0xe]
      %v5059 = vld [vmem:[%s4862 + $0x4c] sm:$0xf]
      %v5060 = vld [vmem:[%s4862 + $0x50] sm:$0x1]
      %v5061 = vld [vmem:[%s4862 + $0x54] sm:$0xe]
      %v5062 = vld [vmem:[%s4862 + $0x58] sm:$0xf]
      %v5063 = vld [vmem:[%s4862 + $0x5c] sm:$0x1]
      %v5064 = vld [vmem:[%s4862 + $0x60] sm:$0xe]
      %v5065 = vld [vmem:[%s4862 + $0x64] sm:$0xf]
      %v5066 = vld [vmem:[%s4862 + $0x68] sm:$0x1]
      %v5067 = vld [vmem:[%s4862 + $0x6c] sm:$0xe]
      %v5068 = vld [vmem:[%s4862 + $0x70] sm:$0xf]
      %v5069 = vld [vmem:[%s4862 + $0x74] sm:$0x1]
      %v5070 = vld [vmem:[%s4862 + $0x78] sm:$0xe]
      %v5071 = vld [vmem:[%s4862 + $0x7c] sm:$0xf]
      %v5072 = vld [vmem:[%s4862 + $0x80] sm:$0x1]
      %v5073 = vld [vmem:[%s4862 + $0x84] sm:$0xe]
      %v5074 = vld [vmem:[%s4862 + $0x88] sm:$0xf]
      %v5075 = vld [vmem:[%s4862 + $0x8c] sm:$0x1]
      %v5076 = vld [vmem:[%s4862 + $0x90] sm:$0xe]
      %v5077 = vld [vmem:[%s4862 + $0x94] sm:$0xf]
      %v5078 = vld [vmem:[%s4862 + $0x98] sm:$0x1]
      %v5079 = vld [vmem:[%s4862 + $0x9c] sm:$0xe]
      %v5080 = vld [vmem:[%s4862 + $0xa0] sm:$0xf]
      %v5081 = vld [vmem:[%s4862 + $0xa4] sm:$0x1]
      %v5082 = vld [vmem:[%s4862 + $0xa8] sm:$0xe]
      %v5083 = vld [vmem:[%s4862 + $0xac] sm:$0xf]
      %v5084 = vld [vmem:[%s4862 + $0xb0] sm:$0x1]
      %v5085 = vld [vmem:[%s4862 + $0xb4] sm:$0xe]
      %v5086 = vld [vmem:[%s4862 + $0xb8] sm:$0xf]
      %v5087 = vld [vmem:[%s4862 + $0xbc] sm:$0x1]
      %v5136 = vunpack.c.l.b16 %v5040
      %v5137 = vunpack.c.l.b16 %v5041
      %v5138 = vunpack.c.l.b16 %v5042
      %v5139 = vunpack.c.l.b16 %v5043
      %v5140 = vunpack.c.l.b16 %v5044
      %v5141 = vunpack.c.l.b16 %v5045
      %v5142 = vunpack.c.l.b16 %v5046
      %v5143 = vunpack.c.l.b16 %v5047
      %v5144 = vunpack.c.l.b16 %v5048
      %v5145 = vunpack.c.l.b16 %v5049
      %v5146 = vunpack.c.l.b16 %v5050
      %v5147 = vunpack.c.l.b16 %v5051
      %v5148 = vunpack.c.l.b16 %v5052
      %v5149 = vunpack.c.l.b16 %v5053
      %v5150 = vunpack.c.l.b16 %v5054
      %v5151 = vunpack.c.l.b16 %v5055
      %v5152 = vunpack.c.l.b16 %v5056
      %v5153 = vunpack.c.l.b16 %v5057
      %v5154 = vunpack.c.l.b16 %v5058
      %v5155 = vunpack.c.l.b16 %v5059
      %v5156 = vunpack.c.l.b16 %v5060
      %v5157 = vunpack.c.l.b16 %v5061
      %v5158 = vunpack.c.l.b16 %v5062
      %v5159 = vunpack.c.l.b16 %v5063
      %v5160 = vunpack.c.l.b16 %v5064
      %v5161 = vunpack.c.l.b16 %v5065
      %v5162 = vunpack.c.l.b16 %v5066
      %v5163 = vunpack.c.l.b16 %v5067
      %v5164 = vunpack.c.l.b16 %v5068
      %v5165 = vunpack.c.l.b16 %v5069
      %v5166 = vunpack.c.l.b16 %v5070
      %v5167 = vunpack.c.l.b16 %v5071
      %v5168 = vunpack.c.l.b16 %v5072
      %v5169 = vunpack.c.l.b16 %v5073
      %v5170 = vunpack.c.l.b16 %v5074
      %v5171 = vunpack.c.l.b16 %v5075
      %v5172 = vunpack.c.l.b16 %v5076
      %v5173 = vunpack.c.l.b16 %v5077
      %v5174 = vunpack.c.l.b16 %v5078
      %v5175 = vunpack.c.l.b16 %v5079
      %v5176 = vunpack.c.l.b16 %v5080
      %v5177 = vunpack.c.l.b16 %v5081
      %v5178 = vunpack.c.l.b16 %v5082
      %v5179 = vunpack.c.l.b16 %v5083
      %v5180 = vunpack.c.l.b16 %v5084
      %v5181 = vunpack.c.l.b16 %v5085
      %v5182 = vunpack.c.l.b16 %v5086
      %v5183 = vunpack.c.l.b16 %v5087
      %v5184 = vpack.c.b16 %v5137, %v5136
      %v5185 = vpack.c.b16 %v5138, %v5138
      %v5186 = vpack.c.b16 %v5140, %v5139
      %v5187 = vpack.c.b16 %v5141, %v5141
      %v5188 = vpack.c.b16 %v5143, %v5142
      %v5189 = vpack.c.b16 %v5144, %v5144
      %v5190 = vpack.c.b16 %v5146, %v5145
      %v5191 = vpack.c.b16 %v5147, %v5147
      %v5192 = vpack.c.b16 %v5149, %v5148
      %v5193 = vpack.c.b16 %v5150, %v5150
      %v5194 = vpack.c.b16 %v5152, %v5151
      %v5195 = vpack.c.b16 %v5153, %v5153
      %v5196 = vpack.c.b16 %v5155, %v5154
      %v5197 = vpack.c.b16 %v5156, %v5156
      %v5198 = vpack.c.b16 %v5158, %v5157
      %v5199 = vpack.c.b16 %v5159, %v5159
      %v5200 = vpack.c.b16 %v5161, %v5160
      %v5201 = vpack.c.b16 %v5162, %v5162
      %v5202 = vpack.c.b16 %v5164, %v5163
      %v5203 = vpack.c.b16 %v5165, %v5165
      %v5204 = vpack.c.b16 %v5167, %v5166
      %v5205 = vpack.c.b16 %v5168, %v5168
      %v5206 = vpack.c.b16 %v5170, %v5169
      %v5207 = vpack.c.b16 %v5171, %v5171
      %v5208 = vpack.c.b16 %v5173, %v5172
      %v5209 = vpack.c.b16 %v5174, %v5174
      %v5210 = vpack.c.b16 %v5176, %v5175
      %v5211 = vpack.c.b16 %v5177, %v5177
      %v5212 = vpack.c.b16 %v5179, %v5178
      %v5213 = vpack.c.b16 %v5180, %v5180
      %v5214 = vpack.c.b16 %v5182, %v5181
      %v5215 = vpack.c.b16 %v5183, %v5183
      %v5216 = vrot.slane %v5184, 1
      %v5217 = vrot.slane %v5185, 1
      %v5218 = vsel %vm849, %v5216, %v5217
      %v5219 = vrot.slane %v5186, 1
      %v5220 = vrot.slane %v5187, 1
      %v5221 = vsel %vm849, %v5219, %v5220
      %v5222 = vrot.slane %v5188, 1
      %v5223 = vrot.slane %v5189, 1
      %v5224 = vsel %vm849, %v5222, %v5223
      %v5225 = vrot.slane %v5190, 1
      %v5226 = vrot.slane %v5191, 1
      %v5227 = vsel %vm849, %v5225, %v5226
      %v5228 = vrot.slane %v5192, 1
      %v5229 = vrot.slane %v5193, 1
      %v5230 = vsel %vm849, %v5228, %v5229
      %v5231 = vrot.slane %v5194, 1
      %v5232 = vrot.slane %v5195, 1
      %v5233 = vsel %vm849, %v5231, %v5232
      %v5234 = vrot.slane %v5196, 1
      %v5235 = vrot.slane %v5197, 1
      %v5236 = vsel %vm849, %v5234, %v5235
      %v5237 = vrot.slane %v5198, 1
      %v5238 = vrot.slane %v5199, 1
      %v5239 = vsel %vm849, %v5237, %v5238
      %v5240 = vrot.slane %v5200, 1
      %v5241 = vrot.slane %v5201, 1
      %v5242 = vsel %vm849, %v5240, %v5241
      %v5243 = vrot.slane %v5202, 1
      %v5244 = vrot.slane %v5203, 1
      %v5245 = vsel %vm849, %v5243, %v5244
      %v5246 = vrot.slane %v5204, 1
      %v5247 = vrot.slane %v5205, 1
      %v5248 = vsel %vm849, %v5246, %v5247
      %v5249 = vrot.slane %v5206, 1
      %v5250 = vrot.slane %v5207, 1
      %v5251 = vsel %vm849, %v5249, %v5250
      %v5252 = vrot.slane %v5208, 1
      %v5253 = vrot.slane %v5209, 1
      %v5254 = vsel %vm849, %v5252, %v5253
      %v5255 = vrot.slane %v5210, 1
      %v5256 = vrot.slane %v5211, 1
      %v5257 = vsel %vm849, %v5255, %v5256
      %v5258 = vrot.slane %v5212, 1
      %v5259 = vrot.slane %v5213, 1
      %v5260 = vsel %vm849, %v5258, %v5259
      %v5261 = vrot.slane %v5214, 1
      %v5262 = vrot.slane %v5215, 1
      %v5263 = vsel %vm849, %v5261, %v5262
      %5264 = vrot.lane.b32.xlu0 %v5218, 56
      %v5265 = vpop.permute.xlu0 %5264
      %5266 = vrot.lane.b32.xlu0 %v5221, 56
      %v5267 = vpop.permute.xlu0 %5266
      %5268 = vrot.lane.b32.xlu0 %v5224, 56
      %v5269 = vpop.permute.xlu0 %5268
      %5270 = vrot.lane.b32.xlu0 %v5227, 56
      %v5271 = vpop.permute.xlu0 %5270
      %5272 = vrot.lane.b32.xlu0 %v5230, 56
      %v5273 = vpop.permute.xlu0 %5272
      %5274 = vrot.lane.b32.xlu0 %v5233, 56
      %v5275 = vpop.permute.xlu0 %5274
      %5276 = vrot.lane.b32.xlu0 %v5236, 56
      %v5277 = vpop.permute.xlu0 %5276
      %5278 = vrot.lane.b32.xlu0 %v5239, 56
      %v5279 = vpop.permute.xlu0 %5278
      %5280 = vrot.lane.b32.xlu0 %v5242, 56
      %v5281 = vpop.permute.xlu0 %5280
      %5282 = vrot.lane.b32.xlu0 %v5245, 56
      %v5283 = vpop.permute.xlu0 %5282
      %5284 = vrot.lane.b32.xlu0 %v5248, 56
      %v5285 = vpop.permute.xlu0 %5284
      %5286 = vrot.lane.b32.xlu0 %v5251, 56
      %v5287 = vpop.permute.xlu0 %5286
      %5288 = vrot.lane.b32.xlu0 %v5254, 56
      %v5289 = vpop.permute.xlu0 %5288
      %5290 = vrot.lane.b32.xlu0 %v5257, 56
      %v5291 = vpop.permute.xlu0 %5290
      %5292 = vrot.lane.b32.xlu0 %v5260, 56
      %v5293 = vpop.permute.xlu0 %5292
      %5294 = vrot.lane.b32.xlu0 %v5263, 56
      %v5295 = vpop.permute.xlu0 %5294
      %vm5312 = vcmask 523712
      %5313 = vst.msk [vmem:[#allocation5] sm:$0xff] %vm5312, %v5265
      %5314 = vst.msk [vmem:[#allocation5 + $0x8] sm:$0xff] %vm5312, %v5267
      %5315 = vst.msk [vmem:[#allocation5 + $0x10] sm:$0xff] %vm5312, %v5269
      %5316 = vst.msk [vmem:[#allocation5 + $0x18] sm:$0xff] %vm5312, %v5271
      %5317 = vst.msk [vmem:[#allocation5 + $0x20] sm:$0xff] %vm5312, %v5273
      %5318 = vst.msk [vmem:[#allocation5 + $0x28] sm:$0xff] %vm5312, %v5275
      %5319 = vst.msk [vmem:[#allocation5 + $0x30] sm:$0xff] %vm5312, %v5277
      %5320 = vst.msk [vmem:[#allocation5 + $0x38] sm:$0xff] %vm5312, %v5279
      %5321 = vst.msk [vmem:[#allocation5 + $0x40] sm:$0xff] %vm5312, %v5281
      %5322 = vst.msk [vmem:[#allocation5 + $0x48] sm:$0xff] %vm5312, %v5283
      %5323 = vst.msk [vmem:[#allocation5 + $0x50] sm:$0xff] %vm5312, %v5285
      %5324 = vst.msk [vmem:[#allocation5 + $0x58] sm:$0xff] %vm5312, %v5287
      %5325 = vst.msk [vmem:[#allocation5 + $0x60] sm:$0xff] %vm5312, %v5289
      %5326 = vst.msk [vmem:[#allocation5 + $0x68] sm:$0xff] %vm5312, %v5291
      %5327 = vst.msk [vmem:[#allocation5 + $0x70] sm:$0xff] %vm5312, %v5293
      %5328 = vst.msk [vmem:[#allocation5 + $0x78] sm:$0xff] %vm5312, %v5295
      %v5329 = vld [vmem:[%s4862] sm:$0xc]
      %v5330 = vld [vmem:[%s4862 + $0x4] sm:$0xf]
      %v5331 = vld [vmem:[%s4862 + $0x8] sm:$0x3]
      %v5332 = vld [vmem:[%s4862 + $0xc] sm:$0xc]
      %v5333 = vld [vmem:[%s4862 + $0x10] sm:$0xf]
      %v5334 = vld [vmem:[%s4862 + $0x14] sm:$0x3]
      %v5335 = vld [vmem:[%s4862 + $0x18] sm:$0xc]
      %v5336 = vld [vmem:[%s4862 + $0x1c] sm:$0xf]
      %v5337 = vld [vmem:[%s4862 + $0x20] sm:$0x3]
      %v5338 = vld [vmem:[%s4862 + $0x24] sm:$0xc]
      %v5339 = vld [vmem:[%s4862 + $0x28] sm:$0xf]
      %v5340 = vld [vmem:[%s4862 + $0x2c] sm:$0x3]
      %v5341 = vld [vmem:[%s4862 + $0x30] sm:$0xc]
      %v5342 = vld [vmem:[%s4862 + $0x34] sm:$0xf]
      %v5343 = vld [vmem:[%s4862 + $0x38] sm:$0x3]
      %v5344 = vld [vmem:[%s4862 + $0x3c] sm:$0xc]
      %v5345 = vld [vmem:[%s4862 + $0x40] sm:$0xf]
      %v5346 = vld [vmem:[%s4862 + $0x44] sm:$0x3]
      %v5347 = vld [vmem:[%s4862 + $0x48] sm:$0xc]
      %v5348 = vld [vmem:[%s4862 + $0x4c] sm:$0xf]
      %v5349 = vld [vmem:[%s4862 + $0x50] sm:$0x3]
      %v5350 = vld [vmem:[%s4862 + $0x54] sm:$0xc]
      %v5351 = vld [vmem:[%s4862 + $0x58] sm:$0xf]
      %v5352 = vld [vmem:[%s4862 + $0x5c] sm:$0x3]
      %v5353 = vld [vmem:[%s4862 + $0x60] sm:$0xc]
      %v5354 = vld [vmem:[%s4862 + $0x64] sm:$0xf]
      %v5355 = vld [vmem:[%s4862 + $0x68] sm:$0x3]
      %v5356 = vld [vmem:[%s4862 + $0x6c] sm:$0xc]
      %v5357 = vld [vmem:[%s4862 + $0x70] sm:$0xf]
      %v5358 = vld [vmem:[%s4862 + $0x74] sm:$0x3]
      %v5359 = vld [vmem:[%s4862 + $0x78] sm:$0xc]
      %v5360 = vld [vmem:[%s4862 + $0x7c] sm:$0xf]
      %v5361 = vld [vmem:[%s4862 + $0x80] sm:$0x3]
      %v5362 = vld [vmem:[%s4862 + $0x84] sm:$0xc]
      %v5363 = vld [vmem:[%s4862 + $0x88] sm:$0xf]
      %v5364 = vld [vmem:[%s4862 + $0x8c] sm:$0x3]
      %v5365 = vld [vmem:[%s4862 + $0x90] sm:$0xc]
      %v5366 = vld [vmem:[%s4862 + $0x94] sm:$0xf]
      %v5367 = vld [vmem:[%s4862 + $0x98] sm:$0x3]
      %v5368 = vld [vmem:[%s4862 + $0x9c] sm:$0xc]
      %v5369 = vld [vmem:[%s4862 + $0xa0] sm:$0xf]
      %v5370 = vld [vmem:[%s4862 + $0xa4] sm:$0x3]
      %v5371 = vld [vmem:[%s4862 + $0xa8] sm:$0xc]
      %v5372 = vld [vmem:[%s4862 + $0xac] sm:$0xf]
      %v5373 = vld [vmem:[%s4862 + $0xb0] sm:$0x3]
      %v5374 = vld [vmem:[%s4862 + $0xb4] sm:$0xc]
      %v5375 = vld [vmem:[%s4862 + $0xb8] sm:$0xf]
      %v5376 = vld [vmem:[%s4862 + $0xbc] sm:$0x3]
      %v5425 = vunpack.c.l.b16 %v5329
      %v5426 = vunpack.c.l.b16 %v5330
      %v5427 = vunpack.c.l.b16 %v5331
      %v5428 = vunpack.c.l.b16 %v5332
      %v5429 = vunpack.c.l.b16 %v5333
      %v5430 = vunpack.c.l.b16 %v5334
      %v5431 = vunpack.c.l.b16 %v5335
      %v5432 = vunpack.c.l.b16 %v5336
      %v5433 = vunpack.c.l.b16 %v5337
      %v5434 = vunpack.c.l.b16 %v5338
      %v5435 = vunpack.c.l.b16 %v5339
      %v5436 = vunpack.c.l.b16 %v5340
      %v5437 = vunpack.c.l.b16 %v5341
      %v5438 = vunpack.c.l.b16 %v5342
      %v5439 = vunpack.c.l.b16 %v5343
      %v5440 = vunpack.c.l.b16 %v5344
      %v5441 = vunpack.c.l.b16 %v5345
      %v5442 = vunpack.c.l.b16 %v5346
      %v5443 = vunpack.c.l.b16 %v5347
      %v5444 = vunpack.c.l.b16 %v5348
      %v5445 = vunpack.c.l.b16 %v5349
      %v5446 = vunpack.c.l.b16 %v5350
      %v5447 = vunpack.c.l.b16 %v5351
      %v5448 = vunpack.c.l.b16 %v5352
      %v5449 = vunpack.c.l.b16 %v5353
      %v5450 = vunpack.c.l.b16 %v5354
      %v5451 = vunpack.c.l.b16 %v5355
      %v5452 = vunpack.c.l.b16 %v5356
      %v5453 = vunpack.c.l.b16 %v5357
      %v5454 = vunpack.c.l.b16 %v5358
      %v5455 = vunpack.c.l.b16 %v5359
      %v5456 = vunpack.c.l.b16 %v5360
      %v5457 = vunpack.c.l.b16 %v5361
      %v5458 = vunpack.c.l.b16 %v5362
      %v5459 = vunpack.c.l.b16 %v5363
      %v5460 = vunpack.c.l.b16 %v5364
      %v5461 = vunpack.c.l.b16 %v5365
      %v5462 = vunpack.c.l.b16 %v5366
      %v5463 = vunpack.c.l.b16 %v5367
      %v5464 = vunpack.c.l.b16 %v5368
      %v5465 = vunpack.c.l.b16 %v5369
      %v5466 = vunpack.c.l.b16 %v5370
      %v5467 = vunpack.c.l.b16 %v5371
      %v5468 = vunpack.c.l.b16 %v5372
      %v5469 = vunpack.c.l.b16 %v5373
      %v5470 = vunpack.c.l.b16 %v5374
      %v5471 = vunpack.c.l.b16 %v5375
      %v5472 = vunpack.c.l.b16 %v5376
      %v5473 = vpack.c.b16 %v5426, %v5425
      %v5474 = vpack.c.b16 %v5427, %v5427
      %v5475 = vpack.c.b16 %v5429, %v5428
      %v5476 = vpack.c.b16 %v5430, %v5430
      %v5477 = vpack.c.b16 %v5432, %v5431
      %v5478 = vpack.c.b16 %v5433, %v5433
      %v5479 = vpack.c.b16 %v5435, %v5434
      %v5480 = vpack.c.b16 %v5436, %v5436
      %v5481 = vpack.c.b16 %v5438, %v5437
      %v5482 = vpack.c.b16 %v5439, %v5439
      %v5483 = vpack.c.b16 %v5441, %v5440
      %v5484 = vpack.c.b16 %v5442, %v5442
      %v5485 = vpack.c.b16 %v5444, %v5443
      %v5486 = vpack.c.b16 %v5445, %v5445
      %v5487 = vpack.c.b16 %v5447, %v5446
      %v5488 = vpack.c.b16 %v5448, %v5448
      %v5489 = vpack.c.b16 %v5450, %v5449
      %v5490 = vpack.c.b16 %v5451, %v5451
      %v5491 = vpack.c.b16 %v5453, %v5452
      %v5492 = vpack.c.b16 %v5454, %v5454
      %v5493 = vpack.c.b16 %v5456, %v5455
      %v5494 = vpack.c.b16 %v5457, %v5457
      %v5495 = vpack.c.b16 %v5459, %v5458
      %v5496 = vpack.c.b16 %v5460, %v5460
      %v5497 = vpack.c.b16 %v5462, %v5461
      %v5498 = vpack.c.b16 %v5463, %v5463
      %v5499 = vpack.c.b16 %v5465, %v5464
      %v5500 = vpack.c.b16 %v5466, %v5466
      %v5501 = vpack.c.b16 %v5468, %v5467
      %v5502 = vpack.c.b16 %v5469, %v5469
      %v5503 = vpack.c.b16 %v5471, %v5470
      %v5504 = vpack.c.b16 %v5472, %v5472
      %v5505 = vrot.slane %v5473, 2
      %v5506 = vrot.slane %v5474, 2
      %v5507 = vsel %vm1139, %v5505, %v5506
      %v5508 = vrot.slane %v5475, 2
      %v5509 = vrot.slane %v5476, 2
      %v5510 = vsel %vm1139, %v5508, %v5509
      %v5511 = vrot.slane %v5477, 2
      %v5512 = vrot.slane %v5478, 2
      %v5513 = vsel %vm1139, %v5511, %v5512
      %v5514 = vrot.slane %v5479, 2
      %v5515 = vrot.slane %v5480, 2
      %v5516 = vsel %vm1139, %v5514, %v5515
      %v5517 = vrot.slane %v5481, 2
      %v5518 = vrot.slane %v5482, 2
      %v5519 = vsel %vm1139, %v5517, %v5518
      %v5520 = vrot.slane %v5483, 2
      %v5521 = vrot.slane %v5484, 2
      %v5522 = vsel %vm1139, %v5520, %v5521
      %v5523 = vrot.slane %v5485, 2
      %v5524 = vrot.slane %v5486, 2
      %v5525 = vsel %vm1139, %v5523, %v5524
      %v5526 = vrot.slane %v5487, 2
      %v5527 = vrot.slane %v5488, 2
      %v5528 = vsel %vm1139, %v5526, %v5527
      %v5529 = vrot.slane %v5489, 2
      %v5530 = vrot.slane %v5490, 2
      %v5531 = vsel %vm1139, %v5529, %v5530
      %v5532 = vrot.slane %v5491, 2
      %v5533 = vrot.slane %v5492, 2
      %v5534 = vsel %vm1139, %v5532, %v5533
      %v5535 = vrot.slane %v5493, 2
      %v5536 = vrot.slane %v5494, 2
      %v5537 = vsel %vm1139, %v5535, %v5536
      %v5538 = vrot.slane %v5495, 2
      %v5539 = vrot.slane %v5496, 2
      %v5540 = vsel %vm1139, %v5538, %v5539
      %v5541 = vrot.slane %v5497, 2
      %v5542 = vrot.slane %v5498, 2
      %v5543 = vsel %vm1139, %v5541, %v5542
      %v5544 = vrot.slane %v5499, 2
      %v5545 = vrot.slane %v5500, 2
      %v5546 = vsel %vm1139, %v5544, %v5545
      %v5547 = vrot.slane %v5501, 2
      %v5548 = vrot.slane %v5502, 2
      %v5549 = vsel %vm1139, %v5547, %v5548
      %v5550 = vrot.slane %v5503, 2
      %v5551 = vrot.slane %v5504, 2
      %v5552 = vsel %vm1139, %v5550, %v5551
      %5553 = vrot.lane.b32.xlu0 %v5507, 64
      %v5554 = vpop.permute.xlu0 %5553
      %5555 = vrot.lane.b32.xlu0 %v5510, 64
      %v5556 = vpop.permute.xlu0 %5555
      %5557 = vrot.lane.b32.xlu0 %v5513, 64
      %v5558 = vpop.permute.xlu0 %5557
      %5559 = vrot.lane.b32.xlu0 %v5516, 64
      %v5560 = vpop.permute.xlu0 %5559
      %5561 = vrot.lane.b32.xlu0 %v5519, 64
      %v5562 = vpop.permute.xlu0 %5561
      %5563 = vrot.lane.b32.xlu0 %v5522, 64
      %v5564 = vpop.permute.xlu0 %5563
      %5565 = vrot.lane.b32.xlu0 %v5525, 64
      %v5566 = vpop.permute.xlu0 %5565
      %5567 = vrot.lane.b32.xlu0 %v5528, 64
      %v5568 = vpop.permute.xlu0 %5567
      %5569 = vrot.lane.b32.xlu0 %v5531, 64
      %v5570 = vpop.permute.xlu0 %5569
      %5571 = vrot.lane.b32.xlu0 %v5534, 64
      %v5572 = vpop.permute.xlu0 %5571
      %5573 = vrot.lane.b32.xlu0 %v5537, 64
      %v5574 = vpop.permute.xlu0 %5573
      %5575 = vrot.lane.b32.xlu0 %v5540, 64
      %v5576 = vpop.permute.xlu0 %5575
      %5577 = vrot.lane.b32.xlu0 %v5543, 64
      %v5578 = vpop.permute.xlu0 %5577
      %5579 = vrot.lane.b32.xlu0 %v5546, 64
      %v5580 = vpop.permute.xlu0 %5579
      %5581 = vrot.lane.b32.xlu0 %v5549, 64
      %v5582 = vpop.permute.xlu0 %5581
      %5583 = vrot.lane.b32.xlu0 %v5552, 64
      %v5584 = vpop.permute.xlu0 %5583
      %vm5601 = vcmask 589312
      %5602 = vst.msk [vmem:[#allocation5] sm:$0xff] %vm5601, %v5554
      %5603 = vst.msk [vmem:[#allocation5 + $0x8] sm:$0xff] %vm5601, %v5556
      %5604 = vst.msk [vmem:[#allocation5 + $0x10] sm:$0xff] %vm5601, %v5558
      %5605 = vst.msk [vmem:[#allocation5 + $0x18] sm:$0xff] %vm5601, %v5560
      %5606 = vst.msk [vmem:[#allocation5 + $0x20] sm:$0xff] %vm5601, %v5562
      %5607 = vst.msk [vmem:[#allocation5 + $0x28] sm:$0xff] %vm5601, %v5564
      %5608 = vst.msk [vmem:[#allocation5 + $0x30] sm:$0xff] %vm5601, %v5566
      %5609 = vst.msk [vmem:[#allocation5 + $0x38] sm:$0xff] %vm5601, %v5568
      %5610 = vst.msk [vmem:[#allocation5 + $0x40] sm:$0xff] %vm5601, %v5570
      %5611 = vst.msk [vmem:[#allocation5 + $0x48] sm:$0xff] %vm5601, %v5572
      %5612 = vst.msk [vmem:[#allocation5 + $0x50] sm:$0xff] %vm5601, %v5574
      %5613 = vst.msk [vmem:[#allocation5 + $0x58] sm:$0xff] %vm5601, %v5576
      %5614 = vst.msk [vmem:[#allocation5 + $0x60] sm:$0xff] %vm5601, %v5578
      %5615 = vst.msk [vmem:[#allocation5 + $0x68] sm:$0xff] %vm5601, %v5580
      %5616 = vst.msk [vmem:[#allocation5 + $0x70] sm:$0xff] %vm5601, %v5582
      %5617 = vst.msk [vmem:[#allocation5 + $0x78] sm:$0xff] %vm5601, %v5584
      %v5618 = vld [vmem:[#allocation5] sm:$0xff]
      %v5619 = vld [vmem:[#allocation5 + $0x8] sm:$0xff]
      %v5620 = vld [vmem:[#allocation5 + $0x10] sm:$0xff]
      %v5621 = vld [vmem:[#allocation5 + $0x18] sm:$0xff]
      %v5622 = vld [vmem:[#allocation5 + $0x20] sm:$0xff]
      %v5623 = vld [vmem:[#allocation5 + $0x28] sm:$0xff]
      %v5624 = vld [vmem:[#allocation5 + $0x30] sm:$0xff]
      %v5625 = vld [vmem:[#allocation5 + $0x38] sm:$0xff]
      %v5626 = vld [vmem:[#allocation5 + $0x40] sm:$0xff]
      %v5627 = vld [vmem:[#allocation5 + $0x48] sm:$0xff]
      %v5628 = vld [vmem:[#allocation5 + $0x50] sm:$0xff]
      %v5629 = vld [vmem:[#allocation5 + $0x58] sm:$0xff]
      %v5630 = vld [vmem:[#allocation5 + $0x60] sm:$0xff]
      %v5631 = vld [vmem:[#allocation5 + $0x68] sm:$0xff]
      %v5632 = vld [vmem:[#allocation5 + $0x70] sm:$0xff]
      %v5633 = vld [vmem:[#allocation5 + $0x78] sm:$0xff]
      %v5634 = vld [vmem:[%s3] sm:$0xf]
      %v5635 = vld [vmem:[%s3 + $0x4] sm:$0xf]
      %v5636 = vld [vmem:[%s3 + $0x8] sm:$0xf]
      %v5637 = vld [vmem:[%s3 + $0xc] sm:$0xf]
      %v5638 = vld [vmem:[%s3 + $0x10] sm:$0xf]
      %v5639 = vld [vmem:[%s3 + $0x14] sm:$0xf]
      %v5640 = vld [vmem:[%s3 + $0x18] sm:$0xf]
      %v5641 = vld [vmem:[%s3 + $0x1c] sm:$0xf]
      %v5642 = vld [vmem:[%s3 + $0x20] sm:$0xf]
      %v5643 = vld [vmem:[%s4] sm:$0x1]
      %v5645 = vlaneseq
      %v5646 = vshrl.u32 %v5645, 7
      %v5647 = vsub.s32 0, %v5646
      %v5648 = vrot.slane %v5643, %v5647
      %v5659 = vunpack.c.l.b16 %v5634
      %v5660 = vunpack.c.l.b16 %v5635
      %v5661 = vunpack.c.l.b16 %v5636
      %v5662 = vunpack.c.l.b16 %v5637
      %v5663 = vunpack.c.l.b16 %v5638
      %v5664 = vunpack.c.l.b16 %v5639
      %v5665 = vunpack.c.l.b16 %v5640
      %v5666 = vunpack.c.l.b16 %v5641
      %v5667 = vunpack.c.l.b16 %v5642
      %v5668 = vpack.c.b16 %v5660, %v5659
      %v5669 = vpack.c.b16 %v5662, %v5661
      %v5670 = vpack.c.b16 %v5664, %v5663
      %v5671 = vpack.c.b16 %v5666, %v5665
      %v5672 = vpack.c.b16 %v5667, %v5667
      %vm5677 = vcmask 588800
      %v5679 = vsel %vm5677, %v5618, 0
      %v5682 = vsel %vm5677, %v5619, 0
      %v5685 = vsel %vm5677, %v5620, 0
      %v5688 = vsel %vm5677, %v5621, 0
      %v5691 = vsel %vm5677, %v5622, 0
      %v5694 = vsel %vm5677, %v5623, 0
      %v5697 = vsel %vm5677, %v5624, 0
      %v5700 = vsel %vm5677, %v5625, 0
      %v5703 = vsel %vm5677, %v5626, 0
      %v5706 = vsel %vm5677, %v5627, 0
      %v5709 = vsel %vm5677, %v5628, 0
      %v5712 = vsel %vm5677, %v5629, 0
      %v5715 = vsel %vm5677, %v5630, 0
      %v5718 = vsel %vm5677, %v5631, 0
      %v5721 = vsel %vm5677, %v5632, 0
      %v5724 = vsel %vm5677, %v5633, 0
      %vm5726 = vcmask 1043456
      %v5728 = vsel %vm5726, %v5672, 0
      %5730 = vmatprep.subr.bf16.mxu0 0
      %5731 = vmatpush1.bf16.msra.mxu0 %v5668
      %5732 = vmatprep.subr.bf16.mxu0 0
      %5733 = vmatpush1.bf16.msra.mxu0 %v5669
      %5734 = vmatprep.subr.bf16.mxu0 0
      %5735 = vmatpush1.bf16.msra.mxu0 %v5670
      %5736 = vmatprep.subr.bf16.mxu0 0
      %5737 = vmatpush1.bf16.msra.mxu0 %v5671
      %5738 = vmatprep.subr.bf16.mxu0 0
      %5739 = vmatpush1.bf16.msra.mxu0 %v5728
      %5740 = vmatprep.subr.bf16.mxu0 0
      %5741 = vmatpush1.bf16.msra.mxu0 0
      %5742 = vmatprep.subr.bf16.mxu0 0
      %5743 = vmatpush1.bf16.msra.mxu0 0
      %5744 = vmatprep.subr.bf16.mxu0 0
      %5745 = vmatpush1.bf16.msra.mxu0 0
      %5746 = vmatprep.subr.bf16.mxu0 0
      %5747 = vmatpush1.bf16.msra.mxu0 0
      %5748 = vmatprep.subr.bf16.mxu0 0
      %5749 = vmatpush1.bf16.msra.mxu0 0
      %5750 = vmatprep.subr.bf16.mxu0 0
      %5751 = vmatpush1.bf16.msra.mxu0 0
      %5752 = vmatprep.subr.bf16.mxu0 0
      %5753 = vmatpush1.bf16.msra.mxu0 0
      %5754 = vmatprep.subr.bf16.mxu0 0
      %5755 = vmatpush1.bf16.msra.mxu0 0
      %5756 = vmatprep.subr.bf16.mxu0 0
      %5757 = vmatpush1.bf16.msra.mxu0 0
      %5758 = vmatprep.subr.bf16.mxu0 0
      %5759 = vmatpush1.bf16.msra.mxu0 0
      %5760 = vmatprep.subr.bf16.mxu0 0
      %5761 = vmatpush1.bf16.msra.mxu0 0
      %5762 = vmatprep.mubr.bf16.mxu0 0
      %5763 = vmatmul.mubr.bf16.gmra.mrb[0].mxu0 %v5679
      %v5764 = vpop.f32.mrb[0].mxu0
      %v5765 = vadd.f32 %v5648, %v5764
      %v5766 = vpop.f32.mrb[0].mxu0
      %v5767 = vpop.f32.mrb[0].mxu0
      %v5768 = vadd.f32 %v5648, %v5767
      %v5769 = vpop.f32.mrb[0].mxu0
      %5770 = vmatprep.mubr.bf16.mxu0 0
      %5771 = vmatmul.mubr.bf16.gmra.mrb[0].mxu0 %v5682
      %v5772 = vpop.f32.mrb[0].mxu0
      %v5773 = vadd.f32 %v5648, %v5772
      %v5774 = vpop.f32.mrb[0].mxu0
      %v5775 = vpop.f32.mrb[0].mxu0
      %v5776 = vadd.f32 %v5648, %v5775
      %v5777 = vpop.f32.mrb[0].mxu0
      %5778 = vmatprep.mubr.bf16.mxu0 0
      %5779 = vmatmul.mubr.bf16.gmra.mrb[0].mxu0 %v5685
      %v5780 = vpop.f32.mrb[0].mxu0
      %v5781 = vadd.f32 %v5648, %v5780
      %v5782 = vpop.f32.mrb[0].mxu0
      %v5783 = vpop.f32.mrb[0].mxu0
      %v5784 = vadd.f32 %v5648, %v5783
      %v5785 = vpop.f32.mrb[0].mxu0
      %5786 = vmatprep.mubr.bf16.mxu0 0
      %5787 = vmatmul.mubr.bf16.gmra.mrb[0].mxu0 %v5688
      %v5788 = vpop.f32.mrb[0].mxu0
      %v5789 = vadd.f32 %v5648, %v5788
      %v5790 = vpop.f32.mrb[0].mxu0
      %v5791 = vpop.f32.mrb[0].mxu0
      %v5792 = vadd.f32 %v5648, %v5791
      %v5793 = vpop.f32.mrb[0].mxu0
      %5794 = vmatprep.mubr.bf16.mxu0 0
      %5795 = vmatmul.mubr.bf16.gmra.mrb[0].mxu0 %v5691
      %v5796 = vpop.f32.mrb[0].mxu0
      %v5797 = vadd.f32 %v5648, %v5796
      %v5798 = vpop.f32.mrb[0].mxu0
      %v5799 = vpop.f32.mrb[0].mxu0
      %v5800 = vadd.f32 %v5648, %v5799
      %v5801 = vpop.f32.mrb[0].mxu0
      %5802 = vmatprep.mubr.bf16.mxu0 0
      %5803 = vmatmul.mubr.bf16.gmra.mrb[0].mxu0 %v5694
      %v5804 = vpop.f32.mrb[0].mxu0
      %v5805 = vadd.f32 %v5648, %v5804
      %v5806 = vpop.f32.mrb[0].mxu0
      %v5807 = vpop.f32.mrb[0].mxu0
      %v5808 = vadd.f32 %v5648, %v5807
      %v5809 = vpop.f32.mrb[0].mxu0
      %5810 = vmatprep.mubr.bf16.mxu0 0
      %5811 = vmatmul.mubr.bf16.gmra.mrb[0].mxu0 %v5697
      %v5812 = vpop.f32.mrb[0].mxu0
      %v5813 = vadd.f32 %v5648, %v5812
      %v5814 = vpop.f32.mrb[0].mxu0
      %v5815 = vpop.f32.mrb[0].mxu0
      %v5816 = vadd.f32 %v5648, %v5815
      %v5817 = vpop.f32.mrb[0].mxu0
      %5818 = vmatprep.mubr.bf16.mxu0 0
      %5819 = vmatmul.mubr.bf16.gmra.mrb[0].mxu0 %v5700
      %v5820 = vpop.f32.mrb[0].mxu0
      %v5821 = vadd.f32 %v5648, %v5820
      %v5822 = vpop.f32.mrb[0].mxu0
      %v5823 = vpop.f32.mrb[0].mxu0
      %v5824 = vadd.f32 %v5648, %v5823
      %v5825 = vpop.f32.mrb[0].mxu0
      %5826 = vmatprep.mubr.bf16.mxu0 0
      %5827 = vmatmul.mubr.bf16.gmra.mrb[0].mxu0 %v5703
      %v5828 = vpop.f32.mrb[0].mxu0
      %v5829 = vadd.f32 %v5648, %v5828
      %v5830 = vpop.f32.mrb[0].mxu0
      %v5831 = vpop.f32.mrb[0].mxu0
      %v5832 = vadd.f32 %v5648, %v5831
      %v5833 = vpop.f32.mrb[0].mxu0
      %5834 = vmatprep.mubr.bf16.mxu0 0
      %5835 = vmatmul.mubr.bf16.gmra.mrb[0].mxu0 %v5706
      %v5836 = vpop.f32.mrb[0].mxu0
      %v5837 = vadd.f32 %v5648, %v5836
      %v5838 = vpop.f32.mrb[0].mxu0
      %v5839 = vpop.f32.mrb[0].mxu0
      %v5840 = vadd.f32 %v5648, %v5839
      %v5841 = vpop.f32.mrb[0].mxu0
      %5842 = vmatprep.mubr.bf16.mxu0 0
      %5843 = vmatmul.mubr.bf16.gmra.mrb[0].mxu0 %v5709
      %v5844 = vpop.f32.mrb[0].mxu0
      %v5845 = vadd.f32 %v5648, %v5844
      %v5846 = vpop.f32.mrb[0].mxu0
      %v5847 = vpop.f32.mrb[0].mxu0
      %v5848 = vadd.f32 %v5648, %v5847
      %v5849 = vpop.f32.mrb[0].mxu0
      %5850 = vmatprep.mubr.bf16.mxu0 0
      %5851 = vmatmul.mubr.bf16.gmra.mrb[0].mxu0 %v5712
      %v5852 = vpop.f32.mrb[0].mxu0
      %v5853 = vadd.f32 %v5648, %v5852
      %v5854 = vpop.f32.mrb[0].mxu0
      %v5855 = vpop.f32.mrb[0].mxu0
      %v5856 = vadd.f32 %v5648, %v5855
      %v5857 = vpop.f32.mrb[0].mxu0
      %5858 = vmatprep.mubr.bf16.mxu0 0
      %5859 = vmatmul.mubr.bf16.gmra.mrb[0].mxu0 %v5715
      %v5860 = vpop.f32.mrb[0].mxu0
      %v5861 = vadd.f32 %v5648, %v5860
      %v5862 = vpop.f32.mrb[0].mxu0
      %v5863 = vpop.f32.mrb[0].mxu0
      %v5864 = vadd.f32 %v5648, %v5863
      %v5865 = vpop.f32.mrb[0].mxu0
      %5866 = vmatprep.mubr.bf16.mxu0 0
      %5867 = vmatmul.mubr.bf16.gmra.mrb[0].mxu0 %v5718
      %v5868 = vpop.f32.mrb[0].mxu0
      %v5869 = vadd.f32 %v5648, %v5868
      %v5870 = vpop.f32.mrb[0].mxu0
      %v5871 = vpop.f32.mrb[0].mxu0
      %v5872 = vadd.f32 %v5648, %v5871
      %v5873 = vpop.f32.mrb[0].mxu0
      %5874 = vmatprep.mubr.bf16.mxu0 0
      %5875 = vmatmul.mubr.bf16.gmra.mrb[0].mxu0 %v5721
      %v5876 = vpop.f32.mrb[0].mxu0
      %v5877 = vadd.f32 %v5648, %v5876
      %v5878 = vpop.f32.mrb[0].mxu0
      %v5879 = vpop.f32.mrb[0].mxu0
      %v5880 = vadd.f32 %v5648, %v5879
      %v5881 = vpop.f32.mrb[0].mxu0
      %5882 = vmatprep.mubr.bf16.mxu0 0
      %5883 = vmatmul.mubr.bf16.gmra.mrb[0].mxu0 %v5724
      %v5884 = vpop.f32.mrb[0].mxu0
      %v5885 = vadd.f32 %v5648, %v5884
      %v5886 = vpop.f32.mrb[0].mxu0
      %v5887 = vpop.f32.mrb[0].mxu0
      %v5888 = vadd.f32 %v5648, %v5887
      %v5889 = vpop.f32.mrb[0].mxu0
      %5890 = vdwg.mxu0
      %v5891 = vmax.f32 %v5765, 0.0
      %v5892 = vmax.f32 %v5768, 0.0
      %v5893 = vmax.f32 %v5773, 0.0
      %v5894 = vmax.f32 %v5776, 0.0
      %v5895 = vmax.f32 %v5781, 0.0
      %v5896 = vmax.f32 %v5784, 0.0
      %v5897 = vmax.f32 %v5789, 0.0
      %v5898 = vmax.f32 %v5792, 0.0
      %v5899 = vmax.f32 %v5797, 0.0
      %v5900 = vmax.f32 %v5800, 0.0
      %v5901 = vmax.f32 %v5805, 0.0
      %v5902 = vmax.f32 %v5808, 0.0
      %v5903 = vmax.f32 %v5813, 0.0
      %v5904 = vmax.f32 %v5816, 0.0
      %v5905 = vmax.f32 %v5821, 0.0
      %v5906 = vmax.f32 %v5824, 0.0
      %v5907 = vmax.f32 %v5829, 0.0
      %v5908 = vmax.f32 %v5832, 0.0
      %v5909 = vmax.f32 %v5837, 0.0
      %v5910 = vmax.f32 %v5840, 0.0
      %v5911 = vmax.f32 %v5845, 0.0
      %v5912 = vmax.f32 %v5848, 0.0
      %v5913 = vmax.f32 %v5853, 0.0
      %v5914 = vmax.f32 %v5856, 0.0
      %v5915 = vmax.f32 %v5861, 0.0
      %v5916 = vmax.f32 %v5864, 0.0
      %v5917 = vmax.f32 %v5869, 0.0
      %v5918 = vmax.f32 %v5872, 0.0
      %v5919 = vmax.f32 %v5877, 0.0
      %v5920 = vmax.f32 %v5880, 0.0
      %v5921 = vmax.f32 %v5885, 0.0
      %v5922 = vmax.f32 %v5888, 0.0
      %5923 = vst.msk [vmem:[%s224] sm:$0xff] %vm3512, %v5891
      %5924 = vst.msk [vmem:[%s224 + $0x8] sm:$0xff] %vm3512, %v5892
      %5925 = vst.msk [vmem:[%s224 + $0x10] sm:$0xff] %vm3512, %v5893
      %5926 = vst.msk [vmem:[%s224 + $0x18] sm:$0xff] %vm3512, %v5894
      %5927 = vst.msk [vmem:[%s224 + $0x20] sm:$0xff] %vm3512, %v5895
      %5928 = vst.msk [vmem:[%s224 + $0x28] sm:$0xff] %vm3512, %v5896
      %5929 = vst.msk [vmem:[%s224 + $0x30] sm:$0xff] %vm3512, %v5897
      %5930 = vst.msk [vmem:[%s224 + $0x38] sm:$0xff] %vm3512, %v5898
      %5931 = vst.msk [vmem:[%s224 + $0x40] sm:$0xff] %vm3512, %v5899
      %5932 = vst.msk [vmem:[%s224 + $0x48] sm:$0xff] %vm3512, %v5900
      %5933 = vst.msk [vmem:[%s224 + $0x50] sm:$0xff] %vm3512, %v5901
      %5934 = vst.msk [vmem:[%s224 + $0x58] sm:$0xff] %vm3512, %v5902
      %5935 = vst.msk [vmem:[%s224 + $0x60] sm:$0xff] %vm3512, %v5903
      %5936 = vst.msk [vmem:[%s224 + $0x68] sm:$0xff] %vm3512, %v5904
      %5937 = vst.msk [vmem:[%s224 + $0x70] sm:$0xff] %vm3512, %v5905
      %5938 = vst.msk [vmem:[%s224 + $0x78] sm:$0xff] %vm3512, %v5906
      %5939 = vst.msk [vmem:[%s224 + $0x80] sm:$0xff] %vm3512, %v5907
      %5940 = vst.msk [vmem:[%s224 + $0x88] sm:$0xff] %vm3512, %v5908
      %5941 = vst.msk [vmem:[%s224 + $0x90] sm:$0xff] %vm3512, %v5909
      %5942 = vst.msk [vmem:[%s224 + $0x98] sm:$0xff] %vm3512, %v5910
      %5943 = vst.msk [vmem:[%s224 + $0xa0] sm:$0xff] %vm3512, %v5911
      %5944 = vst.msk [vmem:[%s224 + $0xa8] sm:$0xff] %vm3512, %v5912
      %5945 = vst.msk [vmem:[%s224 + $0xb0] sm:$0xff] %vm3512, %v5913
      %5946 = vst.msk [vmem:[%s224 + $0xb8] sm:$0xff] %vm3512, %v5914
      %5947 = vst.msk [vmem:[%s224 + $0xc0] sm:$0xff] %vm3512, %v5915
      %5948 = vst.msk [vmem:[%s224 + $0xc8] sm:$0xff] %vm3512, %v5916
      %5949 = vst.msk [vmem:[%s224 + $0xd0] sm:$0xff] %vm3512, %v5917
      %5950 = vst.msk [vmem:[%s224 + $0xd8] sm:$0xff] %vm3512, %v5918
      %5951 = vst.msk [vmem:[%s224 + $0xe0] sm:$0xff] %vm3512, %v5919
      %5952 = vst.msk [vmem:[%s224 + $0xe8] sm:$0xff] %vm3512, %v5920
      %5953 = vst.msk [vmem:[%s224 + $0xf0] sm:$0xff] %vm3512, %v5921
      %5954 = vst.msk [vmem:[%s224 + $0xf8] sm:$0xff] %vm3512, %v5922
      %p5955 = scmp.lt.s32.totalorder %s16, 1
      %s5956 = scalar_select %p5955, %s16, 1
      %s5957 = smul.addr %s5956, 32
      %s5958 = smul.addr %s5957, 8
      %s5959 = scalar_lea.vmem %s5, %s5958
      // Predicated region
      $region41: #{_double_conv_impl.1} parent=39 // pred_check
        %p5960 = pneg %p144
      $region42: #{_double_conv_impl.1} parent=39 // pred_check_branch
        %5962 = sbr.rel (%p5960) target = $region44
      $region43: #{_double_conv_impl.1} parent=39 // pred_region
        _
      $region44: #{_double_conv_impl.1} parent=39 // pred_fallthru
        _
    $region40: #{_double_conv_impl.1} parent=5 // pred_fallthru
      _
    %p5963 = scmp.le.s32.totalorder 2, %s11
    // Predicated region
    $region45: #{_double_conv_impl.1} parent=5 // pred_check
      %p5964 = pneg %p5963
    $region46: #{_double_conv_impl.1} parent=5 // pred_check_branch
      %5966 = sbr.rel (%p5964) target = $region48
    $region47: #{_double_conv_impl.1} parent=5 // pred_region
      %s5967 = ssub.s32 %s11, 2
      // Predicated region
      $region49: #{_double_conv_impl.1} parent=47 // pred_check
        %p5968 = pneg %p150
      $region50: #{_double_conv_impl.1} parent=47 // pred_check_branch
        %5970 = sbr.rel (%p5968) target = $region52
      $region51: #{_double_conv_impl.1} parent=47 // pred_region
        %p5971 = scmp.lt.s32.totalorder %s17, 1
        %s5972 = scalar_select %p5971, %s17, 1
        %s5973 = smul.addr %s5972, 32
        %s5974 = smul.addr %s5973, 8
        %s5975 = scalar_lea.vmem %s5, %s5974
      $region52: #{_double_conv_impl.1} parent=47 // pred_fallthru
        _
    $region48: #{_double_conv_impl.1} parent=5 // pred_fallthru
      _
  $region6: #{_double_conv_impl.1} parent=0 // loop_footer
    %s15 = sadd.s32 1, %s11
  $region7: #{_double_conv_impl.1} parent=0 // loop_footer_branch
    %10 = sbr.rel target = $region3
  $region8: #{_double_conv_impl.1} parent=0 // loop_exit
    _

</llo_original>
